<compile_context>
chip_gen: v7x
topology: tpu7x:2x2x1
jax: 0.10.0
libtpu: 0.0.40
codegen_flags: <defaults>
</compile_context>

<pallas_src>
import math
import functools

import jax
import jax.numpy as jnp
from jax.experimental import pallas as pl
from jax.experimental.pallas import tpu as pltpu

LN_EPS = 1e-5  # PyTorch nn.LayerNorm default eps


def _layer_norm(x, gamma, beta):
    # x: (M, D) f32, gamma/beta: (1, D) f32
    mean = jnp.mean(x, axis=-1, keepdims=True)
    diff = x - mean
    var = jnp.mean(diff * diff, axis=-1, keepdims=True)
    return diff * jax.lax.rsqrt(var + LN_EPS) * gamma + beta


# ---------------------------------------------------------------------------
# Fused ConvLayer kernel: one grid step = one batch element, full chain.
# ---------------------------------------------------------------------------
def _conv_layer_kernel(x_ref, z_ref, mask_ref, topic_ref,
                       a_lng, a_lnb, a_wq, a_wk, a_wv, a_wo, a_bo,
                       f_lng, f_lnb, f_w1, f_b1, f_w2, f_b2,
                       o_ref, *, n_heads, use_mid_layer):
    f32 = jnp.float32
    bf16 = jnp.bfloat16

    x = x_ref[0].astype(f32)          # (N, D)   source items
    z = z_ref[0].astype(f32)          # (Mz, D)  target items
    mask_x = mask_ref[0]              # (1, N)   1.0 keep / 0.0 mask
    y = topic_ref[...].astype(f32)    # (T, D)   topic nodes

    def mha_residual(stage, q_in, kv_raw, mask):
        # Connector:  q_in + MHA(LN(q_in), kv, kv, mask)   (dropout = identity)
        q_ln = _layer_norm(q_in, a_lng[stage], a_lnb[stage])
        kv = q_ln if kv_raw is None else kv_raw   # self-attn: k = v = LN(q_in)
        qb = q_ln.astype(bf16)
        kvb = kv.astype(bf16)
        acc = jnp.zeros(q_in.shape, f32)          # (M, D) attention output accum
        for h in range(n_heads):                  # static, unrolled
            w = stage * n_heads + h
            # Per-head projections: K = D (full contraction), no lane slicing.
            qh = jnp.dot(qb, a_wq[w], preferred_element_type=f32)    # (M, hd)
            kh = jnp.dot(kvb, a_wk[w], preferred_element_type=f32)   # (Nk, hd)
            vh = jnp.dot(kvb, a_wv[w], preferred_element_type=f32)   # (Nk, hd)
            # 1/sqrt(hd) is already folded into Wq host-side.
            s = jnp.dot(qh.astype(bf16), kh.astype(bf16).T,
                        preferred_element_type=f32)                  # (M, Nk)
            if mask is not None:
                s = jnp.where(mask > 0.0, s, -1e9)   # masked_fill(mask==0, -1e9)
            s = s - jnp.max(s, axis=-1, keepdims=True)
            p = jnp.exp(s)
            p = p * pl.reciprocal(jnp.sum(p, axis=-1, keepdims=True), approx=True)
            ctx = jnp.dot(p.astype(bf16), vh.astype(bf16),
                          preferred_element_type=f32)                # (M, hd)
            # Output projection accumulated per head (no concat over heads).
            acc = acc + jnp.dot(ctx.astype(bf16), a_wo[w],
                                preferred_element_type=f32)          # (M, D)
        return q_in + acc + a_bo[stage]

    def fc_residual(stage, v):
        # PointWiseFC:  v + W2 @ relu(W1 @ LN(v) + b1) + b2
        h = _layer_norm(v, f_lng[stage], f_lnb[stage])
        h = jnp.dot(h.astype(bf16), f_w1[stage],
                    preferred_element_type=f32) + f_b1[stage]
        h = jnp.maximum(h, 0.0)
        h = jnp.dot(h.astype(bf16), f_w2[stage],
                    preferred_element_type=f32) + f_b2[stage]
        return v + h

    # Stage 0: y_hat = y_fc(y_connector(y, x2y(., x, x, mask)))
    y_hat = fc_residual(0, mha_residual(0, y, x, mask_x))
    stage = 1
    if use_mid_layer:
        # Stage 1: y_hat = mid_fc(mid_connector(y_hat, y2y(., ., .)))
        y_hat = fc_residual(1, mha_residual(1, y_hat, None, None))
        stage = 2
    # Last stage: z_hat = z_fc(z_connector(z, y2z(., y_hat, y_hat)))
    z_hat = fc_residual(stage, mha_residual(stage, z, y_hat, None))
    o_ref[0] = z_hat.astype(o_ref.dtype)


def conv_layer_forward(params, x, z, mask=None, *, n_heads, use_mid_layer):
    bs, n_src, d = x.shape
    n_tgt = z.shape[1]
    topic = params["topic_nodes"]
    n_topics = topic.shape[0]
    mha = params["mha"]
    fc = params["fc"]
    n_stages = mha["bo"].shape[0]
    assert n_stages == (3 if use_mid_layer else 2)
    hd = d // n_heads
    sh = n_stages * n_heads

    if mask is None:
        mask_x = jnp.ones((bs, 1, n_src), jnp.float32)
    else:
        mask_x = mask.reshape(bs, 1, n_src).astype(jnp.float32)

    kernel = functools.partial(_conv_layer_kernel, n_heads=n_heads,
                               use_mid_layer=use_mid_layer)
    rep2 = lambda b: (0, 0)
    rep3 = lambda b: (0, 0, 0)

    return pl.pallas_call(
        kernel,
        out_shape=jax.ShapeDtypeStruct((bs, n_tgt, d), z.dtype),
        grid=(bs,),
        in_specs=[
            pl.BlockSpec((1, n_src, d), lambda b: (b, 0, 0)),   # x
            pl.BlockSpec((1, n_tgt, d), lambda b: (b, 0, 0)),   # z
            pl.BlockSpec((1, 1, n_src), lambda b: (b, 0, 0)),   # mask over x
            pl.BlockSpec((n_topics, d), rep2),                  # topic nodes
            pl.BlockSpec((n_stages, 1, d), rep3),               # MHA ln gamma
            pl.BlockSpec((n_stages, 1, d), rep3),               # MHA ln beta
            pl.BlockSpec((sh, d, hd), rep3),                    # Wq (per head, scale folded)
            pl.BlockSpec((sh, d, hd), rep3),                    # Wk (per head)
            pl.BlockSpec((sh, d, hd), rep3),                    # Wv (per head)
            pl.BlockSpec((sh, hd, d), rep3),                    # Wo (per head)
            pl.BlockSpec((n_stages, 1, d), rep3),               # bo
            pl.BlockSpec((n_stages, 1, d), rep3),               # FC ln gamma
            pl.BlockSpec((n_stages, 1, d), rep3),               # FC ln beta
            pl.BlockSpec((n_stages, d, d), rep3),               # W1
            pl.BlockSpec((n_stages, 1, d), rep3),               # b1
            pl.BlockSpec((n_stages, d, d), rep3),               # W2
            pl.BlockSpec((n_stages, 1, d), rep3),               # b2
        ],
        out_specs=pl.BlockSpec((1, n_tgt, d), lambda b: (b, 0, 0)),
        compiler_params=pltpu.CompilerParams(
            dimension_semantics=("parallel",)),
    )(x, z, mask_x, topic,
      mha["ln_g"], mha["ln_b"], mha["wq"], mha["wk"], mha["wv"],
      mha["wo"], mha["bo"],
      fc["ln_g"], fc["ln_b"], fc["w1"], fc["b1"], fc["w2"], fc["b2"])


# ---------------------------------------------------------------------------
# Deterministic parameter initialization (shapes from the module __init__),
# stored in the kernel-friendly layout described above.
# ---------------------------------------------------------------------------
def _uniform(key, shape, bound):
    return jax.random.uniform(key, shape, jnp.float32, -bound, bound)


def _init_mha(key, d, n_heads):
    hd = d // n_heads
    ks = jax.random.split(key, 5)
    s = 1.0 / math.sqrt(d)
    # nn.Linear(d, d, bias=False) x3 for q/k/v; nn.Linear(d, d) for output proj.
    wq = _uniform(ks[0], (d, d), s) * (1.0 / math.sqrt(hd))   # fold softmax scale
    wk = _uniform(ks[1], (d, d), s)
    wv = _uniform(ks[2], (d, d), s)
    wo = _uniform(ks[3], (d, d), s)
    bo = _uniform(ks[4], (1, d), s)
    # Per-head layouts: input-proj (H, D, hd); output-proj (H, hd, D).
    per_head_in = lambda w: jnp.transpose(w.reshape(d, n_heads, hd), (1, 0, 2))
    return dict(
        ln_g=jnp.ones((1, d), jnp.float32),
        ln_b=jnp.zeros((1, d), jnp.float32),
        wq=per_head_in(wq).astype(jnp.bfloat16),
        wk=per_head_in(wk).astype(jnp.bfloat16),
        wv=per_head_in(wv).astype(jnp.bfloat16),
        wo=wo.reshape(n_heads, hd, d).astype(jnp.bfloat16),
        bo=bo,
    )


def _init_fc(key, d):
    ks = jax.random.split(key, 4)
    s = 1.0 / math.sqrt(d)
    return dict(
        ln_g=jnp.ones((1, d), jnp.float32),
        ln_b=jnp.zeros((1, d), jnp.float32),
        w1=_uniform(ks[0], (d, d), s).astype(jnp.bfloat16),
        b1=_uniform(ks[1], (1, d), s),
        w2=_uniform(ks[2], (d, d), s).astype(jnp.bfloat16),
        b2=_uniform(ks[3], (1, d), s),
    )


def init_conv_layer_params(key, input_size, n_topics, n_heads, use_mid_layer):
    keys = jax.random.split(key, 7)
    # Stage order matches kernel indexing: [x2y, (y2y), y2z] / [y_fc, (mid_fc), z_fc]
    mha_stages = [_init_mha(keys[1], input_size, n_heads)]
    fc_stages = [_init_fc(keys[2], input_size)]
    if use_mid_layer:
        mha_stages.append(_init_mha(keys[5], input_size, n_heads))
        fc_stages.append(_init_fc(keys[6], input_size))
    mha_stages.append(_init_mha(keys[3], input_size, n_heads))
    fc_stages.append(_init_fc(keys[4], input_size))

    def stack(stages, cat_keys=()):
        out = {}
        for k in stages[0]:
            if k in cat_keys:   # per-head weights: concat heads across stages
                out[k] = jnp.concatenate([st[k] for st in stages], axis=0)
            else:
                out[k] = jnp.stack([st[k] for st in stages], axis=0)
        return out

    return dict(
        # trunc_normal_(mean=0, std=0.01)
        topic_nodes=0.01 * jax.random.truncated_normal(
            keys[0], -2.0, 2.0, (n_topics, input_size), jnp.float32),
        mha=stack(mha_stages, cat_keys=("wq", "wk", "wv", "wo")),
        fc=stack(fc_stages),
    )


if __name__ == "__main__":
    key = jax.random.PRNGKey(0)
    k_param, k_x, k_z = jax.random.split(key, 3)

    # d_model = 128 keeps every activation / output block lane-dense.
    bs, n_src, n_tgt, d_model, n_topics, n_heads = 2, 8, 8, 128, 8, 4
    use_mid_layer = True

    params = init_conv_layer_params(k_param, d_model, n_topics, n_heads,
                                    use_mid_layer)

    x = jax.random.normal(k_x, (bs, n_src, d_model), jnp.float32)
    z = jax.random.normal(k_z, (bs, n_tgt, d_model), jnp.float32)
    lengths = jnp.array([8, 5])
    mask = (jnp.arange(n_src)[None, :] < lengths[:, None]).astype(jnp.float32)

    fwd = jax.jit(functools.partial(conv_layer_forward, n_heads=n_heads,
                                    use_mid_layer=use_mid_layer))
    out = fwd(params, x, z, mask)
    out = jax.block_until_ready(out)
    assert out.shape == (bs, n_tgt, d_model)
    assert bool(jnp.all(jnp.isfinite(out)))
    print("KERNEL_OK")
</pallas_src>

<mosaic_0001>
module attributes {stable_mosaic.version = 11 : i64} {
  func.func @_conv_layer_kernel(%arg0: i32, %arg1: memref<1x8x128xf32, #tpu.memory_space<vmem>>, %arg2: memref<1x8x128xf32, #tpu.memory_space<vmem>>, %arg3: memref<1x1x8xf32, #tpu.memory_space<vmem>>, %arg4: memref<8x128xf32, #tpu.memory_space<vmem>>, %arg5: memref<3x1x128xf32, #tpu.memory_space<vmem>>, %arg6: memref<3x1x128xf32, #tpu.memory_space<vmem>>, %arg7: memref<12x128x32xbf16, #tpu.memory_space<vmem>>, %arg8: memref<12x128x32xbf16, #tpu.memory_space<vmem>>, %arg9: memref<12x128x32xbf16, #tpu.memory_space<vmem>>, %arg10: memref<12x32x128xbf16, #tpu.memory_space<vmem>>, %arg11: memref<3x1x128xf32, #tpu.memory_space<vmem>>, %arg12: memref<3x1x128xf32, #tpu.memory_space<vmem>>, %arg13: memref<3x1x128xf32, #tpu.memory_space<vmem>>, %arg14: memref<3x128x128xbf16, #tpu.memory_space<vmem>>, %arg15: memref<3x1x128xf32, #tpu.memory_space<vmem>>, %arg16: memref<3x128x128xbf16, #tpu.memory_space<vmem>>, %arg17: memref<3x1x128xf32, #tpu.memory_space<vmem>>, %arg18: memref<1x8x128xf32, #tpu.memory_space<vmem>>) attributes {dimension_semantics = [#tpu.dimension_semantics<parallel>], iteration_bounds = array<i64: 2>, scalar_prefetch = 0 : i64, scratch_operands = 0 : i64, tpu.core_type = #tpu.core_type<tc>, window_params = [{transform_indices = @transform_0, window_bounds = array<i64: 1, 8, 128>}, {transform_indices = @transform_1, window_bounds = array<i64: 1, 8, 128>}, {transform_indices = @transform_2, window_bounds = array<i64: 1, 1, 8>}, {pipeline_mode = #tpu.pipeline_mode<synchronous>, transform_indices = @transform_3, window_bounds = array<i64: 8, 128>}, {pipeline_mode = #tpu.pipeline_mode<synchronous>, transform_indices = @transform_4, window_bounds = array<i64: 3, 1, 128>}, {pipeline_mode = #tpu.pipeline_mode<synchronous>, transform_indices = @transform_5, window_bounds = array<i64: 3, 1, 128>}, {pipeline_mode = #tpu.pipeline_mode<synchronous>, transform_indices = @transform_6, window_bounds = array<i64: 12, 128, 32>}, {pipeline_mode = #tpu.pipeline_mode<synchronous>, transform_indices = @transform_7, window_bounds = array<i64: 12, 128, 32>}, {pipeline_mode = #tpu.pipeline_mode<synchronous>, transform_indices = @transform_8, window_bounds = array<i64: 12, 128, 32>}, {pipeline_mode = #tpu.pipeline_mode<synchronous>, transform_indices = @transform_9, window_bounds = array<i64: 12, 32, 128>}, {pipeline_mode = #tpu.pipeline_mode<synchronous>, transform_indices = @transform_10, window_bounds = array<i64: 3, 1, 128>}, {pipeline_mode = #tpu.pipeline_mode<synchronous>, transform_indices = @transform_11, window_bounds = array<i64: 3, 1, 128>}, {pipeline_mode = #tpu.pipeline_mode<synchronous>, transform_indices = @transform_12, window_bounds = array<i64: 3, 1, 128>}, {pipeline_mode = #tpu.pipeline_mode<synchronous>, transform_indices = @transform_13, window_bounds = array<i64: 3, 128, 128>}, {pipeline_mode = #tpu.pipeline_mode<synchronous>, transform_indices = @transform_14, window_bounds = array<i64: 3, 1, 128>}, {pipeline_mode = #tpu.pipeline_mode<synchronous>, transform_indices = @transform_15, window_bounds = array<i64: 3, 128, 128>}, {pipeline_mode = #tpu.pipeline_mode<synchronous>, transform_indices = @transform_16, window_bounds = array<i64: 3, 1, 128>}, {transform_indices = @transform_17, window_bounds = array<i64: 1, 8, 128>}]} {
    %c0 = arith.constant 0 : index
    %c0_0 = arith.constant 0 : index
    %c0_1 = arith.constant 0 : index
    %0 = vector.load %arg1[%c0, %c0_0, %c0_1] : memref<1x8x128xf32, #tpu.memory_space<vmem>>, vector<1x8x128xf32>
    %1 = vector.shape_cast %0 : vector<1x8x128xf32> to vector<8x128xf32>
    %c0_2 = arith.constant 0 : index
    %c0_3 = arith.constant 0 : index
    %c0_4 = arith.constant 0 : index
    %2 = vector.load %arg2[%c0_2, %c0_3, %c0_4] : memref<1x8x128xf32, #tpu.memory_space<vmem>>, vector<1x8x128xf32>
    %3 = vector.shape_cast %2 : vector<1x8x128xf32> to vector<8x128xf32>
    %c0_5 = arith.constant 0 : index
    %c0_6 = arith.constant 0 : index
    %c0_7 = arith.constant 0 : index
    %4 = vector.load %arg3[%c0_5, %c0_6, %c0_7] : memref<1x1x8xf32, #tpu.memory_space<vmem>>, vector<1x1x8xf32>
    %5 = vector.shape_cast %4 : vector<1x1x8xf32> to vector<1x8xf32>
    %c0_8 = arith.constant 0 : index
    %c0_9 = arith.constant 0 : index
    %6 = vector.load %arg4[%c0_8, %c0_9] : memref<8x128xf32, #tpu.memory_space<vmem>>, vector<8x128xf32>
    %c0_10 = arith.constant 0 : index
    %c0_11 = arith.constant 0 : index
    %c0_12 = arith.constant 0 : index
    %7 = vector.load %arg5[%c0_10, %c0_11, %c0_12] : memref<3x1x128xf32, #tpu.memory_space<vmem>>, vector<1x1x128xf32>
    %8 = vector.shape_cast %7 : vector<1x1x128xf32> to vector<1x128xf32>
    %c0_13 = arith.constant 0 : index
    %c0_14 = arith.constant 0 : index
    %c0_15 = arith.constant 0 : index
    %9 = vector.load %arg6[%c0_13, %c0_14, %c0_15] : memref<3x1x128xf32, #tpu.memory_space<vmem>>, vector<1x1x128xf32>
    %10 = vector.shape_cast %9 : vector<1x1x128xf32> to vector<1x128xf32>
    %cst = arith.constant dense<0.000000e+00> : vector<8xf32>
    %11 = vector.multi_reduction <add>, %6, %cst [1] : vector<8x128xf32> to vector<8xf32>
    %12 = vector.shape_cast %11 : vector<8xf32> to vector<8x1xf32>
    %cst_16 = arith.constant 1.280000e+02 : f32
    %13 = vector.broadcast %cst_16 : f32 to vector<8x1xf32>
    %14 = arith.divf %12, %13 : vector<8x1xf32>
    %15 = vector.broadcast %14 : vector<8x1xf32> to vector<8x128xf32>
    %16 = arith.subf %6, %15 : vector<8x128xf32>
    %17 = arith.mulf %16, %16 : vector<8x128xf32>
    %cst_17 = arith.constant dense<0.000000e+00> : vector<8xf32>
    %18 = vector.multi_reduction <add>, %17, %cst_17 [1] : vector<8x128xf32> to vector<8xf32>
    %19 = vector.shape_cast %18 : vector<8xf32> to vector<8x1xf32>
    %cst_18 = arith.constant 1.280000e+02 : f32
    %20 = vector.broadcast %cst_18 : f32 to vector<8x1xf32>
    %21 = arith.divf %19, %20 : vector<8x1xf32>
    %cst_19 = arith.constant 9.99999974E-6 : f32
    %22 = vector.broadcast %cst_19 : f32 to vector<8x1xf32>
    %23 = arith.addf %21, %22 : vector<8x1xf32>
    %24 = math.rsqrt %23 : vector<8x1xf32>
    %25 = vector.broadcast %24 : vector<8x1xf32> to vector<8x128xf32>
    %26 = arith.mulf %16, %25 : vector<8x128xf32>
    %27 = vector.broadcast %8 : vector<1x128xf32> to vector<8x128xf32>
    %28 = arith.mulf %26, %27 : vector<8x128xf32>
    %29 = vector.broadcast %10 : vector<1x128xf32> to vector<8x128xf32>
    %30 = arith.addf %28, %29 : vector<8x128xf32>
    %31 = arith.truncf %30 : vector<8x128xf32> to vector<8x128xbf16>
    %32 = arith.truncf %1 : vector<8x128xf32> to vector<8x128xbf16>
    %cst_20 = arith.constant 0.000000e+00 : f32
    %33 = vector.broadcast %cst_20 : f32 to vector<8x128xf32>
    %c0_21 = arith.constant 0 : index
    %c0_22 = arith.constant 0 : index
    %c0_23 = arith.constant 0 : index
    %34 = vector.load %arg7[%c0_21, %c0_22, %c0_23] : memref<12x128x32xbf16, #tpu.memory_space<vmem>>, vector<1x128x32xbf16>
    %35 = vector.shape_cast %34 : vector<1x128x32xbf16> to vector<128x32xbf16>
    %cst_24 = arith.constant dense<0.000000e+00> : vector<8x32xf32>
    %36 = tpu.matmul %31, %35, %cst_24 {dimension_numbers = #tpu.dot_dimension_numbers<[1], [0], [0], [1], [0, 0, 1, 1], [], []>} : vector<8x128xbf16>, vector<128x32xbf16>, vector<8x32xf32> -> vector<8x32xf32>
    %c0_25 = arith.constant 0 : index
    %c0_26 = arith.constant 0 : index
    %c0_27 = arith.constant 0 : index
    %37 = vector.load %arg8[%c0_25, %c0_26, %c0_27] : memref<12x128x32xbf16, #tpu.memory_space<vmem>>, vector<1x128x32xbf16>
    %38 = vector.shape_cast %37 : vector<1x128x32xbf16> to vector<128x32xbf16>
    %cst_28 = arith.constant dense<0.000000e+00> : vector<8x32xf32>
    %39 = tpu.matmul %32, %38, %cst_28 {dimension_numbers = #tpu.dot_dimension_numbers<[1], [0], [0], [1], [0, 0, 1, 1], [], []>} : vector<8x128xbf16>, vector<128x32xbf16>, vector<8x32xf32> -> vector<8x32xf32>
    %c0_29 = arith.constant 0 : index
    %c0_30 = arith.constant 0 : index
    %c0_31 = arith.constant 0 : index
    %40 = vector.load %arg9[%c0_29, %c0_30, %c0_31] : memref<12x128x32xbf16, #tpu.memory_space<vmem>>, vector<1x128x32xbf16>
    %41 = vector.shape_cast %40 : vector<1x128x32xbf16> to vector<128x32xbf16>
    %cst_32 = arith.constant dense<0.000000e+00> : vector<8x32xf32>
    %42 = tpu.matmul %32, %41, %cst_32 {dimension_numbers = #tpu.dot_dimension_numbers<[1], [0], [0], [1], [0, 0, 1, 1], [], []>} : vector<8x128xbf16>, vector<128x32xbf16>, vector<8x32xf32> -> vector<8x32xf32>
    %43 = arith.truncf %36 : vector<8x32xf32> to vector<8x32xbf16>
    %44 = arith.truncf %39 : vector<8x32xf32> to vector<8x32xbf16>
    %45 = tpu.transpose %44, [1, 0] : vector<8x32xbf16> -> vector<32x8xbf16>
    %cst_33 = arith.constant dense<0.000000e+00> : vector<8x8xf32>
    %46 = tpu.matmul %43, %45, %cst_33 {dimension_numbers = #tpu.dot_dimension_numbers<[1], [0], [0], [1], [0, 0, 1, 1], [], []>} : vector<8x32xbf16>, vector<32x8xbf16>, vector<8x8xf32> -> vector<8x8xf32>
    %cst_34 = arith.constant 0.000000e+00 : f32
    %47 = vector.broadcast %cst_34 : f32 to vector<1x8xf32>
    %48 = arith.cmpf ogt, %5, %47 : vector<1x8xf32>
    %cst_35 = arith.constant -1.000000e+09 : f32
    %49 = vector.shape_cast %48 : vector<1x8xi1> to vector<1x8xi1>
    %50 = vector.broadcast %49 : vector<1x8xi1> to vector<8x8xi1>
    %51 = vector.broadcast %cst_35 : f32 to vector<8x8xf32>
    %52 = arith.select %50, %46, %51 : vector<8x8xi1>, vector<8x8xf32>
    %cst_36 = arith.constant dense<0xFF800000> : vector<8xf32>
    %53 = vector.multi_reduction <maximumf>, %52, %cst_36 [1] : vector<8x8xf32> to vector<8xf32>
    %54 = vector.shape_cast %53 : vector<8xf32> to vector<8x1xf32>
    %55 = vector.broadcast %54 : vector<8x1xf32> to vector<8x8xf32>
    %56 = arith.subf %52, %55 : vector<8x8xf32>
    %57 = math.exp %56 : vector<8x8xf32>
    %cst_37 = arith.constant dense<0.000000e+00> : vector<8xf32>
    %58 = vector.multi_reduction <add>, %57, %cst_37 [1] : vector<8x8xf32> to vector<8xf32>
    %59 = vector.shape_cast %58 : vector<8xf32> to vector<8x1xf32>
    %60 = tpu.reciprocal %59 {approx = true} : vector<8x1xf32> -> vector<8x1xf32>
    %61 = vector.broadcast %60 : vector<8x1xf32> to vector<8x8xf32>
    %62 = arith.mulf %57, %61 : vector<8x8xf32>
    %63 = arith.truncf %62 : vector<8x8xf32> to vector<8x8xbf16>
    %64 = arith.truncf %42 : vector<8x32xf32> to vector<8x32xbf16>
    %cst_38 = arith.constant dense<0.000000e+00> : vector<8x32xf32>
    %65 = tpu.matmul %63, %64, %cst_38 {dimension_numbers = #tpu.dot_dimension_numbers<[1], [0], [0], [1], [0, 0, 1, 1], [], []>} : vector<8x8xbf16>, vector<8x32xbf16>, vector<8x32xf32> -> vector<8x32xf32>
    %66 = arith.truncf %65 : vector<8x32xf32> to vector<8x32xbf16>
    %c0_39 = arith.constant 0 : index
    %c0_40 = arith.constant 0 : index
    %c0_41 = arith.constant 0 : index
    %67 = vector.load %arg10[%c0_39, %c0_40, %c0_41] : memref<12x32x128xbf16, #tpu.memory_space<vmem>>, vector<1x32x128xbf16>
    %68 = vector.shape_cast %67 : vector<1x32x128xbf16> to vector<32x128xbf16>
    %cst_42 = arith.constant dense<0.000000e+00> : vector<8x128xf32>
    %69 = tpu.matmul %66, %68, %cst_42 {dimension_numbers = #tpu.dot_dimension_numbers<[1], [0], [0], [1], [0, 0, 1, 1], [], []>} : vector<8x32xbf16>, vector<32x128xbf16>, vector<8x128xf32> -> vector<8x128xf32>
    %70 = arith.addf %33, %69 : vector<8x128xf32>
    %c1 = arith.constant 1 : index
    %c0_43 = arith.constant 0 : index
    %c0_44 = arith.constant 0 : index
    %71 = vector.load %arg7[%c1, %c0_43, %c0_44] : memref<12x128x32xbf16, #tpu.memory_space<vmem>>, vector<1x128x32xbf16>
    %72 = vector.shape_cast %71 : vector<1x128x32xbf16> to vector<128x32xbf16>
    %cst_45 = arith.constant dense<0.000000e+00> : vector<8x32xf32>
    %73 = tpu.matmul %31, %72, %cst_45 {dimension_numbers = #tpu.dot_dimension_numbers<[1], [0], [0], [1], [0, 0, 1, 1], [], []>} : vector<8x128xbf16>, vector<128x32xbf16>, vector<8x32xf32> -> vector<8x32xf32>
    %c1_46 = arith.constant 1 : index
    %c0_47 = arith.constant 0 : index
    %c0_48 = arith.constant 0 : index
    %74 = vector.load %arg8[%c1_46, %c0_47, %c0_48] : memref<12x128x32xbf16, #tpu.memory_space<vmem>>, vector<1x128x32xbf16>
    %75 = vector.shape_cast %74 : vector<1x128x32xbf16> to vector<128x32xbf16>
    %cst_49 = arith.constant dense<0.000000e+00> : vector<8x32xf32>
    %76 = tpu.matmul %32, %75, %cst_49 {dimension_numbers = #tpu.dot_dimension_numbers<[1], [0], [0], [1], [0, 0, 1, 1], [], []>} : vector<8x128xbf16>, vector<128x32xbf16>, vector<8x32xf32> -> vector<8x32xf32>
    %c1_50 = arith.constant 1 : index
    %c0_51 = arith.constant 0 : index
    %c0_52 = arith.constant 0 : index
    %77 = vector.load %arg9[%c1_50, %c0_51, %c0_52] : memref<12x128x32xbf16, #tpu.memory_space<vmem>>, vector<1x128x32xbf16>
    %78 = vector.shape_cast %77 : vector<1x128x32xbf16> to vector<128x32xbf16>
    %cst_53 = arith.constant dense<0.000000e+00> : vector<8x32xf32>
    %79 = tpu.matmul %32, %78, %cst_53 {dimension_numbers = #tpu.dot_dimension_numbers<[1], [0], [0], [1], [0, 0, 1, 1], [], []>} : vector<8x128xbf16>, vector<128x32xbf16>, vector<8x32xf32> -> vector<8x32xf32>
    %80 = arith.truncf %73 : vector<8x32xf32> to vector<8x32xbf16>
    %81 = arith.truncf %76 : vector<8x32xf32> to vector<8x32xbf16>
    %82 = tpu.transpose %81, [1, 0] : vector<8x32xbf16> -> vector<32x8xbf16>
    %cst_54 = arith.constant dense<0.000000e+00> : vector<8x8xf32>
    %83 = tpu.matmul %80, %82, %cst_54 {dimension_numbers = #tpu.dot_dimension_numbers<[1], [0], [0], [1], [0, 0, 1, 1], [], []>} : vector<8x32xbf16>, vector<32x8xbf16>, vector<8x8xf32> -> vector<8x8xf32>
    %cst_55 = arith.constant 0.000000e+00 : f32
    %84 = vector.broadcast %cst_55 : f32 to vector<1x8xf32>
    %85 = arith.cmpf ogt, %5, %84 : vector<1x8xf32>
    %cst_56 = arith.constant -1.000000e+09 : f32
    %86 = vector.shape_cast %85 : vector<1x8xi1> to vector<1x8xi1>
    %87 = vector.broadcast %86 : vector<1x8xi1> to vector<8x8xi1>
    %88 = vector.broadcast %cst_56 : f32 to vector<8x8xf32>
    %89 = arith.select %87, %83, %88 : vector<8x8xi1>, vector<8x8xf32>
    %cst_57 = arith.constant dense<0xFF800000> : vector<8xf32>
    %90 = vector.multi_reduction <maximumf>, %89, %cst_57 [1] : vector<8x8xf32> to vector<8xf32>
    %91 = vector.shape_cast %90 : vector<8xf32> to vector<8x1xf32>
    %92 = vector.broadcast %91 : vector<8x1xf32> to vector<8x8xf32>
    %93 = arith.subf %89, %92 : vector<8x8xf32>
    %94 = math.exp %93 : vector<8x8xf32>
    %cst_58 = arith.constant dense<0.000000e+00> : vector<8xf32>
    %95 = vector.multi_reduction <add>, %94, %cst_58 [1] : vector<8x8xf32> to vector<8xf32>
    %96 = vector.shape_cast %95 : vector<8xf32> to vector<8x1xf32>
    %97 = tpu.reciprocal %96 {approx = true} : vector<8x1xf32> -> vector<8x1xf32>
    %98 = vector.broadcast %97 : vector<8x1xf32> to vector<8x8xf32>
    %99 = arith.mulf %94, %98 : vector<8x8xf32>
    %100 = arith.truncf %99 : vector<8x8xf32> to vector<8x8xbf16>
    %101 = arith.truncf %79 : vector<8x32xf32> to vector<8x32xbf16>
    %cst_59 = arith.constant dense<0.000000e+00> : vector<8x32xf32>
    %102 = tpu.matmul %100, %101, %cst_59 {dimension_numbers = #tpu.dot_dimension_numbers<[1], [0], [0], [1], [0, 0, 1, 1], [], []>} : vector<8x8xbf16>, vector<8x32xbf16>, vector<8x32xf32> -> vector<8x32xf32>
    %103 = arith.truncf %102 : vector<8x32xf32> to vector<8x32xbf16>
    %c1_60 = arith.constant 1 : index
    %c0_61 = arith.constant 0 : index
    %c0_62 = arith.constant 0 : index
    %104 = vector.load %arg10[%c1_60, %c0_61, %c0_62] : memref<12x32x128xbf16, #tpu.memory_space<vmem>>, vector<1x32x128xbf16>
    %105 = vector.shape_cast %104 : vector<1x32x128xbf16> to vector<32x128xbf16>
    %cst_63 = arith.constant dense<0.000000e+00> : vector<8x128xf32>
    %106 = tpu.matmul %103, %105, %cst_63 {dimension_numbers = #tpu.dot_dimension_numbers<[1], [0], [0], [1], [0, 0, 1, 1], [], []>} : vector<8x32xbf16>, vector<32x128xbf16>, vector<8x128xf32> -> vector<8x128xf32>
    %107 = arith.addf %70, %106 : vector<8x128xf32>
    %c2 = arith.constant 2 : index
    %c0_64 = arith.constant 0 : index
    %c0_65 = arith.constant 0 : index
    %108 = vector.load %arg7[%c2, %c0_64, %c0_65] : memref<12x128x32xbf16, #tpu.memory_space<vmem>>, vector<1x128x32xbf16>
    %109 = vector.shape_cast %108 : vector<1x128x32xbf16> to vector<128x32xbf16>
    %cst_66 = arith.constant dense<0.000000e+00> : vector<8x32xf32>
    %110 = tpu.matmul %31, %109, %cst_66 {dimension_numbers = #tpu.dot_dimension_numbers<[1], [0], [0], [1], [0, 0, 1, 1], [], []>} : vector<8x128xbf16>, vector<128x32xbf16>, vector<8x32xf32> -> vector<8x32xf32>
    %c2_67 = arith.constant 2 : index
    %c0_68 = arith.constant 0 : index
    %c0_69 = arith.constant 0 : index
    %111 = vector.load %arg8[%c2_67, %c0_68, %c0_69] : memref<12x128x32xbf16, #tpu.memory_space<vmem>>, vector<1x128x32xbf16>
    %112 = vector.shape_cast %111 : vector<1x128x32xbf16> to vector<128x32xbf16>
    %cst_70 = arith.constant dense<0.000000e+00> : vector<8x32xf32>
    %113 = tpu.matmul %32, %112, %cst_70 {dimension_numbers = #tpu.dot_dimension_numbers<[1], [0], [0], [1], [0, 0, 1, 1], [], []>} : vector<8x128xbf16>, vector<128x32xbf16>, vector<8x32xf32> -> vector<8x32xf32>
    %c2_71 = arith.constant 2 : index
    %c0_72 = arith.constant 0 : index
    %c0_73 = arith.constant 0 : index
    %114 = vector.load %arg9[%c2_71, %c0_72, %c0_73] : memref<12x128x32xbf16, #tpu.memory_space<vmem>>, vector<1x128x32xbf16>
    %115 = vector.shape_cast %114 : vector<1x128x32xbf16> to vector<128x32xbf16>
    %cst_74 = arith.constant dense<0.000000e+00> : vector<8x32xf32>
    %116 = tpu.matmul %32, %115, %cst_74 {dimension_numbers = #tpu.dot_dimension_numbers<[1], [0], [0], [1], [0, 0, 1, 1], [], []>} : vector<8x128xbf16>, vector<128x32xbf16>, vector<8x32xf32> -> vector<8x32xf32>
    %117 = arith.truncf %110 : vector<8x32xf32> to vector<8x32xbf16>
    %118 = arith.truncf %113 : vector<8x32xf32> to vector<8x32xbf16>
    %119 = tpu.transpose %118, [1, 0] : vector<8x32xbf16> -> vector<32x8xbf16>
    %cst_75 = arith.constant dense<0.000000e+00> : vector<8x8xf32>
    %120 = tpu.matmul %117, %119, %cst_75 {dimension_numbers = #tpu.dot_dimension_numbers<[1], [0], [0], [1], [0, 0, 1, 1], [], []>} : vector<8x32xbf16>, vector<32x8xbf16>, vector<8x8xf32> -> vector<8x8xf32>
    %cst_76 = arith.constant 0.000000e+00 : f32
    %121 = vector.broadcast %cst_76 : f32 to vector<1x8xf32>
    %122 = arith.cmpf ogt, %5, %121 : vector<1x8xf32>
    %cst_77 = arith.constant -1.000000e+09 : f32
    %123 = vector.shape_cast %122 : vector<1x8xi1> to vector<1x8xi1>
    %124 = vector.broadcast %123 : vector<1x8xi1> to vector<8x8xi1>
    %125 = vector.broadcast %cst_77 : f32 to vector<8x8xf32>
    %126 = arith.select %124, %120, %125 : vector<8x8xi1>, vector<8x8xf32>
    %cst_78 = arith.constant dense<0xFF800000> : vector<8xf32>
    %127 = vector.multi_reduction <maximumf>, %126, %cst_78 [1] : vector<8x8xf32> to vector<8xf32>
    %128 = vector.shape_cast %127 : vector<8xf32> to vector<8x1xf32>
    %129 = vector.broadcast %128 : vector<8x1xf32> to vector<8x8xf32>
    %130 = arith.subf %126, %129 : vector<8x8xf32>
    %131 = math.exp %130 : vector<8x8xf32>
    %cst_79 = arith.constant dense<0.000000e+00> : vector<8xf32>
    %132 = vector.multi_reduction <add>, %131, %cst_79 [1] : vector<8x8xf32> to vector<8xf32>
    %133 = vector.shape_cast %132 : vector<8xf32> to vector<8x1xf32>
    %134 = tpu.reciprocal %133 {approx = true} : vector<8x1xf32> -> vector<8x1xf32>
    %135 = vector.broadcast %134 : vector<8x1xf32> to vector<8x8xf32>
    %136 = arith.mulf %131, %135 : vector<8x8xf32>
    %137 = arith.truncf %136 : vector<8x8xf32> to vector<8x8xbf16>
    %138 = arith.truncf %116 : vector<8x32xf32> to vector<8x32xbf16>
    %cst_80 = arith.constant dense<0.000000e+00> : vector<8x32xf32>
    %139 = tpu.matmul %137, %138, %cst_80 {dimension_numbers = #tpu.dot_dimension_numbers<[1], [0], [0], [1], [0, 0, 1, 1], [], []>} : vector<8x8xbf16>, vector<8x32xbf16>, vector<8x32xf32> -> vector<8x32xf32>
    %140 = arith.truncf %139 : vector<8x32xf32> to vector<8x32xbf16>
    %c2_81 = arith.constant 2 : index
    %c0_82 = arith.constant 0 : index
    %c0_83 = arith.constant 0 : index
    %141 = vector.load %arg10[%c2_81, %c0_82, %c0_83] : memref<12x32x128xbf16, #tpu.memory_space<vmem>>, vector<1x32x128xbf16>
    %142 = vector.shape_cast %141 : vector<1x32x128xbf16> to vector<32x128xbf16>
    %cst_84 = arith.constant dense<0.000000e+00> : vector<8x128xf32>
    %143 = tpu.matmul %140, %142, %cst_84 {dimension_numbers = #tpu.dot_dimension_numbers<[1], [0], [0], [1], [0, 0, 1, 1], [], []>} : vector<8x32xbf16>, vector<32x128xbf16>, vector<8x128xf32> -> vector<8x128xf32>
    %144 = arith.addf %107, %143 : vector<8x128xf32>
    %c3 = arith.constant 3 : index
    %c0_85 = arith.constant 0 : index
    %c0_86 = arith.constant 0 : index
    %145 = vector.load %arg7[%c3, %c0_85, %c0_86] : memref<12x128x32xbf16, #tpu.memory_space<vmem>>, vector<1x128x32xbf16>
    %146 = vector.shape_cast %145 : vector<1x128x32xbf16> to vector<128x32xbf16>
    %cst_87 = arith.constant dense<0.000000e+00> : vector<8x32xf32>
    %147 = tpu.matmul %31, %146, %cst_87 {dimension_numbers = #tpu.dot_dimension_numbers<[1], [0], [0], [1], [0, 0, 1, 1], [], []>} : vector<8x128xbf16>, vector<128x32xbf16>, vector<8x32xf32> -> vector<8x32xf32>
    %c3_88 = arith.constant 3 : index
    %c0_89 = arith.constant 0 : index
    %c0_90 = arith.constant 0 : index
    %148 = vector.load %arg8[%c3_88, %c0_89, %c0_90] : memref<12x128x32xbf16, #tpu.memory_space<vmem>>, vector<1x128x32xbf16>
    %149 = vector.shape_cast %148 : vector<1x128x32xbf16> to vector<128x32xbf16>
    %cst_91 = arith.constant dense<0.000000e+00> : vector<8x32xf32>
    %150 = tpu.matmul %32, %149, %cst_91 {dimension_numbers = #tpu.dot_dimension_numbers<[1], [0], [0], [1], [0, 0, 1, 1], [], []>} : vector<8x128xbf16>, vector<128x32xbf16>, vector<8x32xf32> -> vector<8x32xf32>
    %c3_92 = arith.constant 3 : index
    %c0_93 = arith.constant 0 : index
    %c0_94 = arith.constant 0 : index
    %151 = vector.load %arg9[%c3_92, %c0_93, %c0_94] : memref<12x128x32xbf16, #tpu.memory_space<vmem>>, vector<1x128x32xbf16>
    %152 = vector.shape_cast %151 : vector<1x128x32xbf16> to vector<128x32xbf16>
    %cst_95 = arith.constant dense<0.000000e+00> : vector<8x32xf32>
    %153 = tpu.matmul %32, %152, %cst_95 {dimension_numbers = #tpu.dot_dimension_numbers<[1], [0], [0], [1], [0, 0, 1, 1], [], []>} : vector<8x128xbf16>, vector<128x32xbf16>, vector<8x32xf32> -> vector<8x32xf32>
    %154 = arith.truncf %147 : vector<8x32xf32> to vector<8x32xbf16>
    %155 = arith.truncf %150 : vector<8x32xf32> to vector<8x32xbf16>
    %156 = tpu.transpose %155, [1, 0] : vector<8x32xbf16> -> vector<32x8xbf16>
    %cst_96 = arith.constant dense<0.000000e+00> : vector<8x8xf32>
    %157 = tpu.matmul %154, %156, %cst_96 {dimension_numbers = #tpu.dot_dimension_numbers<[1], [0], [0], [1], [0, 0, 1, 1], [], []>} : vector<8x32xbf16>, vector<32x8xbf16>, vector<8x8xf32> -> vector<8x8xf32>
    %cst_97 = arith.constant 0.000000e+00 : f32
    %158 = vector.broadcast %cst_97 : f32 to vector<1x8xf32>
    %159 = arith.cmpf ogt, %5, %158 : vector<1x8xf32>
    %cst_98 = arith.constant -1.000000e+09 : f32
    %160 = vector.shape_cast %159 : vector<1x8xi1> to vector<1x8xi1>
    %161 = vector.broadcast %160 : vector<1x8xi1> to vector<8x8xi1>
    %162 = vector.broadcast %cst_98 : f32 to vector<8x8xf32>
    %163 = arith.select %161, %157, %162 : vector<8x8xi1>, vector<8x8xf32>
    %cst_99 = arith.constant dense<0xFF800000> : vector<8xf32>
    %164 = vector.multi_reduction <maximumf>, %163, %cst_99 [1] : vector<8x8xf32> to vector<8xf32>
    %165 = vector.shape_cast %164 : vector<8xf32> to vector<8x1xf32>
    %166 = vector.broadcast %165 : vector<8x1xf32> to vector<8x8xf32>
    %167 = arith.subf %163, %166 : vector<8x8xf32>
    %168 = math.exp %167 : vector<8x8xf32>
    %cst_100 = arith.constant dense<0.000000e+00> : vector<8xf32>
    %169 = vector.multi_reduction <add>, %168, %cst_100 [1] : vector<8x8xf32> to vector<8xf32>
    %170 = vector.shape_cast %169 : vector<8xf32> to vector<8x1xf32>
    %171 = tpu.reciprocal %170 {approx = true} : vector<8x1xf32> -> vector<8x1xf32>
    %172 = vector.broadcast %171 : vector<8x1xf32> to vector<8x8xf32>
    %173 = arith.mulf %168, %172 : vector<8x8xf32>
    %174 = arith.truncf %173 : vector<8x8xf32> to vector<8x8xbf16>
    %175 = arith.truncf %153 : vector<8x32xf32> to vector<8x32xbf16>
    %cst_101 = arith.constant dense<0.000000e+00> : vector<8x32xf32>
    %176 = tpu.matmul %174, %175, %cst_101 {dimension_numbers = #tpu.dot_dimension_numbers<[1], [0], [0], [1], [0, 0, 1, 1], [], []>} : vector<8x8xbf16>, vector<8x32xbf16>, vector<8x32xf32> -> vector<8x32xf32>
    %177 = arith.truncf %176 : vector<8x32xf32> to vector<8x32xbf16>
    %c3_102 = arith.constant 3 : index
    %c0_103 = arith.constant 0 : index
    %c0_104 = arith.constant 0 : index
    %178 = vector.load %arg10[%c3_102, %c0_103, %c0_104] : memref<12x32x128xbf16, #tpu.memory_space<vmem>>, vector<1x32x128xbf16>
    %179 = vector.shape_cast %178 : vector<1x32x128xbf16> to vector<32x128xbf16>
    %cst_105 = arith.constant dense<0.000000e+00> : vector<8x128xf32>
    %180 = tpu.matmul %177, %179, %cst_105 {dimension_numbers = #tpu.dot_dimension_numbers<[1], [0], [0], [1], [0, 0, 1, 1], [], []>} : vector<8x32xbf16>, vector<32x128xbf16>, vector<8x128xf32> -> vector<8x128xf32>
    %181 = arith.addf %144, %180 : vector<8x128xf32>
    %182 = arith.addf %6, %181 : vector<8x128xf32>
    %c0_106 = arith.constant 0 : index
    %c0_107 = arith.constant 0 : index
    %c0_108 = arith.constant 0 : index
    %183 = vector.load %arg11[%c0_106, %c0_107, %c0_108] : memref<3x1x128xf32, #tpu.memory_space<vmem>>, vector<1x1x128xf32>
    %184 = vector.shape_cast %183 : vector<1x1x128xf32> to vector<1x128xf32>
    %185 = vector.broadcast %184 : vector<1x128xf32> to vector<8x128xf32>
    %186 = arith.addf %182, %185 : vector<8x128xf32>
    %c0_109 = arith.constant 0 : index
    %c0_110 = arith.constant 0 : index
    %c0_111 = arith.constant 0 : index
    %187 = vector.load %arg12[%c0_109, %c0_110, %c0_111] : memref<3x1x128xf32, #tpu.memory_space<vmem>>, vector<1x1x128xf32>
    %188 = vector.shape_cast %187 : vector<1x1x128xf32> to vector<1x128xf32>
    %c0_112 = arith.constant 0 : index
    %c0_113 = arith.constant 0 : index
    %c0_114 = arith.constant 0 : index
    %189 = vector.load %arg13[%c0_112, %c0_113, %c0_114] : memref<3x1x128xf32, #tpu.memory_space<vmem>>, vector<1x1x128xf32>
    %190 = vector.shape_cast %189 : vector<1x1x128xf32> to vector<1x128xf32>
    %cst_115 = arith.constant dense<0.000000e+00> : vector<8xf32>
    %191 = vector.multi_reduction <add>, %186, %cst_115 [1] : vector<8x128xf32> to vector<8xf32>
    %192 = vector.shape_cast %191 : vector<8xf32> to vector<8x1xf32>
    %cst_116 = arith.constant 1.280000e+02 : f32
    %193 = vector.broadcast %cst_116 : f32 to vector<8x1xf32>
    %194 = arith.divf %192, %193 : vector<8x1xf32>
    %195 = vector.broadcast %194 : vector<8x1xf32> to vector<8x128xf32>
    %196 = arith.subf %186, %195 : vector<8x128xf32>
    %197 = arith.mulf %196, %196 : vector<8x128xf32>
    %cst_117 = arith.constant dense<0.000000e+00> : vector<8xf32>
    %198 = vector.multi_reduction <add>, %197, %cst_117 [1] : vector<8x128xf32> to vector<8xf32>
    %199 = vector.shape_cast %198 : vector<8xf32> to vector<8x1xf32>
    %cst_118 = arith.constant 1.280000e+02 : f32
    %200 = vector.broadcast %cst_118 : f32 to vector<8x1xf32>
    %201 = arith.divf %199, %200 : vector<8x1xf32>
    %cst_119 = arith.constant 9.99999974E-6 : f32
    %202 = vector.broadcast %cst_119 : f32 to vector<8x1xf32>
    %203 = arith.addf %201, %202 : vector<8x1xf32>
    %204 = math.rsqrt %203 : vector<8x1xf32>
    %205 = vector.broadcast %204 : vector<8x1xf32> to vector<8x128xf32>
    %206 = arith.mulf %196, %205 : vector<8x128xf32>
    %207 = vector.broadcast %188 : vector<1x128xf32> to vector<8x128xf32>
    %208 = arith.mulf %206, %207 : vector<8x128xf32>
    %209 = vector.broadcast %190 : vector<1x128xf32> to vector<8x128xf32>
    %210 = arith.addf %208, %209 : vector<8x128xf32>
    %211 = arith.truncf %210 : vector<8x128xf32> to vector<8x128xbf16>
    %c0_120 = arith.constant 0 : index
    %c0_121 = arith.constant 0 : index
    %c0_122 = arith.constant 0 : index
    %212 = vector.load %arg14[%c0_120, %c0_121, %c0_122] : memref<3x128x128xbf16, #tpu.memory_space<vmem>>, vector<1x128x128xbf16>
    %213 = vector.shape_cast %212 : vector<1x128x128xbf16> to vector<128x128xbf16>
    %cst_123 = arith.constant dense<0.000000e+00> : vector<8x128xf32>
    %214 = tpu.matmul %211, %213, %cst_123 {dimension_numbers = #tpu.dot_dimension_numbers<[1], [0], [0], [1], [0, 0, 1, 1], [], []>} : vector<8x128xbf16>, vector<128x128xbf16>, vector<8x128xf32> -> vector<8x128xf32>
    %c0_124 = arith.constant 0 : index
    %c0_125 = arith.constant 0 : index
    %c0_126 = arith.constant 0 : index
    %215 = vector.load %arg15[%c0_124, %c0_125, %c0_126] : memref<3x1x128xf32, #tpu.memory_space<vmem>>, vector<1x1x128xf32>
    %216 = vector.shape_cast %215 : vector<1x1x128xf32> to vector<1x128xf32>
    %217 = vector.broadcast %216 : vector<1x128xf32> to vector<8x128xf32>
    %218 = arith.addf %214, %217 : vector<8x128xf32>
    %cst_127 = arith.constant 0.000000e+00 : f32
    %219 = vector.broadcast %cst_127 : f32 to vector<8x128xf32>
    %220 = arith.maximumf %218, %219 : vector<8x128xf32>
    %221 = arith.truncf %220 : vector<8x128xf32> to vector<8x128xbf16>
    %c0_128 = arith.constant 0 : index
    %c0_129 = arith.constant 0 : index
    %c0_130 = arith.constant 0 : index
    %222 = vector.load %arg16[%c0_128, %c0_129, %c0_130] : memref<3x128x128xbf16, #tpu.memory_space<vmem>>, vector<1x128x128xbf16>
    %223 = vector.shape_cast %222 : vector<1x128x128xbf16> to vector<128x128xbf16>
    %cst_131 = arith.constant dense<0.000000e+00> : vector<8x128xf32>
    %224 = tpu.matmul %221, %223, %cst_131 {dimension_numbers = #tpu.dot_dimension_numbers<[1], [0], [0], [1], [0, 0, 1, 1], [], []>} : vector<8x128xbf16>, vector<128x128xbf16>, vector<8x128xf32> -> vector<8x128xf32>
    %c0_132 = arith.constant 0 : index
    %c0_133 = arith.constant 0 : index
    %c0_134 = arith.constant 0 : index
    %225 = vector.load %arg17[%c0_132, %c0_133, %c0_134] : memref<3x1x128xf32, #tpu.memory_space<vmem>>, vector<1x1x128xf32>
    %226 = vector.shape_cast %225 : vector<1x1x128xf32> to vector<1x128xf32>
    %227 = vector.broadcast %226 : vector<1x128xf32> to vector<8x128xf32>
    %228 = arith.addf %224, %227 : vector<8x128xf32>
    %229 = arith.addf %186, %228 : vector<8x128xf32>
    %c1_135 = arith.constant 1 : index
    %c0_136 = arith.constant 0 : index
    %c0_137 = arith.constant 0 : index
    %230 = vector.load %arg5[%c1_135, %c0_136, %c0_137] : memref<3x1x128xf32, #tpu.memory_space<vmem>>, vector<1x1x128xf32>
    %231 = vector.shape_cast %230 : vector<1x1x128xf32> to vector<1x128xf32>
    %c1_138 = arith.constant 1 : index
    %c0_139 = arith.constant 0 : index
    %c0_140 = arith.constant 0 : index
    %232 = vector.load %arg6[%c1_138, %c0_139, %c0_140] : memref<3x1x128xf32, #tpu.memory_space<vmem>>, vector<1x1x128xf32>
    %233 = vector.shape_cast %232 : vector<1x1x128xf32> to vector<1x128xf32>
    %cst_141 = arith.constant dense<0.000000e+00> : vector<8xf32>
    %234 = vector.multi_reduction <add>, %229, %cst_141 [1] : vector<8x128xf32> to vector<8xf32>
    %235 = vector.shape_cast %234 : vector<8xf32> to vector<8x1xf32>
    %cst_142 = arith.constant 1.280000e+02 : f32
    %236 = vector.broadcast %cst_142 : f32 to vector<8x1xf32>
    %237 = arith.divf %235, %236 : vector<8x1xf32>
    %238 = vector.broadcast %237 : vector<8x1xf32> to vector<8x128xf32>
    %239 = arith.subf %229, %238 : vector<8x128xf32>
    %240 = arith.mulf %239, %239 : vector<8x128xf32>
    %cst_143 = arith.constant dense<0.000000e+00> : vector<8xf32>
    %241 = vector.multi_reduction <add>, %240, %cst_143 [1] : vector<8x128xf32> to vector<8xf32>
    %242 = vector.shape_cast %241 : vector<8xf32> to vector<8x1xf32>
    %cst_144 = arith.constant 1.280000e+02 : f32
    %243 = vector.broadcast %cst_144 : f32 to vector<8x1xf32>
    %244 = arith.divf %242, %243 : vector<8x1xf32>
    %cst_145 = arith.constant 9.99999974E-6 : f32
    %245 = vector.broadcast %cst_145 : f32 to vector<8x1xf32>
    %246 = arith.addf %244, %245 : vector<8x1xf32>
    %247 = math.rsqrt %246 : vector<8x1xf32>
    %248 = vector.broadcast %247 : vector<8x1xf32> to vector<8x128xf32>
    %249 = arith.mulf %239, %248 : vector<8x128xf32>
    %250 = vector.broadcast %231 : vector<1x128xf32> to vector<8x128xf32>
    %251 = arith.mulf %249, %250 : vector<8x128xf32>
    %252 = vector.broadcast %233 : vector<1x128xf32> to vector<8x128xf32>
    %253 = arith.addf %251, %252 : vector<8x128xf32>
    %254 = arith.truncf %253 : vector<8x128xf32> to vector<8x128xbf16>
    %255 = arith.truncf %253 : vector<8x128xf32> to vector<8x128xbf16>
    %cst_146 = arith.constant 0.000000e+00 : f32
    %256 = vector.broadcast %cst_146 : f32 to vector<8x128xf32>
    %c4 = arith.constant 4 : index
    %c0_147 = arith.constant 0 : index
    %c0_148 = arith.constant 0 : index
    %257 = vector.load %arg7[%c4, %c0_147, %c0_148] : memref<12x128x32xbf16, #tpu.memory_space<vmem>>, vector<1x128x32xbf16>
    %258 = vector.shape_cast %257 : vector<1x128x32xbf16> to vector<128x32xbf16>
    %cst_149 = arith.constant dense<0.000000e+00> : vector<8x32xf32>
    %259 = tpu.matmul %254, %258, %cst_149 {dimension_numbers = #tpu.dot_dimension_numbers<[1], [0], [0], [1], [0, 0, 1, 1], [], []>} : vector<8x128xbf16>, vector<128x32xbf16>, vector<8x32xf32> -> vector<8x32xf32>
    %c4_150 = arith.constant 4 : index
    %c0_151 = arith.constant 0 : index
    %c0_152 = arith.constant 0 : index
    %260 = vector.load %arg8[%c4_150, %c0_151, %c0_152] : memref<12x128x32xbf16, #tpu.memory_space<vmem>>, vector<1x128x32xbf16>
    %261 = vector.shape_cast %260 : vector<1x128x32xbf16> to vector<128x32xbf16>
    %cst_153 = arith.constant dense<0.000000e+00> : vector<8x32xf32>
    %262 = tpu.matmul %255, %261, %cst_153 {dimension_numbers = #tpu.dot_dimension_numbers<[1], [0], [0], [1], [0, 0, 1, 1], [], []>} : vector<8x128xbf16>, vector<128x32xbf16>, vector<8x32xf32> -> vector<8x32xf32>
    %c4_154 = arith.constant 4 : index
    %c0_155 = arith.constant 0 : index
    %c0_156 = arith.constant 0 : index
    %263 = vector.load %arg9[%c4_154, %c0_155, %c0_156] : memref<12x128x32xbf16, #tpu.memory_space<vmem>>, vector<1x128x32xbf16>
    %264 = vector.shape_cast %263 : vector<1x128x32xbf16> to vector<128x32xbf16>
    %cst_157 = arith.constant dense<0.000000e+00> : vector<8x32xf32>
    %265 = tpu.matmul %255, %264, %cst_157 {dimension_numbers = #tpu.dot_dimension_numbers<[1], [0], [0], [1], [0, 0, 1, 1], [], []>} : vector<8x128xbf16>, vector<128x32xbf16>, vector<8x32xf32> -> vector<8x32xf32>
    %266 = arith.truncf %259 : vector<8x32xf32> to vector<8x32xbf16>
    %267 = arith.truncf %262 : vector<8x32xf32> to vector<8x32xbf16>
    %268 = tpu.transpose %267, [1, 0] : vector<8x32xbf16> -> vector<32x8xbf16>
    %cst_158 = arith.constant dense<0.000000e+00> : vector<8x8xf32>
    %269 = tpu.matmul %266, %268, %cst_158 {dimension_numbers = #tpu.dot_dimension_numbers<[1], [0], [0], [1], [0, 0, 1, 1], [], []>} : vector<8x32xbf16>, vector<32x8xbf16>, vector<8x8xf32> -> vector<8x8xf32>
    %cst_159 = arith.constant dense<0xFF800000> : vector<8xf32>
    %270 = vector.multi_reduction <maximumf>, %269, %cst_159 [1] : vector<8x8xf32> to vector<8xf32>
    %271 = vector.shape_cast %270 : vector<8xf32> to vector<8x1xf32>
    %272 = vector.broadcast %271 : vector<8x1xf32> to vector<8x8xf32>
    %273 = arith.subf %269, %272 : vector<8x8xf32>
    %274 = math.exp %273 : vector<8x8xf32>
    %cst_160 = arith.constant dense<0.000000e+00> : vector<8xf32>
    %275 = vector.multi_reduction <add>, %274, %cst_160 [1] : vector<8x8xf32> to vector<8xf32>
    %276 = vector.shape_cast %275 : vector<8xf32> to vector<8x1xf32>
    %277 = tpu.reciprocal %276 {approx = true} : vector<8x1xf32> -> vector<8x1xf32>
    %278 = vector.broadcast %277 : vector<8x1xf32> to vector<8x8xf32>
    %279 = arith.mulf %274, %278 : vector<8x8xf32>
    %280 = arith.truncf %279 : vector<8x8xf32> to vector<8x8xbf16>
    %281 = arith.truncf %265 : vector<8x32xf32> to vector<8x32xbf16>
    %cst_161 = arith.constant dense<0.000000e+00> : vector<8x32xf32>
    %282 = tpu.matmul %280, %281, %cst_161 {dimension_numbers = #tpu.dot_dimension_numbers<[1], [0], [0], [1], [0, 0, 1, 1], [], []>} : vector<8x8xbf16>, vector<8x32xbf16>, vector<8x32xf32> -> vector<8x32xf32>
    %283 = arith.truncf %282 : vector<8x32xf32> to vector<8x32xbf16>
    %c4_162 = arith.constant 4 : index
    %c0_163 = arith.constant 0 : index
    %c0_164 = arith.constant 0 : index
    %284 = vector.load %arg10[%c4_162, %c0_163, %c0_164] : memref<12x32x128xbf16, #tpu.memory_space<vmem>>, vector<1x32x128xbf16>
    %285 = vector.shape_cast %284 : vector<1x32x128xbf16> to vector<32x128xbf16>
    %cst_165 = arith.constant dense<0.000000e+00> : vector<8x128xf32>
    %286 = tpu.matmul %283, %285, %cst_165 {dimension_numbers = #tpu.dot_dimension_numbers<[1], [0], [0], [1], [0, 0, 1, 1], [], []>} : vector<8x32xbf16>, vector<32x128xbf16>, vector<8x128xf32> -> vector<8x128xf32>
    %287 = arith.addf %256, %286 : vector<8x128xf32>
    %c5 = arith.constant 5 : index
    %c0_166 = arith.constant 0 : index
    %c0_167 = arith.constant 0 : index
    %288 = vector.load %arg7[%c5, %c0_166, %c0_167] : memref<12x128x32xbf16, #tpu.memory_space<vmem>>, vector<1x128x32xbf16>
    %289 = vector.shape_cast %288 : vector<1x128x32xbf16> to vector<128x32xbf16>
    %cst_168 = arith.constant dense<0.000000e+00> : vector<8x32xf32>
    %290 = tpu.matmul %254, %289, %cst_168 {dimension_numbers = #tpu.dot_dimension_numbers<[1], [0], [0], [1], [0, 0, 1, 1], [], []>} : vector<8x128xbf16>, vector<128x32xbf16>, vector<8x32xf32> -> vector<8x32xf32>
    %c5_169 = arith.constant 5 : index
    %c0_170 = arith.constant 0 : index
    %c0_171 = arith.constant 0 : index
    %291 = vector.load %arg8[%c5_169, %c0_170, %c0_171] : memref<12x128x32xbf16, #tpu.memory_space<vmem>>, vector<1x128x32xbf16>
    %292 = vector.shape_cast %291 : vector<1x128x32xbf16> to vector<128x32xbf16>
    %cst_172 = arith.constant dense<0.000000e+00> : vector<8x32xf32>
    %293 = tpu.matmul %255, %292, %cst_172 {dimension_numbers = #tpu.dot_dimension_numbers<[1], [0], [0], [1], [0, 0, 1, 1], [], []>} : vector<8x128xbf16>, vector<128x32xbf16>, vector<8x32xf32> -> vector<8x32xf32>
    %c5_173 = arith.constant 5 : index
    %c0_174 = arith.constant 0 : index
    %c0_175 = arith.constant 0 : index
    %294 = vector.load %arg9[%c5_173, %c0_174, %c0_175] : memref<12x128x32xbf16, #tpu.memory_space<vmem>>, vector<1x128x32xbf16>
    %295 = vector.shape_cast %294 : vector<1x128x32xbf16> to vector<128x32xbf16>
    %cst_176 = arith.constant dense<0.000000e+00> : vector<8x32xf32>
    %296 = tpu.matmul %255, %295, %cst_176 {dimension_numbers = #tpu.dot_dimension_numbers<[1], [0], [0], [1], [0, 0, 1, 1], [], []>} : vector<8x128xbf16>, vector<128x32xbf16>, vector<8x32xf32> -> vector<8x32xf32>
    %297 = arith.truncf %290 : vector<8x32xf32> to vector<8x32xbf16>
    %298 = arith.truncf %293 : vector<8x32xf32> to vector<8x32xbf16>
    %299 = tpu.transpose %298, [1, 0] : vector<8x32xbf16> -> vector<32x8xbf16>
    %cst_177 = arith.constant dense<0.000000e+00> : vector<8x8xf32>
    %300 = tpu.matmul %297, %299, %cst_177 {dimension_numbers = #tpu.dot_dimension_numbers<[1], [0], [0], [1], [0, 0, 1, 1], [], []>} : vector<8x32xbf16>, vector<32x8xbf16>, vector<8x8xf32> -> vector<8x8xf32>
    %cst_178 = arith.constant dense<0xFF800000> : vector<8xf32>
    %301 = vector.multi_reduction <maximumf>, %300, %cst_178 [1] : vector<8x8xf32> to vector<8xf32>
    %302 = vector.shape_cast %301 : vector<8xf32> to vector<8x1xf32>
    %303 = vector.broadcast %302 : vector<8x1xf32> to vector<8x8xf32>
    %304 = arith.subf %300, %303 : vector<8x8xf32>
    %305 = math.exp %304 : vector<8x8xf32>
    %cst_179 = arith.constant dense<0.000000e+00> : vector<8xf32>
    %306 = vector.multi_reduction <add>, %305, %cst_179 [1] : vector<8x8xf32> to vector<8xf32>
    %307 = vector.shape_cast %306 : vector<8xf32> to vector<8x1xf32>
    %308 = tpu.reciprocal %307 {approx = true} : vector<8x1xf32> -> vector<8x1xf32>
    %309 = vector.broadcast %308 : vector<8x1xf32> to vector<8x8xf32>
    %310 = arith.mulf %305, %309 : vector<8x8xf32>
    %311 = arith.truncf %310 : vector<8x8xf32> to vector<8x8xbf16>
    %312 = arith.truncf %296 : vector<8x32xf32> to vector<8x32xbf16>
    %cst_180 = arith.constant dense<0.000000e+00> : vector<8x32xf32>
    %313 = tpu.matmul %311, %312, %cst_180 {dimension_numbers = #tpu.dot_dimension_numbers<[1], [0], [0], [1], [0, 0, 1, 1], [], []>} : vector<8x8xbf16>, vector<8x32xbf16>, vector<8x32xf32> -> vector<8x32xf32>
    %314 = arith.truncf %313 : vector<8x32xf32> to vector<8x32xbf16>
    %c5_181 = arith.constant 5 : index
    %c0_182 = arith.constant 0 : index
    %c0_183 = arith.constant 0 : index
    %315 = vector.load %arg10[%c5_181, %c0_182, %c0_183] : memref<12x32x128xbf16, #tpu.memory_space<vmem>>, vector<1x32x128xbf16>
    %316 = vector.shape_cast %315 : vector<1x32x128xbf16> to vector<32x128xbf16>
    %cst_184 = arith.constant dense<0.000000e+00> : vector<8x128xf32>
    %317 = tpu.matmul %314, %316, %cst_184 {dimension_numbers = #tpu.dot_dimension_numbers<[1], [0], [0], [1], [0, 0, 1, 1], [], []>} : vector<8x32xbf16>, vector<32x128xbf16>, vector<8x128xf32> -> vector<8x128xf32>
    %318 = arith.addf %287, %317 : vector<8x128xf32>
    %c6 = arith.constant 6 : index
    %c0_185 = arith.constant 0 : index
    %c0_186 = arith.constant 0 : index
    %319 = vector.load %arg7[%c6, %c0_185, %c0_186] : memref<12x128x32xbf16, #tpu.memory_space<vmem>>, vector<1x128x32xbf16>
    %320 = vector.shape_cast %319 : vector<1x128x32xbf16> to vector<128x32xbf16>
    %cst_187 = arith.constant dense<0.000000e+00> : vector<8x32xf32>
    %321 = tpu.matmul %254, %320, %cst_187 {dimension_numbers = #tpu.dot_dimension_numbers<[1], [0], [0], [1], [0, 0, 1, 1], [], []>} : vector<8x128xbf16>, vector<128x32xbf16>, vector<8x32xf32> -> vector<8x32xf32>
    %c6_188 = arith.constant 6 : index
    %c0_189 = arith.constant 0 : index
    %c0_190 = arith.constant 0 : index
    %322 = vector.load %arg8[%c6_188, %c0_189, %c0_190] : memref<12x128x32xbf16, #tpu.memory_space<vmem>>, vector<1x128x32xbf16>
    %323 = vector.shape_cast %322 : vector<1x128x32xbf16> to vector<128x32xbf16>
    %cst_191 = arith.constant dense<0.000000e+00> : vector<8x32xf32>
    %324 = tpu.matmul %255, %323, %cst_191 {dimension_numbers = #tpu.dot_dimension_numbers<[1], [0], [0], [1], [0, 0, 1, 1], [], []>} : vector<8x128xbf16>, vector<128x32xbf16>, vector<8x32xf32> -> vector<8x32xf32>
    %c6_192 = arith.constant 6 : index
    %c0_193 = arith.constant 0 : index
    %c0_194 = arith.constant 0 : index
    %325 = vector.load %arg9[%c6_192, %c0_193, %c0_194] : memref<12x128x32xbf16, #tpu.memory_space<vmem>>, vector<1x128x32xbf16>
    %326 = vector.shape_cast %325 : vector<1x128x32xbf16> to vector<128x32xbf16>
    %cst_195 = arith.constant dense<0.000000e+00> : vector<8x32xf32>
    %327 = tpu.matmul %255, %326, %cst_195 {dimension_numbers = #tpu.dot_dimension_numbers<[1], [0], [0], [1], [0, 0, 1, 1], [], []>} : vector<8x128xbf16>, vector<128x32xbf16>, vector<8x32xf32> -> vector<8x32xf32>
    %328 = arith.truncf %321 : vector<8x32xf32> to vector<8x32xbf16>
    %329 = arith.truncf %324 : vector<8x32xf32> to vector<8x32xbf16>
    %330 = tpu.transpose %329, [1, 0] : vector<8x32xbf16> -> vector<32x8xbf16>
    %cst_196 = arith.constant dense<0.000000e+00> : vector<8x8xf32>
    %331 = tpu.matmul %328, %330, %cst_196 {dimension_numbers = #tpu.dot_dimension_numbers<[1], [0], [0], [1], [0, 0, 1, 1], [], []>} : vector<8x32xbf16>, vector<32x8xbf16>, vector<8x8xf32> -> vector<8x8xf32>
    %cst_197 = arith.constant dense<0xFF800000> : vector<8xf32>
    %332 = vector.multi_reduction <maximumf>, %331, %cst_197 [1] : vector<8x8xf32> to vector<8xf32>
    %333 = vector.shape_cast %332 : vector<8xf32> to vector<8x1xf32>
    %334 = vector.broadcast %333 : vector<8x1xf32> to vector<8x8xf32>
    %335 = arith.subf %331, %334 : vector<8x8xf32>
    %336 = math.exp %335 : vector<8x8xf32>
    %cst_198 = arith.constant dense<0.000000e+00> : vector<8xf32>
    %337 = vector.multi_reduction <add>, %336, %cst_198 [1] : vector<8x8xf32> to vector<8xf32>
    %338 = vector.shape_cast %337 : vector<8xf32> to vector<8x1xf32>
    %339 = tpu.reciprocal %338 {approx = true} : vector<8x1xf32> -> vector<8x1xf32>
    %340 = vector.broadcast %339 : vector<8x1xf32> to vector<8x8xf32>
    %341 = arith.mulf %336, %340 : vector<8x8xf32>
    %342 = arith.truncf %341 : vector<8x8xf32> to vector<8x8xbf16>
    %343 = arith.truncf %327 : vector<8x32xf32> to vector<8x32xbf16>
    %cst_199 = arith.constant dense<0.000000e+00> : vector<8x32xf32>
    %344 = tpu.matmul %342, %343, %cst_199 {dimension_numbers = #tpu.dot_dimension_numbers<[1], [0], [0], [1], [0, 0, 1, 1], [], []>} : vector<8x8xbf16>, vector<8x32xbf16>, vector<8x32xf32> -> vector<8x32xf32>
    %345 = arith.truncf %344 : vector<8x32xf32> to vector<8x32xbf16>
    %c6_200 = arith.constant 6 : index
    %c0_201 = arith.constant 0 : index
    %c0_202 = arith.constant 0 : index
    %346 = vector.load %arg10[%c6_200, %c0_201, %c0_202] : memref<12x32x128xbf16, #tpu.memory_space<vmem>>, vector<1x32x128xbf16>
    %347 = vector.shape_cast %346 : vector<1x32x128xbf16> to vector<32x128xbf16>
    %cst_203 = arith.constant dense<0.000000e+00> : vector<8x128xf32>
    %348 = tpu.matmul %345, %347, %cst_203 {dimension_numbers = #tpu.dot_dimension_numbers<[1], [0], [0], [1], [0, 0, 1, 1], [], []>} : vector<8x32xbf16>, vector<32x128xbf16>, vector<8x128xf32> -> vector<8x128xf32>
    %349 = arith.addf %318, %348 : vector<8x128xf32>
    %c7 = arith.constant 7 : index
    %c0_204 = arith.constant 0 : index
    %c0_205 = arith.constant 0 : index
    %350 = vector.load %arg7[%c7, %c0_204, %c0_205] : memref<12x128x32xbf16, #tpu.memory_space<vmem>>, vector<1x128x32xbf16>
    %351 = vector.shape_cast %350 : vector<1x128x32xbf16> to vector<128x32xbf16>
    %cst_206 = arith.constant dense<0.000000e+00> : vector<8x32xf32>
    %352 = tpu.matmul %254, %351, %cst_206 {dimension_numbers = #tpu.dot_dimension_numbers<[1], [0], [0], [1], [0, 0, 1, 1], [], []>} : vector<8x128xbf16>, vector<128x32xbf16>, vector<8x32xf32> -> vector<8x32xf32>
    %c7_207 = arith.constant 7 : index
    %c0_208 = arith.constant 0 : index
    %c0_209 = arith.constant 0 : index
    %353 = vector.load %arg8[%c7_207, %c0_208, %c0_209] : memref<12x128x32xbf16, #tpu.memory_space<vmem>>, vector<1x128x32xbf16>
    %354 = vector.shape_cast %353 : vector<1x128x32xbf16> to vector<128x32xbf16>
    %cst_210 = arith.constant dense<0.000000e+00> : vector<8x32xf32>
    %355 = tpu.matmul %255, %354, %cst_210 {dimension_numbers = #tpu.dot_dimension_numbers<[1], [0], [0], [1], [0, 0, 1, 1], [], []>} : vector<8x128xbf16>, vector<128x32xbf16>, vector<8x32xf32> -> vector<8x32xf32>
    %c7_211 = arith.constant 7 : index
    %c0_212 = arith.constant 0 : index
    %c0_213 = arith.constant 0 : index
    %356 = vector.load %arg9[%c7_211, %c0_212, %c0_213] : memref<12x128x32xbf16, #tpu.memory_space<vmem>>, vector<1x128x32xbf16>
    %357 = vector.shape_cast %356 : vector<1x128x32xbf16> to vector<128x32xbf16>
    %cst_214 = arith.constant dense<0.000000e+00> : vector<8x32xf32>
    %358 = tpu.matmul %255, %357, %cst_214 {dimension_numbers = #tpu.dot_dimension_numbers<[1], [0], [0], [1], [0, 0, 1, 1], [], []>} : vector<8x128xbf16>, vector<128x32xbf16>, vector<8x32xf32> -> vector<8x32xf32>
    %359 = arith.truncf %352 : vector<8x32xf32> to vector<8x32xbf16>
    %360 = arith.truncf %355 : vector<8x32xf32> to vector<8x32xbf16>
    %361 = tpu.transpose %360, [1, 0] : vector<8x32xbf16> -> vector<32x8xbf16>
    %cst_215 = arith.constant dense<0.000000e+00> : vector<8x8xf32>
    %362 = tpu.matmul %359, %361, %cst_215 {dimension_numbers = #tpu.dot_dimension_numbers<[1], [0], [0], [1], [0, 0, 1, 1], [], []>} : vector<8x32xbf16>, vector<32x8xbf16>, vector<8x8xf32> -> vector<8x8xf32>
    %cst_216 = arith.constant dense<0xFF800000> : vector<8xf32>
    %363 = vector.multi_reduction <maximumf>, %362, %cst_216 [1] : vector<8x8xf32> to vector<8xf32>
    %364 = vector.shape_cast %363 : vector<8xf32> to vector<8x1xf32>
    %365 = vector.broadcast %364 : vector<8x1xf32> to vector<8x8xf32>
    %366 = arith.subf %362, %365 : vector<8x8xf32>
    %367 = math.exp %366 : vector<8x8xf32>
    %cst_217 = arith.constant dense<0.000000e+00> : vector<8xf32>
    %368 = vector.multi_reduction <add>, %367, %cst_217 [1] : vector<8x8xf32> to vector<8xf32>
    %369 = vector.shape_cast %368 : vector<8xf32> to vector<8x1xf32>
    %370 = tpu.reciprocal %369 {approx = true} : vector<8x1xf32> -> vector<8x1xf32>
    %371 = vector.broadcast %370 : vector<8x1xf32> to vector<8x8xf32>
    %372 = arith.mulf %367, %371 : vector<8x8xf32>
    %373 = arith.truncf %372 : vector<8x8xf32> to vector<8x8xbf16>
    %374 = arith.truncf %358 : vector<8x32xf32> to vector<8x32xbf16>
    %cst_218 = arith.constant dense<0.000000e+00> : vector<8x32xf32>
    %375 = tpu.matmul %373, %374, %cst_218 {dimension_numbers = #tpu.dot_dimension_numbers<[1], [0], [0], [1], [0, 0, 1, 1], [], []>} : vector<8x8xbf16>, vector<8x32xbf16>, vector<8x32xf32> -> vector<8x32xf32>
    %376 = arith.truncf %375 : vector<8x32xf32> to vector<8x32xbf16>
    %c7_219 = arith.constant 7 : index
    %c0_220 = arith.constant 0 : index
    %c0_221 = arith.constant 0 : index
    %377 = vector.load %arg10[%c7_219, %c0_220, %c0_221] : memref<12x32x128xbf16, #tpu.memory_space<vmem>>, vector<1x32x128xbf16>
    %378 = vector.shape_cast %377 : vector<1x32x128xbf16> to vector<32x128xbf16>
    %cst_222 = arith.constant dense<0.000000e+00> : vector<8x128xf32>
    %379 = tpu.matmul %376, %378, %cst_222 {dimension_numbers = #tpu.dot_dimension_numbers<[1], [0], [0], [1], [0, 0, 1, 1], [], []>} : vector<8x32xbf16>, vector<32x128xbf16>, vector<8x128xf32> -> vector<8x128xf32>
    %380 = arith.addf %349, %379 : vector<8x128xf32>
    %381 = arith.addf %229, %380 : vector<8x128xf32>
    %c1_223 = arith.constant 1 : index
    %c0_224 = arith.constant 0 : index
    %c0_225 = arith.constant 0 : index
    %382 = vector.load %arg11[%c1_223, %c0_224, %c0_225] : memref<3x1x128xf32, #tpu.memory_space<vmem>>, vector<1x1x128xf32>
    %383 = vector.shape_cast %382 : vector<1x1x128xf32> to vector<1x128xf32>
    %384 = vector.broadcast %383 : vector<1x128xf32> to vector<8x128xf32>
    %385 = arith.addf %381, %384 : vector<8x128xf32>
    %c1_226 = arith.constant 1 : index
    %c0_227 = arith.constant 0 : index
    %c0_228 = arith.constant 0 : index
    %386 = vector.load %arg12[%c1_226, %c0_227, %c0_228] : memref<3x1x128xf32, #tpu.memory_space<vmem>>, vector<1x1x128xf32>
    %387 = vector.shape_cast %386 : vector<1x1x128xf32> to vector<1x128xf32>
    %c1_229 = arith.constant 1 : index
    %c0_230 = arith.constant 0 : index
    %c0_231 = arith.constant 0 : index
    %388 = vector.load %arg13[%c1_229, %c0_230, %c0_231] : memref<3x1x128xf32, #tpu.memory_space<vmem>>, vector<1x1x128xf32>
    %389 = vector.shape_cast %388 : vector<1x1x128xf32> to vector<1x128xf32>
    %cst_232 = arith.constant dense<0.000000e+00> : vector<8xf32>
    %390 = vector.multi_reduction <add>, %385, %cst_232 [1] : vector<8x128xf32> to vector<8xf32>
    %391 = vector.shape_cast %390 : vector<8xf32> to vector<8x1xf32>
    %cst_233 = arith.constant 1.280000e+02 : f32
    %392 = vector.broadcast %cst_233 : f32 to vector<8x1xf32>
    %393 = arith.divf %391, %392 : vector<8x1xf32>
    %394 = vector.broadcast %393 : vector<8x1xf32> to vector<8x128xf32>
    %395 = arith.subf %385, %394 : vector<8x128xf32>
    %396 = arith.mulf %395, %395 : vector<8x128xf32>
    %cst_234 = arith.constant dense<0.000000e+00> : vector<8xf32>
    %397 = vector.multi_reduction <add>, %396, %cst_234 [1] : vector<8x128xf32> to vector<8xf32>
    %398 = vector.shape_cast %397 : vector<8xf32> to vector<8x1xf32>
    %cst_235 = arith.constant 1.280000e+02 : f32
    %399 = vector.broadcast %cst_235 : f32 to vector<8x1xf32>
    %400 = arith.divf %398, %399 : vector<8x1xf32>
    %cst_236 = arith.constant 9.99999974E-6 : f32
    %401 = vector.broadcast %cst_236 : f32 to vector<8x1xf32>
    %402 = arith.addf %400, %401 : vector<8x1xf32>
    %403 = math.rsqrt %402 : vector<8x1xf32>
    %404 = vector.broadcast %403 : vector<8x1xf32> to vector<8x128xf32>
    %405 = arith.mulf %395, %404 : vector<8x128xf32>
    %406 = vector.broadcast %387 : vector<1x128xf32> to vector<8x128xf32>
    %407 = arith.mulf %405, %406 : vector<8x128xf32>
    %408 = vector.broadcast %389 : vector<1x128xf32> to vector<8x128xf32>
    %409 = arith.addf %407, %408 : vector<8x128xf32>
    %410 = arith.truncf %409 : vector<8x128xf32> to vector<8x128xbf16>
    %c1_237 = arith.constant 1 : index
    %c0_238 = arith.constant 0 : index
    %c0_239 = arith.constant 0 : index
    %411 = vector.load %arg14[%c1_237, %c0_238, %c0_239] : memref<3x128x128xbf16, #tpu.memory_space<vmem>>, vector<1x128x128xbf16>
    %412 = vector.shape_cast %411 : vector<1x128x128xbf16> to vector<128x128xbf16>
    %cst_240 = arith.constant dense<0.000000e+00> : vector<8x128xf32>
    %413 = tpu.matmul %410, %412, %cst_240 {dimension_numbers = #tpu.dot_dimension_numbers<[1], [0], [0], [1], [0, 0, 1, 1], [], []>} : vector<8x128xbf16>, vector<128x128xbf16>, vector<8x128xf32> -> vector<8x128xf32>
    %c1_241 = arith.constant 1 : index
    %c0_242 = arith.constant 0 : index
    %c0_243 = arith.constant 0 : index
    %414 = vector.load %arg15[%c1_241, %c0_242, %c0_243] : memref<3x1x128xf32, #tpu.memory_space<vmem>>, vector<1x1x128xf32>
    %415 = vector.shape_cast %414 : vector<1x1x128xf32> to vector<1x128xf32>
    %416 = vector.broadcast %415 : vector<1x128xf32> to vector<8x128xf32>
    %417 = arith.addf %413, %416 : vector<8x128xf32>
    %cst_244 = arith.constant 0.000000e+00 : f32
    %418 = vector.broadcast %cst_244 : f32 to vector<8x128xf32>
    %419 = arith.maximumf %417, %418 : vector<8x128xf32>
    %420 = arith.truncf %419 : vector<8x128xf32> to vector<8x128xbf16>
    %c1_245 = arith.constant 1 : index
    %c0_246 = arith.constant 0 : index
    %c0_247 = arith.constant 0 : index
    %421 = vector.load %arg16[%c1_245, %c0_246, %c0_247] : memref<3x128x128xbf16, #tpu.memory_space<vmem>>, vector<1x128x128xbf16>
    %422 = vector.shape_cast %421 : vector<1x128x128xbf16> to vector<128x128xbf16>
    %cst_248 = arith.constant dense<0.000000e+00> : vector<8x128xf32>
    %423 = tpu.matmul %420, %422, %cst_248 {dimension_numbers = #tpu.dot_dimension_numbers<[1], [0], [0], [1], [0, 0, 1, 1], [], []>} : vector<8x128xbf16>, vector<128x128xbf16>, vector<8x128xf32> -> vector<8x128xf32>
    %c1_249 = arith.constant 1 : index
    %c0_250 = arith.constant 0 : index
    %c0_251 = arith.constant 0 : index
    %424 = vector.load %arg17[%c1_249, %c0_250, %c0_251] : memref<3x1x128xf32, #tpu.memory_space<vmem>>, vector<1x1x128xf32>
    %425 = vector.shape_cast %424 : vector<1x1x128xf32> to vector<1x128xf32>
    %426 = vector.broadcast %425 : vector<1x128xf32> to vector<8x128xf32>
    %427 = arith.addf %423, %426 : vector<8x128xf32>
    %428 = arith.addf %385, %427 : vector<8x128xf32>
    %c2_252 = arith.constant 2 : index
    %c0_253 = arith.constant 0 : index
    %c0_254 = arith.constant 0 : index
    %429 = vector.load %arg5[%c2_252, %c0_253, %c0_254] : memref<3x1x128xf32, #tpu.memory_space<vmem>>, vector<1x1x128xf32>
    %430 = vector.shape_cast %429 : vector<1x1x128xf32> to vector<1x128xf32>
    %c2_255 = arith.constant 2 : index
    %c0_256 = arith.constant 0 : index
    %c0_257 = arith.constant 0 : index
    %431 = vector.load %arg6[%c2_255, %c0_256, %c0_257] : memref<3x1x128xf32, #tpu.memory_space<vmem>>, vector<1x1x128xf32>
    %432 = vector.shape_cast %431 : vector<1x1x128xf32> to vector<1x128xf32>
    %cst_258 = arith.constant dense<0.000000e+00> : vector<8xf32>
    %433 = vector.multi_reduction <add>, %3, %cst_258 [1] : vector<8x128xf32> to vector<8xf32>
    %434 = vector.shape_cast %433 : vector<8xf32> to vector<8x1xf32>
    %cst_259 = arith.constant 1.280000e+02 : f32
    %435 = vector.broadcast %cst_259 : f32 to vector<8x1xf32>
    %436 = arith.divf %434, %435 : vector<8x1xf32>
    %437 = vector.broadcast %436 : vector<8x1xf32> to vector<8x128xf32>
    %438 = arith.subf %3, %437 : vector<8x128xf32>
    %439 = arith.mulf %438, %438 : vector<8x128xf32>
    %cst_260 = arith.constant dense<0.000000e+00> : vector<8xf32>
    %440 = vector.multi_reduction <add>, %439, %cst_260 [1] : vector<8x128xf32> to vector<8xf32>
    %441 = vector.shape_cast %440 : vector<8xf32> to vector<8x1xf32>
    %cst_261 = arith.constant 1.280000e+02 : f32
    %442 = vector.broadcast %cst_261 : f32 to vector<8x1xf32>
    %443 = arith.divf %441, %442 : vector<8x1xf32>
    %cst_262 = arith.constant 9.99999974E-6 : f32
    %444 = vector.broadcast %cst_262 : f32 to vector<8x1xf32>
    %445 = arith.addf %443, %444 : vector<8x1xf32>
    %446 = math.rsqrt %445 : vector<8x1xf32>
    %447 = vector.broadcast %446 : vector<8x1xf32> to vector<8x128xf32>
    %448 = arith.mulf %438, %447 : vector<8x128xf32>
    %449 = vector.broadcast %430 : vector<1x128xf32> to vector<8x128xf32>
    %450 = arith.mulf %448, %449 : vector<8x128xf32>
    %451 = vector.broadcast %432 : vector<1x128xf32> to vector<8x128xf32>
    %452 = arith.addf %450, %451 : vector<8x128xf32>
    %453 = arith.truncf %452 : vector<8x128xf32> to vector<8x128xbf16>
    %454 = arith.truncf %428 : vector<8x128xf32> to vector<8x128xbf16>
    %cst_263 = arith.constant 0.000000e+00 : f32
    %455 = vector.broadcast %cst_263 : f32 to vector<8x128xf32>
    %c8 = arith.constant 8 : index
    %c0_264 = arith.constant 0 : index
    %c0_265 = arith.constant 0 : index
    %456 = vector.load %arg7[%c8, %c0_264, %c0_265] : memref<12x128x32xbf16, #tpu.memory_space<vmem>>, vector<1x128x32xbf16>
    %457 = vector.shape_cast %456 : vector<1x128x32xbf16> to vector<128x32xbf16>
    %cst_266 = arith.constant dense<0.000000e+00> : vector<8x32xf32>
    %458 = tpu.matmul %453, %457, %cst_266 {dimension_numbers = #tpu.dot_dimension_numbers<[1], [0], [0], [1], [0, 0, 1, 1], [], []>} : vector<8x128xbf16>, vector<128x32xbf16>, vector<8x32xf32> -> vector<8x32xf32>
    %c8_267 = arith.constant 8 : index
    %c0_268 = arith.constant 0 : index
    %c0_269 = arith.constant 0 : index
    %459 = vector.load %arg8[%c8_267, %c0_268, %c0_269] : memref<12x128x32xbf16, #tpu.memory_space<vmem>>, vector<1x128x32xbf16>
    %460 = vector.shape_cast %459 : vector<1x128x32xbf16> to vector<128x32xbf16>
    %cst_270 = arith.constant dense<0.000000e+00> : vector<8x32xf32>
    %461 = tpu.matmul %454, %460, %cst_270 {dimension_numbers = #tpu.dot_dimension_numbers<[1], [0], [0], [1], [0, 0, 1, 1], [], []>} : vector<8x128xbf16>, vector<128x32xbf16>, vector<8x32xf32> -> vector<8x32xf32>
    %c8_271 = arith.constant 8 : index
    %c0_272 = arith.constant 0 : index
    %c0_273 = arith.constant 0 : index
    %462 = vector.load %arg9[%c8_271, %c0_272, %c0_273] : memref<12x128x32xbf16, #tpu.memory_space<vmem>>, vector<1x128x32xbf16>
    %463 = vector.shape_cast %462 : vector<1x128x32xbf16> to vector<128x32xbf16>
    %cst_274 = arith.constant dense<0.000000e+00> : vector<8x32xf32>
    %464 = tpu.matmul %454, %463, %cst_274 {dimension_numbers = #tpu.dot_dimension_numbers<[1], [0], [0], [1], [0, 0, 1, 1], [], []>} : vector<8x128xbf16>, vector<128x32xbf16>, vector<8x32xf32> -> vector<8x32xf32>
    %465 = arith.truncf %458 : vector<8x32xf32> to vector<8x32xbf16>
    %466 = arith.truncf %461 : vector<8x32xf32> to vector<8x32xbf16>
    %467 = tpu.transpose %466, [1, 0] : vector<8x32xbf16> -> vector<32x8xbf16>
    %cst_275 = arith.constant dense<0.000000e+00> : vector<8x8xf32>
    %468 = tpu.matmul %465, %467, %cst_275 {dimension_numbers = #tpu.dot_dimension_numbers<[1], [0], [0], [1], [0, 0, 1, 1], [], []>} : vector<8x32xbf16>, vector<32x8xbf16>, vector<8x8xf32> -> vector<8x8xf32>
    %cst_276 = arith.constant dense<0xFF800000> : vector<8xf32>
    %469 = vector.multi_reduction <maximumf>, %468, %cst_276 [1] : vector<8x8xf32> to vector<8xf32>
    %470 = vector.shape_cast %469 : vector<8xf32> to vector<8x1xf32>
    %471 = vector.broadcast %470 : vector<8x1xf32> to vector<8x8xf32>
    %472 = arith.subf %468, %471 : vector<8x8xf32>
    %473 = math.exp %472 : vector<8x8xf32>
    %cst_277 = arith.constant dense<0.000000e+00> : vector<8xf32>
    %474 = vector.multi_reduction <add>, %473, %cst_277 [1] : vector<8x8xf32> to vector<8xf32>
    %475 = vector.shape_cast %474 : vector<8xf32> to vector<8x1xf32>
    %476 = tpu.reciprocal %475 {approx = true} : vector<8x1xf32> -> vector<8x1xf32>
    %477 = vector.broadcast %476 : vector<8x1xf32> to vector<8x8xf32>
    %478 = arith.mulf %473, %477 : vector<8x8xf32>
    %479 = arith.truncf %478 : vector<8x8xf32> to vector<8x8xbf16>
    %480 = arith.truncf %464 : vector<8x32xf32> to vector<8x32xbf16>
    %cst_278 = arith.constant dense<0.000000e+00> : vector<8x32xf32>
    %481 = tpu.matmul %479, %480, %cst_278 {dimension_numbers = #tpu.dot_dimension_numbers<[1], [0], [0], [1], [0, 0, 1, 1], [], []>} : vector<8x8xbf16>, vector<8x32xbf16>, vector<8x32xf32> -> vector<8x32xf32>
    %482 = arith.truncf %481 : vector<8x32xf32> to vector<8x32xbf16>
    %c8_279 = arith.constant 8 : index
    %c0_280 = arith.constant 0 : index
    %c0_281 = arith.constant 0 : index
    %483 = vector.load %arg10[%c8_279, %c0_280, %c0_281] : memref<12x32x128xbf16, #tpu.memory_space<vmem>>, vector<1x32x128xbf16>
    %484 = vector.shape_cast %483 : vector<1x32x128xbf16> to vector<32x128xbf16>
    %cst_282 = arith.constant dense<0.000000e+00> : vector<8x128xf32>
    %485 = tpu.matmul %482, %484, %cst_282 {dimension_numbers = #tpu.dot_dimension_numbers<[1], [0], [0], [1], [0, 0, 1, 1], [], []>} : vector<8x32xbf16>, vector<32x128xbf16>, vector<8x128xf32> -> vector<8x128xf32>
    %486 = arith.addf %455, %485 : vector<8x128xf32>
    %c9 = arith.constant 9 : index
    %c0_283 = arith.constant 0 : index
    %c0_284 = arith.constant 0 : index
    %487 = vector.load %arg7[%c9, %c0_283, %c0_284] : memref<12x128x32xbf16, #tpu.memory_space<vmem>>, vector<1x128x32xbf16>
    %488 = vector.shape_cast %487 : vector<1x128x32xbf16> to vector<128x32xbf16>
    %cst_285 = arith.constant dense<0.000000e+00> : vector<8x32xf32>
    %489 = tpu.matmul %453, %488, %cst_285 {dimension_numbers = #tpu.dot_dimension_numbers<[1], [0], [0], [1], [0, 0, 1, 1], [], []>} : vector<8x128xbf16>, vector<128x32xbf16>, vector<8x32xf32> -> vector<8x32xf32>
    %c9_286 = arith.constant 9 : index
    %c0_287 = arith.constant 0 : index
    %c0_288 = arith.constant 0 : index
    %490 = vector.load %arg8[%c9_286, %c0_287, %c0_288] : memref<12x128x32xbf16, #tpu.memory_space<vmem>>, vector<1x128x32xbf16>
    %491 = vector.shape_cast %490 : vector<1x128x32xbf16> to vector<128x32xbf16>
    %cst_289 = arith.constant dense<0.000000e+00> : vector<8x32xf32>
    %492 = tpu.matmul %454, %491, %cst_289 {dimension_numbers = #tpu.dot_dimension_numbers<[1], [0], [0], [1], [0, 0, 1, 1], [], []>} : vector<8x128xbf16>, vector<128x32xbf16>, vector<8x32xf32> -> vector<8x32xf32>
    %c9_290 = arith.constant 9 : index
    %c0_291 = arith.constant 0 : index
    %c0_292 = arith.constant 0 : index
    %493 = vector.load %arg9[%c9_290, %c0_291, %c0_292] : memref<12x128x32xbf16, #tpu.memory_space<vmem>>, vector<1x128x32xbf16>
    %494 = vector.shape_cast %493 : vector<1x128x32xbf16> to vector<128x32xbf16>
    %cst_293 = arith.constant dense<0.000000e+00> : vector<8x32xf32>
    %495 = tpu.matmul %454, %494, %cst_293 {dimension_numbers = #tpu.dot_dimension_numbers<[1], [0], [0], [1], [0, 0, 1, 1], [], []>} : vector<8x128xbf16>, vector<128x32xbf16>, vector<8x32xf32> -> vector<8x32xf32>
    %496 = arith.truncf %489 : vector<8x32xf32> to vector<8x32xbf16>
    %497 = arith.truncf %492 : vector<8x32xf32> to vector<8x32xbf16>
    %498 = tpu.transpose %497, [1, 0] : vector<8x32xbf16> -> vector<32x8xbf16>
    %cst_294 = arith.constant dense<0.000000e+00> : vector<8x8xf32>
    %499 = tpu.matmul %496, %498, %cst_294 {dimension_numbers = #tpu.dot_dimension_numbers<[1], [0], [0], [1], [0, 0, 1, 1], [], []>} : vector<8x32xbf16>, vector<32x8xbf16>, vector<8x8xf32> -> vector<8x8xf32>
    %cst_295 = arith.constant dense<0xFF800000> : vector<8xf32>
    %500 = vector.multi_reduction <maximumf>, %499, %cst_295 [1] : vector<8x8xf32> to vector<8xf32>
    %501 = vector.shape_cast %500 : vector<8xf32> to vector<8x1xf32>
    %502 = vector.broadcast %501 : vector<8x1xf32> to vector<8x8xf32>
    %503 = arith.subf %499, %502 : vector<8x8xf32>
    %504 = math.exp %503 : vector<8x8xf32>
    %cst_296 = arith.constant dense<0.000000e+00> : vector<8xf32>
    %505 = vector.multi_reduction <add>, %504, %cst_296 [1] : vector<8x8xf32> to vector<8xf32>
    %506 = vector.shape_cast %505 : vector<8xf32> to vector<8x1xf32>
    %507 = tpu.reciprocal %506 {approx = true} : vector<8x1xf32> -> vector<8x1xf32>
    %508 = vector.broadcast %507 : vector<8x1xf32> to vector<8x8xf32>
    %509 = arith.mulf %504, %508 : vector<8x8xf32>
    %510 = arith.truncf %509 : vector<8x8xf32> to vector<8x8xbf16>
    %511 = arith.truncf %495 : vector<8x32xf32> to vector<8x32xbf16>
    %cst_297 = arith.constant dense<0.000000e+00> : vector<8x32xf32>
    %512 = tpu.matmul %510, %511, %cst_297 {dimension_numbers = #tpu.dot_dimension_numbers<[1], [0], [0], [1], [0, 0, 1, 1], [], []>} : vector<8x8xbf16>, vector<8x32xbf16>, vector<8x32xf32> -> vector<8x32xf32>
    %513 = arith.truncf %512 : vector<8x32xf32> to vector<8x32xbf16>
    %c9_298 = arith.constant 9 : index
    %c0_299 = arith.constant 0 : index
    %c0_300 = arith.constant 0 : index
    %514 = vector.load %arg10[%c9_298, %c0_299, %c0_300] : memref<12x32x128xbf16, #tpu.memory_space<vmem>>, vector<1x32x128xbf16>
    %515 = vector.shape_cast %514 : vector<1x32x128xbf16> to vector<32x128xbf16>
    %cst_301 = arith.constant dense<0.000000e+00> : vector<8x128xf32>
    %516 = tpu.matmul %513, %515, %cst_301 {dimension_numbers = #tpu.dot_dimension_numbers<[1], [0], [0], [1], [0, 0, 1, 1], [], []>} : vector<8x32xbf16>, vector<32x128xbf16>, vector<8x128xf32> -> vector<8x128xf32>
    %517 = arith.addf %486, %516 : vector<8x128xf32>
    %c10 = arith.constant 10 : index
    %c0_302 = arith.constant 0 : index
    %c0_303 = arith.constant 0 : index
    %518 = vector.load %arg7[%c10, %c0_302, %c0_303] : memref<12x128x32xbf16, #tpu.memory_space<vmem>>, vector<1x128x32xbf16>
    %519 = vector.shape_cast %518 : vector<1x128x32xbf16> to vector<128x32xbf16>
    %cst_304 = arith.constant dense<0.000000e+00> : vector<8x32xf32>
    %520 = tpu.matmul %453, %519, %cst_304 {dimension_numbers = #tpu.dot_dimension_numbers<[1], [0], [0], [1], [0, 0, 1, 1], [], []>} : vector<8x128xbf16>, vector<128x32xbf16>, vector<8x32xf32> -> vector<8x32xf32>
    %c10_305 = arith.constant 10 : index
    %c0_306 = arith.constant 0 : index
    %c0_307 = arith.constant 0 : index
    %521 = vector.load %arg8[%c10_305, %c0_306, %c0_307] : memref<12x128x32xbf16, #tpu.memory_space<vmem>>, vector<1x128x32xbf16>
    %522 = vector.shape_cast %521 : vector<1x128x32xbf16> to vector<128x32xbf16>
    %cst_308 = arith.constant dense<0.000000e+00> : vector<8x32xf32>
    %523 = tpu.matmul %454, %522, %cst_308 {dimension_numbers = #tpu.dot_dimension_numbers<[1], [0], [0], [1], [0, 0, 1, 1], [], []>} : vector<8x128xbf16>, vector<128x32xbf16>, vector<8x32xf32> -> vector<8x32xf32>
    %c10_309 = arith.constant 10 : index
    %c0_310 = arith.constant 0 : index
    %c0_311 = arith.constant 0 : index
    %524 = vector.load %arg9[%c10_309, %c0_310, %c0_311] : memref<12x128x32xbf16, #tpu.memory_space<vmem>>, vector<1x128x32xbf16>
    %525 = vector.shape_cast %524 : vector<1x128x32xbf16> to vector<128x32xbf16>
    %cst_312 = arith.constant dense<0.000000e+00> : vector<8x32xf32>
    %526 = tpu.matmul %454, %525, %cst_312 {dimension_numbers = #tpu.dot_dimension_numbers<[1], [0], [0], [1], [0, 0, 1, 1], [], []>} : vector<8x128xbf16>, vector<128x32xbf16>, vector<8x32xf32> -> vector<8x32xf32>
    %527 = arith.truncf %520 : vector<8x32xf32> to vector<8x32xbf16>
    %528 = arith.truncf %523 : vector<8x32xf32> to vector<8x32xbf16>
    %529 = tpu.transpose %528, [1, 0] : vector<8x32xbf16> -> vector<32x8xbf16>
    %cst_313 = arith.constant dense<0.000000e+00> : vector<8x8xf32>
    %530 = tpu.matmul %527, %529, %cst_313 {dimension_numbers = #tpu.dot_dimension_numbers<[1], [0], [0], [1], [0, 0, 1, 1], [], []>} : vector<8x32xbf16>, vector<32x8xbf16>, vector<8x8xf32> -> vector<8x8xf32>
    %cst_314 = arith.constant dense<0xFF800000> : vector<8xf32>
    %531 = vector.multi_reduction <maximumf>, %530, %cst_314 [1] : vector<8x8xf32> to vector<8xf32>
    %532 = vector.shape_cast %531 : vector<8xf32> to vector<8x1xf32>
    %533 = vector.broadcast %532 : vector<8x1xf32> to vector<8x8xf32>
    %534 = arith.subf %530, %533 : vector<8x8xf32>
    %535 = math.exp %534 : vector<8x8xf32>
    %cst_315 = arith.constant dense<0.000000e+00> : vector<8xf32>
    %536 = vector.multi_reduction <add>, %535, %cst_315 [1] : vector<8x8xf32> to vector<8xf32>
    %537 = vector.shape_cast %536 : vector<8xf32> to vector<8x1xf32>
    %538 = tpu.reciprocal %537 {approx = true} : vector<8x1xf32> -> vector<8x1xf32>
    %539 = vector.broadcast %538 : vector<8x1xf32> to vector<8x8xf32>
    %540 = arith.mulf %535, %539 : vector<8x8xf32>
    %541 = arith.truncf %540 : vector<8x8xf32> to vector<8x8xbf16>
    %542 = arith.truncf %526 : vector<8x32xf32> to vector<8x32xbf16>
    %cst_316 = arith.constant dense<0.000000e+00> : vector<8x32xf32>
    %543 = tpu.matmul %541, %542, %cst_316 {dimension_numbers = #tpu.dot_dimension_numbers<[1], [0], [0], [1], [0, 0, 1, 1], [], []>} : vector<8x8xbf16>, vector<8x32xbf16>, vector<8x32xf32> -> vector<8x32xf32>
    %544 = arith.truncf %543 : vector<8x32xf32> to vector<8x32xbf16>
    %c10_317 = arith.constant 10 : index
    %c0_318 = arith.constant 0 : index
    %c0_319 = arith.constant 0 : index
    %545 = vector.load %arg10[%c10_317, %c0_318, %c0_319] : memref<12x32x128xbf16, #tpu.memory_space<vmem>>, vector<1x32x128xbf16>
    %546 = vector.shape_cast %545 : vector<1x32x128xbf16> to vector<32x128xbf16>
    %cst_320 = arith.constant dense<0.000000e+00> : vector<8x128xf32>
    %547 = tpu.matmul %544, %546, %cst_320 {dimension_numbers = #tpu.dot_dimension_numbers<[1], [0], [0], [1], [0, 0, 1, 1], [], []>} : vector<8x32xbf16>, vector<32x128xbf16>, vector<8x128xf32> -> vector<8x128xf32>
    %548 = arith.addf %517, %547 : vector<8x128xf32>
    %c11 = arith.constant 11 : index
    %c0_321 = arith.constant 0 : index
    %c0_322 = arith.constant 0 : index
    %549 = vector.load %arg7[%c11, %c0_321, %c0_322] : memref<12x128x32xbf16, #tpu.memory_space<vmem>>, vector<1x128x32xbf16>
    %550 = vector.shape_cast %549 : vector<1x128x32xbf16> to vector<128x32xbf16>
    %cst_323 = arith.constant dense<0.000000e+00> : vector<8x32xf32>
    %551 = tpu.matmul %453, %550, %cst_323 {dimension_numbers = #tpu.dot_dimension_numbers<[1], [0], [0], [1], [0, 0, 1, 1], [], []>} : vector<8x128xbf16>, vector<128x32xbf16>, vector<8x32xf32> -> vector<8x32xf32>
    %c11_324 = arith.constant 11 : index
    %c0_325 = arith.constant 0 : index
    %c0_326 = arith.constant 0 : index
    %552 = vector.load %arg8[%c11_324, %c0_325, %c0_326] : memref<12x128x32xbf16, #tpu.memory_space<vmem>>, vector<1x128x32xbf16>
    %553 = vector.shape_cast %552 : vector<1x128x32xbf16> to vector<128x32xbf16>
    %cst_327 = arith.constant dense<0.000000e+00> : vector<8x32xf32>
    %554 = tpu.matmul %454, %553, %cst_327 {dimension_numbers = #tpu.dot_dimension_numbers<[1], [0], [0], [1], [0, 0, 1, 1], [], []>} : vector<8x128xbf16>, vector<128x32xbf16>, vector<8x32xf32> -> vector<8x32xf32>
    %c11_328 = arith.constant 11 : index
    %c0_329 = arith.constant 0 : index
    %c0_330 = arith.constant 0 : index
    %555 = vector.load %arg9[%c11_328, %c0_329, %c0_330] : memref<12x128x32xbf16, #tpu.memory_space<vmem>>, vector<1x128x32xbf16>
    %556 = vector.shape_cast %555 : vector<1x128x32xbf16> to vector<128x32xbf16>
    %cst_331 = arith.constant dense<0.000000e+00> : vector<8x32xf32>
    %557 = tpu.matmul %454, %556, %cst_331 {dimension_numbers = #tpu.dot_dimension_numbers<[1], [0], [0], [1], [0, 0, 1, 1], [], []>} : vector<8x128xbf16>, vector<128x32xbf16>, vector<8x32xf32> -> vector<8x32xf32>
    %558 = arith.truncf %551 : vector<8x32xf32> to vector<8x32xbf16>
    %559 = arith.truncf %554 : vector<8x32xf32> to vector<8x32xbf16>
    %560 = tpu.transpose %559, [1, 0] : vector<8x32xbf16> -> vector<32x8xbf16>
    %cst_332 = arith.constant dense<0.000000e+00> : vector<8x8xf32>
    %561 = tpu.matmul %558, %560, %cst_332 {dimension_numbers = #tpu.dot_dimension_numbers<[1], [0], [0], [1], [0, 0, 1, 1], [], []>} : vector<8x32xbf16>, vector<32x8xbf16>, vector<8x8xf32> -> vector<8x8xf32>
    %cst_333 = arith.constant dense<0xFF800000> : vector<8xf32>
    %562 = vector.multi_reduction <maximumf>, %561, %cst_333 [1] : vector<8x8xf32> to vector<8xf32>
    %563 = vector.shape_cast %562 : vector<8xf32> to vector<8x1xf32>
    %564 = vector.broadcast %563 : vector<8x1xf32> to vector<8x8xf32>
    %565 = arith.subf %561, %564 : vector<8x8xf32>
    %566 = math.exp %565 : vector<8x8xf32>
    %cst_334 = arith.constant dense<0.000000e+00> : vector<8xf32>
    %567 = vector.multi_reduction <add>, %566, %cst_334 [1] : vector<8x8xf32> to vector<8xf32>
    %568 = vector.shape_cast %567 : vector<8xf32> to vector<8x1xf32>
    %569 = tpu.reciprocal %568 {approx = true} : vector<8x1xf32> -> vector<8x1xf32>
    %570 = vector.broadcast %569 : vector<8x1xf32> to vector<8x8xf32>
    %571 = arith.mulf %566, %570 : vector<8x8xf32>
    %572 = arith.truncf %571 : vector<8x8xf32> to vector<8x8xbf16>
    %573 = arith.truncf %557 : vector<8x32xf32> to vector<8x32xbf16>
    %cst_335 = arith.constant dense<0.000000e+00> : vector<8x32xf32>
    %574 = tpu.matmul %572, %573, %cst_335 {dimension_numbers = #tpu.dot_dimension_numbers<[1], [0], [0], [1], [0, 0, 1, 1], [], []>} : vector<8x8xbf16>, vector<8x32xbf16>, vector<8x32xf32> -> vector<8x32xf32>
    %575 = arith.truncf %574 : vector<8x32xf32> to vector<8x32xbf16>
    %c11_336 = arith.constant 11 : index
    %c0_337 = arith.constant 0 : index
    %c0_338 = arith.constant 0 : index
    %576 = vector.load %arg10[%c11_336, %c0_337, %c0_338] : memref<12x32x128xbf16, #tpu.memory_space<vmem>>, vector<1x32x128xbf16>
    %577 = vector.shape_cast %576 : vector<1x32x128xbf16> to vector<32x128xbf16>
    %cst_339 = arith.constant dense<0.000000e+00> : vector<8x128xf32>
    %578 = tpu.matmul %575, %577, %cst_339 {dimension_numbers = #tpu.dot_dimension_numbers<[1], [0], [0], [1], [0, 0, 1, 1], [], []>} : vector<8x32xbf16>, vector<32x128xbf16>, vector<8x128xf32> -> vector<8x128xf32>
    %579 = arith.addf %548, %578 : vector<8x128xf32>
    %580 = arith.addf %3, %579 : vector<8x128xf32>
    %c2_340 = arith.constant 2 : index
    %c0_341 = arith.constant 0 : index
    %c0_342 = arith.constant 0 : index
    %581 = vector.load %arg11[%c2_340, %c0_341, %c0_342] : memref<3x1x128xf32, #tpu.memory_space<vmem>>, vector<1x1x128xf32>
    %582 = vector.shape_cast %581 : vector<1x1x128xf32> to vector<1x128xf32>
    %583 = vector.broadcast %582 : vector<1x128xf32> to vector<8x128xf32>
    %584 = arith.addf %580, %583 : vector<8x128xf32>
    %c2_343 = arith.constant 2 : index
    %c0_344 = arith.constant 0 : index
    %c0_345 = arith.constant 0 : index
    %585 = vector.load %arg12[%c2_343, %c0_344, %c0_345] : memref<3x1x128xf32, #tpu.memory_space<vmem>>, vector<1x1x128xf32>
    %586 = vector.shape_cast %585 : vector<1x1x128xf32> to vector<1x128xf32>
    %c2_346 = arith.constant 2 : index
    %c0_347 = arith.constant 0 : index
    %c0_348 = arith.constant 0 : index
    %587 = vector.load %arg13[%c2_346, %c0_347, %c0_348] : memref<3x1x128xf32, #tpu.memory_space<vmem>>, vector<1x1x128xf32>
    %588 = vector.shape_cast %587 : vector<1x1x128xf32> to vector<1x128xf32>
    %cst_349 = arith.constant dense<0.000000e+00> : vector<8xf32>
    %589 = vector.multi_reduction <add>, %584, %cst_349 [1] : vector<8x128xf32> to vector<8xf32>
    %590 = vector.shape_cast %589 : vector<8xf32> to vector<8x1xf32>
    %cst_350 = arith.constant 1.280000e+02 : f32
    %591 = vector.broadcast %cst_350 : f32 to vector<8x1xf32>
    %592 = arith.divf %590, %591 : vector<8x1xf32>
    %593 = vector.broadcast %592 : vector<8x1xf32> to vector<8x128xf32>
    %594 = arith.subf %584, %593 : vector<8x128xf32>
    %595 = arith.mulf %594, %594 : vector<8x128xf32>
    %cst_351 = arith.constant dense<0.000000e+00> : vector<8xf32>
    %596 = vector.multi_reduction <add>, %595, %cst_351 [1] : vector<8x128xf32> to vector<8xf32>
    %597 = vector.shape_cast %596 : vector<8xf32> to vector<8x1xf32>
    %cst_352 = arith.constant 1.280000e+02 : f32
    %598 = vector.broadcast %cst_352 : f32 to vector<8x1xf32>
    %599 = arith.divf %597, %598 : vector<8x1xf32>
    %cst_353 = arith.constant 9.99999974E-6 : f32
    %600 = vector.broadcast %cst_353 : f32 to vector<8x1xf32>
    %601 = arith.addf %599, %600 : vector<8x1xf32>
    %602 = math.rsqrt %601 : vector<8x1xf32>
    %603 = vector.broadcast %602 : vector<8x1xf32> to vector<8x128xf32>
    %604 = arith.mulf %594, %603 : vector<8x128xf32>
    %605 = vector.broadcast %586 : vector<1x128xf32> to vector<8x128xf32>
    %606 = arith.mulf %604, %605 : vector<8x128xf32>
    %607 = vector.broadcast %588 : vector<1x128xf32> to vector<8x128xf32>
    %608 = arith.addf %606, %607 : vector<8x128xf32>
    %609 = arith.truncf %608 : vector<8x128xf32> to vector<8x128xbf16>
    %c2_354 = arith.constant 2 : index
    %c0_355 = arith.constant 0 : index
    %c0_356 = arith.constant 0 : index
    %610 = vector.load %arg14[%c2_354, %c0_355, %c0_356] : memref<3x128x128xbf16, #tpu.memory_space<vmem>>, vector<1x128x128xbf16>
    %611 = vector.shape_cast %610 : vector<1x128x128xbf16> to vector<128x128xbf16>
    %cst_357 = arith.constant dense<0.000000e+00> : vector<8x128xf32>
    %612 = tpu.matmul %609, %611, %cst_357 {dimension_numbers = #tpu.dot_dimension_numbers<[1], [0], [0], [1], [0, 0, 1, 1], [], []>} : vector<8x128xbf16>, vector<128x128xbf16>, vector<8x128xf32> -> vector<8x128xf32>
    %c2_358 = arith.constant 2 : index
    %c0_359 = arith.constant 0 : index
    %c0_360 = arith.constant 0 : index
    %613 = vector.load %arg15[%c2_358, %c0_359, %c0_360] : memref<3x1x128xf32, #tpu.memory_space<vmem>>, vector<1x1x128xf32>
    %614 = vector.shape_cast %613 : vector<1x1x128xf32> to vector<1x128xf32>
    %615 = vector.broadcast %614 : vector<1x128xf32> to vector<8x128xf32>
    %616 = arith.addf %612, %615 : vector<8x128xf32>
    %cst_361 = arith.constant 0.000000e+00 : f32
    %617 = vector.broadcast %cst_361 : f32 to vector<8x128xf32>
    %618 = arith.maximumf %616, %617 : vector<8x128xf32>
    %619 = arith.truncf %618 : vector<8x128xf32> to vector<8x128xbf16>
    %c2_362 = arith.constant 2 : index
    %c0_363 = arith.constant 0 : index
    %c0_364 = arith.constant 0 : index
    %620 = vector.load %arg16[%c2_362, %c0_363, %c0_364] : memref<3x128x128xbf16, #tpu.memory_space<vmem>>, vector<1x128x128xbf16>
    %621 = vector.shape_cast %620 : vector<1x128x128xbf16> to vector<128x128xbf16>
    %cst_365 = arith.constant dense<0.000000e+00> : vector<8x128xf32>
    %622 = tpu.matmul %619, %621, %cst_365 {dimension_numbers = #tpu.dot_dimension_numbers<[1], [0], [0], [1], [0, 0, 1, 1], [], []>} : vector<8x128xbf16>, vector<128x128xbf16>, vector<8x128xf32> -> vector<8x128xf32>
    %c2_366 = arith.constant 2 : index
    %c0_367 = arith.constant 0 : index
    %c0_368 = arith.constant 0 : index
    %623 = vector.load %arg17[%c2_366, %c0_367, %c0_368] : memref<3x1x128xf32, #tpu.memory_space<vmem>>, vector<1x1x128xf32>
    %624 = vector.shape_cast %623 : vector<1x1x128xf32> to vector<1x128xf32>
    %625 = vector.broadcast %624 : vector<1x128xf32> to vector<8x128xf32>
    %626 = arith.addf %622, %625 : vector<8x128xf32>
    %627 = arith.addf %584, %626 : vector<8x128xf32>
    %c0_369 = arith.constant 0 : index
    %c0_370 = arith.constant 0 : index
    %c0_371 = arith.constant 0 : index
    %628 = vector.load %arg18[%c0_369, %c0_370, %c0_371] : memref<1x8x128xf32, #tpu.memory_space<vmem>>, vector<1x8x128xf32>
    %629 = vector.shape_cast %628 : vector<1x8x128xf32> to vector<8x128xf32>
    %630 = vector.shape_cast %627 : vector<8x128xf32> to vector<1x8x128xf32>
    tpu.vector_store %arg18[%c0_369, %c0_370, %c0_371], %630 {strides = array<i32>} : memref<1x8x128xf32, #tpu.memory_space<vmem>>, vector<1x8x128xf32>,
    return
  }
  func.func @transform_0(%arg0: i32) -> (i32, i32, i32) {
    %c0_i32 = arith.constant 0 : i32
    %c0_i32_0 = arith.constant 0 : i32
    %c0_i32_1 = arith.constant 0 : i32
    return %arg0, %c0_i32, %c0_i32_0 : i32, i32, i32
  }
  func.func @transform_1(%arg0: i32) -> (i32, i32, i32) {
    %c0_i32 = arith.constant 0 : i32
    %c0_i32_0 = arith.constant 0 : i32
    %c0_i32_1 = arith.constant 0 : i32
    return %arg0, %c0_i32, %c0_i32_0 : i32, i32, i32
  }
  func.func @transform_2(%arg0: i32) -> (i32, i32, i32) {
    %c0_i32 = arith.constant 0 : i32
    %c0_i32_0 = arith.constant 0 : i32
    %c0_i32_1 = arith.constant 0 : i32
    return %arg0, %c0_i32, %c0_i32_0 : i32, i32, i32
  }
  func.func @transform_3(%arg0: i32) -> (i32, i32) {
    %c0_i32 = arith.constant 0 : i32
    %c0_i32_0 = arith.constant 0 : i32
    %c0_i32_1 = arith.constant 0 : i32
    return %c0_i32, %c0_i32_0 : i32, i32
  }
  func.func @transform_4(%arg0: i32) -> (i32, i32, i32) {
    %c0_i32 = arith.constant 0 : i32
    %c0_i32_0 = arith.constant 0 : i32
    %c0_i32_1 = arith.constant 0 : i32
    %c0_i32_2 = arith.constant 0 : i32
    return %c0_i32, %c0_i32_0, %c0_i32_1 : i32, i32, i32
  }
  func.func @transform_5(%arg0: i32) -> (i32, i32, i32) {
    %c0_i32 = arith.constant 0 : i32
    %c0_i32_0 = arith.constant 0 : i32
    %c0_i32_1 = arith.constant 0 : i32
    %c0_i32_2 = arith.constant 0 : i32
    return %c0_i32, %c0_i32_0, %c0_i32_1 : i32, i32, i32
  }
  func.func @transform_6(%arg0: i32) -> (i32, i32, i32) {
    %c0_i32 = arith.constant 0 : i32
    %c0_i32_0 = arith.constant 0 : i32
    %c0_i32_1 = arith.constant 0 : i32
    %c0_i32_2 = arith.constant 0 : i32
    return %c0_i32, %c0_i32_0, %c0_i32_1 : i32, i32, i32
  }
  func.func @transform_7(%arg0: i32) -> (i32, i32, i32) {
    %c0_i32 = arith.constant 0 : i32
    %c0_i32_0 = arith.constant 0 : i32
    %c0_i32_1 = arith.constant 0 : i32
    %c0_i32_2 = arith.constant 0 : i32
    return %c0_i32, %c0_i32_0, %c0_i32_1 : i32, i32, i32
  }
  func.func @transform_8(%arg0: i32) -> (i32, i32, i32) {
    %c0_i32 = arith.constant 0 : i32
    %c0_i32_0 = arith.constant 0 : i32
    %c0_i32_1 = arith.constant 0 : i32
    %c0_i32_2 = arith.constant 0 : i32
    return %c0_i32, %c0_i32_0, %c0_i32_1 : i32, i32, i32
  }
  func.func @transform_9(%arg0: i32) -> (i32, i32, i32) {
    %c0_i32 = arith.constant 0 : i32
    %c0_i32_0 = arith.constant 0 : i32
    %c0_i32_1 = arith.constant 0 : i32
    %c0_i32_2 = arith.constant 0 : i32
    return %c0_i32, %c0_i32_0, %c0_i32_1 : i32, i32, i32
  }
  func.func @transform_10(%arg0: i32) -> (i32, i32, i32) {
    %c0_i32 = arith.constant 0 : i32
    %c0_i32_0 = arith.constant 0 : i32
    %c0_i32_1 = arith.constant 0 : i32
    %c0_i32_2 = arith.constant 0 : i32
    return %c0_i32, %c0_i32_0, %c0_i32_1 : i32, i32, i32
  }
  func.func @transform_11(%arg0: i32) -> (i32, i32, i32) {
    %c0_i32 = arith.constant 0 : i32
    %c0_i32_0 = arith.constant 0 : i32
    %c0_i32_1 = arith.constant 0 : i32
    %c0_i32_2 = arith.constant 0 : i32
    return %c0_i32, %c0_i32_0, %c0_i32_1 : i32, i32, i32
  }
  func.func @transform_12(%arg0: i32) -> (i32, i32, i32) {
    %c0_i32 = arith.constant 0 : i32
    %c0_i32_0 = arith.constant 0 : i32
    %c0_i32_1 = arith.constant 0 : i32
    %c0_i32_2 = arith.constant 0 : i32
    return %c0_i32, %c0_i32_0, %c0_i32_1 : i32, i32, i32
  }
  func.func @transform_13(%arg0: i32) -> (i32, i32, i32) {
    %c0_i32 = arith.constant 0 : i32
    %c0_i32_0 = arith.constant 0 : i32
    %c0_i32_1 = arith.constant 0 : i32
    %c0_i32_2 = arith.constant 0 : i32
    return %c0_i32, %c0_i32_0, %c0_i32_1 : i32, i32, i32
  }
  func.func @transform_14(%arg0: i32) -> (i32, i32, i32) {
    %c0_i32 = arith.constant 0 : i32
    %c0_i32_0 = arith.constant 0 : i32
    %c0_i32_1 = arith.constant 0 : i32
    %c0_i32_2 = arith.constant 0 : i32
    return %c0_i32, %c0_i32_0, %c0_i32_1 : i32, i32, i32
  }
  func.func @transform_15(%arg0: i32) -> (i32, i32, i32) {
    %c0_i32 = arith.constant 0 : i32
    %c0_i32_0 = arith.constant 0 : i32
    %c0_i32_1 = arith.constant 0 : i32
    %c0_i32_2 = arith.constant 0 : i32
    return %c0_i32, %c0_i32_0, %c0_i32_1 : i32, i32, i32
  }
  func.func @transform_16(%arg0: i32) -> (i32, i32, i32) {
    %c0_i32 = arith.constant 0 : i32
    %c0_i32_0 = arith.constant 0 : i32
    %c0_i32_1 = arith.constant 0 : i32
    %c0_i32_2 = arith.constant 0 : i32
    return %c0_i32, %c0_i32_0, %c0_i32_1 : i32, i32, i32
  }
  func.func @transform_17(%arg0: i32) -> (i32, i32, i32) {
    %c0_i32 = arith.constant 0 : i32
    %c0_i32_0 = arith.constant 0 : i32
    %c0_i32_1 = arith.constant 0 : i32
    return %arg0, %c0_i32, %c0_i32_0 : i32, i32, i32
  }
}

</mosaic_0001>

<llo_original>
// kernel: conv_layer_forward.1
$region0: #{conv_layer_forward.1}
  #allocation0 [shape = 'u32[]', space=smem, size = 0x4, offset = 0x4, fixed_abs, tag = 'smem constant byte address 0x4 - core index']
  #allocation1 [shape = 'u32[144,128]{1,0:T(1,128)}', space=vmem, size = 0x12000, scoped, tag = 'internal scratch']
  %s0 = inlined_call_operand.vmem [shape: f32[2,8,128], index: 0, kind: input, shape index: {}]
  %s1 = inlined_call_operand.vmem [shape: f32[2,8,128], index: 1, kind: input, shape index: {}]
  %s2 = inlined_call_operand.vmem [shape: f32[2,1,8], index: 2, kind: input, shape index: {}]
  %s3 = inlined_call_operand.vmem [shape: f32[8,128], index: 3, kind: input, shape index: {}]
  %s4 = inlined_call_operand.vmem [shape: f32[3,1,128], index: 4, kind: input, shape index: {}]
  %s5 = inlined_call_operand.vmem [shape: f32[3,1,128], index: 5, kind: input, shape index: {}]
  %s6 = inlined_call_operand.vmem [shape: bf16[12,128,32], index: 6, kind: input, shape index: {}]
  %s7 = inlined_call_operand.vmem [shape: bf16[12,128,32], index: 7, kind: input, shape index: {}]
  %s8 = inlined_call_operand.vmem [shape: bf16[12,128,32], index: 8, kind: input, shape index: {}]
  %s9 = inlined_call_operand.vmem [shape: bf16[12,32,128], index: 9, kind: input, shape index: {}]
  %s10 = inlined_call_operand.vmem [shape: f32[3,1,128], index: 10, kind: input, shape index: {}]
  %s11 = inlined_call_operand.vmem [shape: f32[3,1,128], index: 11, kind: input, shape index: {}]
  %s12 = inlined_call_operand.vmem [shape: f32[3,1,128], index: 12, kind: input, shape index: {}]
  %s13 = inlined_call_operand.vmem [shape: bf16[3,128,128], index: 13, kind: input, shape index: {}]
  %s14 = inlined_call_operand.vmem [shape: f32[3,1,128], index: 14, kind: input, shape index: {}]
  %s15 = inlined_call_operand.vmem [shape: bf16[3,128,128], index: 15, kind: input, shape index: {}]
  %s16 = inlined_call_operand.vmem [shape: f32[3,1,128], index: 16, kind: input, shape index: {}]
  %s17 = inlined_call_operand.hbm [shape: f32[2,8,128], index: 17, kind: output, shape index: {}]
  %s18 = sld [smem:[#allocation0]]
  $region101: #{conv_layer_forward.1} parent=0
    _
  %s20 = ssub.s32 1, %s18
  %s21 = scalar_select 0, %s20, %s18
  $region1: #{conv_layer_forward.1} parent=0
    #allocation2 [shape = 'u8[8192]{0}', space=vmem, size = 0x2000, scoped, tag = 'output window, operand 0']
    #allocation3 [shape = 's32[2]{0}', space=sflag, size = 0x8, scoped, tag = 'scoped memory for conv_layer_forward.1']
    %22 = vsyncpa [#allocation3], 0
    %s23 = scalar_lea.sflag [#allocation3], 1
    %24 = vsyncpa %s23, 0
    loop: start=0, step=1, limit=4
    $region2: #{conv_layer_forward.1} parent=1 // loop_pre_header
      _
    $region3: #{conv_layer_forward.1} parent=1 // loop_header
      %s26 = sphi 0, %s30
      %p27 = scmp.ge.s32.totalorder %s26, 4
      %s36 = sphi 0, %s38
      %s39 = sphi 0, %s36
      %s40 = sphi 0, %s39
      %s56 = sphi 0, %s40
      %s62 = sphi 0, %s64
      %s65 = sphi 0, %s62
      %s66 = sphi 0, %s65
      %s82 = sphi 0, %s66
      %s88 = sphi 0, %s90
      %s91 = sphi 0, %s88
      %s92 = sphi 0, %s91
      %s108 = sphi 0, %s92
      %s112 = sphi 0, %s112
      %s114 = sphi 0, %s112
      %s115 = sphi 0, %s114
      %s129 = sphi 0, %s115
      %s133 = sphi 0, %s133
      %s135 = sphi 0, %s133
      %s136 = sphi 0, %s135
      %s150 = sphi 0, %s136
      %s154 = sphi 0, %s154
      %s156 = sphi 0, %s154
      %s157 = sphi 0, %s156
      %s171 = sphi 0, %s157
      %s175 = sphi 0, %s175
      %s177 = sphi 0, %s175
      %s178 = sphi 0, %s177
      %s192 = sphi 0, %s178
      %s196 = sphi 0, %s196
      %s198 = sphi 0, %s196
      %s199 = sphi 0, %s198
      %s213 = sphi 0, %s199
      %s217 = sphi 0, %s217
      %s219 = sphi 0, %s217
      %s220 = sphi 0, %s219
      %s234 = sphi 0, %s220
      %s238 = sphi 0, %s238
      %s240 = sphi 0, %s238
      %s241 = sphi 0, %s240
      %s255 = sphi 0, %s241
      %s259 = sphi 0, %s259
      %s261 = sphi 0, %s259
      %s262 = sphi 0, %s261
      %s276 = sphi 0, %s262
      %s280 = sphi 0, %s280
      %s282 = sphi 0, %s280
      %s283 = sphi 0, %s282
      %s297 = sphi 0, %s283
      %s301 = sphi 0, %s301
      %s303 = sphi 0, %s301
      %s304 = sphi 0, %s303
      %s318 = sphi 0, %s304
      %s322 = sphi 0, %s322
      %s324 = sphi 0, %s322
      %s325 = sphi 0, %s324
      %s339 = sphi 0, %s325
      %s343 = sphi 0, %s343
      %s345 = sphi 0, %s343
      %s346 = sphi 0, %s345
      %s360 = sphi 0, %s346
      %s364 = sphi 0, %s364
      %s366 = sphi 0, %s364
      %s367 = sphi 0, %s366
      %s381 = sphi 0, %s367
      %s385 = sphi 0, %s385
      %s387 = sphi 0, %s385
      %s388 = sphi 0, %s387
      %s402 = sphi 0, %s388
      %s408 = sphi 0, %s410
      %s411 = sphi 0, %s408
      %s412 = sphi 0, %s411
      %s428 = sphi 0, %s412
    $region4: #{conv_layer_forward.1} parent=1 // loop_header_branch
      %29 = sbr.rel (%p27) target = $region8
    $region5: #{conv_layer_forward.1} parent=1 // loop_body
      %s31 = ssub.s32 %s26, 1
      %s32 = ssub.s32 %s26, 2
      %s33 = sadd.s32 %s26, 1
      %s34 = ssub.s32 %s26, %s33
      %p35 = scmp.eq.s32.totalorder %s34, 0
      %s37 = sadd.s32 %s36, 1
      %s38 = scalar_select %p35, %s36, %s37
      %p41 = pneg %p35
      %p42 = scmp.eq.s32.totalorder %s26, 1
      %p43 = por %p41, %p42
      %p44 = scmp.ne.s32.totalorder %s36, %s39
      %p45 = scmp.eq.s32.totalorder %s26, 0
      %p46 = por %p44, %p45
      %p47 = scmp.ne.s32.totalorder %s36, %s39
      %p48 = scmp.eq.s32.totalorder %s31, 1
      %p49 = por %p47, %p48
      %p50 = scmp.ne.s32.totalorder %s39, %s40
      %p51 = scmp.eq.s32.totalorder %s31, 0
      %p52 = por %p50, %p51
      %p53 = scmp.ne.s32.totalorder %s39, %s40
      %p54 = scmp.eq.s32.totalorder %s32, 1
      %p55 = por %p53, %p54
      %p57 = scmp.ne.s32.totalorder %s40, %s56
      %p58 = scmp.eq.s32.totalorder %s32, 0
      %p59 = por %p57, %p58
      %s60 = ssub.s32 %s26, %s33
      %p61 = scmp.eq.s32.totalorder %s60, 0
      %s63 = sadd.s32 %s62, 1
      %s64 = scalar_select %p61, %s62, %s63
      %p67 = pneg %p61
      %p68 = scmp.eq.s32.totalorder %s26, 1
      %p69 = por %p67, %p68
      %p70 = scmp.ne.s32.totalorder %s62, %s65
      %p71 = scmp.eq.s32.totalorder %s26, 0
      %p72 = por %p70, %p71
      %p73 = scmp.ne.s32.totalorder %s62, %s65
      %p74 = scmp.eq.s32.totalorder %s31, 1
      %p75 = por %p73, %p74
      %p76 = scmp.ne.s32.totalorder %s65, %s66
      %p77 = scmp.eq.s32.totalorder %s31, 0
      %p78 = por %p76, %p77
      %p79 = scmp.ne.s32.totalorder %s65, %s66
      %p80 = scmp.eq.s32.totalorder %s32, 1
      %p81 = por %p79, %p80
      %p83 = scmp.ne.s32.totalorder %s66, %s82
      %p84 = scmp.eq.s32.totalorder %s32, 0
      %p85 = por %p83, %p84
      %s86 = ssub.s32 %s26, %s33
      %p87 = scmp.eq.s32.totalorder %s86, 0
      %s89 = sadd.s32 %s88, 1
      %s90 = scalar_select %p87, %s88, %s89
      %p93 = pneg %p87
      %p94 = scmp.eq.s32.totalorder %s26, 1
      %p95 = por %p93, %p94
      %p96 = scmp.ne.s32.totalorder %s88, %s91
      %p97 = scmp.eq.s32.totalorder %s26, 0
      %p98 = por %p96, %p97
      %p99 = scmp.ne.s32.totalorder %s88, %s91
      %p100 = scmp.eq.s32.totalorder %s31, 1
      %p101 = por %p99, %p100
      %p102 = scmp.ne.s32.totalorder %s91, %s92
      %p103 = scmp.eq.s32.totalorder %s31, 0
      %p104 = por %p102, %p103
      %p105 = scmp.ne.s32.totalorder %s91, %s92
      %p106 = scmp.eq.s32.totalorder %s32, 1
      %p107 = por %p105, %p106
      %p109 = scmp.ne.s32.totalorder %s92, %s108
      %p110 = scmp.eq.s32.totalorder %s32, 0
      %p111 = por %p109, %p110
      %s113 = sadd.s32 %s112, 1
      %p116 = scmp.eq.s32.totalorder %s26, 1
      %p117 = scmp.ne.s32.totalorder %s112, %s114
      %p118 = scmp.eq.s32.totalorder %s26, 0
      %p119 = por %p117, %p118
      %p120 = scmp.ne.s32.totalorder %s112, %s114
      %p121 = scmp.eq.s32.totalorder %s31, 1
      %p122 = por %p120, %p121
      %p123 = scmp.ne.s32.totalorder %s114, %s115
      %p124 = scmp.eq.s32.totalorder %s31, 0
      %p125 = por %p123, %p124
      %p126 = scmp.ne.s32.totalorder %s114, %s115
      %p127 = scmp.eq.s32.totalorder %s32, 1
      %p128 = por %p126, %p127
      %p130 = scmp.ne.s32.totalorder %s115, %s129
      %p131 = scmp.eq.s32.totalorder %s32, 0
      %p132 = por %p130, %p131
      %s134 = sadd.s32 %s133, 1
      %p137 = scmp.eq.s32.totalorder %s26, 1
      %p138 = scmp.ne.s32.totalorder %s133, %s135
      %p139 = scmp.eq.s32.totalorder %s26, 0
      %p140 = por %p138, %p139
      %p141 = scmp.ne.s32.totalorder %s133, %s135
      %p142 = scmp.eq.s32.totalorder %s31, 1
      %p143 = por %p141, %p142
      %p144 = scmp.ne.s32.totalorder %s135, %s136
      %p145 = scmp.eq.s32.totalorder %s31, 0
      %p146 = por %p144, %p145
      %p147 = scmp.ne.s32.totalorder %s135, %s136
      %p148 = scmp.eq.s32.totalorder %s32, 1
      %p149 = por %p147, %p148
      %p151 = scmp.ne.s32.totalorder %s136, %s150
      %p152 = scmp.eq.s32.totalorder %s32, 0
      %p153 = por %p151, %p152
      %s155 = sadd.s32 %s154, 1
      %p158 = scmp.eq.s32.totalorder %s26, 1
      %p159 = scmp.ne.s32.totalorder %s154, %s156
      %p160 = scmp.eq.s32.totalorder %s26, 0
      %p161 = por %p159, %p160
      %p162 = scmp.ne.s32.totalorder %s154, %s156
      %p163 = scmp.eq.s32.totalorder %s31, 1
      %p164 = por %p162, %p163
      %p165 = scmp.ne.s32.totalorder %s156, %s157
      %p166 = scmp.eq.s32.totalorder %s31, 0
      %p167 = por %p165, %p166
      %p168 = scmp.ne.s32.totalorder %s156, %s157
      %p169 = scmp.eq.s32.totalorder %s32, 1
      %p170 = por %p168, %p169
      %p172 = scmp.ne.s32.totalorder %s157, %s171
      %p173 = scmp.eq.s32.totalorder %s32, 0
      %p174 = por %p172, %p173
      %s176 = sadd.s32 %s175, 1
      %p179 = scmp.eq.s32.totalorder %s26, 1
      %p180 = scmp.ne.s32.totalorder %s175, %s177
      %p181 = scmp.eq.s32.totalorder %s26, 0
      %p182 = por %p180, %p181
      %p183 = scmp.ne.s32.totalorder %s175, %s177
      %p184 = scmp.eq.s32.totalorder %s31, 1
      %p185 = por %p183, %p184
      %p186 = scmp.ne.s32.totalorder %s177, %s178
      %p187 = scmp.eq.s32.totalorder %s31, 0
      %p188 = por %p186, %p187
      %p189 = scmp.ne.s32.totalorder %s177, %s178
      %p190 = scmp.eq.s32.totalorder %s32, 1
      %p191 = por %p189, %p190
      %p193 = scmp.ne.s32.totalorder %s178, %s192
      %p194 = scmp.eq.s32.totalorder %s32, 0
      %p195 = por %p193, %p194
      %s197 = sadd.s32 %s196, 1
      %p200 = scmp.eq.s32.totalorder %s26, 1
      %p201 = scmp.ne.s32.totalorder %s196, %s198
      %p202 = scmp.eq.s32.totalorder %s26, 0
      %p203 = por %p201, %p202
      %p204 = scmp.ne.s32.totalorder %s196, %s198
      %p205 = scmp.eq.s32.totalorder %s31, 1
      %p206 = por %p204, %p205
      %p207 = scmp.ne.s32.totalorder %s198, %s199
      %p208 = scmp.eq.s32.totalorder %s31, 0
      %p209 = por %p207, %p208
      %p210 = scmp.ne.s32.totalorder %s198, %s199
      %p211 = scmp.eq.s32.totalorder %s32, 1
      %p212 = por %p210, %p211
      %p214 = scmp.ne.s32.totalorder %s199, %s213
      %p215 = scmp.eq.s32.totalorder %s32, 0
      %p216 = por %p214, %p215
      %s218 = sadd.s32 %s217, 1
      %p221 = scmp.eq.s32.totalorder %s26, 1
      %p222 = scmp.ne.s32.totalorder %s217, %s219
      %p223 = scmp.eq.s32.totalorder %s26, 0
      %p224 = por %p222, %p223
      %p225 = scmp.ne.s32.totalorder %s217, %s219
      %p226 = scmp.eq.s32.totalorder %s31, 1
      %p227 = por %p225, %p226
      %p228 = scmp.ne.s32.totalorder %s219, %s220
      %p229 = scmp.eq.s32.totalorder %s31, 0
      %p230 = por %p228, %p229
      %p231 = scmp.ne.s32.totalorder %s219, %s220
      %p232 = scmp.eq.s32.totalorder %s32, 1
      %p233 = por %p231, %p232
      %p235 = scmp.ne.s32.totalorder %s220, %s234
      %p236 = scmp.eq.s32.totalorder %s32, 0
      %p237 = por %p235, %p236
      %s239 = sadd.s32 %s238, 1
      %p242 = scmp.eq.s32.totalorder %s26, 1
      %p243 = scmp.ne.s32.totalorder %s238, %s240
      %p244 = scmp.eq.s32.totalorder %s26, 0
      %p245 = por %p243, %p244
      %p246 = scmp.ne.s32.totalorder %s238, %s240
      %p247 = scmp.eq.s32.totalorder %s31, 1
      %p248 = por %p246, %p247
      %p249 = scmp.ne.s32.totalorder %s240, %s241
      %p250 = scmp.eq.s32.totalorder %s31, 0
      %p251 = por %p249, %p250
      %p252 = scmp.ne.s32.totalorder %s240, %s241
      %p253 = scmp.eq.s32.totalorder %s32, 1
      %p254 = por %p252, %p253
      %p256 = scmp.ne.s32.totalorder %s241, %s255
      %p257 = scmp.eq.s32.totalorder %s32, 0
      %p258 = por %p256, %p257
      %s260 = sadd.s32 %s259, 1
      %p263 = scmp.eq.s32.totalorder %s26, 1
      %p264 = scmp.ne.s32.totalorder %s259, %s261
      %p265 = scmp.eq.s32.totalorder %s26, 0
      %p266 = por %p264, %p265
      %p267 = scmp.ne.s32.totalorder %s259, %s261
      %p268 = scmp.eq.s32.totalorder %s31, 1
      %p269 = por %p267, %p268
      %p270 = scmp.ne.s32.totalorder %s261, %s262
      %p271 = scmp.eq.s32.totalorder %s31, 0
      %p272 = por %p270, %p271
      %p273 = scmp.ne.s32.totalorder %s261, %s262
      %p274 = scmp.eq.s32.totalorder %s32, 1
      %p275 = por %p273, %p274
      %p277 = scmp.ne.s32.totalorder %s262, %s276
      %p278 = scmp.eq.s32.totalorder %s32, 0
      %p279 = por %p277, %p278
      %s281 = sadd.s32 %s280, 1
      %p284 = scmp.eq.s32.totalorder %s26, 1
      %p285 = scmp.ne.s32.totalorder %s280, %s282
      %p286 = scmp.eq.s32.totalorder %s26, 0
      %p287 = por %p285, %p286
      %p288 = scmp.ne.s32.totalorder %s280, %s282
      %p289 = scmp.eq.s32.totalorder %s31, 1
      %p290 = por %p288, %p289
      %p291 = scmp.ne.s32.totalorder %s282, %s283
      %p292 = scmp.eq.s32.totalorder %s31, 0
      %p293 = por %p291, %p292
      %p294 = scmp.ne.s32.totalorder %s282, %s283
      %p295 = scmp.eq.s32.totalorder %s32, 1
      %p296 = por %p294, %p295
      %p298 = scmp.ne.s32.totalorder %s283, %s297
      %p299 = scmp.eq.s32.totalorder %s32, 0
      %p300 = por %p298, %p299
      %s302 = sadd.s32 %s301, 1
      %p305 = scmp.eq.s32.totalorder %s26, 1
      %p306 = scmp.ne.s32.totalorder %s301, %s303
      %p307 = scmp.eq.s32.totalorder %s26, 0
      %p308 = por %p306, %p307
      %p309 = scmp.ne.s32.totalorder %s301, %s303
      %p310 = scmp.eq.s32.totalorder %s31, 1
      %p311 = por %p309, %p310
      %p312 = scmp.ne.s32.totalorder %s303, %s304
      %p313 = scmp.eq.s32.totalorder %s31, 0
      %p314 = por %p312, %p313
      %p315 = scmp.ne.s32.totalorder %s303, %s304
      %p316 = scmp.eq.s32.totalorder %s32, 1
      %p317 = por %p315, %p316
      %p319 = scmp.ne.s32.totalorder %s304, %s318
      %p320 = scmp.eq.s32.totalorder %s32, 0
      %p321 = por %p319, %p320
      %s323 = sadd.s32 %s322, 1
      %p326 = scmp.eq.s32.totalorder %s26, 1
      %p327 = scmp.ne.s32.totalorder %s322, %s324
      %p328 = scmp.eq.s32.totalorder %s26, 0
      %p329 = por %p327, %p328
      %p330 = scmp.ne.s32.totalorder %s322, %s324
      %p331 = scmp.eq.s32.totalorder %s31, 1
      %p332 = por %p330, %p331
      %p333 = scmp.ne.s32.totalorder %s324, %s325
      %p334 = scmp.eq.s32.totalorder %s31, 0
      %p335 = por %p333, %p334
      %p336 = scmp.ne.s32.totalorder %s324, %s325
      %p337 = scmp.eq.s32.totalorder %s32, 1
      %p338 = por %p336, %p337
      %p340 = scmp.ne.s32.totalorder %s325, %s339
      %p341 = scmp.eq.s32.totalorder %s32, 0
      %p342 = por %p340, %p341
      %s344 = sadd.s32 %s343, 1
      %p347 = scmp.eq.s32.totalorder %s26, 1
      %p348 = scmp.ne.s32.totalorder %s343, %s345
      %p349 = scmp.eq.s32.totalorder %s26, 0
      %p350 = por %p348, %p349
      %p351 = scmp.ne.s32.totalorder %s343, %s345
      %p352 = scmp.eq.s32.totalorder %s31, 1
      %p353 = por %p351, %p352
      %p354 = scmp.ne.s32.totalorder %s345, %s346
      %p355 = scmp.eq.s32.totalorder %s31, 0
      %p356 = por %p354, %p355
      %p357 = scmp.ne.s32.totalorder %s345, %s346
      %p358 = scmp.eq.s32.totalorder %s32, 1
      %p359 = por %p357, %p358
      %p361 = scmp.ne.s32.totalorder %s346, %s360
      %p362 = scmp.eq.s32.totalorder %s32, 0
      %p363 = por %p361, %p362
      %s365 = sadd.s32 %s364, 1
      %p368 = scmp.eq.s32.totalorder %s26, 1
      %p369 = scmp.ne.s32.totalorder %s364, %s366
      %p370 = scmp.eq.s32.totalorder %s26, 0
      %p371 = por %p369, %p370
      %p372 = scmp.ne.s32.totalorder %s364, %s366
      %p373 = scmp.eq.s32.totalorder %s31, 1
      %p374 = por %p372, %p373
      %p375 = scmp.ne.s32.totalorder %s366, %s367
      %p376 = scmp.eq.s32.totalorder %s31, 0
      %p377 = por %p375, %p376
      %p378 = scmp.ne.s32.totalorder %s366, %s367
      %p379 = scmp.eq.s32.totalorder %s32, 1
      %p380 = por %p378, %p379
      %p382 = scmp.ne.s32.totalorder %s367, %s381
      %p383 = scmp.eq.s32.totalorder %s32, 0
      %p384 = por %p382, %p383
      %s386 = sadd.s32 %s385, 1
      %p389 = scmp.eq.s32.totalorder %s26, 1
      %p390 = scmp.ne.s32.totalorder %s385, %s387
      %p391 = scmp.eq.s32.totalorder %s26, 0
      %p392 = por %p390, %p391
      %p393 = scmp.ne.s32.totalorder %s385, %s387
      %p394 = scmp.eq.s32.totalorder %s31, 1
      %p395 = por %p393, %p394
      %p396 = scmp.ne.s32.totalorder %s387, %s388
      %p397 = scmp.eq.s32.totalorder %s31, 0
      %p398 = por %p396, %p397
      %p399 = scmp.ne.s32.totalorder %s387, %s388
      %p400 = scmp.eq.s32.totalorder %s32, 1
      %p401 = por %p399, %p400
      %p403 = scmp.ne.s32.totalorder %s388, %s402
      %p404 = scmp.eq.s32.totalorder %s32, 0
      %p405 = por %p403, %p404
      %s406 = ssub.s32 %s26, %s33
      %p407 = scmp.eq.s32.totalorder %s406, 0
      %s409 = sadd.s32 %s408, 1
      %s410 = scalar_select %p407, %s408, %s409
      %p413 = pneg %p407
      %p414 = scmp.eq.s32.totalorder %s26, 1
      %p415 = por %p413, %p414
      %p416 = scmp.ne.s32.totalorder %s408, %s411
      %p417 = scmp.eq.s32.totalorder %s26, 0
      %p418 = por %p416, %p417
      %p419 = scmp.ne.s32.totalorder %s408, %s411
      %p420 = scmp.eq.s32.totalorder %s31, 1
      %p421 = por %p419, %p420
      %p422 = scmp.ne.s32.totalorder %s411, %s412
      %p423 = scmp.eq.s32.totalorder %s31, 0
      %p424 = por %p422, %p423
      %p425 = scmp.ne.s32.totalorder %s411, %s412
      %p426 = scmp.eq.s32.totalorder %s32, 1
      %p427 = por %p425, %p426
      %p429 = scmp.ne.s32.totalorder %s412, %s428
      %p430 = scmp.eq.s32.totalorder %s32, 0
      %p431 = por %p429, %p430
      %p432 = scmp.le.s32.totalorder 1, %s26
      %p433 = scmp.lt.s32.totalorder %s26, 3
      %p434 = pnand %p432, %p433
      %p435 = pneg %p434
      // Predicated region
      $region9: #{conv_layer_forward.1} parent=5 // pred_check
        _
      $region10: #{conv_layer_forward.1} parent=5 // pred_check_branch
        %437 = sbr.rel (%p434) target = $region12
      $region11: #{conv_layer_forward.1} parent=5 // pred_region
        %s438 = ssub.s32 %s26, 1
        // Predicated region
        $region13: #{conv_layer_forward.1} parent=11 // pred_check
          %p439 = pneg %p125
        $region14: #{conv_layer_forward.1} parent=11 // pred_check_branch
          %441 = sbr.rel (%p439) target = $region16
        $region15: #{conv_layer_forward.1} parent=11 // pred_region
          _
        $region16: #{conv_layer_forward.1} parent=11 // pred_fallthru
          _
        // Predicated region
        $region17: #{conv_layer_forward.1} parent=11 // pred_check
          %p442 = pneg %p146
        $region18: #{conv_layer_forward.1} parent=11 // pred_check_branch
          %444 = sbr.rel (%p442) target = $region20
        $region19: #{conv_layer_forward.1} parent=11 // pred_region
          _
        $region20: #{conv_layer_forward.1} parent=11 // pred_fallthru
          _
        // Predicated region
        $region21: #{conv_layer_forward.1} parent=11 // pred_check
          %p445 = pneg %p167
        $region22: #{conv_layer_forward.1} parent=11 // pred_check_branch
          %447 = sbr.rel (%p445) target = $region24
        $region23: #{conv_layer_forward.1} parent=11 // pred_region
          _
        $region24: #{conv_layer_forward.1} parent=11 // pred_fallthru
          _
        // Predicated region
        $region25: #{conv_layer_forward.1} parent=11 // pred_check
          %p448 = pneg %p188
        $region26: #{conv_layer_forward.1} parent=11 // pred_check_branch
          %450 = sbr.rel (%p448) target = $region28
        $region27: #{conv_layer_forward.1} parent=11 // pred_region
          _
        $region28: #{conv_layer_forward.1} parent=11 // pred_fallthru
          _
        // Predicated region
        $region29: #{conv_layer_forward.1} parent=11 // pred_check
          %p451 = pneg %p209
        $region30: #{conv_layer_forward.1} parent=11 // pred_check_branch
          %453 = sbr.rel (%p451) target = $region32
        $region31: #{conv_layer_forward.1} parent=11 // pred_region
          _
        $region32: #{conv_layer_forward.1} parent=11 // pred_fallthru
          _
        // Predicated region
        $region33: #{conv_layer_forward.1} parent=11 // pred_check
          %p454 = pneg %p230
        $region34: #{conv_layer_forward.1} parent=11 // pred_check_branch
          %456 = sbr.rel (%p454) target = $region36
        $region35: #{conv_layer_forward.1} parent=11 // pred_region
          _
        $region36: #{conv_layer_forward.1} parent=11 // pred_fallthru
          _
        // Predicated region
        $region37: #{conv_layer_forward.1} parent=11 // pred_check
          %p457 = pneg %p251
        $region38: #{conv_layer_forward.1} parent=11 // pred_check_branch
          %459 = sbr.rel (%p457) target = $region40
        $region39: #{conv_layer_forward.1} parent=11 // pred_region
          _
        $region40: #{conv_layer_forward.1} parent=11 // pred_fallthru
          _
        // Predicated region
        $region41: #{conv_layer_forward.1} parent=11 // pred_check
          %p460 = pneg %p272
        $region42: #{conv_layer_forward.1} parent=11 // pred_check_branch
          %462 = sbr.rel (%p460) target = $region44
        $region43: #{conv_layer_forward.1} parent=11 // pred_region
          _
        $region44: #{conv_layer_forward.1} parent=11 // pred_fallthru
          _
        // Predicated region
        $region45: #{conv_layer_forward.1} parent=11 // pred_check
          %p463 = pneg %p293
        $region46: #{conv_layer_forward.1} parent=11 // pred_check_branch
          %465 = sbr.rel (%p463) target = $region48
        $region47: #{conv_layer_forward.1} parent=11 // pred_region
          _
        $region48: #{conv_layer_forward.1} parent=11 // pred_fallthru
          _
        // Predicated region
        $region49: #{conv_layer_forward.1} parent=11 // pred_check
          %p466 = pneg %p314
        $region50: #{conv_layer_forward.1} parent=11 // pred_check_branch
          %468 = sbr.rel (%p466) target = $region52
        $region51: #{conv_layer_forward.1} parent=11 // pred_region
          _
        $region52: #{conv_layer_forward.1} parent=11 // pred_fallthru
          _
        // Predicated region
        $region53: #{conv_layer_forward.1} parent=11 // pred_check
          %p469 = pneg %p335
        $region54: #{conv_layer_forward.1} parent=11 // pred_check_branch
          %471 = sbr.rel (%p469) target = $region56
        $region55: #{conv_layer_forward.1} parent=11 // pred_region
          _
        $region56: #{conv_layer_forward.1} parent=11 // pred_fallthru
          _
        // Predicated region
        $region57: #{conv_layer_forward.1} parent=11 // pred_check
          %p472 = pneg %p356
        $region58: #{conv_layer_forward.1} parent=11 // pred_check_branch
          %474 = sbr.rel (%p472) target = $region60
        $region59: #{conv_layer_forward.1} parent=11 // pred_region
          _
        $region60: #{conv_layer_forward.1} parent=11 // pred_fallthru
          _
        // Predicated region
        $region61: #{conv_layer_forward.1} parent=11 // pred_check
          %p475 = pneg %p377
        $region62: #{conv_layer_forward.1} parent=11 // pred_check_branch
          %477 = sbr.rel (%p475) target = $region64
        $region63: #{conv_layer_forward.1} parent=11 // pred_region
          _
        $region64: #{conv_layer_forward.1} parent=11 // pred_fallthru
          _
        // Predicated region
        $region65: #{conv_layer_forward.1} parent=11 // pred_check
          %p478 = pneg %p398
        $region66: #{conv_layer_forward.1} parent=11 // pred_check_branch
          %480 = sbr.rel (%p478) target = $region68
        $region67: #{conv_layer_forward.1} parent=11 // pred_region
          _
        $region68: #{conv_layer_forward.1} parent=11 // pred_fallthru
          _
      $region12: #{conv_layer_forward.1} parent=5 // pred_fallthru
        _
      %p481 = scmp.lt.s32.totalorder %s26, 2
      // Predicated region
      $region69: #{conv_layer_forward.1} parent=5 // pred_check
        %p482 = pneg %p481
      $region70: #{conv_layer_forward.1} parent=5 // pred_check_branch
        %484 = sbr.rel (%p482) target = $region72
      $region71: #{conv_layer_forward.1} parent=5 // pred_region
        // Predicated region
        $region73: #{conv_layer_forward.1} parent=71 // pred_check
          %p485 = pneg %p46
        $region74: #{conv_layer_forward.1} parent=71 // pred_check_branch
          %487 = sbr.rel (%p485) target = $region76
        $region75: #{conv_layer_forward.1} parent=71 // pred_region
          %p488 = scmp.lt.s32.totalorder %s26, 1
          %s489 = scalar_select %p488, %s26, 1
          %s490 = smul.addr %s489, 8
          %s491 = scalar_lea.vmem %s0, %s490
        $region76: #{conv_layer_forward.1} parent=71 // pred_fallthru
          _
        // Predicated region
        $region77: #{conv_layer_forward.1} parent=71 // pred_check
          %p492 = pneg %p72
        $region78: #{conv_layer_forward.1} parent=71 // pred_check_branch
          %494 = sbr.rel (%p492) target = $region80
        $region79: #{conv_layer_forward.1} parent=71 // pred_region
          %p495 = scmp.lt.s32.totalorder %s26, 1
          %s496 = scalar_select %p495, %s26, 1
          %s497 = smul.addr %s496, 8
          %s498 = scalar_lea.vmem %s1, %s497
        $region80: #{conv_layer_forward.1} parent=71 // pred_fallthru
          _
        // Predicated region
        $region81: #{conv_layer_forward.1} parent=71 // pred_check
          %p499 = pneg %p98
        $region82: #{conv_layer_forward.1} parent=71 // pred_check_branch
          %501 = sbr.rel (%p499) target = $region84
        $region83: #{conv_layer_forward.1} parent=71 // pred_region
          %p502 = scmp.lt.s32.totalorder %s26, 1
          %s503 = scalar_select %p502, %s26, 1
          %s504 = scalar_lea.vmem %s2, %s503
        $region84: #{conv_layer_forward.1} parent=71 // pred_fallthru
          _
      $region72: #{conv_layer_forward.1} parent=5 // pred_fallthru
        _
      %p505 = scmp.le.s32.totalorder 1, %s26
      %p506 = scmp.lt.s32.totalorder %s26, 3
      %p507 = pnand %p505, %p506
      %p508 = pneg %p507
      // Predicated region
      $region85: #{conv_layer_forward.1} parent=5 // pred_check
        _
      $region86: #{conv_layer_forward.1} parent=5 // pred_check_branch
        %510 = sbr.rel (%p507) target = $region88
      $region87: #{conv_layer_forward.1} parent=5 // pred_region
        %s511 = ssub.s32 %s26, 1
        %p512 = scmp.lt.s32.totalorder %s31, 1
        %s513 = scalar_select %p512, %s31, 1
        %s514 = smul.addr %s513, 8
        %s515 = scalar_lea.vmem %s0, %s514
        %p516 = pneg %p52
        %p517 = pneg %p49
        %p518 = scmp.lt.s32.totalorder %s31, 1
        %s519 = scalar_select %p518, %s31, 1
        %s520 = smul.addr %s519, 8
        %s521 = scalar_lea.vmem %s1, %s520
        %p522 = pneg %p78
        %p523 = pneg %p75
        %p524 = scmp.lt.s32.totalorder %s31, 1
        %s525 = scalar_select %p524, %s31, 1
        %s526 = scalar_lea.vmem %s2, %s525
        %p527 = pneg %p104
        %p528 = pneg %p101
        %p529 = pneg %p125
        %p530 = pneg %p122
        %p531 = pneg %p146
        %p532 = pneg %p143
        %p533 = pneg %p167
        %p534 = pneg %p164
        %p535 = pneg %p188
        %p536 = pneg %p185
        %p537 = pneg %p209
        %p538 = pneg %p206
        %p539 = pneg %p230
        %p540 = pneg %p227
        %p541 = pneg %p251
        %p542 = pneg %p248
        %p543 = pneg %p272
        %p544 = pneg %p269
        %p545 = pneg %p293
        %p546 = pneg %p290
        %p547 = pneg %p314
        %p548 = pneg %p311
        %p549 = pneg %p335
        %p550 = pneg %p332
        %p551 = pneg %p356
        %p552 = pneg %p353
        %p553 = pneg %p377
        %p554 = pneg %p374
        %p555 = pneg %p398
        %p556 = pneg %p395
        %p557 = pneg %p424
        %p558 = pneg %p421
        %s559 = sand.u32 %s411, 1
        %s560 = scalar_lea.sflag [#allocation3], %s559
        %s561 = sand.u32 %s411, 1
        %s562 = smul.addr %s561, 8
        %s563 = scalar_lea.vmem [#allocation2], %s562
        %p564 = scmp.lt.s32.totalorder %s31, 1
        %s565 = scalar_select %p564, %s31, 1
        %s566 = smul.addr %s565, 8
        %s567 = scalar_lea.vmem %s0, %s566
        %p568 = scmp.lt.s32.totalorder %s31, 1
        %s569 = scalar_select %p568, %s31, 1
        %s570 = smul.addr %s569, 8
        %s571 = scalar_lea.vmem %s1, %s570
        %p572 = scmp.lt.s32.totalorder %s31, 1
        %s573 = scalar_select %p572, %s31, 1
        %s574 = scalar_lea.vmem %s2, %s573
        %v576 = vld [vmem:[%s567] sm:$0xff]
        %v577 = vld [vmem:[%s571] sm:$0xff]
        %v578 = vld [vmem:[%s574] sm:$0x1]
        %v579 = vld [vmem:[%s3] sm:$0xff]
        %v580 = vld [vmem:[%s4] sm:$0x1]
        %v581 = vld [vmem:[%s5] sm:$0x1]
        %582 = vadd.xlane.f32.xlu0 %v579
        %v583 = vpop.xlane.xlu0 %582
        %v584 = vrcp.pop 128.0
        %v585 = vmul.f32 %v583, %v584
        %v586 = vsub.f32 %v579, %v585
        %v587 = vmul.f32 %v586, %v586
        %588 = vadd.xlane.f32.xlu0 %v587
        %v589 = vpop.xlane.xlu0 %588
        %v590 = vmul.f32 %v589, %v584
        %v591 = vadd.f32 %v590, 1e-05
        %v592 = vrsqrt.pop %v591
        %v593 = vmul.f32 %v586, %v592
        %v595 = vlaneseq
        %v596 = vshrl.u32 %v595, 7
        %v597 = vsub.s32 0, %v596
        %v598 = vrot.slane %v580, %v597
        %v600 = vmul.f32 %v593, %v598
        %v602 = vlaneseq
        %v603 = vshrl.u32 %v602, 7
        %v604 = vsub.s32 0, %v603
        %v605 = vrot.slane %v581, %v604
        %v607 = vadd.f32 %v600, %v605
        %v608 = vpack.c.bf16 %v607, %v607
        %v609 = vpack.c.bf16 %v576, %v576
        %v610 = vld [vmem:[%s6] sm:$0xf]
        %v611 = vld [vmem:[%s6 + $0x4] sm:$0xf]
        %v612 = vld [vmem:[%s6 + $0x8] sm:$0xf]
        %v613 = vld [vmem:[%s6 + $0xc] sm:$0xf]
        %v614 = vld [vmem:[%s6 + $0x10] sm:$0xf]
        %v615 = vld [vmem:[%s6 + $0x14] sm:$0xf]
        %v616 = vld [vmem:[%s6 + $0x18] sm:$0xf]
        %v617 = vld [vmem:[%s6 + $0x1c] sm:$0xf]
        %v618 = vld [vmem:[%s6 + $0x20] sm:$0xf]
        %v619 = vld [vmem:[%s6 + $0x24] sm:$0xf]
        %v620 = vld [vmem:[%s6 + $0x28] sm:$0xf]
        %v621 = vld [vmem:[%s6 + $0x2c] sm:$0xf]
        %v622 = vld [vmem:[%s6 + $0x30] sm:$0xf]
        %v623 = vld [vmem:[%s6 + $0x34] sm:$0xf]
        %v624 = vld [vmem:[%s6 + $0x38] sm:$0xf]
        %v625 = vld [vmem:[%s6 + $0x3c] sm:$0xf]
        %v642 = vunpack.c.l.b16 %v610
        %v643 = vunpack.c.l.b16 %v611
        %v644 = vunpack.c.l.b16 %v612
        %v645 = vunpack.c.l.b16 %v613
        %v646 = vunpack.c.l.b16 %v614
        %v647 = vunpack.c.l.b16 %v615
        %v648 = vunpack.c.l.b16 %v616
        %v649 = vunpack.c.l.b16 %v617
        %v650 = vunpack.c.l.b16 %v618
        %v651 = vunpack.c.l.b16 %v619
        %v652 = vunpack.c.l.b16 %v620
        %v653 = vunpack.c.l.b16 %v621
        %v654 = vunpack.c.l.b16 %v622
        %v655 = vunpack.c.l.b16 %v623
        %v656 = vunpack.c.l.b16 %v624
        %v657 = vunpack.c.l.b16 %v625
        %v658 = vpack.c.b16 %v643, %v642
        %v659 = vpack.c.b16 %v645, %v644
        %v660 = vpack.c.b16 %v647, %v646
        %v661 = vpack.c.b16 %v649, %v648
        %v662 = vpack.c.b16 %v651, %v650
        %v663 = vpack.c.b16 %v653, %v652
        %v664 = vpack.c.b16 %v655, %v654
        %v665 = vpack.c.b16 %v657, %v656
        %674 = vmatprep.subr.bf16.mxu0 0
        %675 = vmatpush1.bf16.msra.mxu0 %v658
        %676 = vmatprep.subr.bf16.mxu0 0
        %677 = vmatpush1.bf16.msra.mxu0 %v659
        %678 = vmatprep.subr.bf16.mxu0 0
        %679 = vmatpush1.bf16.msra.mxu0 %v660
        %680 = vmatprep.subr.bf16.mxu0 0
        %681 = vmatpush1.bf16.msra.mxu0 %v661
        %682 = vmatprep.subr.bf16.mxu0 0
        %683 = vmatpush1.bf16.msra.mxu0 %v662
        %684 = vmatprep.subr.bf16.mxu0 0
        %685 = vmatpush1.bf16.msra.mxu0 %v663
        %686 = vmatprep.subr.bf16.mxu0 0
        %687 = vmatpush1.bf16.msra.mxu0 %v664
        %688 = vmatprep.subr.bf16.mxu0 0
        %689 = vmatpush1.bf16.msra.mxu0 %v665
        %690 = vmatprep.subr.bf16.mxu0 0
        %691 = vmatpush1.bf16.msra.mxu0 0
        %692 = vmatprep.subr.bf16.mxu0 0
        %693 = vmatpush1.bf16.msra.mxu0 0
        %694 = vmatprep.subr.bf16.mxu0 0
        %695 = vmatpush1.bf16.msra.mxu0 0
        %696 = vmatprep.subr.bf16.mxu0 0
        %697 = vmatpush1.bf16.msra.mxu0 0
        %698 = vmatprep.subr.bf16.mxu0 0
        %699 = vmatpush1.bf16.msra.mxu0 0
        %700 = vmatprep.subr.bf16.mxu0 0
        %701 = vmatpush1.bf16.msra.mxu0 0
        %702 = vmatprep.subr.bf16.mxu0 0
        %703 = vmatpush1.bf16.msra.mxu0 0
        %704 = vmatprep.subr.bf16.mxu0 0
        %705 = vmatpush1.bf16.msra.mxu0 0
        %706 = vmatprep.mubr.bf16.mxu0 0
        %707 = vmatmul.mubr.bf16.gmra.mrb[0].mxu0 %v608
        %v708 = vpop.f32.mrb[0].mxu0
        %v709 = vadd.f32 0.0, %v708
        %v710 = vpop.f32.mrb[0].mxu0
        %v711 = vpop.f32.mrb[0].mxu0
        %v712 = vpop.f32.mrb[0].mxu0
        %713 = vdwg.mxu0
        %v714 = vld [vmem:[%s7] sm:$0xf]
        %v715 = vld [vmem:[%s7 + $0x4] sm:$0xf]
        %v716 = vld [vmem:[%s7 + $0x8] sm:$0xf]
        %v717 = vld [vmem:[%s7 + $0xc] sm:$0xf]
        %v718 = vld [vmem:[%s7 + $0x10] sm:$0xf]
        %v719 = vld [vmem:[%s7 + $0x14] sm:$0xf]
        %v720 = vld [vmem:[%s7 + $0x18] sm:$0xf]
        %v721 = vld [vmem:[%s7 + $0x1c] sm:$0xf]
        %v722 = vld [vmem:[%s7 + $0x20] sm:$0xf]
        %v723 = vld [vmem:[%s7 + $0x24] sm:$0xf]
        %v724 = vld [vmem:[%s7 + $0x28] sm:$0xf]
        %v725 = vld [vmem:[%s7 + $0x2c] sm:$0xf]
        %v726 = vld [vmem:[%s7 + $0x30] sm:$0xf]
        %v727 = vld [vmem:[%s7 + $0x34] sm:$0xf]
        %v728 = vld [vmem:[%s7 + $0x38] sm:$0xf]
        %v729 = vld [vmem:[%s7 + $0x3c] sm:$0xf]
        %v746 = vunpack.c.l.b16 %v714
        %v747 = vunpack.c.l.b16 %v715
        %v748 = vunpack.c.l.b16 %v716
        %v749 = vunpack.c.l.b16 %v717
        %v750 = vunpack.c.l.b16 %v718
        %v751 = vunpack.c.l.b16 %v719
        %v752 = vunpack.c.l.b16 %v720
        %v753 = vunpack.c.l.b16 %v721
        %v754 = vunpack.c.l.b16 %v722
        %v755 = vunpack.c.l.b16 %v723
        %v756 = vunpack.c.l.b16 %v724
        %v757 = vunpack.c.l.b16 %v725
        %v758 = vunpack.c.l.b16 %v726
        %v759 = vunpack.c.l.b16 %v727
        %v760 = vunpack.c.l.b16 %v728
        %v761 = vunpack.c.l.b16 %v729
        %v762 = vpack.c.b16 %v747, %v746
        %v763 = vpack.c.b16 %v749, %v748
        %v764 = vpack.c.b16 %v751, %v750
        %v765 = vpack.c.b16 %v753, %v752
        %v766 = vpack.c.b16 %v755, %v754
        %v767 = vpack.c.b16 %v757, %v756
        %v768 = vpack.c.b16 %v759, %v758
        %v769 = vpack.c.b16 %v761, %v760
        %778 = vmatprep.subr.bf16.mxu0 0
        %779 = vmatpush1.bf16.msra.mxu0 %v762
        %780 = vmatprep.subr.bf16.mxu0 0
        %781 = vmatpush1.bf16.msra.mxu0 %v763
        %782 = vmatprep.subr.bf16.mxu0 0
        %783 = vmatpush1.bf16.msra.mxu0 %v764
        %784 = vmatprep.subr.bf16.mxu0 0
        %785 = vmatpush1.bf16.msra.mxu0 %v765
        %786 = vmatprep.subr.bf16.mxu0 0
        %787 = vmatpush1.bf16.msra.mxu0 %v766
        %788 = vmatprep.subr.bf16.mxu0 0
        %789 = vmatpush1.bf16.msra.mxu0 %v767
        %790 = vmatprep.subr.bf16.mxu0 0
        %791 = vmatpush1.bf16.msra.mxu0 %v768
        %792 = vmatprep.subr.bf16.mxu0 0
        %793 = vmatpush1.bf16.msra.mxu0 %v769
        %794 = vmatprep.subr.bf16.mxu0 0
        %795 = vmatpush1.bf16.msra.mxu0 0
        %796 = vmatprep.subr.bf16.mxu0 0
        %797 = vmatpush1.bf16.msra.mxu0 0
        %798 = vmatprep.subr.bf16.mxu0 0
        %799 = vmatpush1.bf16.msra.mxu0 0
        %800 = vmatprep.subr.bf16.mxu0 0
        %801 = vmatpush1.bf16.msra.mxu0 0
        %802 = vmatprep.subr.bf16.mxu0 0
        %803 = vmatpush1.bf16.msra.mxu0 0
        %804 = vmatprep.subr.bf16.mxu0 0
        %805 = vmatpush1.bf16.msra.mxu0 0
        %806 = vmatprep.subr.bf16.mxu0 0
        %807 = vmatpush1.bf16.msra.mxu0 0
        %808 = vmatprep.subr.bf16.mxu0 0
        %809 = vmatpush1.bf16.msra.mxu0 0
        %810 = vmatprep.mubr.bf16.mxu0 0
        %811 = vmatmul.mubr.bf16.gmra.mrb[0].mxu0 %v609
        %v812 = vpop.f32.mrb[0].mxu0
        %v813 = vadd.f32 0.0, %v812
        %v814 = vpop.f32.mrb[0].mxu0
        %v815 = vpop.f32.mrb[0].mxu0
        %v816 = vpop.f32.mrb[0].mxu0
        %817 = vdwg.mxu0
        %v818 = vld [vmem:[%s8] sm:$0xf]
        %v819 = vld [vmem:[%s8 + $0x4] sm:$0xf]
        %v820 = vld [vmem:[%s8 + $0x8] sm:$0xf]
        %v821 = vld [vmem:[%s8 + $0xc] sm:$0xf]
        %v822 = vld [vmem:[%s8 + $0x10] sm:$0xf]
        %v823 = vld [vmem:[%s8 + $0x14] sm:$0xf]
        %v824 = vld [vmem:[%s8 + $0x18] sm:$0xf]
        %v825 = vld [vmem:[%s8 + $0x1c] sm:$0xf]
        %v826 = vld [vmem:[%s8 + $0x20] sm:$0xf]
        %v827 = vld [vmem:[%s8 + $0x24] sm:$0xf]
        %v828 = vld [vmem:[%s8 + $0x28] sm:$0xf]
        %v829 = vld [vmem:[%s8 + $0x2c] sm:$0xf]
        %v830 = vld [vmem:[%s8 + $0x30] sm:$0xf]
        %v831 = vld [vmem:[%s8 + $0x34] sm:$0xf]
        %v832 = vld [vmem:[%s8 + $0x38] sm:$0xf]
        %v833 = vld [vmem:[%s8 + $0x3c] sm:$0xf]
        %v850 = vunpack.c.l.b16 %v818
        %v851 = vunpack.c.l.b16 %v819
        %v852 = vunpack.c.l.b16 %v820
        %v853 = vunpack.c.l.b16 %v821
        %v854 = vunpack.c.l.b16 %v822
        %v855 = vunpack.c.l.b16 %v823
        %v856 = vunpack.c.l.b16 %v824
        %v857 = vunpack.c.l.b16 %v825
        %v858 = vunpack.c.l.b16 %v826
        %v859 = vunpack.c.l.b16 %v827
        %v860 = vunpack.c.l.b16 %v828
        %v861 = vunpack.c.l.b16 %v829
        %v862 = vunpack.c.l.b16 %v830
        %v863 = vunpack.c.l.b16 %v831
        %v864 = vunpack.c.l.b16 %v832
        %v865 = vunpack.c.l.b16 %v833
        %v866 = vpack.c.b16 %v851, %v850
        %v867 = vpack.c.b16 %v853, %v852
        %v868 = vpack.c.b16 %v855, %v854
        %v869 = vpack.c.b16 %v857, %v856
        %v870 = vpack.c.b16 %v859, %v858
        %v871 = vpack.c.b16 %v861, %v860
        %v872 = vpack.c.b16 %v863, %v862
        %v873 = vpack.c.b16 %v865, %v864
        %882 = vmatprep.subr.bf16.mxu0 0
        %883 = vmatpush1.bf16.msra.mxu0 %v866
        %884 = vmatprep.subr.bf16.mxu0 0
        %885 = vmatpush1.bf16.msra.mxu0 %v867
        %886 = vmatprep.subr.bf16.mxu0 0
        %887 = vmatpush1.bf16.msra.mxu0 %v868
        %888 = vmatprep.subr.bf16.mxu0 0
        %889 = vmatpush1.bf16.msra.mxu0 %v869
        %890 = vmatprep.subr.bf16.mxu0 0
        %891 = vmatpush1.bf16.msra.mxu0 %v870
        %892 = vmatprep.subr.bf16.mxu0 0
        %893 = vmatpush1.bf16.msra.mxu0 %v871
        %894 = vmatprep.subr.bf16.mxu0 0
        %895 = vmatpush1.bf16.msra.mxu0 %v872
        %896 = vmatprep.subr.bf16.mxu0 0
        %897 = vmatpush1.bf16.msra.mxu0 %v873
        %898 = vmatprep.subr.bf16.mxu0 0
        %899 = vmatpush1.bf16.msra.mxu0 0
        %900 = vmatprep.subr.bf16.mxu0 0
        %901 = vmatpush1.bf16.msra.mxu0 0
        %902 = vmatprep.subr.bf16.mxu0 0
        %903 = vmatpush1.bf16.msra.mxu0 0
        %904 = vmatprep.subr.bf16.mxu0 0
        %905 = vmatpush1.bf16.msra.mxu0 0
        %906 = vmatprep.subr.bf16.mxu0 0
        %907 = vmatpush1.bf16.msra.mxu0 0
        %908 = vmatprep.subr.bf16.mxu0 0
        %909 = vmatpush1.bf16.msra.mxu0 0
        %910 = vmatprep.subr.bf16.mxu0 0
        %911 = vmatpush1.bf16.msra.mxu0 0
        %912 = vmatprep.subr.bf16.mxu0 0
        %913 = vmatpush1.bf16.msra.mxu0 0
        %914 = vmatprep.mubr.bf16.mxu0 0
        %915 = vmatmul.mubr.bf16.gmra.mrb[0].mxu0 %v609
        %v916 = vpop.f32.mrb[0].mxu0
        %v917 = vadd.f32 0.0, %v916
        %v918 = vpop.f32.mrb[0].mxu0
        %v919 = vpop.f32.mrb[0].mxu0
        %v920 = vpop.f32.mrb[0].mxu0
        %921 = vdwg.mxu0
        %v922 = vpack.c.bf16 %v709, %v709
        %v923 = vpack.c.bf16 %v813, %v813
        %vm924 = vcmask 261120
        %v926 = vsel %vm924, %v922, 0
        %v929 = vsel %vm924, %v923, 0
        %931 = vmatprep.subr.bf16.mxu0 0
        %932 = vmatpush1.bf16.xpose.msra.mxu0 %v929
        %933 = vmatprep.subr.bf16.mxu0 0
        %934 = vmatpush1.bf16.xpose.msra.mxu0 0
        %935 = vmatprep.subr.bf16.mxu0 0
        %936 = vmatpush1.bf16.xpose.msra.mxu0 0
        %937 = vmatprep.subr.bf16.mxu0 0
        %938 = vmatpush1.bf16.xpose.msra.mxu0 0
        %939 = vmatprep.subr.bf16.mxu0 0
        %940 = vmatpush1.bf16.xpose.msra.mxu0 0
        %941 = vmatprep.subr.bf16.mxu0 0
        %942 = vmatpush1.bf16.xpose.msra.mxu0 0
        %943 = vmatprep.subr.bf16.mxu0 0
        %944 = vmatpush1.bf16.xpose.msra.mxu0 0
        %945 = vmatprep.subr.bf16.mxu0 0
        %946 = vmatpush1.bf16.xpose.msra.mxu0 0
        %947 = vmatprep.subr.bf16.mxu0 0
        %948 = vmatpush1.bf16.xpose.msra.mxu0 0
        %949 = vmatprep.subr.bf16.mxu0 0
        %950 = vmatpush1.bf16.xpose.msra.mxu0 0
        %951 = vmatprep.subr.bf16.mxu0 0
        %952 = vmatpush1.bf16.xpose.msra.mxu0 0
        %953 = vmatprep.subr.bf16.mxu0 0
        %954 = vmatpush1.bf16.xpose.msra.mxu0 0
        %955 = vmatprep.subr.bf16.mxu0 0
        %956 = vmatpush1.bf16.xpose.msra.mxu0 0
        %957 = vmatprep.subr.bf16.mxu0 0
        %958 = vmatpush1.bf16.xpose.msra.mxu0 0
        %959 = vmatprep.subr.bf16.mxu0 0
        %960 = vmatpush1.bf16.xpose.msra.mxu0 0
        %961 = vmatprep.subr.bf16.mxu0 0
        %962 = vmatpush1.bf16.xpose.msra.mxu0 0
        %963 = vmatprep.mubr.bf16.mxu0 0
        %964 = vmatmul.mubr.bf16.gmra.mrb[0].mxu0 %v926
        %v965 = vpop.f32.mrb[0].mxu0
        %v966 = vadd.f32 0.0, %v965
        %v967 = vpop.f32.mrb[0].mxu0
        %v968 = vpop.f32.mrb[0].mxu0
        %v969 = vpop.f32.mrb[0].mxu0
        %970 = vdwg.mxu0
        %vm971 = vcmp.gt.f32.partialorder %v578, 0.0
        %v972 = vsel %vm971, 1, 0
        %v973 = vlaneseq
        %v974 = vshrl.u32 %v973, 7
        %v975 = vsub.s32 0, %v974
        %v976 = vrot.slane %v972, %v975
        %vm977 = vcmp.eq.s32.totalorder %v976, 1
        %v978 = vsel %vm977, %v966, -1e+09
        %vm979 = vcmask 64512
        %v980 = vsel %vm979, %v978, -inf
        %981 = vmax.xlane.f32.xlu0 %v980
        %v982 = vpop.xlane.xlu0 %981
        %v983 = vsub.f32 %v978, %v982
        %v984 = vmul.f32 %v983, 1.442695
        %v985 = vpow.pop %v984
        %v986 = vsel %vm979, %v985, 0.0
        %987 = vadd.xlane.f32.xlu0 %v986
        %v988 = vpop.xlane.xlu0 %987
        %v989 = vrcp.pop %v988
        %v990 = vmul.f32 %v985, %v989
        %v991 = vpack.c.bf16 %v990, %v990
        %v992 = vpack.c.bf16 %v917, %v917
        %v994 = vsel %vm979, %v991, 0
        %vm996 = vcmask 1043456
        %v998 = vsel %vm996, %v992, 0
        %1000 = vmatprep.subr.bf16.mxu0 0
        %1001 = vmatpush1.bf16.msra.mxu0 %v998
        %1002 = vmatprep.subr.bf16.mxu0 0
        %1003 = vmatpush1.bf16.msra.mxu0 0
        %1004 = vmatprep.subr.bf16.mxu0 0
        %1005 = vmatpush1.bf16.msra.mxu0 0
        %1006 = vmatprep.subr.bf16.mxu0 0
        %1007 = vmatpush1.bf16.msra.mxu0 0
        %1008 = vmatprep.subr.bf16.mxu0 0
        %1009 = vmatpush1.bf16.msra.mxu0 0
        %1010 = vmatprep.subr.bf16.mxu0 0
        %1011 = vmatpush1.bf16.msra.mxu0 0
        %1012 = vmatprep.subr.bf16.mxu0 0
        %1013 = vmatpush1.bf16.msra.mxu0 0
        %1014 = vmatprep.subr.bf16.mxu0 0
        %1015 = vmatpush1.bf16.msra.mxu0 0
        %1016 = vmatprep.subr.bf16.mxu0 0
        %1017 = vmatpush1.bf16.msra.mxu0 0
        %1018 = vmatprep.subr.bf16.mxu0 0
        %1019 = vmatpush1.bf16.msra.mxu0 0
        %1020 = vmatprep.subr.bf16.mxu0 0
        %1021 = vmatpush1.bf16.msra.mxu0 0
        %1022 = vmatprep.subr.bf16.mxu0 0
        %1023 = vmatpush1.bf16.msra.mxu0 0
        %1024 = vmatprep.subr.bf16.mxu0 0
        %1025 = vmatpush1.bf16.msra.mxu0 0
        %1026 = vmatprep.subr.bf16.mxu0 0
        %1027 = vmatpush1.bf16.msra.mxu0 0
        %1028 = vmatprep.subr.bf16.mxu0 0
        %1029 = vmatpush1.bf16.msra.mxu0 0
        %1030 = vmatprep.subr.bf16.mxu0 0
        %1031 = vmatpush1.bf16.msra.mxu0 0
        %1032 = vmatprep.mubr.bf16.mxu0 0
        %1033 = vmatmul.mubr.bf16.gmra.mrb[0].mxu0 %v994
        %v1034 = vpop.f32.mrb[0].mxu0
        %v1035 = vadd.f32 0.0, %v1034
        %v1036 = vpop.f32.mrb[0].mxu0
        %v1037 = vpop.f32.mrb[0].mxu0
        %v1038 = vpop.f32.mrb[0].mxu0
        %1039 = vdwg.mxu0
        %v1040 = vpack.c.bf16 %v1035, %v1035
        %v1041 = vld [vmem:[%s9] sm:$0xf]
        %v1042 = vld [vmem:[%s9 + $0x4] sm:$0xf]
        %v1043 = vld [vmem:[%s9 + $0x8] sm:$0xf]
        %v1044 = vld [vmem:[%s9 + $0xc] sm:$0xf]
        %s1045 = scalar_lea.vmem %s6, 64
        %v1046 = vld [vmem:[%s1045] sm:$0xf]
        %v1047 = vld [vmem:[%s1045 + $0x4] sm:$0xf]
        %v1048 = vld [vmem:[%s1045 + $0x8] sm:$0xf]
        %v1049 = vld [vmem:[%s1045 + $0xc] sm:$0xf]
        %v1050 = vld [vmem:[%s1045 + $0x10] sm:$0xf]
        %v1051 = vld [vmem:[%s1045 + $0x14] sm:$0xf]
        %v1052 = vld [vmem:[%s1045 + $0x18] sm:$0xf]
        %v1053 = vld [vmem:[%s1045 + $0x1c] sm:$0xf]
        %v1054 = vld [vmem:[%s1045 + $0x20] sm:$0xf]
        %v1055 = vld [vmem:[%s1045 + $0x24] sm:$0xf]
        %v1056 = vld [vmem:[%s1045 + $0x28] sm:$0xf]
        %v1057 = vld [vmem:[%s1045 + $0x2c] sm:$0xf]
        %v1058 = vld [vmem:[%s1045 + $0x30] sm:$0xf]
        %v1059 = vld [vmem:[%s1045 + $0x34] sm:$0xf]
        %v1060 = vld [vmem:[%s1045 + $0x38] sm:$0xf]
        %v1061 = vld [vmem:[%s1045 + $0x3c] sm:$0xf]
        %v1078 = vunpack.c.l.b16 %v1046
        %v1079 = vunpack.c.l.b16 %v1047
        %v1080 = vunpack.c.l.b16 %v1048
        %v1081 = vunpack.c.l.b16 %v1049
        %v1082 = vunpack.c.l.b16 %v1050
        %v1083 = vunpack.c.l.b16 %v1051
        %v1084 = vunpack.c.l.b16 %v1052
        %v1085 = vunpack.c.l.b16 %v1053
        %v1086 = vunpack.c.l.b16 %v1054
        %v1087 = vunpack.c.l.b16 %v1055
        %v1088 = vunpack.c.l.b16 %v1056
        %v1089 = vunpack.c.l.b16 %v1057
        %v1090 = vunpack.c.l.b16 %v1058
        %v1091 = vunpack.c.l.b16 %v1059
        %v1092 = vunpack.c.l.b16 %v1060
        %v1093 = vunpack.c.l.b16 %v1061
        %v1094 = vpack.c.b16 %v1079, %v1078
        %v1095 = vpack.c.b16 %v1081, %v1080
        %v1096 = vpack.c.b16 %v1083, %v1082
        %v1097 = vpack.c.b16 %v1085, %v1084
        %v1098 = vpack.c.b16 %v1087, %v1086
        %v1099 = vpack.c.b16 %v1089, %v1088
        %v1100 = vpack.c.b16 %v1091, %v1090
        %v1101 = vpack.c.b16 %v1093, %v1092
        %1110 = vmatprep.subr.bf16.mxu0 0
        %1111 = vmatpush1.bf16.msra.mxu0 %v1094
        %1112 = vmatprep.subr.bf16.mxu0 0
        %1113 = vmatpush1.bf16.msra.mxu0 %v1095
        %1114 = vmatprep.subr.bf16.mxu0 0
        %1115 = vmatpush1.bf16.msra.mxu0 %v1096
        %1116 = vmatprep.subr.bf16.mxu0 0
        %1117 = vmatpush1.bf16.msra.mxu0 %v1097
        %1118 = vmatprep.subr.bf16.mxu0 0
        %1119 = vmatpush1.bf16.msra.mxu0 %v1098
        %1120 = vmatprep.subr.bf16.mxu0 0
        %1121 = vmatpush1.bf16.msra.mxu0 %v1099
        %1122 = vmatprep.subr.bf16.mxu0 0
        %1123 = vmatpush1.bf16.msra.mxu0 %v1100
        %1124 = vmatprep.subr.bf16.mxu0 0
        %1125 = vmatpush1.bf16.msra.mxu0 %v1101
        %1126 = vmatprep.subr.bf16.mxu0 0
        %1127 = vmatpush1.bf16.msra.mxu0 0
        %1128 = vmatprep.subr.bf16.mxu0 0
        %1129 = vmatpush1.bf16.msra.mxu0 0
        %1130 = vmatprep.subr.bf16.mxu0 0
        %1131 = vmatpush1.bf16.msra.mxu0 0
        %1132 = vmatprep.subr.bf16.mxu0 0
        %1133 = vmatpush1.bf16.msra.mxu0 0
        %1134 = vmatprep.subr.bf16.mxu0 0
        %1135 = vmatpush1.bf16.msra.mxu0 0
        %1136 = vmatprep.subr.bf16.mxu0 0
        %1137 = vmatpush1.bf16.msra.mxu0 0
        %1138 = vmatprep.subr.bf16.mxu0 0
        %1139 = vmatpush1.bf16.msra.mxu0 0
        %1140 = vmatprep.subr.bf16.mxu0 0
        %1141 = vmatpush1.bf16.msra.mxu0 0
        %1142 = vmatprep.mubr.bf16.mxu0 0
        %1143 = vmatmul.mubr.bf16.gmra.mrb[0].mxu0 %v608
        %v1144 = vpop.f32.mrb[0].mxu0
        %v1145 = vadd.f32 0.0, %v1144
        %v1146 = vpop.f32.mrb[0].mxu0
        %v1147 = vpop.f32.mrb[0].mxu0
        %v1148 = vpop.f32.mrb[0].mxu0
        %1149 = vdwg.mxu0
        %s1150 = scalar_lea.vmem %s7, 64
        %v1151 = vld [vmem:[%s1150] sm:$0xf]
        %v1152 = vld [vmem:[%s1150 + $0x4] sm:$0xf]
        %v1153 = vld [vmem:[%s1150 + $0x8] sm:$0xf]
        %v1154 = vld [vmem:[%s1150 + $0xc] sm:$0xf]
        %v1155 = vld [vmem:[%s1150 + $0x10] sm:$0xf]
        %v1156 = vld [vmem:[%s1150 + $0x14] sm:$0xf]
        %v1157 = vld [vmem:[%s1150 + $0x18] sm:$0xf]
        %v1158 = vld [vmem:[%s1150 + $0x1c] sm:$0xf]
        %v1159 = vld [vmem:[%s1150 + $0x20] sm:$0xf]
        %v1160 = vld [vmem:[%s1150 + $0x24] sm:$0xf]
        %v1161 = vld [vmem:[%s1150 + $0x28] sm:$0xf]
        %v1162 = vld [vmem:[%s1150 + $0x2c] sm:$0xf]
        %v1163 = vld [vmem:[%s1150 + $0x30] sm:$0xf]
        %v1164 = vld [vmem:[%s1150 + $0x34] sm:$0xf]
        %v1165 = vld [vmem:[%s1150 + $0x38] sm:$0xf]
        %v1166 = vld [vmem:[%s1150 + $0x3c] sm:$0xf]
        %v1183 = vunpack.c.l.b16 %v1151
        %v1184 = vunpack.c.l.b16 %v1152
        %v1185 = vunpack.c.l.b16 %v1153
        %v1186 = vunpack.c.l.b16 %v1154
        %v1187 = vunpack.c.l.b16 %v1155
        %v1188 = vunpack.c.l.b16 %v1156
        %v1189 = vunpack.c.l.b16 %v1157
        %v1190 = vunpack.c.l.b16 %v1158
        %v1191 = vunpack.c.l.b16 %v1159
        %v1192 = vunpack.c.l.b16 %v1160
        %v1193 = vunpack.c.l.b16 %v1161
        %v1194 = vunpack.c.l.b16 %v1162
        %v1195 = vunpack.c.l.b16 %v1163
        %v1196 = vunpack.c.l.b16 %v1164
        %v1197 = vunpack.c.l.b16 %v1165
        %v1198 = vunpack.c.l.b16 %v1166
        %v1199 = vpack.c.b16 %v1184, %v1183
        %v1200 = vpack.c.b16 %v1186, %v1185
        %v1201 = vpack.c.b16 %v1188, %v1187
        %v1202 = vpack.c.b16 %v1190, %v1189
        %v1203 = vpack.c.b16 %v1192, %v1191
        %v1204 = vpack.c.b16 %v1194, %v1193
        %v1205 = vpack.c.b16 %v1196, %v1195
        %v1206 = vpack.c.b16 %v1198, %v1197
        %1215 = vmatprep.subr.bf16.mxu0 0
        %1216 = vmatpush1.bf16.msra.mxu0 %v1199
        %1217 = vmatprep.subr.bf16.mxu0 0
        %1218 = vmatpush1.bf16.msra.mxu0 %v1200
        %1219 = vmatprep.subr.bf16.mxu0 0
        %1220 = vmatpush1.bf16.msra.mxu0 %v1201
        %1221 = vmatprep.subr.bf16.mxu0 0
        %1222 = vmatpush1.bf16.msra.mxu0 %v1202
        %1223 = vmatprep.subr.bf16.mxu0 0
        %1224 = vmatpush1.bf16.msra.mxu0 %v1203
        %1225 = vmatprep.subr.bf16.mxu0 0
        %1226 = vmatpush1.bf16.msra.mxu0 %v1204
        %1227 = vmatprep.subr.bf16.mxu0 0
        %1228 = vmatpush1.bf16.msra.mxu0 %v1205
        %1229 = vmatprep.subr.bf16.mxu0 0
        %1230 = vmatpush1.bf16.msra.mxu0 %v1206
        %1231 = vmatprep.subr.bf16.mxu0 0
        %1232 = vmatpush1.bf16.msra.mxu0 0
        %1233 = vmatprep.subr.bf16.mxu0 0
        %1234 = vmatpush1.bf16.msra.mxu0 0
        %1235 = vmatprep.subr.bf16.mxu0 0
        %1236 = vmatpush1.bf16.msra.mxu0 0
        %1237 = vmatprep.subr.bf16.mxu0 0
        %1238 = vmatpush1.bf16.msra.mxu0 0
        %1239 = vmatprep.subr.bf16.mxu0 0
        %1240 = vmatpush1.bf16.msra.mxu0 0
        %1241 = vmatprep.subr.bf16.mxu0 0
        %1242 = vmatpush1.bf16.msra.mxu0 0
        %1243 = vmatprep.subr.bf16.mxu0 0
        %1244 = vmatpush1.bf16.msra.mxu0 0
        %1245 = vmatprep.subr.bf16.mxu0 0
        %1246 = vmatpush1.bf16.msra.mxu0 0
        %1247 = vmatprep.mubr.bf16.mxu0 0
        %1248 = vmatmul.mubr.bf16.gmra.mrb[0].mxu0 %v609
        %v1249 = vpop.f32.mrb[0].mxu0
        %v1250 = vadd.f32 0.0, %v1249
        %v1251 = vpop.f32.mrb[0].mxu0
        %v1252 = vpop.f32.mrb[0].mxu0
        %v1253 = vpop.f32.mrb[0].mxu0
        %1254 = vdwg.mxu0
        %s1255 = scalar_lea.vmem %s8, 64
        %v1256 = vld [vmem:[%s1255] sm:$0xf]
        %v1257 = vld [vmem:[%s1255 + $0x4] sm:$0xf]
        %v1258 = vld [vmem:[%s1255 + $0x8] sm:$0xf]
        %v1259 = vld [vmem:[%s1255 + $0xc] sm:$0xf]
        %v1260 = vld [vmem:[%s1255 + $0x10] sm:$0xf]
        %v1261 = vld [vmem:[%s1255 + $0x14] sm:$0xf]
        %v1262 = vld [vmem:[%s1255 + $0x18] sm:$0xf]
        %v1263 = vld [vmem:[%s1255 + $0x1c] sm:$0xf]
        %v1264 = vld [vmem:[%s1255 + $0x20] sm:$0xf]
        %v1265 = vld [vmem:[%s1255 + $0x24] sm:$0xf]
        %v1266 = vld [vmem:[%s1255 + $0x28] sm:$0xf]
        %v1267 = vld [vmem:[%s1255 + $0x2c] sm:$0xf]
        %v1268 = vld [vmem:[%s1255 + $0x30] sm:$0xf]
        %v1269 = vld [vmem:[%s1255 + $0x34] sm:$0xf]
        %v1270 = vld [vmem:[%s1255 + $0x38] sm:$0xf]
        %v1271 = vld [vmem:[%s1255 + $0x3c] sm:$0xf]
        %v1288 = vunpack.c.l.b16 %v1256
        %v1289 = vunpack.c.l.b16 %v1257
        %v1290 = vunpack.c.l.b16 %v1258
        %v1291 = vunpack.c.l.b16 %v1259
        %v1292 = vunpack.c.l.b16 %v1260
        %v1293 = vunpack.c.l.b16 %v1261
        %v1294 = vunpack.c.l.b16 %v1262
        %v1295 = vunpack.c.l.b16 %v1263
        %v1296 = vunpack.c.l.b16 %v1264
        %v1297 = vunpack.c.l.b16 %v1265
        %v1298 = vunpack.c.l.b16 %v1266
        %v1299 = vunpack.c.l.b16 %v1267
        %v1300 = vunpack.c.l.b16 %v1268
        %v1301 = vunpack.c.l.b16 %v1269
        %v1302 = vunpack.c.l.b16 %v1270
        %v1303 = vunpack.c.l.b16 %v1271
        %v1304 = vpack.c.b16 %v1289, %v1288
        %v1305 = vpack.c.b16 %v1291, %v1290
        %v1306 = vpack.c.b16 %v1293, %v1292
        %v1307 = vpack.c.b16 %v1295, %v1294
        %v1308 = vpack.c.b16 %v1297, %v1296
        %v1309 = vpack.c.b16 %v1299, %v1298
        %v1310 = vpack.c.b16 %v1301, %v1300
        %v1311 = vpack.c.b16 %v1303, %v1302
        %1320 = vmatprep.subr.bf16.mxu0 0
        %1321 = vmatpush1.bf16.msra.mxu0 %v1304
        %1322 = vmatprep.subr.bf16.mxu0 0
        %1323 = vmatpush1.bf16.msra.mxu0 %v1305
        %1324 = vmatprep.subr.bf16.mxu0 0
        %1325 = vmatpush1.bf16.msra.mxu0 %v1306
        %1326 = vmatprep.subr.bf16.mxu0 0
        %1327 = vmatpush1.bf16.msra.mxu0 %v1307
        %1328 = vmatprep.subr.bf16.mxu0 0
        %1329 = vmatpush1.bf16.msra.mxu0 %v1308
        %1330 = vmatprep.subr.bf16.mxu0 0
        %1331 = vmatpush1.bf16.msra.mxu0 %v1309
        %1332 = vmatprep.subr.bf16.mxu0 0
        %1333 = vmatpush1.bf16.msra.mxu0 %v1310
        %1334 = vmatprep.subr.bf16.mxu0 0
        %1335 = vmatpush1.bf16.msra.mxu0 %v1311
        %1336 = vmatprep.subr.bf16.mxu0 0
        %1337 = vmatpush1.bf16.msra.mxu0 0
        %1338 = vmatprep.subr.bf16.mxu0 0
        %1339 = vmatpush1.bf16.msra.mxu0 0
        %1340 = vmatprep.subr.bf16.mxu0 0
        %1341 = vmatpush1.bf16.msra.mxu0 0
        %1342 = vmatprep.subr.bf16.mxu0 0
        %1343 = vmatpush1.bf16.msra.mxu0 0
        %1344 = vmatprep.subr.bf16.mxu0 0
        %1345 = vmatpush1.bf16.msra.mxu0 0
        %1346 = vmatprep.subr.bf16.mxu0 0
        %1347 = vmatpush1.bf16.msra.mxu0 0
        %1348 = vmatprep.subr.bf16.mxu0 0
        %1349 = vmatpush1.bf16.msra.mxu0 0
        %1350 = vmatprep.subr.bf16.mxu0 0
        %1351 = vmatpush1.bf16.msra.mxu0 0
        %1352 = vmatprep.mubr.bf16.mxu0 0
        %1353 = vmatmul.mubr.bf16.gmra.mrb[0].mxu0 %v609
        %v1354 = vpop.f32.mrb[0].mxu0
        %v1355 = vadd.f32 0.0, %v1354
        %v1356 = vpop.f32.mrb[0].mxu0
        %v1357 = vpop.f32.mrb[0].mxu0
        %v1358 = vpop.f32.mrb[0].mxu0
        %1359 = vdwg.mxu0
        %v1360 = vpack.c.bf16 %v1145, %v1145
        %v1361 = vpack.c.bf16 %v1250, %v1250
        %v1363 = vsel %vm924, %v1360, 0
        %v1366 = vsel %vm924, %v1361, 0
        %1368 = vmatprep.subr.bf16.mxu0 0
        %1369 = vmatpush1.bf16.xpose.msra.mxu0 %v1366
        %1370 = vmatprep.subr.bf16.mxu0 0
        %1371 = vmatpush1.bf16.xpose.msra.mxu0 0
        %1372 = vmatprep.subr.bf16.mxu0 0
        %1373 = vmatpush1.bf16.xpose.msra.mxu0 0
        %1374 = vmatprep.subr.bf16.mxu0 0
        %1375 = vmatpush1.bf16.xpose.msra.mxu0 0
        %1376 = vmatprep.subr.bf16.mxu0 0
        %1377 = vmatpush1.bf16.xpose.msra.mxu0 0
        %1378 = vmatprep.subr.bf16.mxu0 0
        %1379 = vmatpush1.bf16.xpose.msra.mxu0 0
        %1380 = vmatprep.subr.bf16.mxu0 0
        %1381 = vmatpush1.bf16.xpose.msra.mxu0 0
        %1382 = vmatprep.subr.bf16.mxu0 0
        %1383 = vmatpush1.bf16.xpose.msra.mxu0 0
        %1384 = vmatprep.subr.bf16.mxu0 0
        %1385 = vmatpush1.bf16.xpose.msra.mxu0 0
        %1386 = vmatprep.subr.bf16.mxu0 0
        %1387 = vmatpush1.bf16.xpose.msra.mxu0 0
        %1388 = vmatprep.subr.bf16.mxu0 0
        %1389 = vmatpush1.bf16.xpose.msra.mxu0 0
        %1390 = vmatprep.subr.bf16.mxu0 0
        %1391 = vmatpush1.bf16.xpose.msra.mxu0 0
        %1392 = vmatprep.subr.bf16.mxu0 0
        %1393 = vmatpush1.bf16.xpose.msra.mxu0 0
        %1394 = vmatprep.subr.bf16.mxu0 0
        %1395 = vmatpush1.bf16.xpose.msra.mxu0 0
        %1396 = vmatprep.subr.bf16.mxu0 0
        %1397 = vmatpush1.bf16.xpose.msra.mxu0 0
        %1398 = vmatprep.subr.bf16.mxu0 0
        %1399 = vmatpush1.bf16.xpose.msra.mxu0 0
        %1400 = vmatprep.mubr.bf16.mxu0 0
        %1401 = vmatmul.mubr.bf16.gmra.mrb[0].mxu0 %v1363
        %v1402 = vpop.f32.mrb[0].mxu0
        %v1403 = vadd.f32 0.0, %v1402
        %v1404 = vpop.f32.mrb[0].mxu0
        %v1405 = vpop.f32.mrb[0].mxu0
        %v1406 = vpop.f32.mrb[0].mxu0
        %1407 = vdwg.mxu0
        %v1408 = vsel %vm977, %v1403, -1e+09
        %v1409 = vsel %vm979, %v1408, -inf
        %1410 = vmax.xlane.f32.xlu0 %v1409
        %v1411 = vpop.xlane.xlu0 %1410
        %v1412 = vsub.f32 %v1408, %v1411
        %v1413 = vmul.f32 %v1412, 1.442695
        %v1414 = vpow.pop %v1413
        %v1415 = vsel %vm979, %v1414, 0.0
        %1416 = vadd.xlane.f32.xlu0 %v1415
        %v1417 = vpop.xlane.xlu0 %1416
        %v1418 = vrcp.pop %v1417
        %v1419 = vmul.f32 %v1414, %v1418
        %v1420 = vpack.c.bf16 %v1419, %v1419
        %v1421 = vpack.c.bf16 %v1355, %v1355
        %v1423 = vsel %vm979, %v1420, 0
        %v1426 = vsel %vm996, %v1421, 0
        %1428 = vmatprep.subr.bf16.mxu0 0
        %1429 = vmatpush1.bf16.msra.mxu0 %v1426
        %1430 = vmatprep.subr.bf16.mxu0 0
        %1431 = vmatpush1.bf16.msra.mxu0 0
        %1432 = vmatprep.subr.bf16.mxu0 0
        %1433 = vmatpush1.bf16.msra.mxu0 0
        %1434 = vmatprep.subr.bf16.mxu0 0
        %1435 = vmatpush1.bf16.msra.mxu0 0
        %1436 = vmatprep.subr.bf16.mxu0 0
        %1437 = vmatpush1.bf16.msra.mxu0 0
        %1438 = vmatprep.subr.bf16.mxu0 0
        %1439 = vmatpush1.bf16.msra.mxu0 0
        %1440 = vmatprep.subr.bf16.mxu0 0
        %1441 = vmatpush1.bf16.msra.mxu0 0
        %1442 = vmatprep.subr.bf16.mxu0 0
        %1443 = vmatpush1.bf16.msra.mxu0 0
        %1444 = vmatprep.subr.bf16.mxu0 0
        %1445 = vmatpush1.bf16.msra.mxu0 0
        %1446 = vmatprep.subr.bf16.mxu0 0
        %1447 = vmatpush1.bf16.msra.mxu0 0
        %1448 = vmatprep.subr.bf16.mxu0 0
        %1449 = vmatpush1.bf16.msra.mxu0 0
        %1450 = vmatprep.subr.bf16.mxu0 0
        %1451 = vmatpush1.bf16.msra.mxu0 0
        %1452 = vmatprep.subr.bf16.mxu0 0
        %1453 = vmatpush1.bf16.msra.mxu0 0
        %1454 = vmatprep.subr.bf16.mxu0 0
        %1455 = vmatpush1.bf16.msra.mxu0 0
        %1456 = vmatprep.subr.bf16.mxu0 0
        %1457 = vmatpush1.bf16.msra.mxu0 0
        %1458 = vmatprep.subr.bf16.mxu0 0
        %1459 = vmatpush1.bf16.msra.mxu0 0
        %1460 = vmatprep.mubr.bf16.mxu0 0
        %1461 = vmatmul.mubr.bf16.gmra.mrb[0].mxu0 %v1423
        %v1462 = vpop.f32.mrb[0].mxu0
        %v1463 = vadd.f32 0.0, %v1462
        %v1464 = vpop.f32.mrb[0].mxu0
        %v1465 = vpop.f32.mrb[0].mxu0
        %v1466 = vpop.f32.mrb[0].mxu0
        %1467 = vdwg.mxu0
        %v1468 = vpack.c.bf16 %v1463, %v1463
        %s1469 = scalar_lea.vmem %s9, 16
        %v1470 = vld [vmem:[%s1469] sm:$0xf]
        %v1471 = vld [vmem:[%s1469 + $0x4] sm:$0xf]
        %v1472 = vld [vmem:[%s1469 + $0x8] sm:$0xf]
        %v1473 = vld [vmem:[%s1469 + $0xc] sm:$0xf]
        %v1478 = vunpack.c.l.b16 %v1470
        %v1479 = vunpack.c.l.b16 %v1471
        %v1480 = vunpack.c.l.b16 %v1472
        %v1481 = vunpack.c.l.b16 %v1473
        %v1482 = vpack.c.b16 %v1479, %v1478
        %v1483 = vpack.c.b16 %v1481, %v1480
        %v1487 = vsel %vm924, %v1468, 0
        %1489 = vmatprep.subr.bf16.mxu0 0
        %1490 = vmatpush1.bf16.msra.mxu0 %v1482
        %1491 = vmatprep.subr.bf16.mxu0 0
        %1492 = vmatpush1.bf16.msra.mxu0 %v1483
        %1493 = vmatprep.subr.bf16.mxu0 0
        %1494 = vmatpush1.bf16.msra.mxu0 0
        %1495 = vmatprep.subr.bf16.mxu0 0
        %1496 = vmatpush1.bf16.msra.mxu0 0
        %1497 = vmatprep.subr.bf16.mxu0 0
        %1498 = vmatpush1.bf16.msra.mxu0 0
        %1499 = vmatprep.subr.bf16.mxu0 0
        %1500 = vmatpush1.bf16.msra.mxu0 0
        %1501 = vmatprep.subr.bf16.mxu0 0
        %1502 = vmatpush1.bf16.msra.mxu0 0
        %1503 = vmatprep.subr.bf16.mxu0 0
        %1504 = vmatpush1.bf16.msra.mxu0 0
        %1505 = vmatprep.subr.bf16.mxu0 0
        %1506 = vmatpush1.bf16.msra.mxu0 0
        %1507 = vmatprep.subr.bf16.mxu0 0
        %1508 = vmatpush1.bf16.msra.mxu0 0
        %1509 = vmatprep.subr.bf16.mxu0 0
        %1510 = vmatpush1.bf16.msra.mxu0 0
        %1511 = vmatprep.subr.bf16.mxu0 0
        %1512 = vmatpush1.bf16.msra.mxu0 0
        %1513 = vmatprep.subr.bf16.mxu0 0
        %1514 = vmatpush1.bf16.msra.mxu0 0
        %1515 = vmatprep.subr.bf16.mxu0 0
        %1516 = vmatpush1.bf16.msra.mxu0 0
        %1517 = vmatprep.subr.bf16.mxu0 0
        %1518 = vmatpush1.bf16.msra.mxu0 0
        %1519 = vmatprep.subr.bf16.mxu0 0
        %1520 = vmatpush1.bf16.msra.mxu0 0
        %1521 = vmatprep.mubr.bf16.mxu0 0
        %1522 = vmatmul.mubr.bf16.gmra.mrb[0].mxu0 %v1487
        %v1523 = vpop.f32.mrb[0].mxu0
        %v1524 = vadd.f32 0.0, %v1523
        %v1525 = vpop.f32.mrb[0].mxu0
        %v1526 = vpop.f32.mrb[0].mxu0
        %v1527 = vpop.f32.mrb[0].mxu0
        %1528 = vdwg.mxu0
        %v1533 = vunpack.c.l.b16 %v1041
        %v1534 = vunpack.c.l.b16 %v1042
        %v1535 = vunpack.c.l.b16 %v1043
        %v1536 = vunpack.c.l.b16 %v1044
        %v1537 = vpack.c.b16 %v1534, %v1533
        %v1538 = vpack.c.b16 %v1536, %v1535
        %v1542 = vsel %vm924, %v1040, 0
        %1544 = vmatprep.subr.bf16.mxu0 0
        %1545 = vmatpush1.bf16.msra.mxu0 %v1537
        %1546 = vmatprep.subr.bf16.mxu0 0
        %1547 = vmatpush1.bf16.msra.mxu0 %v1538
        %1548 = vmatprep.subr.bf16.mxu0 0
        %1549 = vmatpush1.bf16.msra.mxu0 0
        %1550 = vmatprep.subr.bf16.mxu0 0
        %1551 = vmatpush1.bf16.msra.mxu0 0
        %1552 = vmatprep.subr.bf16.mxu0 0
        %1553 = vmatpush1.bf16.msra.mxu0 0
        %1554 = vmatprep.subr.bf16.mxu0 0
        %1555 = vmatpush1.bf16.msra.mxu0 0
        %1556 = vmatprep.subr.bf16.mxu0 0
        %1557 = vmatpush1.bf16.msra.mxu0 0
        %1558 = vmatprep.subr.bf16.mxu0 0
        %1559 = vmatpush1.bf16.msra.mxu0 0
        %1560 = vmatprep.subr.bf16.mxu0 0
        %1561 = vmatpush1.bf16.msra.mxu0 0
        %1562 = vmatprep.subr.bf16.mxu0 0
        %1563 = vmatpush1.bf16.msra.mxu0 0
        %1564 = vmatprep.subr.bf16.mxu0 0
        %1565 = vmatpush1.bf16.msra.mxu0 0
        %1566 = vmatprep.subr.bf16.mxu0 0
        %1567 = vmatpush1.bf16.msra.mxu0 0
        %1568 = vmatprep.subr.bf16.mxu0 0
        %1569 = vmatpush1.bf16.msra.mxu0 0
        %1570 = vmatprep.subr.bf16.mxu0 0
        %1571 = vmatpush1.bf16.msra.mxu0 0
        %1572 = vmatprep.subr.bf16.mxu0 0
        %1573 = vmatpush1.bf16.msra.mxu0 0
        %1574 = vmatprep.subr.bf16.mxu0 0
        %1575 = vmatpush1.bf16.msra.mxu0 0
        %1576 = vmatprep.mubr.bf16.mxu0 0
        %1577 = vmatmul.mubr.bf16.gmra.mrb[0].mxu0 %v1542
        %v1578 = vpop.f32.mrb[0].mxu0
        %v1579 = vadd.f32 %v1524, %v1578
        %v1580 = vpop.f32.mrb[0].mxu0
        %v1581 = vpop.f32.mrb[0].mxu0
        %v1582 = vpop.f32.mrb[0].mxu0
        %1583 = vdwg.mxu0
        %s1584 = scalar_lea.vmem %s6, 128
        %v1585 = vld [vmem:[%s1584] sm:$0xf]
        %v1586 = vld [vmem:[%s1584 + $0x4] sm:$0xf]
        %v1587 = vld [vmem:[%s1584 + $0x8] sm:$0xf]
        %v1588 = vld [vmem:[%s1584 + $0xc] sm:$0xf]
        %v1589 = vld [vmem:[%s1584 + $0x10] sm:$0xf]
        %v1590 = vld [vmem:[%s1584 + $0x14] sm:$0xf]
        %v1591 = vld [vmem:[%s1584 + $0x18] sm:$0xf]
        %v1592 = vld [vmem:[%s1584 + $0x1c] sm:$0xf]
        %v1593 = vld [vmem:[%s1584 + $0x20] sm:$0xf]
        %v1594 = vld [vmem:[%s1584 + $0x24] sm:$0xf]
        %v1595 = vld [vmem:[%s1584 + $0x28] sm:$0xf]
        %v1596 = vld [vmem:[%s1584 + $0x2c] sm:$0xf]
        %v1597 = vld [vmem:[%s1584 + $0x30] sm:$0xf]
        %v1598 = vld [vmem:[%s1584 + $0x34] sm:$0xf]
        %v1599 = vld [vmem:[%s1584 + $0x38] sm:$0xf]
        %v1600 = vld [vmem:[%s1584 + $0x3c] sm:$0xf]
        %v1617 = vunpack.c.l.b16 %v1585
        %v1618 = vunpack.c.l.b16 %v1586
        %v1619 = vunpack.c.l.b16 %v1587
        %v1620 = vunpack.c.l.b16 %v1588
        %v1621 = vunpack.c.l.b16 %v1589
        %v1622 = vunpack.c.l.b16 %v1590
        %v1623 = vunpack.c.l.b16 %v1591
        %v1624 = vunpack.c.l.b16 %v1592
        %v1625 = vunpack.c.l.b16 %v1593
        %v1626 = vunpack.c.l.b16 %v1594
        %v1627 = vunpack.c.l.b16 %v1595
        %v1628 = vunpack.c.l.b16 %v1596
        %v1629 = vunpack.c.l.b16 %v1597
        %v1630 = vunpack.c.l.b16 %v1598
        %v1631 = vunpack.c.l.b16 %v1599
        %v1632 = vunpack.c.l.b16 %v1600
        %v1633 = vpack.c.b16 %v1618, %v1617
        %v1634 = vpack.c.b16 %v1620, %v1619
        %v1635 = vpack.c.b16 %v1622, %v1621
        %v1636 = vpack.c.b16 %v1624, %v1623
        %v1637 = vpack.c.b16 %v1626, %v1625
        %v1638 = vpack.c.b16 %v1628, %v1627
        %v1639 = vpack.c.b16 %v1630, %v1629
        %v1640 = vpack.c.b16 %v1632, %v1631
        %1649 = vmatprep.subr.bf16.mxu0 0
        %1650 = vmatpush1.bf16.msra.mxu0 %v1633
        %1651 = vmatprep.subr.bf16.mxu0 0
        %1652 = vmatpush1.bf16.msra.mxu0 %v1634
        %1653 = vmatprep.subr.bf16.mxu0 0
        %1654 = vmatpush1.bf16.msra.mxu0 %v1635
        %1655 = vmatprep.subr.bf16.mxu0 0
        %1656 = vmatpush1.bf16.msra.mxu0 %v1636
        %1657 = vmatprep.subr.bf16.mxu0 0
        %1658 = vmatpush1.bf16.msra.mxu0 %v1637
        %1659 = vmatprep.subr.bf16.mxu0 0
        %1660 = vmatpush1.bf16.msra.mxu0 %v1638
        %1661 = vmatprep.subr.bf16.mxu0 0
        %1662 = vmatpush1.bf16.msra.mxu0 %v1639
        %1663 = vmatprep.subr.bf16.mxu0 0
        %1664 = vmatpush1.bf16.msra.mxu0 %v1640
        %1665 = vmatprep.subr.bf16.mxu0 0
        %1666 = vmatpush1.bf16.msra.mxu0 0
        %1667 = vmatprep.subr.bf16.mxu0 0
        %1668 = vmatpush1.bf16.msra.mxu0 0
        %1669 = vmatprep.subr.bf16.mxu0 0
        %1670 = vmatpush1.bf16.msra.mxu0 0
        %1671 = vmatprep.subr.bf16.mxu0 0
        %1672 = vmatpush1.bf16.msra.mxu0 0
        %1673 = vmatprep.subr.bf16.mxu0 0
        %1674 = vmatpush1.bf16.msra.mxu0 0
        %1675 = vmatprep.subr.bf16.mxu0 0
        %1676 = vmatpush1.bf16.msra.mxu0 0
        %1677 = vmatprep.subr.bf16.mxu0 0
        %1678 = vmatpush1.bf16.msra.mxu0 0
        %1679 = vmatprep.subr.bf16.mxu0 0
        %1680 = vmatpush1.bf16.msra.mxu0 0
        %1681 = vmatprep.mubr.bf16.mxu0 0
        %1682 = vmatmul.mubr.bf16.gmra.mrb[0].mxu0 %v608
        %v1683 = vpop.f32.mrb[0].mxu0
        %v1684 = vadd.f32 0.0, %v1683
        %v1685 = vpop.f32.mrb[0].mxu0
        %v1686 = vpop.f32.mrb[0].mxu0
        %v1687 = vpop.f32.mrb[0].mxu0
        %1688 = vdwg.mxu0
        %s1689 = scalar_lea.vmem %s7, 128
        %v1690 = vld [vmem:[%s1689] sm:$0xf]
        %v1691 = vld [vmem:[%s1689 + $0x4] sm:$0xf]
        %v1692 = vld [vmem:[%s1689 + $0x8] sm:$0xf]
        %v1693 = vld [vmem:[%s1689 + $0xc] sm:$0xf]
        %v1694 = vld [vmem:[%s1689 + $0x10] sm:$0xf]
        %v1695 = vld [vmem:[%s1689 + $0x14] sm:$0xf]
        %v1696 = vld [vmem:[%s1689 + $0x18] sm:$0xf]
        %v1697 = vld [vmem:[%s1689 + $0x1c] sm:$0xf]
        %v1698 = vld [vmem:[%s1689 + $0x20] sm:$0xf]
        %v1699 = vld [vmem:[%s1689 + $0x24] sm:$0xf]
        %v1700 = vld [vmem:[%s1689 + $0x28] sm:$0xf]
        %v1701 = vld [vmem:[%s1689 + $0x2c] sm:$0xf]
        %v1702 = vld [vmem:[%s1689 + $0x30] sm:$0xf]
        %v1703 = vld [vmem:[%s1689 + $0x34] sm:$0xf]
        %v1704 = vld [vmem:[%s1689 + $0x38] sm:$0xf]
        %v1705 = vld [vmem:[%s1689 + $0x3c] sm:$0xf]
        %v1722 = vunpack.c.l.b16 %v1690
        %v1723 = vunpack.c.l.b16 %v1691
        %v1724 = vunpack.c.l.b16 %v1692
        %v1725 = vunpack.c.l.b16 %v1693
        %v1726 = vunpack.c.l.b16 %v1694
        %v1727 = vunpack.c.l.b16 %v1695
        %v1728 = vunpack.c.l.b16 %v1696
        %v1729 = vunpack.c.l.b16 %v1697
        %v1730 = vunpack.c.l.b16 %v1698
        %v1731 = vunpack.c.l.b16 %v1699
        %v1732 = vunpack.c.l.b16 %v1700
        %v1733 = vunpack.c.l.b16 %v1701
        %v1734 = vunpack.c.l.b16 %v1702
        %v1735 = vunpack.c.l.b16 %v1703
        %v1736 = vunpack.c.l.b16 %v1704
        %v1737 = vunpack.c.l.b16 %v1705
        %v1738 = vpack.c.b16 %v1723, %v1722
        %v1739 = vpack.c.b16 %v1725, %v1724
        %v1740 = vpack.c.b16 %v1727, %v1726
        %v1741 = vpack.c.b16 %v1729, %v1728
        %v1742 = vpack.c.b16 %v1731, %v1730
        %v1743 = vpack.c.b16 %v1733, %v1732
        %v1744 = vpack.c.b16 %v1735, %v1734
        %v1745 = vpack.c.b16 %v1737, %v1736
        %1754 = vmatprep.subr.bf16.mxu0 0
        %1755 = vmatpush1.bf16.msra.mxu0 %v1738
        %1756 = vmatprep.subr.bf16.mxu0 0
        %1757 = vmatpush1.bf16.msra.mxu0 %v1739
        %1758 = vmatprep.subr.bf16.mxu0 0
        %1759 = vmatpush1.bf16.msra.mxu0 %v1740
        %1760 = vmatprep.subr.bf16.mxu0 0
        %1761 = vmatpush1.bf16.msra.mxu0 %v1741
        %1762 = vmatprep.subr.bf16.mxu0 0
        %1763 = vmatpush1.bf16.msra.mxu0 %v1742
        %1764 = vmatprep.subr.bf16.mxu0 0
        %1765 = vmatpush1.bf16.msra.mxu0 %v1743
        %1766 = vmatprep.subr.bf16.mxu0 0
        %1767 = vmatpush1.bf16.msra.mxu0 %v1744
        %1768 = vmatprep.subr.bf16.mxu0 0
        %1769 = vmatpush1.bf16.msra.mxu0 %v1745
        %1770 = vmatprep.subr.bf16.mxu0 0
        %1771 = vmatpush1.bf16.msra.mxu0 0
        %1772 = vmatprep.subr.bf16.mxu0 0
        %1773 = vmatpush1.bf16.msra.mxu0 0
        %1774 = vmatprep.subr.bf16.mxu0 0
        %1775 = vmatpush1.bf16.msra.mxu0 0
        %1776 = vmatprep.subr.bf16.mxu0 0
        %1777 = vmatpush1.bf16.msra.mxu0 0
        %1778 = vmatprep.subr.bf16.mxu0 0
        %1779 = vmatpush1.bf16.msra.mxu0 0
        %1780 = vmatprep.subr.bf16.mxu0 0
        %1781 = vmatpush1.bf16.msra.mxu0 0
        %1782 = vmatprep.subr.bf16.mxu0 0
        %1783 = vmatpush1.bf16.msra.mxu0 0
        %1784 = vmatprep.subr.bf16.mxu0 0
        %1785 = vmatpush1.bf16.msra.mxu0 0
        %1786 = vmatprep.mubr.bf16.mxu0 0
        %1787 = vmatmul.mubr.bf16.gmra.mrb[0].mxu0 %v609
        %v1788 = vpop.f32.mrb[0].mxu0
        %v1789 = vadd.f32 0.0, %v1788
        %v1790 = vpop.f32.mrb[0].mxu0
        %v1791 = vpop.f32.mrb[0].mxu0
        %v1792 = vpop.f32.mrb[0].mxu0
        %1793 = vdwg.mxu0
        %s1794 = scalar_lea.vmem %s8, 128
        %v1795 = vld [vmem:[%s1794] sm:$0xf]
        %v1796 = vld [vmem:[%s1794 + $0x4] sm:$0xf]
        %v1797 = vld [vmem:[%s1794 + $0x8] sm:$0xf]
        %v1798 = vld [vmem:[%s1794 + $0xc] sm:$0xf]
        %v1799 = vld [vmem:[%s1794 + $0x10] sm:$0xf]
        %v1800 = vld [vmem:[%s1794 + $0x14] sm:$0xf]
        %v1801 = vld [vmem:[%s1794 + $0x18] sm:$0xf]
        %v1802 = vld [vmem:[%s1794 + $0x1c] sm:$0xf]
        %v1803 = vld [vmem:[%s1794 + $0x20] sm:$0xf]
        %v1804 = vld [vmem:[%s1794 + $0x24] sm:$0xf]
        %v1805 = vld [vmem:[%s1794 + $0x28] sm:$0xf]
        %v1806 = vld [vmem:[%s1794 + $0x2c] sm:$0xf]
        %v1807 = vld [vmem:[%s1794 + $0x30] sm:$0xf]
        %v1808 = vld [vmem:[%s1794 + $0x34] sm:$0xf]
        %v1809 = vld [vmem:[%s1794 + $0x38] sm:$0xf]
        %v1810 = vld [vmem:[%s1794 + $0x3c] sm:$0xf]
        %v1827 = vunpack.c.l.b16 %v1795
        %v1828 = vunpack.c.l.b16 %v1796
        %v1829 = vunpack.c.l.b16 %v1797
        %v1830 = vunpack.c.l.b16 %v1798
        %v1831 = vunpack.c.l.b16 %v1799
        %v1832 = vunpack.c.l.b16 %v1800
        %v1833 = vunpack.c.l.b16 %v1801
        %v1834 = vunpack.c.l.b16 %v1802
        %v1835 = vunpack.c.l.b16 %v1803
        %v1836 = vunpack.c.l.b16 %v1804
        %v1837 = vunpack.c.l.b16 %v1805
        %v1838 = vunpack.c.l.b16 %v1806
        %v1839 = vunpack.c.l.b16 %v1807
        %v1840 = vunpack.c.l.b16 %v1808
        %v1841 = vunpack.c.l.b16 %v1809
        %v1842 = vunpack.c.l.b16 %v1810
        %v1843 = vpack.c.b16 %v1828, %v1827
        %v1844 = vpack.c.b16 %v1830, %v1829
        %v1845 = vpack.c.b16 %v1832, %v1831
        %v1846 = vpack.c.b16 %v1834, %v1833
        %v1847 = vpack.c.b16 %v1836, %v1835
        %v1848 = vpack.c.b16 %v1838, %v1837
        %v1849 = vpack.c.b16 %v1840, %v1839
        %v1850 = vpack.c.b16 %v1842, %v1841
        %1859 = vmatprep.subr.bf16.mxu0 0
        %1860 = vmatpush1.bf16.msra.mxu0 %v1843
        %1861 = vmatprep.subr.bf16.mxu0 0
        %1862 = vmatpush1.bf16.msra.mxu0 %v1844
        %1863 = vmatprep.subr.bf16.mxu0 0
        %1864 = vmatpush1.bf16.msra.mxu0 %v1845
        %1865 = vmatprep.subr.bf16.mxu0 0
        %1866 = vmatpush1.bf16.msra.mxu0 %v1846
        %1867 = vmatprep.subr.bf16.mxu0 0
        %1868 = vmatpush1.bf16.msra.mxu0 %v1847
        %1869 = vmatprep.subr.bf16.mxu0 0
        %1870 = vmatpush1.bf16.msra.mxu0 %v1848
        %1871 = vmatprep.subr.bf16.mxu0 0
        %1872 = vmatpush1.bf16.msra.mxu0 %v1849
        %1873 = vmatprep.subr.bf16.mxu0 0
        %1874 = vmatpush1.bf16.msra.mxu0 %v1850
        %1875 = vmatprep.subr.bf16.mxu0 0
        %1876 = vmatpush1.bf16.msra.mxu0 0
        %1877 = vmatprep.subr.bf16.mxu0 0
        %1878 = vmatpush1.bf16.msra.mxu0 0
        %1879 = vmatprep.subr.bf16.mxu0 0
        %1880 = vmatpush1.bf16.msra.mxu0 0
        %1881 = vmatprep.subr.bf16.mxu0 0
        %1882 = vmatpush1.bf16.msra.mxu0 0
        %1883 = vmatprep.subr.bf16.mxu0 0
        %1884 = vmatpush1.bf16.msra.mxu0 0
        %1885 = vmatprep.subr.bf16.mxu0 0
        %1886 = vmatpush1.bf16.msra.mxu0 0
        %1887 = vmatprep.subr.bf16.mxu0 0
        %1888 = vmatpush1.bf16.msra.mxu0 0
        %1889 = vmatprep.subr.bf16.mxu0 0
        %1890 = vmatpush1.bf16.msra.mxu0 0
        %1891 = vmatprep.mubr.bf16.mxu0 0
        %1892 = vmatmul.mubr.bf16.gmra.mrb[0].mxu0 %v609
        %v1893 = vpop.f32.mrb[0].mxu0
        %v1894 = vadd.f32 0.0, %v1893
        %v1895 = vpop.f32.mrb[0].mxu0
        %v1896 = vpop.f32.mrb[0].mxu0
        %v1897 = vpop.f32.mrb[0].mxu0
        %1898 = vdwg.mxu0
        %v1899 = vpack.c.bf16 %v1684, %v1684
        %v1900 = vpack.c.bf16 %v1789, %v1789
        %v1902 = vsel %vm924, %v1899, 0
        %v1905 = vsel %vm924, %v1900, 0
        %1907 = vmatprep.subr.bf16.mxu0 0
        %1908 = vmatpush1.bf16.xpose.msra.mxu0 %v1905
        %1909 = vmatprep.subr.bf16.mxu0 0
        %1910 = vmatpush1.bf16.xpose.msra.mxu0 0
        %1911 = vmatprep.subr.bf16.mxu0 0
        %1912 = vmatpush1.bf16.xpose.msra.mxu0 0
        %1913 = vmatprep.subr.bf16.mxu0 0
        %1914 = vmatpush1.bf16.xpose.msra.mxu0 0
        %1915 = vmatprep.subr.bf16.mxu0 0
        %1916 = vmatpush1.bf16.xpose.msra.mxu0 0
        %1917 = vmatprep.subr.bf16.mxu0 0
        %1918 = vmatpush1.bf16.xpose.msra.mxu0 0
        %1919 = vmatprep.subr.bf16.mxu0 0
        %1920 = vmatpush1.bf16.xpose.msra.mxu0 0
        %1921 = vmatprep.subr.bf16.mxu0 0
        %1922 = vmatpush1.bf16.xpose.msra.mxu0 0
        %1923 = vmatprep.subr.bf16.mxu0 0
        %1924 = vmatpush1.bf16.xpose.msra.mxu0 0
        %1925 = vmatprep.subr.bf16.mxu0 0
        %1926 = vmatpush1.bf16.xpose.msra.mxu0 0
        %1927 = vmatprep.subr.bf16.mxu0 0
        %1928 = vmatpush1.bf16.xpose.msra.mxu0 0
        %1929 = vmatprep.subr.bf16.mxu0 0
        %1930 = vmatpush1.bf16.xpose.msra.mxu0 0
        %1931 = vmatprep.subr.bf16.mxu0 0
        %1932 = vmatpush1.bf16.xpose.msra.mxu0 0
        %1933 = vmatprep.subr.bf16.mxu0 0
        %1934 = vmatpush1.bf16.xpose.msra.mxu0 0
        %1935 = vmatprep.subr.bf16.mxu0 0
        %1936 = vmatpush1.bf16.xpose.msra.mxu0 0
        %1937 = vmatprep.subr.bf16.mxu0 0
        %1938 = vmatpush1.bf16.xpose.msra.mxu0 0
        %1939 = vmatprep.mubr.bf16.mxu0 0
        %1940 = vmatmul.mubr.bf16.gmra.mrb[0].mxu0 %v1902
        %v1941 = vpop.f32.mrb[0].mxu0
        %v1942 = vadd.f32 0.0, %v1941
        %v1943 = vpop.f32.mrb[0].mxu0
        %v1944 = vpop.f32.mrb[0].mxu0
        %v1945 = vpop.f32.mrb[0].mxu0
        %1946 = vdwg.mxu0
        %v1947 = vsel %vm977, %v1942, -1e+09
        %v1948 = vsel %vm979, %v1947, -inf
        %1949 = vmax.xlane.f32.xlu0 %v1948
        %v1950 = vpop.xlane.xlu0 %1949
        %v1951 = vsub.f32 %v1947, %v1950
        %v1952 = vmul.f32 %v1951, 1.442695
        %v1953 = vpow.pop %v1952
        %v1954 = vsel %vm979, %v1953, 0.0
        %1955 = vadd.xlane.f32.xlu0 %v1954
        %v1956 = vpop.xlane.xlu0 %1955
        %v1957 = vrcp.pop %v1956
        %v1958 = vmul.f32 %v1953, %v1957
        %v1959 = vpack.c.bf16 %v1958, %v1958
        %v1960 = vpack.c.bf16 %v1894, %v1894
        %v1962 = vsel %vm979, %v1959, 0
        %v1965 = vsel %vm996, %v1960, 0
        %1967 = vmatprep.subr.bf16.mxu0 0
        %1968 = vmatpush1.bf16.msra.mxu0 %v1965
        %1969 = vmatprep.subr.bf16.mxu0 0
        %1970 = vmatpush1.bf16.msra.mxu0 0
        %1971 = vmatprep.subr.bf16.mxu0 0
        %1972 = vmatpush1.bf16.msra.mxu0 0
        %1973 = vmatprep.subr.bf16.mxu0 0
        %1974 = vmatpush1.bf16.msra.mxu0 0
        %1975 = vmatprep.subr.bf16.mxu0 0
        %1976 = vmatpush1.bf16.msra.mxu0 0
        %1977 = vmatprep.subr.bf16.mxu0 0
        %1978 = vmatpush1.bf16.msra.mxu0 0
        %1979 = vmatprep.subr.bf16.mxu0 0
        %1980 = vmatpush1.bf16.msra.mxu0 0
        %1981 = vmatprep.subr.bf16.mxu0 0
        %1982 = vmatpush1.bf16.msra.mxu0 0
        %1983 = vmatprep.subr.bf16.mxu0 0
        %1984 = vmatpush1.bf16.msra.mxu0 0
        %1985 = vmatprep.subr.bf16.mxu0 0
        %1986 = vmatpush1.bf16.msra.mxu0 0
        %1987 = vmatprep.subr.bf16.mxu0 0
        %1988 = vmatpush1.bf16.msra.mxu0 0
        %1989 = vmatprep.subr.bf16.mxu0 0
        %1990 = vmatpush1.bf16.msra.mxu0 0
        %1991 = vmatprep.subr.bf16.mxu0 0
        %1992 = vmatpush1.bf16.msra.mxu0 0
        %1993 = vmatprep.subr.bf16.mxu0 0
        %1994 = vmatpush1.bf16.msra.mxu0 0
        %1995 = vmatprep.subr.bf16.mxu0 0
        %1996 = vmatpush1.bf16.msra.mxu0 0
        %1997 = vmatprep.subr.bf16.mxu0 0
        %1998 = vmatpush1.bf16.msra.mxu0 0
        %1999 = vmatprep.mubr.bf16.mxu0 0
        %2000 = vmatmul.mubr.bf16.gmra.mrb[0].mxu0 %v1962
        %v2001 = vpop.f32.mrb[0].mxu0
        %v2002 = vadd.f32 0.0, %v2001
        %v2003 = vpop.f32.mrb[0].mxu0
        %v2004 = vpop.f32.mrb[0].mxu0
        %v2005 = vpop.f32.mrb[0].mxu0
        %2006 = vdwg.mxu0
        %v2007 = vpack.c.bf16 %v2002, %v2002
        %s2008 = scalar_lea.vmem %s9, 32
        %v2009 = vld [vmem:[%s2008] sm:$0xf]
        %v2010 = vld [vmem:[%s2008 + $0x4] sm:$0xf]
        %v2011 = vld [vmem:[%s2008 + $0x8] sm:$0xf]
        %v2012 = vld [vmem:[%s2008 + $0xc] sm:$0xf]
        %v2017 = vunpack.c.l.b16 %v2009
        %v2018 = vunpack.c.l.b16 %v2010
        %v2019 = vunpack.c.l.b16 %v2011
        %v2020 = vunpack.c.l.b16 %v2012
        %v2021 = vpack.c.b16 %v2018, %v2017
        %v2022 = vpack.c.b16 %v2020, %v2019
        %v2026 = vsel %vm924, %v2007, 0
        %2028 = vmatprep.subr.bf16.mxu0 0
        %2029 = vmatpush1.bf16.msra.mxu0 %v2021
        %2030 = vmatprep.subr.bf16.mxu0 0
        %2031 = vmatpush1.bf16.msra.mxu0 %v2022
        %2032 = vmatprep.subr.bf16.mxu0 0
        %2033 = vmatpush1.bf16.msra.mxu0 0
        %2034 = vmatprep.subr.bf16.mxu0 0
        %2035 = vmatpush1.bf16.msra.mxu0 0
        %2036 = vmatprep.subr.bf16.mxu0 0
        %2037 = vmatpush1.bf16.msra.mxu0 0
        %2038 = vmatprep.subr.bf16.mxu0 0
        %2039 = vmatpush1.bf16.msra.mxu0 0
        %2040 = vmatprep.subr.bf16.mxu0 0
        %2041 = vmatpush1.bf16.msra.mxu0 0
        %2042 = vmatprep.subr.bf16.mxu0 0
        %2043 = vmatpush1.bf16.msra.mxu0 0
        %2044 = vmatprep.subr.bf16.mxu0 0
        %2045 = vmatpush1.bf16.msra.mxu0 0
        %2046 = vmatprep.subr.bf16.mxu0 0
        %2047 = vmatpush1.bf16.msra.mxu0 0
        %2048 = vmatprep.subr.bf16.mxu0 0
        %2049 = vmatpush1.bf16.msra.mxu0 0
        %2050 = vmatprep.subr.bf16.mxu0 0
        %2051 = vmatpush1.bf16.msra.mxu0 0
        %2052 = vmatprep.subr.bf16.mxu0 0
        %2053 = vmatpush1.bf16.msra.mxu0 0
        %2054 = vmatprep.subr.bf16.mxu0 0
        %2055 = vmatpush1.bf16.msra.mxu0 0
        %2056 = vmatprep.subr.bf16.mxu0 0
        %2057 = vmatpush1.bf16.msra.mxu0 0
        %2058 = vmatprep.subr.bf16.mxu0 0
        %2059 = vmatpush1.bf16.msra.mxu0 0
        %2060 = vmatprep.mubr.bf16.mxu0 0
        %2061 = vmatmul.mubr.bf16.gmra.mrb[0].mxu0 %v2026
        %v2062 = vpop.f32.mrb[0].mxu0
        %v2063 = vadd.f32 0.0, %v2062
        %v2064 = vpop.f32.mrb[0].mxu0
        %v2065 = vpop.f32.mrb[0].mxu0
        %v2066 = vpop.f32.mrb[0].mxu0
        %2067 = vdwg.mxu0
        %v2068 = vadd.f32 %v1579, %v2063
        %s2069 = scalar_lea.vmem %s6, 192
        %v2070 = vld [vmem:[%s2069] sm:$0xf]
        %v2071 = vld [vmem:[%s2069 + $0x4] sm:$0xf]
        %v2072 = vld [vmem:[%s2069 + $0x8] sm:$0xf]
        %v2073 = vld [vmem:[%s2069 + $0xc] sm:$0xf]
        %v2074 = vld [vmem:[%s2069 + $0x10] sm:$0xf]
        %v2075 = vld [vmem:[%s2069 + $0x14] sm:$0xf]
        %v2076 = vld [vmem:[%s2069 + $0x18] sm:$0xf]
        %v2077 = vld [vmem:[%s2069 + $0x1c] sm:$0xf]
        %v2078 = vld [vmem:[%s2069 + $0x20] sm:$0xf]
        %v2079 = vld [vmem:[%s2069 + $0x24] sm:$0xf]
        %v2080 = vld [vmem:[%s2069 + $0x28] sm:$0xf]
        %v2081 = vld [vmem:[%s2069 + $0x2c] sm:$0xf]
        %v2082 = vld [vmem:[%s2069 + $0x30] sm:$0xf]
        %v2083 = vld [vmem:[%s2069 + $0x34] sm:$0xf]
        %v2084 = vld [vmem:[%s2069 + $0x38] sm:$0xf]
        %v2085 = vld [vmem:[%s2069 + $0x3c] sm:$0xf]
        %v2102 = vunpack.c.l.b16 %v2070
        %v2103 = vunpack.c.l.b16 %v2071
        %v2104 = vunpack.c.l.b16 %v2072
        %v2105 = vunpack.c.l.b16 %v2073
        %v2106 = vunpack.c.l.b16 %v2074
        %v2107 = vunpack.c.l.b16 %v2075
        %v2108 = vunpack.c.l.b16 %v2076
        %v2109 = vunpack.c.l.b16 %v2077
        %v2110 = vunpack.c.l.b16 %v2078
        %v2111 = vunpack.c.l.b16 %v2079
        %v2112 = vunpack.c.l.b16 %v2080
        %v2113 = vunpack.c.l.b16 %v2081
        %v2114 = vunpack.c.l.b16 %v2082
        %v2115 = vunpack.c.l.b16 %v2083
        %v2116 = vunpack.c.l.b16 %v2084
        %v2117 = vunpack.c.l.b16 %v2085
        %v2118 = vpack.c.b16 %v2103, %v2102
        %v2119 = vpack.c.b16 %v2105, %v2104
        %v2120 = vpack.c.b16 %v2107, %v2106
        %v2121 = vpack.c.b16 %v2109, %v2108
        %v2122 = vpack.c.b16 %v2111, %v2110
        %v2123 = vpack.c.b16 %v2113, %v2112
        %v2124 = vpack.c.b16 %v2115, %v2114
        %v2125 = vpack.c.b16 %v2117, %v2116
        %2134 = vmatprep.subr.bf16.mxu0 0
        %2135 = vmatpush1.bf16.msra.mxu0 %v2118
        %2136 = vmatprep.subr.bf16.mxu0 0
        %2137 = vmatpush1.bf16.msra.mxu0 %v2119
        %2138 = vmatprep.subr.bf16.mxu0 0
        %2139 = vmatpush1.bf16.msra.mxu0 %v2120
        %2140 = vmatprep.subr.bf16.mxu0 0
        %2141 = vmatpush1.bf16.msra.mxu0 %v2121
        %2142 = vmatprep.subr.bf16.mxu0 0
        %2143 = vmatpush1.bf16.msra.mxu0 %v2122
        %2144 = vmatprep.subr.bf16.mxu0 0
        %2145 = vmatpush1.bf16.msra.mxu0 %v2123
        %2146 = vmatprep.subr.bf16.mxu0 0
        %2147 = vmatpush1.bf16.msra.mxu0 %v2124
        %2148 = vmatprep.subr.bf16.mxu0 0
        %2149 = vmatpush1.bf16.msra.mxu0 %v2125
        %2150 = vmatprep.subr.bf16.mxu0 0
        %2151 = vmatpush1.bf16.msra.mxu0 0
        %2152 = vmatprep.subr.bf16.mxu0 0
        %2153 = vmatpush1.bf16.msra.mxu0 0
        %2154 = vmatprep.subr.bf16.mxu0 0
        %2155 = vmatpush1.bf16.msra.mxu0 0
        %2156 = vmatprep.subr.bf16.mxu0 0
        %2157 = vmatpush1.bf16.msra.mxu0 0
        %2158 = vmatprep.subr.bf16.mxu0 0
        %2159 = vmatpush1.bf16.msra.mxu0 0
        %2160 = vmatprep.subr.bf16.mxu0 0
        %2161 = vmatpush1.bf16.msra.mxu0 0
        %2162 = vmatprep.subr.bf16.mxu0 0
        %2163 = vmatpush1.bf16.msra.mxu0 0
        %2164 = vmatprep.subr.bf16.mxu0 0
        %2165 = vmatpush1.bf16.msra.mxu0 0
        %2166 = vmatprep.mubr.bf16.mxu0 0
        %2167 = vmatmul.mubr.bf16.gmra.mrb[0].mxu0 %v608
        %v2168 = vpop.f32.mrb[0].mxu0
        %v2169 = vadd.f32 0.0, %v2168
        %v2170 = vpop.f32.mrb[0].mxu0
        %v2171 = vpop.f32.mrb[0].mxu0
        %v2172 = vpop.f32.mrb[0].mxu0
        %2173 = vdwg.mxu0
        %s2174 = scalar_lea.vmem %s7, 192
        %v2175 = vld [vmem:[%s2174] sm:$0xf]
        %v2176 = vld [vmem:[%s2174 + $0x4] sm:$0xf]
        %v2177 = vld [vmem:[%s2174 + $0x8] sm:$0xf]
        %v2178 = vld [vmem:[%s2174 + $0xc] sm:$0xf]
        %v2179 = vld [vmem:[%s2174 + $0x10] sm:$0xf]
        %v2180 = vld [vmem:[%s2174 + $0x14] sm:$0xf]
        %v2181 = vld [vmem:[%s2174 + $0x18] sm:$0xf]
        %v2182 = vld [vmem:[%s2174 + $0x1c] sm:$0xf]
        %v2183 = vld [vmem:[%s2174 + $0x20] sm:$0xf]
        %v2184 = vld [vmem:[%s2174 + $0x24] sm:$0xf]
        %v2185 = vld [vmem:[%s2174 + $0x28] sm:$0xf]
        %v2186 = vld [vmem:[%s2174 + $0x2c] sm:$0xf]
        %v2187 = vld [vmem:[%s2174 + $0x30] sm:$0xf]
        %v2188 = vld [vmem:[%s2174 + $0x34] sm:$0xf]
        %v2189 = vld [vmem:[%s2174 + $0x38] sm:$0xf]
        %v2190 = vld [vmem:[%s2174 + $0x3c] sm:$0xf]
        %v2207 = vunpack.c.l.b16 %v2175
        %v2208 = vunpack.c.l.b16 %v2176
        %v2209 = vunpack.c.l.b16 %v2177
        %v2210 = vunpack.c.l.b16 %v2178
        %v2211 = vunpack.c.l.b16 %v2179
        %v2212 = vunpack.c.l.b16 %v2180
        %v2213 = vunpack.c.l.b16 %v2181
        %v2214 = vunpack.c.l.b16 %v2182
        %v2215 = vunpack.c.l.b16 %v2183
        %v2216 = vunpack.c.l.b16 %v2184
        %v2217 = vunpack.c.l.b16 %v2185
        %v2218 = vunpack.c.l.b16 %v2186
        %v2219 = vunpack.c.l.b16 %v2187
        %v2220 = vunpack.c.l.b16 %v2188
        %v2221 = vunpack.c.l.b16 %v2189
        %v2222 = vunpack.c.l.b16 %v2190
        %v2223 = vpack.c.b16 %v2208, %v2207
        %v2224 = vpack.c.b16 %v2210, %v2209
        %v2225 = vpack.c.b16 %v2212, %v2211
        %v2226 = vpack.c.b16 %v2214, %v2213
        %v2227 = vpack.c.b16 %v2216, %v2215
        %v2228 = vpack.c.b16 %v2218, %v2217
        %v2229 = vpack.c.b16 %v2220, %v2219
        %v2230 = vpack.c.b16 %v2222, %v2221
        %2239 = vmatprep.subr.bf16.mxu0 0
        %2240 = vmatpush1.bf16.msra.mxu0 %v2223
        %2241 = vmatprep.subr.bf16.mxu0 0
        %2242 = vmatpush1.bf16.msra.mxu0 %v2224
        %2243 = vmatprep.subr.bf16.mxu0 0
        %2244 = vmatpush1.bf16.msra.mxu0 %v2225
        %2245 = vmatprep.subr.bf16.mxu0 0
        %2246 = vmatpush1.bf16.msra.mxu0 %v2226
        %2247 = vmatprep.subr.bf16.mxu0 0
        %2248 = vmatpush1.bf16.msra.mxu0 %v2227
        %2249 = vmatprep.subr.bf16.mxu0 0
        %2250 = vmatpush1.bf16.msra.mxu0 %v2228
        %2251 = vmatprep.subr.bf16.mxu0 0
        %2252 = vmatpush1.bf16.msra.mxu0 %v2229
        %2253 = vmatprep.subr.bf16.mxu0 0
        %2254 = vmatpush1.bf16.msra.mxu0 %v2230
        %2255 = vmatprep.subr.bf16.mxu0 0
        %2256 = vmatpush1.bf16.msra.mxu0 0
        %2257 = vmatprep.subr.bf16.mxu0 0
        %2258 = vmatpush1.bf16.msra.mxu0 0
        %2259 = vmatprep.subr.bf16.mxu0 0
        %2260 = vmatpush1.bf16.msra.mxu0 0
        %2261 = vmatprep.subr.bf16.mxu0 0
        %2262 = vmatpush1.bf16.msra.mxu0 0
        %2263 = vmatprep.subr.bf16.mxu0 0
        %2264 = vmatpush1.bf16.msra.mxu0 0
        %2265 = vmatprep.subr.bf16.mxu0 0
        %2266 = vmatpush1.bf16.msra.mxu0 0
        %2267 = vmatprep.subr.bf16.mxu0 0
        %2268 = vmatpush1.bf16.msra.mxu0 0
        %2269 = vmatprep.subr.bf16.mxu0 0
        %2270 = vmatpush1.bf16.msra.mxu0 0
        %2271 = vmatprep.mubr.bf16.mxu0 0
        %2272 = vmatmul.mubr.bf16.gmra.mrb[0].mxu0 %v609
        %v2273 = vpop.f32.mrb[0].mxu0
        %v2274 = vadd.f32 0.0, %v2273
        %v2275 = vpop.f32.mrb[0].mxu0
        %v2276 = vpop.f32.mrb[0].mxu0
        %v2277 = vpop.f32.mrb[0].mxu0
        %2278 = vdwg.mxu0
        %s2279 = scalar_lea.vmem %s8, 192
        %v2280 = vld [vmem:[%s2279] sm:$0xf]
        %v2281 = vld [vmem:[%s2279 + $0x4] sm:$0xf]
        %v2282 = vld [vmem:[%s2279 + $0x8] sm:$0xf]
        %v2283 = vld [vmem:[%s2279 + $0xc] sm:$0xf]
        %v2284 = vld [vmem:[%s2279 + $0x10] sm:$0xf]
        %v2285 = vld [vmem:[%s2279 + $0x14] sm:$0xf]
        %v2286 = vld [vmem:[%s2279 + $0x18] sm:$0xf]
        %v2287 = vld [vmem:[%s2279 + $0x1c] sm:$0xf]
        %v2288 = vld [vmem:[%s2279 + $0x20] sm:$0xf]
        %v2289 = vld [vmem:[%s2279 + $0x24] sm:$0xf]
        %v2290 = vld [vmem:[%s2279 + $0x28] sm:$0xf]
        %v2291 = vld [vmem:[%s2279 + $0x2c] sm:$0xf]
        %v2292 = vld [vmem:[%s2279 + $0x30] sm:$0xf]
        %v2293 = vld [vmem:[%s2279 + $0x34] sm:$0xf]
        %v2294 = vld [vmem:[%s2279 + $0x38] sm:$0xf]
        %v2295 = vld [vmem:[%s2279 + $0x3c] sm:$0xf]
        %v2312 = vunpack.c.l.b16 %v2280
        %v2313 = vunpack.c.l.b16 %v2281
        %v2314 = vunpack.c.l.b16 %v2282
        %v2315 = vunpack.c.l.b16 %v2283
        %v2316 = vunpack.c.l.b16 %v2284
        %v2317 = vunpack.c.l.b16 %v2285
        %v2318 = vunpack.c.l.b16 %v2286
        %v2319 = vunpack.c.l.b16 %v2287
        %v2320 = vunpack.c.l.b16 %v2288
        %v2321 = vunpack.c.l.b16 %v2289
        %v2322 = vunpack.c.l.b16 %v2290
        %v2323 = vunpack.c.l.b16 %v2291
        %v2324 = vunpack.c.l.b16 %v2292
        %v2325 = vunpack.c.l.b16 %v2293
        %v2326 = vunpack.c.l.b16 %v2294
        %v2327 = vunpack.c.l.b16 %v2295
        %v2328 = vpack.c.b16 %v2313, %v2312
        %v2329 = vpack.c.b16 %v2315, %v2314
        %v2330 = vpack.c.b16 %v2317, %v2316
        %v2331 = vpack.c.b16 %v2319, %v2318
        %v2332 = vpack.c.b16 %v2321, %v2320
        %v2333 = vpack.c.b16 %v2323, %v2322
        %v2334 = vpack.c.b16 %v2325, %v2324
        %v2335 = vpack.c.b16 %v2327, %v2326
        %2344 = vmatprep.subr.bf16.mxu0 0
        %2345 = vmatpush1.bf16.msra.mxu0 %v2328
        %2346 = vmatprep.subr.bf16.mxu0 0
        %2347 = vmatpush1.bf16.msra.mxu0 %v2329
        %2348 = vmatprep.subr.bf16.mxu0 0
        %2349 = vmatpush1.bf16.msra.mxu0 %v2330
        %2350 = vmatprep.subr.bf16.mxu0 0
        %2351 = vmatpush1.bf16.msra.mxu0 %v2331
        %2352 = vmatprep.subr.bf16.mxu0 0
        %2353 = vmatpush1.bf16.msra.mxu0 %v2332
        %2354 = vmatprep.subr.bf16.mxu0 0
        %2355 = vmatpush1.bf16.msra.mxu0 %v2333
        %2356 = vmatprep.subr.bf16.mxu0 0
        %2357 = vmatpush1.bf16.msra.mxu0 %v2334
        %2358 = vmatprep.subr.bf16.mxu0 0
        %2359 = vmatpush1.bf16.msra.mxu0 %v2335
        %2360 = vmatprep.subr.bf16.mxu0 0
        %2361 = vmatpush1.bf16.msra.mxu0 0
        %2362 = vmatprep.subr.bf16.mxu0 0
        %2363 = vmatpush1.bf16.msra.mxu0 0
        %2364 = vmatprep.subr.bf16.mxu0 0
        %2365 = vmatpush1.bf16.msra.mxu0 0
        %2366 = vmatprep.subr.bf16.mxu0 0
        %2367 = vmatpush1.bf16.msra.mxu0 0
        %2368 = vmatprep.subr.bf16.mxu0 0
        %2369 = vmatpush1.bf16.msra.mxu0 0
        %2370 = vmatprep.subr.bf16.mxu0 0
        %2371 = vmatpush1.bf16.msra.mxu0 0
        %2372 = vmatprep.subr.bf16.mxu0 0
        %2373 = vmatpush1.bf16.msra.mxu0 0
        %2374 = vmatprep.subr.bf16.mxu0 0
        %2375 = vmatpush1.bf16.msra.mxu0 0
        %2376 = vmatprep.mubr.bf16.mxu0 0
        %2377 = vmatmul.mubr.bf16.gmra.mrb[0].mxu0 %v609
        %v2378 = vpop.f32.mrb[0].mxu0
        %v2379 = vadd.f32 0.0, %v2378
        %v2380 = vpop.f32.mrb[0].mxu0
        %v2381 = vpop.f32.mrb[0].mxu0
        %v2382 = vpop.f32.mrb[0].mxu0
        %2383 = vdwg.mxu0
        %v2384 = vpack.c.bf16 %v2169, %v2169
        %v2385 = vpack.c.bf16 %v2274, %v2274
        %v2387 = vsel %vm924, %v2384, 0
        %v2390 = vsel %vm924, %v2385, 0
        %2392 = vmatprep.subr.bf16.mxu0 0
        %2393 = vmatpush1.bf16.xpose.msra.mxu0 %v2390
        %2394 = vmatprep.subr.bf16.mxu0 0
        %2395 = vmatpush1.bf16.xpose.msra.mxu0 0
        %2396 = vmatprep.subr.bf16.mxu0 0
        %2397 = vmatpush1.bf16.xpose.msra.mxu0 0
        %2398 = vmatprep.subr.bf16.mxu0 0
        %2399 = vmatpush1.bf16.xpose.msra.mxu0 0
        %2400 = vmatprep.subr.bf16.mxu0 0
        %2401 = vmatpush1.bf16.xpose.msra.mxu0 0
        %2402 = vmatprep.subr.bf16.mxu0 0
        %2403 = vmatpush1.bf16.xpose.msra.mxu0 0
        %2404 = vmatprep.subr.bf16.mxu0 0
        %2405 = vmatpush1.bf16.xpose.msra.mxu0 0
        %2406 = vmatprep.subr.bf16.mxu0 0
        %2407 = vmatpush1.bf16.xpose.msra.mxu0 0
        %2408 = vmatprep.subr.bf16.mxu0 0
        %2409 = vmatpush1.bf16.xpose.msra.mxu0 0
        %2410 = vmatprep.subr.bf16.mxu0 0
        %2411 = vmatpush1.bf16.xpose.msra.mxu0 0
        %2412 = vmatprep.subr.bf16.mxu0 0
        %2413 = vmatpush1.bf16.xpose.msra.mxu0 0
        %2414 = vmatprep.subr.bf16.mxu0 0
        %2415 = vmatpush1.bf16.xpose.msra.mxu0 0
        %2416 = vmatprep.subr.bf16.mxu0 0
        %2417 = vmatpush1.bf16.xpose.msra.mxu0 0
        %2418 = vmatprep.subr.bf16.mxu0 0
        %2419 = vmatpush1.bf16.xpose.msra.mxu0 0
        %2420 = vmatprep.subr.bf16.mxu0 0
        %2421 = vmatpush1.bf16.xpose.msra.mxu0 0
        %2422 = vmatprep.subr.bf16.mxu0 0
        %2423 = vmatpush1.bf16.xpose.msra.mxu0 0
        %2424 = vmatprep.mubr.bf16.mxu0 0
        %2425 = vmatmul.mubr.bf16.gmra.mrb[0].mxu0 %v2387
        %v2426 = vpop.f32.mrb[0].mxu0
        %v2427 = vadd.f32 0.0, %v2426
        %v2428 = vpop.f32.mrb[0].mxu0
        %v2429 = vpop.f32.mrb[0].mxu0
        %v2430 = vpop.f32.mrb[0].mxu0
        %2431 = vdwg.mxu0
        %v2432 = vsel %vm977, %v2427, -1e+09
        %v2433 = vsel %vm979, %v2432, -inf
        %2434 = vmax.xlane.f32.xlu0 %v2433
        %v2435 = vpop.xlane.xlu0 %2434
        %v2436 = vsub.f32 %v2432, %v2435
        %v2437 = vmul.f32 %v2436, 1.442695
        %v2438 = vpow.pop %v2437
        %v2439 = vsel %vm979, %v2438, 0.0
        %2440 = vadd.xlane.f32.xlu0 %v2439
        %v2441 = vpop.xlane.xlu0 %2440
        %v2442 = vrcp.pop %v2441
        %v2443 = vmul.f32 %v2438, %v2442
        %v2444 = vpack.c.bf16 %v2443, %v2443
        %v2445 = vpack.c.bf16 %v2379, %v2379
        %v2447 = vsel %vm979, %v2444, 0
        %v2450 = vsel %vm996, %v2445, 0
        %2452 = vmatprep.subr.bf16.mxu0 0
        %2453 = vmatpush1.bf16.msra.mxu0 %v2450
        %2454 = vmatprep.subr.bf16.mxu0 0
        %2455 = vmatpush1.bf16.msra.mxu0 0
        %2456 = vmatprep.subr.bf16.mxu0 0
        %2457 = vmatpush1.bf16.msra.mxu0 0
        %2458 = vmatprep.subr.bf16.mxu0 0
        %2459 = vmatpush1.bf16.msra.mxu0 0
        %2460 = vmatprep.subr.bf16.mxu0 0
        %2461 = vmatpush1.bf16.msra.mxu0 0
        %2462 = vmatprep.subr.bf16.mxu0 0
        %2463 = vmatpush1.bf16.msra.mxu0 0
        %2464 = vmatprep.subr.bf16.mxu0 0
        %2465 = vmatpush1.bf16.msra.mxu0 0
        %2466 = vmatprep.subr.bf16.mxu0 0
        %2467 = vmatpush1.bf16.msra.mxu0 0
        %2468 = vmatprep.subr.bf16.mxu0 0
        %2469 = vmatpush1.bf16.msra.mxu0 0
        %2470 = vmatprep.subr.bf16.mxu0 0
        %2471 = vmatpush1.bf16.msra.mxu0 0
        %2472 = vmatprep.subr.bf16.mxu0 0
        %2473 = vmatpush1.bf16.msra.mxu0 0
        %2474 = vmatprep.subr.bf16.mxu0 0
        %2475 = vmatpush1.bf16.msra.mxu0 0
        %2476 = vmatprep.subr.bf16.mxu0 0
        %2477 = vmatpush1.bf16.msra.mxu0 0
        %2478 = vmatprep.subr.bf16.mxu0 0
        %2479 = vmatpush1.bf16.msra.mxu0 0
        %2480 = vmatprep.subr.bf16.mxu0 0
        %2481 = vmatpush1.bf16.msra.mxu0 0
        %2482 = vmatprep.subr.bf16.mxu0 0
        %2483 = vmatpush1.bf16.msra.mxu0 0
        %2484 = vmatprep.mubr.bf16.mxu0 0
        %2485 = vmatmul.mubr.bf16.gmra.mrb[0].mxu0 %v2447
        %v2486 = vpop.f32.mrb[0].mxu0
        %v2487 = vadd.f32 0.0, %v2486
        %v2488 = vpop.f32.mrb[0].mxu0
        %v2489 = vpop.f32.mrb[0].mxu0
        %v2490 = vpop.f32.mrb[0].mxu0
        %2491 = vdwg.mxu0
        %v2492 = vpack.c.bf16 %v2487, %v2487
        %s2493 = scalar_lea.vmem %s9, 48
        %v2494 = vld [vmem:[%s2493] sm:$0xf]
        %v2495 = vld [vmem:[%s2493 + $0x4] sm:$0xf]
        %v2496 = vld [vmem:[%s2493 + $0x8] sm:$0xf]
        %v2497 = vld [vmem:[%s2493 + $0xc] sm:$0xf]
        %v2502 = vunpack.c.l.b16 %v2494
        %v2503 = vunpack.c.l.b16 %v2495
        %v2504 = vunpack.c.l.b16 %v2496
        %v2505 = vunpack.c.l.b16 %v2497
        %v2506 = vpack.c.b16 %v2503, %v2502
        %v2507 = vpack.c.b16 %v2505, %v2504
        %v2511 = vsel %vm924, %v2492, 0
        %2513 = vmatprep.subr.bf16.mxu0 0
        %2514 = vmatpush1.bf16.msra.mxu0 %v2506
        %2515 = vmatprep.subr.bf16.mxu0 0
        %2516 = vmatpush1.bf16.msra.mxu0 %v2507
        %2517 = vmatprep.subr.bf16.mxu0 0
        %2518 = vmatpush1.bf16.msra.mxu0 0
        %2519 = vmatprep.subr.bf16.mxu0 0
        %2520 = vmatpush1.bf16.msra.mxu0 0
        %2521 = vmatprep.subr.bf16.mxu0 0
        %2522 = vmatpush1.bf16.msra.mxu0 0
        %2523 = vmatprep.subr.bf16.mxu0 0
        %2524 = vmatpush1.bf16.msra.mxu0 0
        %2525 = vmatprep.subr.bf16.mxu0 0
        %2526 = vmatpush1.bf16.msra.mxu0 0
        %2527 = vmatprep.subr.bf16.mxu0 0
        %2528 = vmatpush1.bf16.msra.mxu0 0
        %2529 = vmatprep.subr.bf16.mxu0 0
        %2530 = vmatpush1.bf16.msra.mxu0 0
        %2531 = vmatprep.subr.bf16.mxu0 0
        %2532 = vmatpush1.bf16.msra.mxu0 0
        %2533 = vmatprep.subr.bf16.mxu0 0
        %2534 = vmatpush1.bf16.msra.mxu0 0
        %2535 = vmatprep.subr.bf16.mxu0 0
        %2536 = vmatpush1.bf16.msra.mxu0 0
        %2537 = vmatprep.subr.bf16.mxu0 0
        %2538 = vmatpush1.bf16.msra.mxu0 0
        %2539 = vmatprep.subr.bf16.mxu0 0
        %2540 = vmatpush1.bf16.msra.mxu0 0
        %2541 = vmatprep.subr.bf16.mxu0 0
        %2542 = vmatpush1.bf16.msra.mxu0 0
        %2543 = vmatprep.subr.bf16.mxu0 0
        %2544 = vmatpush1.bf16.msra.mxu0 0
        %2545 = vmatprep.mubr.bf16.mxu0 0
        %2546 = vmatmul.mubr.bf16.gmra.mrb[0].mxu0 %v2511
        %v2547 = vpop.f32.mrb[0].mxu0
        %v2548 = vadd.f32 0.0, %v2547
        %v2549 = vpop.f32.mrb[0].mxu0
        %v2550 = vpop.f32.mrb[0].mxu0
        %v2551 = vpop.f32.mrb[0].mxu0
        %2552 = vdwg.mxu0
        %v2553 = vadd.f32 %v2068, %v2548
        %v2554 = vadd.f32 %v579, %v2553
        %v2555 = vld [vmem:[%s10] sm:$0x1]
        %v2557 = vlaneseq
        %v2558 = vshrl.u32 %v2557, 7
        %v2559 = vsub.s32 0, %v2558
        %v2560 = vrot.slane %v2555, %v2559
        %v2562 = vadd.f32 %v2554, %v2560
        %v2563 = vld [vmem:[%s11] sm:$0x1]
        %v2564 = vld [vmem:[%s12] sm:$0x1]
        %2565 = vadd.xlane.f32.xlu0 %v2562
        %v2566 = vpop.xlane.xlu0 %2565
        %v2567 = vmul.f32 %v2566, %v584
        %v2568 = vsub.f32 %v2562, %v2567
        %v2569 = vmul.f32 %v2568, %v2568
        %2570 = vadd.xlane.f32.xlu0 %v2569
        %v2571 = vpop.xlane.xlu0 %2570
        %v2572 = vmul.f32 %v2571, %v584
        %v2573 = vadd.f32 %v2572, 1e-05
        %v2574 = vrsqrt.pop %v2573
        %v2575 = vmul.f32 %v2568, %v2574
        %v2577 = vlaneseq
        %v2578 = vshrl.u32 %v2577, 7
        %v2579 = vsub.s32 0, %v2578
        %v2580 = vrot.slane %v2563, %v2579
        %v2582 = vmul.f32 %v2575, %v2580
        %v2584 = vlaneseq
        %v2585 = vshrl.u32 %v2584, 7
        %v2586 = vsub.s32 0, %v2585
        %v2587 = vrot.slane %v2564, %v2586
        %v2589 = vadd.f32 %v2582, %v2587
        %v2590 = vpack.c.bf16 %v2589, %v2589
        %v2591 = vld [vmem:[%s13] sm:$0xf]
        %v2592 = vld [vmem:[%s13 + $0x4] sm:$0xf]
        %v2593 = vld [vmem:[%s13 + $0x8] sm:$0xf]
        %v2594 = vld [vmem:[%s13 + $0xc] sm:$0xf]
        %v2595 = vld [vmem:[%s13 + $0x10] sm:$0xf]
        %v2596 = vld [vmem:[%s13 + $0x14] sm:$0xf]
        %v2597 = vld [vmem:[%s13 + $0x18] sm:$0xf]
        %v2598 = vld [vmem:[%s13 + $0x1c] sm:$0xf]
        %v2599 = vld [vmem:[%s13 + $0x20] sm:$0xf]
        %v2600 = vld [vmem:[%s13 + $0x24] sm:$0xf]
        %v2601 = vld [vmem:[%s13 + $0x28] sm:$0xf]
        %v2602 = vld [vmem:[%s13 + $0x2c] sm:$0xf]
        %v2603 = vld [vmem:[%s13 + $0x30] sm:$0xf]
        %v2604 = vld [vmem:[%s13 + $0x34] sm:$0xf]
        %v2605 = vld [vmem:[%s13 + $0x38] sm:$0xf]
        %v2606 = vld [vmem:[%s13 + $0x3c] sm:$0xf]
        %v2607 = vld [vmem:[%s14] sm:$0x1]
        %v2609 = vlaneseq
        %v2610 = vshrl.u32 %v2609, 7
        %v2611 = vsub.s32 0, %v2610
        %v2612 = vrot.slane %v2607, %v2611
        %v2630 = vunpack.c.l.b16 %v2591
        %v2631 = vunpack.c.l.b16 %v2592
        %v2632 = vunpack.c.l.b16 %v2593
        %v2633 = vunpack.c.l.b16 %v2594
        %v2634 = vunpack.c.l.b16 %v2595
        %v2635 = vunpack.c.l.b16 %v2596
        %v2636 = vunpack.c.l.b16 %v2597
        %v2637 = vunpack.c.l.b16 %v2598
        %v2638 = vunpack.c.l.b16 %v2599
        %v2639 = vunpack.c.l.b16 %v2600
        %v2640 = vunpack.c.l.b16 %v2601
        %v2641 = vunpack.c.l.b16 %v2602
        %v2642 = vunpack.c.l.b16 %v2603
        %v2643 = vunpack.c.l.b16 %v2604
        %v2644 = vunpack.c.l.b16 %v2605
        %v2645 = vunpack.c.l.b16 %v2606
        %v2646 = vpack.c.b16 %v2631, %v2630
        %v2647 = vpack.c.b16 %v2633, %v2632
        %v2648 = vpack.c.b16 %v2635, %v2634
        %v2649 = vpack.c.b16 %v2637, %v2636
        %v2650 = vpack.c.b16 %v2639, %v2638
        %v2651 = vpack.c.b16 %v2641, %v2640
        %v2652 = vpack.c.b16 %v2643, %v2642
        %v2653 = vpack.c.b16 %v2645, %v2644
        %2662 = vmatprep.subr.bf16.mxu0 0
        %2663 = vmatpush1.bf16.msra.mxu0 %v2646
        %2664 = vmatprep.subr.bf16.mxu0 0
        %2665 = vmatpush1.bf16.msra.mxu0 %v2647
        %2666 = vmatprep.subr.bf16.mxu0 0
        %2667 = vmatpush1.bf16.msra.mxu0 %v2648
        %2668 = vmatprep.subr.bf16.mxu0 0
        %2669 = vmatpush1.bf16.msra.mxu0 %v2649
        %2670 = vmatprep.subr.bf16.mxu0 0
        %2671 = vmatpush1.bf16.msra.mxu0 %v2650
        %2672 = vmatprep.subr.bf16.mxu0 0
        %2673 = vmatpush1.bf16.msra.mxu0 %v2651
        %2674 = vmatprep.subr.bf16.mxu0 0
        %2675 = vmatpush1.bf16.msra.mxu0 %v2652
        %2676 = vmatprep.subr.bf16.mxu0 0
        %2677 = vmatpush1.bf16.msra.mxu0 %v2653
        %2678 = vmatprep.subr.bf16.mxu0 0
        %2679 = vmatpush1.bf16.msra.mxu0 0
        %2680 = vmatprep.subr.bf16.mxu0 0
        %2681 = vmatpush1.bf16.msra.mxu0 0
        %2682 = vmatprep.subr.bf16.mxu0 0
        %2683 = vmatpush1.bf16.msra.mxu0 0
        %2684 = vmatprep.subr.bf16.mxu0 0
        %2685 = vmatpush1.bf16.msra.mxu0 0
        %2686 = vmatprep.subr.bf16.mxu0 0
        %2687 = vmatpush1.bf16.msra.mxu0 0
        %2688 = vmatprep.subr.bf16.mxu0 0
        %2689 = vmatpush1.bf16.msra.mxu0 0
        %2690 = vmatprep.subr.bf16.mxu0 0
        %2691 = vmatpush1.bf16.msra.mxu0 0
        %2692 = vmatprep.subr.bf16.mxu0 0
        %2693 = vmatpush1.bf16.msra.mxu0 0
        %2694 = vmatprep.mubr.bf16.mxu0 0
        %2695 = vmatmul.mubr.bf16.gmra.mrb[0].mxu0 %v2590
        %v2696 = vpop.f32.mrb[0].mxu0
        %v2697 = vadd.f32 %v2612, %v2696
        %v2698 = vpop.f32.mrb[0].mxu0
        %v2699 = vpop.f32.mrb[0].mxu0
        %v2700 = vpop.f32.mrb[0].mxu0
        %2701 = vdwg.mxu0
        %v2702 = vmax.f32 %v2697, 0.0
        %v2703 = vpack.c.bf16 %v2702, %v2702
        %v2704 = vld [vmem:[%s15] sm:$0xf]
        %v2705 = vld [vmem:[%s15 + $0x4] sm:$0xf]
        %v2706 = vld [vmem:[%s15 + $0x8] sm:$0xf]
        %v2707 = vld [vmem:[%s15 + $0xc] sm:$0xf]
        %v2708 = vld [vmem:[%s15 + $0x10] sm:$0xf]
        %v2709 = vld [vmem:[%s15 + $0x14] sm:$0xf]
        %v2710 = vld [vmem:[%s15 + $0x18] sm:$0xf]
        %v2711 = vld [vmem:[%s15 + $0x1c] sm:$0xf]
        %v2712 = vld [vmem:[%s15 + $0x20] sm:$0xf]
        %v2713 = vld [vmem:[%s15 + $0x24] sm:$0xf]
        %v2714 = vld [vmem:[%s15 + $0x28] sm:$0xf]
        %v2715 = vld [vmem:[%s15 + $0x2c] sm:$0xf]
        %v2716 = vld [vmem:[%s15 + $0x30] sm:$0xf]
        %v2717 = vld [vmem:[%s15 + $0x34] sm:$0xf]
        %v2718 = vld [vmem:[%s15 + $0x38] sm:$0xf]
        %v2719 = vld [vmem:[%s15 + $0x3c] sm:$0xf]
        %v2720 = vld [vmem:[%s16] sm:$0x1]
        %v2722 = vlaneseq
        %v2723 = vshrl.u32 %v2722, 7
        %v2724 = vsub.s32 0, %v2723
        %v2725 = vrot.slane %v2720, %v2724
        %v2743 = vunpack.c.l.b16 %v2704
        %v2744 = vunpack.c.l.b16 %v2705
        %v2745 = vunpack.c.l.b16 %v2706
        %v2746 = vunpack.c.l.b16 %v2707
        %v2747 = vunpack.c.l.b16 %v2708
        %v2748 = vunpack.c.l.b16 %v2709
        %v2749 = vunpack.c.l.b16 %v2710
        %v2750 = vunpack.c.l.b16 %v2711
        %v2751 = vunpack.c.l.b16 %v2712
        %v2752 = vunpack.c.l.b16 %v2713
        %v2753 = vunpack.c.l.b16 %v2714
        %v2754 = vunpack.c.l.b16 %v2715
        %v2755 = vunpack.c.l.b16 %v2716
        %v2756 = vunpack.c.l.b16 %v2717
        %v2757 = vunpack.c.l.b16 %v2718
        %v2758 = vunpack.c.l.b16 %v2719
        %v2759 = vpack.c.b16 %v2744, %v2743
        %v2760 = vpack.c.b16 %v2746, %v2745
        %v2761 = vpack.c.b16 %v2748, %v2747
        %v2762 = vpack.c.b16 %v2750, %v2749
        %v2763 = vpack.c.b16 %v2752, %v2751
        %v2764 = vpack.c.b16 %v2754, %v2753
        %v2765 = vpack.c.b16 %v2756, %v2755
        %v2766 = vpack.c.b16 %v2758, %v2757
        %2775 = vmatprep.subr.bf16.mxu0 0
        %2776 = vmatpush1.bf16.msra.mxu0 %v2759
        %2777 = vmatprep.subr.bf16.mxu0 0
        %2778 = vmatpush1.bf16.msra.mxu0 %v2760
        %2779 = vmatprep.subr.bf16.mxu0 0
        %2780 = vmatpush1.bf16.msra.mxu0 %v2761
        %2781 = vmatprep.subr.bf16.mxu0 0
        %2782 = vmatpush1.bf16.msra.mxu0 %v2762
        %2783 = vmatprep.subr.bf16.mxu0 0
        %2784 = vmatpush1.bf16.msra.mxu0 %v2763
        %2785 = vmatprep.subr.bf16.mxu0 0
        %2786 = vmatpush1.bf16.msra.mxu0 %v2764
        %2787 = vmatprep.subr.bf16.mxu0 0
        %2788 = vmatpush1.bf16.msra.mxu0 %v2765
        %2789 = vmatprep.subr.bf16.mxu0 0
        %2790 = vmatpush1.bf16.msra.mxu0 %v2766
        %2791 = vmatprep.subr.bf16.mxu0 0
        %2792 = vmatpush1.bf16.msra.mxu0 0
        %2793 = vmatprep.subr.bf16.mxu0 0
        %2794 = vmatpush1.bf16.msra.mxu0 0
        %2795 = vmatprep.subr.bf16.mxu0 0
        %2796 = vmatpush1.bf16.msra.mxu0 0
        %2797 = vmatprep.subr.bf16.mxu0 0
        %2798 = vmatpush1.bf16.msra.mxu0 0
        %2799 = vmatprep.subr.bf16.mxu0 0
        %2800 = vmatpush1.bf16.msra.mxu0 0
        %2801 = vmatprep.subr.bf16.mxu0 0
        %2802 = vmatpush1.bf16.msra.mxu0 0
        %2803 = vmatprep.subr.bf16.mxu0 0
        %2804 = vmatpush1.bf16.msra.mxu0 0
        %2805 = vmatprep.subr.bf16.mxu0 0
        %2806 = vmatpush1.bf16.msra.mxu0 0
        %2807 = vmatprep.mubr.bf16.mxu0 0
        %2808 = vmatmul.mubr.bf16.gmra.mrb[0].mxu0 %v2703
        %v2809 = vpop.f32.mrb[0].mxu0
        %v2810 = vadd.f32 %v2725, %v2809
        %v2811 = vpop.f32.mrb[0].mxu0
        %v2812 = vpop.f32.mrb[0].mxu0
        %v2813 = vpop.f32.mrb[0].mxu0
        %2814 = vdwg.mxu0
        %v2815 = vadd.f32 %v2562, %v2810
        %s2816 = scalar_lea.vmem %s4, 1
        %v2817 = vld [vmem:[%s2816] sm:$0x1]
        %s2818 = scalar_lea.vmem %s5, 1
        %v2819 = vld [vmem:[%s2818] sm:$0x1]
        %2820 = vadd.xlane.f32.xlu0 %v2815
        %v2821 = vpop.xlane.xlu0 %2820
        %v2822 = vmul.f32 %v2821, %v584
        %v2823 = vsub.f32 %v2815, %v2822
        %v2824 = vmul.f32 %v2823, %v2823
        %2825 = vadd.xlane.f32.xlu0 %v2824
        %v2826 = vpop.xlane.xlu0 %2825
        %v2827 = vmul.f32 %v2826, %v584
        %v2828 = vadd.f32 %v2827, 1e-05
        %v2829 = vrsqrt.pop %v2828
        %v2830 = vmul.f32 %v2823, %v2829
        %v2832 = vlaneseq
        %v2833 = vshrl.u32 %v2832, 7
        %v2834 = vsub.s32 0, %v2833
        %v2835 = vrot.slane %v2817, %v2834
        %v2837 = vmul.f32 %v2830, %v2835
        %v2839 = vlaneseq
        %v2840 = vshrl.u32 %v2839, 7
        %v2841 = vsub.s32 0, %v2840
        %v2842 = vrot.slane %v2819, %v2841
        %v2844 = vadd.f32 %v2837, %v2842
        %v2845 = vpack.c.bf16 %v2844, %v2844
        %s2846 = scalar_lea.vmem %s6, 256
        %v2847 = vld [vmem:[%s2846] sm:$0xf]
        %v2848 = vld [vmem:[%s2846 + $0x4] sm:$0xf]
        %v2849 = vld [vmem:[%s2846 + $0x8] sm:$0xf]
        %v2850 = vld [vmem:[%s2846 + $0xc] sm:$0xf]
        %v2851 = vld [vmem:[%s2846 + $0x10] sm:$0xf]
        %v2852 = vld [vmem:[%s2846 + $0x14] sm:$0xf]
        %v2853 = vld [vmem:[%s2846 + $0x18] sm:$0xf]
        %v2854 = vld [vmem:[%s2846 + $0x1c] sm:$0xf]
        %v2855 = vld [vmem:[%s2846 + $0x20] sm:$0xf]
        %v2856 = vld [vmem:[%s2846 + $0x24] sm:$0xf]
        %v2857 = vld [vmem:[%s2846 + $0x28] sm:$0xf]
        %v2858 = vld [vmem:[%s2846 + $0x2c] sm:$0xf]
        %v2859 = vld [vmem:[%s2846 + $0x30] sm:$0xf]
        %v2860 = vld [vmem:[%s2846 + $0x34] sm:$0xf]
        %v2861 = vld [vmem:[%s2846 + $0x38] sm:$0xf]
        %v2862 = vld [vmem:[%s2846 + $0x3c] sm:$0xf]
        %v2879 = vunpack.c.l.b16 %v2847
        %v2880 = vunpack.c.l.b16 %v2848
        %v2881 = vunpack.c.l.b16 %v2849
        %v2882 = vunpack.c.l.b16 %v2850
        %v2883 = vunpack.c.l.b16 %v2851
        %v2884 = vunpack.c.l.b16 %v2852
        %v2885 = vunpack.c.l.b16 %v2853
        %v2886 = vunpack.c.l.b16 %v2854
        %v2887 = vunpack.c.l.b16 %v2855
        %v2888 = vunpack.c.l.b16 %v2856
        %v2889 = vunpack.c.l.b16 %v2857
        %v2890 = vunpack.c.l.b16 %v2858
        %v2891 = vunpack.c.l.b16 %v2859
        %v2892 = vunpack.c.l.b16 %v2860
        %v2893 = vunpack.c.l.b16 %v2861
        %v2894 = vunpack.c.l.b16 %v2862
        %v2895 = vpack.c.b16 %v2880, %v2879
        %v2896 = vpack.c.b16 %v2882, %v2881
        %v2897 = vpack.c.b16 %v2884, %v2883
        %v2898 = vpack.c.b16 %v2886, %v2885
        %v2899 = vpack.c.b16 %v2888, %v2887
        %v2900 = vpack.c.b16 %v2890, %v2889
        %v2901 = vpack.c.b16 %v2892, %v2891
        %v2902 = vpack.c.b16 %v2894, %v2893
        %2911 = vmatprep.subr.bf16.mxu0 0
        %2912 = vmatpush1.bf16.msra.mxu0 %v2895
        %2913 = vmatprep.subr.bf16.mxu0 0
        %2914 = vmatpush1.bf16.msra.mxu0 %v2896
        %2915 = vmatprep.subr.bf16.mxu0 0
        %2916 = vmatpush1.bf16.msra.mxu0 %v2897
        %2917 = vmatprep.subr.bf16.mxu0 0
        %2918 = vmatpush1.bf16.msra.mxu0 %v2898
        %2919 = vmatprep.subr.bf16.mxu0 0
        %2920 = vmatpush1.bf16.msra.mxu0 %v2899
        %2921 = vmatprep.subr.bf16.mxu0 0
        %2922 = vmatpush1.bf16.msra.mxu0 %v2900
        %2923 = vmatprep.subr.bf16.mxu0 0
        %2924 = vmatpush1.bf16.msra.mxu0 %v2901
        %2925 = vmatprep.subr.bf16.mxu0 0
        %2926 = vmatpush1.bf16.msra.mxu0 %v2902
        %2927 = vmatprep.subr.bf16.mxu0 0
        %2928 = vmatpush1.bf16.msra.mxu0 0
        %2929 = vmatprep.subr.bf16.mxu0 0
        %2930 = vmatpush1.bf16.msra.mxu0 0
        %2931 = vmatprep.subr.bf16.mxu0 0
        %2932 = vmatpush1.bf16.msra.mxu0 0
        %2933 = vmatprep.subr.bf16.mxu0 0
        %2934 = vmatpush1.bf16.msra.mxu0 0
        %2935 = vmatprep.subr.bf16.mxu0 0
        %2936 = vmatpush1.bf16.msra.mxu0 0
        %2937 = vmatprep.subr.bf16.mxu0 0
        %2938 = vmatpush1.bf16.msra.mxu0 0
        %2939 = vmatprep.subr.bf16.mxu0 0
        %2940 = vmatpush1.bf16.msra.mxu0 0
        %2941 = vmatprep.subr.bf16.mxu0 0
        %2942 = vmatpush1.bf16.msra.mxu0 0
        %2943 = vmatprep.mubr.bf16.mxu0 0
        %2944 = vmatmul.mubr.bf16.gmra.mrb[0].mxu0 %v2845
        %v2945 = vpop.f32.mrb[0].mxu0
        %v2946 = vadd.f32 0.0, %v2945
        %v2947 = vpop.f32.mrb[0].mxu0
        %v2948 = vpop.f32.mrb[0].mxu0
        %v2949 = vpop.f32.mrb[0].mxu0
        %2950 = vdwg.mxu0
        %s2951 = scalar_lea.vmem %s7, 256
        %v2952 = vld [vmem:[%s2951] sm:$0xf]
        %v2953 = vld [vmem:[%s2951 + $0x4] sm:$0xf]
        %v2954 = vld [vmem:[%s2951 + $0x8] sm:$0xf]
        %v2955 = vld [vmem:[%s2951 + $0xc] sm:$0xf]
        %v2956 = vld [vmem:[%s2951 + $0x10] sm:$0xf]
        %v2957 = vld [vmem:[%s2951 + $0x14] sm:$0xf]
        %v2958 = vld [vmem:[%s2951 + $0x18] sm:$0xf]
        %v2959 = vld [vmem:[%s2951 + $0x1c] sm:$0xf]
        %v2960 = vld [vmem:[%s2951 + $0x20] sm:$0xf]
        %v2961 = vld [vmem:[%s2951 + $0x24] sm:$0xf]
        %v2962 = vld [vmem:[%s2951 + $0x28] sm:$0xf]
        %v2963 = vld [vmem:[%s2951 + $0x2c] sm:$0xf]
        %v2964 = vld [vmem:[%s2951 + $0x30] sm:$0xf]
        %v2965 = vld [vmem:[%s2951 + $0x34] sm:$0xf]
        %v2966 = vld [vmem:[%s2951 + $0x38] sm:$0xf]
        %v2967 = vld [vmem:[%s2951 + $0x3c] sm:$0xf]
        %v2984 = vunpack.c.l.b16 %v2952
        %v2985 = vunpack.c.l.b16 %v2953
        %v2986 = vunpack.c.l.b16 %v2954
        %v2987 = vunpack.c.l.b16 %v2955
        %v2988 = vunpack.c.l.b16 %v2956
        %v2989 = vunpack.c.l.b16 %v2957
        %v2990 = vunpack.c.l.b16 %v2958
        %v2991 = vunpack.c.l.b16 %v2959
        %v2992 = vunpack.c.l.b16 %v2960
        %v2993 = vunpack.c.l.b16 %v2961
        %v2994 = vunpack.c.l.b16 %v2962
        %v2995 = vunpack.c.l.b16 %v2963
        %v2996 = vunpack.c.l.b16 %v2964
        %v2997 = vunpack.c.l.b16 %v2965
        %v2998 = vunpack.c.l.b16 %v2966
        %v2999 = vunpack.c.l.b16 %v2967
        %v3000 = vpack.c.b16 %v2985, %v2984
        %v3001 = vpack.c.b16 %v2987, %v2986
        %v3002 = vpack.c.b16 %v2989, %v2988
        %v3003 = vpack.c.b16 %v2991, %v2990
        %v3004 = vpack.c.b16 %v2993, %v2992
        %v3005 = vpack.c.b16 %v2995, %v2994
        %v3006 = vpack.c.b16 %v2997, %v2996
        %v3007 = vpack.c.b16 %v2999, %v2998
        %3016 = vmatprep.subr.bf16.mxu0 0
        %3017 = vmatpush1.bf16.msra.mxu0 %v3000
        %3018 = vmatprep.subr.bf16.mxu0 0
        %3019 = vmatpush1.bf16.msra.mxu0 %v3001
        %3020 = vmatprep.subr.bf16.mxu0 0
        %3021 = vmatpush1.bf16.msra.mxu0 %v3002
        %3022 = vmatprep.subr.bf16.mxu0 0
        %3023 = vmatpush1.bf16.msra.mxu0 %v3003
        %3024 = vmatprep.subr.bf16.mxu0 0
        %3025 = vmatpush1.bf16.msra.mxu0 %v3004
        %3026 = vmatprep.subr.bf16.mxu0 0
        %3027 = vmatpush1.bf16.msra.mxu0 %v3005
        %3028 = vmatprep.subr.bf16.mxu0 0
        %3029 = vmatpush1.bf16.msra.mxu0 %v3006
        %3030 = vmatprep.subr.bf16.mxu0 0
        %3031 = vmatpush1.bf16.msra.mxu0 %v3007
        %3032 = vmatprep.subr.bf16.mxu0 0
        %3033 = vmatpush1.bf16.msra.mxu0 0
        %3034 = vmatprep.subr.bf16.mxu0 0
        %3035 = vmatpush1.bf16.msra.mxu0 0
        %3036 = vmatprep.subr.bf16.mxu0 0
        %3037 = vmatpush1.bf16.msra.mxu0 0
        %3038 = vmatprep.subr.bf16.mxu0 0
        %3039 = vmatpush1.bf16.msra.mxu0 0
        %3040 = vmatprep.subr.bf16.mxu0 0
        %3041 = vmatpush1.bf16.msra.mxu0 0
        %3042 = vmatprep.subr.bf16.mxu0 0
        %3043 = vmatpush1.bf16.msra.mxu0 0
        %3044 = vmatprep.subr.bf16.mxu0 0
        %3045 = vmatpush1.bf16.msra.mxu0 0
        %3046 = vmatprep.subr.bf16.mxu0 0
        %3047 = vmatpush1.bf16.msra.mxu0 0
        %3048 = vmatprep.mubr.bf16.mxu0 0
        %3049 = vmatmul.mubr.bf16.gmra.mrb[0].mxu0 %v2845
        %v3050 = vpop.f32.mrb[0].mxu0
        %v3051 = vadd.f32 0.0, %v3050
        %v3052 = vpop.f32.mrb[0].mxu0
        %v3053 = vpop.f32.mrb[0].mxu0
        %v3054 = vpop.f32.mrb[0].mxu0
        %3055 = vdwg.mxu0
        %s3056 = scalar_lea.vmem %s8, 256
        %v3057 = vld [vmem:[%s3056] sm:$0xf]
        %v3058 = vld [vmem:[%s3056 + $0x4] sm:$0xf]
        %v3059 = vld [vmem:[%s3056 + $0x8] sm:$0xf]
        %v3060 = vld [vmem:[%s3056 + $0xc] sm:$0xf]
        %v3061 = vld [vmem:[%s3056 + $0x10] sm:$0xf]
        %v3062 = vld [vmem:[%s3056 + $0x14] sm:$0xf]
        %v3063 = vld [vmem:[%s3056 + $0x18] sm:$0xf]
        %v3064 = vld [vmem:[%s3056 + $0x1c] sm:$0xf]
        %v3065 = vld [vmem:[%s3056 + $0x20] sm:$0xf]
        %v3066 = vld [vmem:[%s3056 + $0x24] sm:$0xf]
        %v3067 = vld [vmem:[%s3056 + $0x28] sm:$0xf]
        %v3068 = vld [vmem:[%s3056 + $0x2c] sm:$0xf]
        %v3069 = vld [vmem:[%s3056 + $0x30] sm:$0xf]
        %v3070 = vld [vmem:[%s3056 + $0x34] sm:$0xf]
        %v3071 = vld [vmem:[%s3056 + $0x38] sm:$0xf]
        %v3072 = vld [vmem:[%s3056 + $0x3c] sm:$0xf]
        %v3089 = vunpack.c.l.b16 %v3057
        %v3090 = vunpack.c.l.b16 %v3058
        %v3091 = vunpack.c.l.b16 %v3059
        %v3092 = vunpack.c.l.b16 %v3060
        %v3093 = vunpack.c.l.b16 %v3061
        %v3094 = vunpack.c.l.b16 %v3062
        %v3095 = vunpack.c.l.b16 %v3063
        %v3096 = vunpack.c.l.b16 %v3064
        %v3097 = vunpack.c.l.b16 %v3065
        %v3098 = vunpack.c.l.b16 %v3066
        %v3099 = vunpack.c.l.b16 %v3067
        %v3100 = vunpack.c.l.b16 %v3068
        %v3101 = vunpack.c.l.b16 %v3069
        %v3102 = vunpack.c.l.b16 %v3070
        %v3103 = vunpack.c.l.b16 %v3071
        %v3104 = vunpack.c.l.b16 %v3072
        %v3105 = vpack.c.b16 %v3090, %v3089
        %v3106 = vpack.c.b16 %v3092, %v3091
        %v3107 = vpack.c.b16 %v3094, %v3093
        %v3108 = vpack.c.b16 %v3096, %v3095
        %v3109 = vpack.c.b16 %v3098, %v3097
        %v3110 = vpack.c.b16 %v3100, %v3099
        %v3111 = vpack.c.b16 %v3102, %v3101
        %v3112 = vpack.c.b16 %v3104, %v3103
        %3121 = vmatprep.subr.bf16.mxu0 0
        %3122 = vmatpush1.bf16.msra.mxu0 %v3105
        %3123 = vmatprep.subr.bf16.mxu0 0
        %3124 = vmatpush1.bf16.msra.mxu0 %v3106
        %3125 = vmatprep.subr.bf16.mxu0 0
        %3126 = vmatpush1.bf16.msra.mxu0 %v3107
        %3127 = vmatprep.subr.bf16.mxu0 0
        %3128 = vmatpush1.bf16.msra.mxu0 %v3108
        %3129 = vmatprep.subr.bf16.mxu0 0
        %3130 = vmatpush1.bf16.msra.mxu0 %v3109
        %3131 = vmatprep.subr.bf16.mxu0 0
        %3132 = vmatpush1.bf16.msra.mxu0 %v3110
        %3133 = vmatprep.subr.bf16.mxu0 0
        %3134 = vmatpush1.bf16.msra.mxu0 %v3111
        %3135 = vmatprep.subr.bf16.mxu0 0
        %3136 = vmatpush1.bf16.msra.mxu0 %v3112
        %3137 = vmatprep.subr.bf16.mxu0 0
        %3138 = vmatpush1.bf16.msra.mxu0 0
        %3139 = vmatprep.subr.bf16.mxu0 0
        %3140 = vmatpush1.bf16.msra.mxu0 0
        %3141 = vmatprep.subr.bf16.mxu0 0
        %3142 = vmatpush1.bf16.msra.mxu0 0
        %3143 = vmatprep.subr.bf16.mxu0 0
        %3144 = vmatpush1.bf16.msra.mxu0 0
        %3145 = vmatprep.subr.bf16.mxu0 0
        %3146 = vmatpush1.bf16.msra.mxu0 0
        %3147 = vmatprep.subr.bf16.mxu0 0
        %3148 = vmatpush1.bf16.msra.mxu0 0
        %3149 = vmatprep.subr.bf16.mxu0 0
        %3150 = vmatpush1.bf16.msra.mxu0 0
        %3151 = vmatprep.subr.bf16.mxu0 0
        %3152 = vmatpush1.bf16.msra.mxu0 0
        %3153 = vmatprep.mubr.bf16.mxu0 0
        %3154 = vmatmul.mubr.bf16.gmra.mrb[0].mxu0 %v2845
        %v3155 = vpop.f32.mrb[0].mxu0
        %v3156 = vadd.f32 0.0, %v3155
        %v3157 = vpop.f32.mrb[0].mxu0
        %v3158 = vpop.f32.mrb[0].mxu0
        %v3159 = vpop.f32.mrb[0].mxu0
        %3160 = vdwg.mxu0
        %v3161 = vpack.c.bf16 %v2946, %v2946
        %v3162 = vpack.c.bf16 %v3051, %v3051
        %v3164 = vsel %vm924, %v3161, 0
        %v3167 = vsel %vm924, %v3162, 0
        %3169 = vmatprep.subr.bf16.mxu0 0
        %3170 = vmatpush1.bf16.xpose.msra.mxu0 %v3167
        %3171 = vmatprep.subr.bf16.mxu0 0
        %3172 = vmatpush1.bf16.xpose.msra.mxu0 0
        %3173 = vmatprep.subr.bf16.mxu0 0
        %3174 = vmatpush1.bf16.xpose.msra.mxu0 0
        %3175 = vmatprep.subr.bf16.mxu0 0
        %3176 = vmatpush1.bf16.xpose.msra.mxu0 0
        %3177 = vmatprep.subr.bf16.mxu0 0
        %3178 = vmatpush1.bf16.xpose.msra.mxu0 0
        %3179 = vmatprep.subr.bf16.mxu0 0
        %3180 = vmatpush1.bf16.xpose.msra.mxu0 0
        %3181 = vmatprep.subr.bf16.mxu0 0
        %3182 = vmatpush1.bf16.xpose.msra.mxu0 0
        %3183 = vmatprep.subr.bf16.mxu0 0
        %3184 = vmatpush1.bf16.xpose.msra.mxu0 0
        %3185 = vmatprep.subr.bf16.mxu0 0
        %3186 = vmatpush1.bf16.xpose.msra.mxu0 0
        %3187 = vmatprep.subr.bf16.mxu0 0
        %3188 = vmatpush1.bf16.xpose.msra.mxu0 0
        %3189 = vmatprep.subr.bf16.mxu0 0
        %3190 = vmatpush1.bf16.xpose.msra.mxu0 0
        %3191 = vmatprep.subr.bf16.mxu0 0
        %3192 = vmatpush1.bf16.xpose.msra.mxu0 0
        %3193 = vmatprep.subr.bf16.mxu0 0
        %3194 = vmatpush1.bf16.xpose.msra.mxu0 0
        %3195 = vmatprep.subr.bf16.mxu0 0
        %3196 = vmatpush1.bf16.xpose.msra.mxu0 0
        %3197 = vmatprep.subr.bf16.mxu0 0
        %3198 = vmatpush1.bf16.xpose.msra.mxu0 0
        %3199 = vmatprep.subr.bf16.mxu0 0
        %3200 = vmatpush1.bf16.xpose.msra.mxu0 0
        %3201 = vmatprep.mubr.bf16.mxu0 0
        %3202 = vmatmul.mubr.bf16.gmra.mrb[0].mxu0 %v3164
        %v3203 = vpop.f32.mrb[0].mxu0
        %v3204 = vadd.f32 0.0, %v3203
        %v3205 = vpop.f32.mrb[0].mxu0
        %v3206 = vpop.f32.mrb[0].mxu0
        %v3207 = vpop.f32.mrb[0].mxu0
        %3208 = vdwg.mxu0
        %v3209 = vsel %vm979, %v3204, -inf
        %3210 = vmax.xlane.f32.xlu0 %v3209
        %v3211 = vpop.xlane.xlu0 %3210
        %v3212 = vsub.f32 %v3204, %v3211
        %v3213 = vmul.f32 %v3212, 1.442695
        %v3214 = vpow.pop %v3213
        %v3215 = vsel %vm979, %v3214, 0.0
        %3216 = vadd.xlane.f32.xlu0 %v3215
        %v3217 = vpop.xlane.xlu0 %3216
        %v3218 = vrcp.pop %v3217
        %v3219 = vmul.f32 %v3214, %v3218
        %v3220 = vpack.c.bf16 %v3219, %v3219
        %v3221 = vpack.c.bf16 %v3156, %v3156
        %v3223 = vsel %vm979, %v3220, 0
        %v3226 = vsel %vm996, %v3221, 0
        %3228 = vmatprep.subr.bf16.mxu0 0
        %3229 = vmatpush1.bf16.msra.mxu0 %v3226
        %3230 = vmatprep.subr.bf16.mxu0 0
        %3231 = vmatpush1.bf16.msra.mxu0 0
        %3232 = vmatprep.subr.bf16.mxu0 0
        %3233 = vmatpush1.bf16.msra.mxu0 0
        %3234 = vmatprep.subr.bf16.mxu0 0
        %3235 = vmatpush1.bf16.msra.mxu0 0
        %3236 = vmatprep.subr.bf16.mxu0 0
        %3237 = vmatpush1.bf16.msra.mxu0 0
        %3238 = vmatprep.subr.bf16.mxu0 0
        %3239 = vmatpush1.bf16.msra.mxu0 0
        %3240 = vmatprep.subr.bf16.mxu0 0
        %3241 = vmatpush1.bf16.msra.mxu0 0
        %3242 = vmatprep.subr.bf16.mxu0 0
        %3243 = vmatpush1.bf16.msra.mxu0 0
        %3244 = vmatprep.subr.bf16.mxu0 0
        %3245 = vmatpush1.bf16.msra.mxu0 0
        %3246 = vmatprep.subr.bf16.mxu0 0
        %3247 = vmatpush1.bf16.msra.mxu0 0
        %3248 = vmatprep.subr.bf16.mxu0 0
        %3249 = vmatpush1.bf16.msra.mxu0 0
        %3250 = vmatprep.subr.bf16.mxu0 0
        %3251 = vmatpush1.bf16.msra.mxu0 0
        %3252 = vmatprep.subr.bf16.mxu0 0
        %3253 = vmatpush1.bf16.msra.mxu0 0
        %3254 = vmatprep.subr.bf16.mxu0 0
        %3255 = vmatpush1.bf16.msra.mxu0 0
        %3256 = vmatprep.subr.bf16.mxu0 0
        %3257 = vmatpush1.bf16.msra.mxu0 0
        %3258 = vmatprep.subr.bf16.mxu0 0
        %3259 = vmatpush1.bf16.msra.mxu0 0
        %3260 = vmatprep.mubr.bf16.mxu0 0
        %3261 = vmatmul.mubr.bf16.gmra.mrb[0].mxu0 %v3223
        %v3262 = vpop.f32.mrb[0].mxu0
        %v3263 = vadd.f32 0.0, %v3262
        %v3264 = vpop.f32.mrb[0].mxu0
        %v3265 = vpop.f32.mrb[0].mxu0
        %v3266 = vpop.f32.mrb[0].mxu0
        %3267 = vdwg.mxu0
        %v3268 = vpack.c.bf16 %v3263, %v3263
        %s3269 = scalar_lea.vmem %s9, 64
        %v3270 = vld [vmem:[%s3269] sm:$0xf]
        %v3271 = vld [vmem:[%s3269 + $0x4] sm:$0xf]
        %v3272 = vld [vmem:[%s3269 + $0x8] sm:$0xf]
        %v3273 = vld [vmem:[%s3269 + $0xc] sm:$0xf]
        %s3274 = scalar_lea.vmem %s6, 320
        %v3275 = vld [vmem:[%s3274] sm:$0xf]
        %v3276 = vld [vmem:[%s3274 + $0x4] sm:$0xf]
        %v3277 = vld [vmem:[%s3274 + $0x8] sm:$0xf]
        %v3278 = vld [vmem:[%s3274 + $0xc] sm:$0xf]
        %v3279 = vld [vmem:[%s3274 + $0x10] sm:$0xf]
        %v3280 = vld [vmem:[%s3274 + $0x14] sm:$0xf]
        %v3281 = vld [vmem:[%s3274 + $0x18] sm:$0xf]
        %v3282 = vld [vmem:[%s3274 + $0x1c] sm:$0xf]
        %v3283 = vld [vmem:[%s3274 + $0x20] sm:$0xf]
        %v3284 = vld [vmem:[%s3274 + $0x24] sm:$0xf]
        %v3285 = vld [vmem:[%s3274 + $0x28] sm:$0xf]
        %v3286 = vld [vmem:[%s3274 + $0x2c] sm:$0xf]
        %v3287 = vld [vmem:[%s3274 + $0x30] sm:$0xf]
        %v3288 = vld [vmem:[%s3274 + $0x34] sm:$0xf]
        %v3289 = vld [vmem:[%s3274 + $0x38] sm:$0xf]
        %v3290 = vld [vmem:[%s3274 + $0x3c] sm:$0xf]
        %v3307 = vunpack.c.l.b16 %v3275
        %v3308 = vunpack.c.l.b16 %v3276
        %v3309 = vunpack.c.l.b16 %v3277
        %v3310 = vunpack.c.l.b16 %v3278
        %v3311 = vunpack.c.l.b16 %v3279
        %v3312 = vunpack.c.l.b16 %v3280
        %v3313 = vunpack.c.l.b16 %v3281
        %v3314 = vunpack.c.l.b16 %v3282
        %v3315 = vunpack.c.l.b16 %v3283
        %v3316 = vunpack.c.l.b16 %v3284
        %v3317 = vunpack.c.l.b16 %v3285
        %v3318 = vunpack.c.l.b16 %v3286
        %v3319 = vunpack.c.l.b16 %v3287
        %v3320 = vunpack.c.l.b16 %v3288
        %v3321 = vunpack.c.l.b16 %v3289
        %v3322 = vunpack.c.l.b16 %v3290
        %v3323 = vpack.c.b16 %v3308, %v3307
        %v3324 = vpack.c.b16 %v3310, %v3309
        %v3325 = vpack.c.b16 %v3312, %v3311
        %v3326 = vpack.c.b16 %v3314, %v3313
        %v3327 = vpack.c.b16 %v3316, %v3315
        %v3328 = vpack.c.b16 %v3318, %v3317
        %v3329 = vpack.c.b16 %v3320, %v3319
        %v3330 = vpack.c.b16 %v3322, %v3321
        %3339 = vmatprep.subr.bf16.mxu0 0
        %3340 = vmatpush1.bf16.msra.mxu0 %v3323
        %3341 = vmatprep.subr.bf16.mxu0 0
        %3342 = vmatpush1.bf16.msra.mxu0 %v3324
        %3343 = vmatprep.subr.bf16.mxu0 0
        %3344 = vmatpush1.bf16.msra.mxu0 %v3325
        %3345 = vmatprep.subr.bf16.mxu0 0
        %3346 = vmatpush1.bf16.msra.mxu0 %v3326
        %3347 = vmatprep.subr.bf16.mxu0 0
        %3348 = vmatpush1.bf16.msra.mxu0 %v3327
        %3349 = vmatprep.subr.bf16.mxu0 0
        %3350 = vmatpush1.bf16.msra.mxu0 %v3328
        %3351 = vmatprep.subr.bf16.mxu0 0
        %3352 = vmatpush1.bf16.msra.mxu0 %v3329
        %3353 = vmatprep.subr.bf16.mxu0 0
        %3354 = vmatpush1.bf16.msra.mxu0 %v3330
        %3355 = vmatprep.subr.bf16.mxu0 0
        %3356 = vmatpush1.bf16.msra.mxu0 0
        %3357 = vmatprep.subr.bf16.mxu0 0
        %3358 = vmatpush1.bf16.msra.mxu0 0
        %3359 = vmatprep.subr.bf16.mxu0 0
        %3360 = vmatpush1.bf16.msra.mxu0 0
        %3361 = vmatprep.subr.bf16.mxu0 0
        %3362 = vmatpush1.bf16.msra.mxu0 0
        %3363 = vmatprep.subr.bf16.mxu0 0
        %3364 = vmatpush1.bf16.msra.mxu0 0
        %3365 = vmatprep.subr.bf16.mxu0 0
        %3366 = vmatpush1.bf16.msra.mxu0 0
        %3367 = vmatprep.subr.bf16.mxu0 0
        %3368 = vmatpush1.bf16.msra.mxu0 0
        %3369 = vmatprep.subr.bf16.mxu0 0
        %3370 = vmatpush1.bf16.msra.mxu0 0
        %3371 = vmatprep.mubr.bf16.mxu0 0
        %3372 = vmatmul.mubr.bf16.gmra.mrb[0].mxu0 %v2845
        %v3373 = vpop.f32.mrb[0].mxu0
        %v3374 = vadd.f32 0.0, %v3373
        %v3375 = vpop.f32.mrb[0].mxu0
        %v3376 = vpop.f32.mrb[0].mxu0
        %v3377 = vpop.f32.mrb[0].mxu0
        %3378 = vdwg.mxu0
        %s3379 = scalar_lea.vmem %s7, 320
        %v3380 = vld [vmem:[%s3379] sm:$0xf]
        %v3381 = vld [vmem:[%s3379 + $0x4] sm:$0xf]
        %v3382 = vld [vmem:[%s3379 + $0x8] sm:$0xf]
        %v3383 = vld [vmem:[%s3379 + $0xc] sm:$0xf]
        %v3384 = vld [vmem:[%s3379 + $0x10] sm:$0xf]
        %v3385 = vld [vmem:[%s3379 + $0x14] sm:$0xf]
        %v3386 = vld [vmem:[%s3379 + $0x18] sm:$0xf]
        %v3387 = vld [vmem:[%s3379 + $0x1c] sm:$0xf]
        %v3388 = vld [vmem:[%s3379 + $0x20] sm:$0xf]
        %v3389 = vld [vmem:[%s3379 + $0x24] sm:$0xf]
        %v3390 = vld [vmem:[%s3379 + $0x28] sm:$0xf]
        %v3391 = vld [vmem:[%s3379 + $0x2c] sm:$0xf]
        %v3392 = vld [vmem:[%s3379 + $0x30] sm:$0xf]
        %v3393 = vld [vmem:[%s3379 + $0x34] sm:$0xf]
        %v3394 = vld [vmem:[%s3379 + $0x38] sm:$0xf]
        %v3395 = vld [vmem:[%s3379 + $0x3c] sm:$0xf]
        %v3412 = vunpack.c.l.b16 %v3380
        %v3413 = vunpack.c.l.b16 %v3381
        %v3414 = vunpack.c.l.b16 %v3382
        %v3415 = vunpack.c.l.b16 %v3383
        %v3416 = vunpack.c.l.b16 %v3384
        %v3417 = vunpack.c.l.b16 %v3385
        %v3418 = vunpack.c.l.b16 %v3386
        %v3419 = vunpack.c.l.b16 %v3387
        %v3420 = vunpack.c.l.b16 %v3388
        %v3421 = vunpack.c.l.b16 %v3389
        %v3422 = vunpack.c.l.b16 %v3390
        %v3423 = vunpack.c.l.b16 %v3391
        %v3424 = vunpack.c.l.b16 %v3392
        %v3425 = vunpack.c.l.b16 %v3393
        %v3426 = vunpack.c.l.b16 %v3394
        %v3427 = vunpack.c.l.b16 %v3395
        %v3428 = vpack.c.b16 %v3413, %v3412
        %v3429 = vpack.c.b16 %v3415, %v3414
        %v3430 = vpack.c.b16 %v3417, %v3416
        %v3431 = vpack.c.b16 %v3419, %v3418
        %v3432 = vpack.c.b16 %v3421, %v3420
        %v3433 = vpack.c.b16 %v3423, %v3422
        %v3434 = vpack.c.b16 %v3425, %v3424
        %v3435 = vpack.c.b16 %v3427, %v3426
        %3444 = vmatprep.subr.bf16.mxu0 0
        %3445 = vmatpush1.bf16.msra.mxu0 %v3428
        %3446 = vmatprep.subr.bf16.mxu0 0
        %3447 = vmatpush1.bf16.msra.mxu0 %v3429
        %3448 = vmatprep.subr.bf16.mxu0 0
        %3449 = vmatpush1.bf16.msra.mxu0 %v3430
        %3450 = vmatprep.subr.bf16.mxu0 0
        %3451 = vmatpush1.bf16.msra.mxu0 %v3431
        %3452 = vmatprep.subr.bf16.mxu0 0
        %3453 = vmatpush1.bf16.msra.mxu0 %v3432
        %3454 = vmatprep.subr.bf16.mxu0 0
        %3455 = vmatpush1.bf16.msra.mxu0 %v3433
        %3456 = vmatprep.subr.bf16.mxu0 0
        %3457 = vmatpush1.bf16.msra.mxu0 %v3434
        %3458 = vmatprep.subr.bf16.mxu0 0
        %3459 = vmatpush1.bf16.msra.mxu0 %v3435
        %3460 = vmatprep.subr.bf16.mxu0 0
        %3461 = vmatpush1.bf16.msra.mxu0 0
        %3462 = vmatprep.subr.bf16.mxu0 0
        %3463 = vmatpush1.bf16.msra.mxu0 0
        %3464 = vmatprep.subr.bf16.mxu0 0
        %3465 = vmatpush1.bf16.msra.mxu0 0
        %3466 = vmatprep.subr.bf16.mxu0 0
        %3467 = vmatpush1.bf16.msra.mxu0 0
        %3468 = vmatprep.subr.bf16.mxu0 0
        %3469 = vmatpush1.bf16.msra.mxu0 0
        %3470 = vmatprep.subr.bf16.mxu0 0
        %3471 = vmatpush1.bf16.msra.mxu0 0
        %3472 = vmatprep.subr.bf16.mxu0 0
        %3473 = vmatpush1.bf16.msra.mxu0 0
        %3474 = vmatprep.subr.bf16.mxu0 0
        %3475 = vmatpush1.bf16.msra.mxu0 0
        %3476 = vmatprep.mubr.bf16.mxu0 0
        %3477 = vmatmul.mubr.bf16.gmra.mrb[0].mxu0 %v2845
        %v3478 = vpop.f32.mrb[0].mxu0
        %v3479 = vadd.f32 0.0, %v3478
        %v3480 = vpop.f32.mrb[0].mxu0
        %v3481 = vpop.f32.mrb[0].mxu0
        %v3482 = vpop.f32.mrb[0].mxu0
        %3483 = vdwg.mxu0
        %s3484 = scalar_lea.vmem %s8, 320
        %v3485 = vld [vmem:[%s3484] sm:$0xf]
        %v3486 = vld [vmem:[%s3484 + $0x4] sm:$0xf]
        %v3487 = vld [vmem:[%s3484 + $0x8] sm:$0xf]
        %v3488 = vld [vmem:[%s3484 + $0xc] sm:$0xf]
        %v3489 = vld [vmem:[%s3484 + $0x10] sm:$0xf]
        %v3490 = vld [vmem:[%s3484 + $0x14] sm:$0xf]
        %v3491 = vld [vmem:[%s3484 + $0x18] sm:$0xf]
        %v3492 = vld [vmem:[%s3484 + $0x1c] sm:$0xf]
        %v3493 = vld [vmem:[%s3484 + $0x20] sm:$0xf]
        %v3494 = vld [vmem:[%s3484 + $0x24] sm:$0xf]
        %v3495 = vld [vmem:[%s3484 + $0x28] sm:$0xf]
        %v3496 = vld [vmem:[%s3484 + $0x2c] sm:$0xf]
        %v3497 = vld [vmem:[%s3484 + $0x30] sm:$0xf]
        %v3498 = vld [vmem:[%s3484 + $0x34] sm:$0xf]
        %v3499 = vld [vmem:[%s3484 + $0x38] sm:$0xf]
        %v3500 = vld [vmem:[%s3484 + $0x3c] sm:$0xf]
        %v3517 = vunpack.c.l.b16 %v3485
        %v3518 = vunpack.c.l.b16 %v3486
        %v3519 = vunpack.c.l.b16 %v3487
        %v3520 = vunpack.c.l.b16 %v3488
        %v3521 = vunpack.c.l.b16 %v3489
        %v3522 = vunpack.c.l.b16 %v3490
        %v3523 = vunpack.c.l.b16 %v3491
        %v3524 = vunpack.c.l.b16 %v3492
        %v3525 = vunpack.c.l.b16 %v3493
        %v3526 = vunpack.c.l.b16 %v3494
        %v3527 = vunpack.c.l.b16 %v3495
        %v3528 = vunpack.c.l.b16 %v3496
        %v3529 = vunpack.c.l.b16 %v3497
        %v3530 = vunpack.c.l.b16 %v3498
        %v3531 = vunpack.c.l.b16 %v3499
        %v3532 = vunpack.c.l.b16 %v3500
        %v3533 = vpack.c.b16 %v3518, %v3517
        %v3534 = vpack.c.b16 %v3520, %v3519
        %v3535 = vpack.c.b16 %v3522, %v3521
        %v3536 = vpack.c.b16 %v3524, %v3523
        %v3537 = vpack.c.b16 %v3526, %v3525
        %v3538 = vpack.c.b16 %v3528, %v3527
        %v3539 = vpack.c.b16 %v3530, %v3529
        %v3540 = vpack.c.b16 %v3532, %v3531
        %3549 = vmatprep.subr.bf16.mxu0 0
        %3550 = vmatpush1.bf16.msra.mxu0 %v3533
        %3551 = vmatprep.subr.bf16.mxu0 0
        %3552 = vmatpush1.bf16.msra.mxu0 %v3534
        %3553 = vmatprep.subr.bf16.mxu0 0
        %3554 = vmatpush1.bf16.msra.mxu0 %v3535
        %3555 = vmatprep.subr.bf16.mxu0 0
        %3556 = vmatpush1.bf16.msra.mxu0 %v3536
        %3557 = vmatprep.subr.bf16.mxu0 0
        %3558 = vmatpush1.bf16.msra.mxu0 %v3537
        %3559 = vmatprep.subr.bf16.mxu0 0
        %3560 = vmatpush1.bf16.msra.mxu0 %v3538
        %3561 = vmatprep.subr.bf16.mxu0 0
        %3562 = vmatpush1.bf16.msra.mxu0 %v3539
        %3563 = vmatprep.subr.bf16.mxu0 0
        %3564 = vmatpush1.bf16.msra.mxu0 %v3540
        %3565 = vmatprep.subr.bf16.mxu0 0
        %3566 = vmatpush1.bf16.msra.mxu0 0
        %3567 = vmatprep.subr.bf16.mxu0 0
        %3568 = vmatpush1.bf16.msra.mxu0 0
        %3569 = vmatprep.subr.bf16.mxu0 0
        %3570 = vmatpush1.bf16.msra.mxu0 0
        %3571 = vmatprep.subr.bf16.mxu0 0
        %3572 = vmatpush1.bf16.msra.mxu0 0
        %3573 = vmatprep.subr.bf16.mxu0 0
        %3574 = vmatpush1.bf16.msra.mxu0 0
        %3575 = vmatprep.subr.bf16.mxu0 0
        %3576 = vmatpush1.bf16.msra.mxu0 0
        %3577 = vmatprep.subr.bf16.mxu0 0
        %3578 = vmatpush1.bf16.msra.mxu0 0
        %3579 = vmatprep.subr.bf16.mxu0 0
        %3580 = vmatpush1.bf16.msra.mxu0 0
        %3581 = vmatprep.mubr.bf16.mxu0 0
        %3582 = vmatmul.mubr.bf16.gmra.mrb[0].mxu0 %v2845
        %v3583 = vpop.f32.mrb[0].mxu0
        %v3584 = vadd.f32 0.0, %v3583
        %v3585 = vpop.f32.mrb[0].mxu0
        %v3586 = vpop.f32.mrb[0].mxu0
        %v3587 = vpop.f32.mrb[0].mxu0
        %3588 = vdwg.mxu0
        %v3589 = vpack.c.bf16 %v3374, %v3374
        %v3590 = vpack.c.bf16 %v3479, %v3479
        %v3592 = vsel %vm924, %v3589, 0
        %v3595 = vsel %vm924, %v3590, 0
        %3597 = vmatprep.subr.bf16.mxu0 0
        %3598 = vmatpush1.bf16.xpose.msra.mxu0 %v3595
        %3599 = vmatprep.subr.bf16.mxu0 0
        %3600 = vmatpush1.bf16.xpose.msra.mxu0 0
        %3601 = vmatprep.subr.bf16.mxu0 0
        %3602 = vmatpush1.bf16.xpose.msra.mxu0 0
        %3603 = vmatprep.subr.bf16.mxu0 0
        %3604 = vmatpush1.bf16.xpose.msra.mxu0 0
        %3605 = vmatprep.subr.bf16.mxu0 0
        %3606 = vmatpush1.bf16.xpose.msra.mxu0 0
        %3607 = vmatprep.subr.bf16.mxu0 0
        %3608 = vmatpush1.bf16.xpose.msra.mxu0 0
        %3609 = vmatprep.subr.bf16.mxu0 0
        %3610 = vmatpush1.bf16.xpose.msra.mxu0 0
        %3611 = vmatprep.subr.bf16.mxu0 0
        %3612 = vmatpush1.bf16.xpose.msra.mxu0 0
        %3613 = vmatprep.subr.bf16.mxu0 0
        %3614 = vmatpush1.bf16.xpose.msra.mxu0 0
        %3615 = vmatprep.subr.bf16.mxu0 0
        %3616 = vmatpush1.bf16.xpose.msra.mxu0 0
        %3617 = vmatprep.subr.bf16.mxu0 0
        %3618 = vmatpush1.bf16.xpose.msra.mxu0 0
        %3619 = vmatprep.subr.bf16.mxu0 0
        %3620 = vmatpush1.bf16.xpose.msra.mxu0 0
        %3621 = vmatprep.subr.bf16.mxu0 0
        %3622 = vmatpush1.bf16.xpose.msra.mxu0 0
        %3623 = vmatprep.subr.bf16.mxu0 0
        %3624 = vmatpush1.bf16.xpose.msra.mxu0 0
        %3625 = vmatprep.subr.bf16.mxu0 0
        %3626 = vmatpush1.bf16.xpose.msra.mxu0 0
        %3627 = vmatprep.subr.bf16.mxu0 0
        %3628 = vmatpush1.bf16.xpose.msra.mxu0 0
        %3629 = vmatprep.mubr.bf16.mxu0 0
        %3630 = vmatmul.mubr.bf16.gmra.mrb[0].mxu0 %v3592
        %v3631 = vpop.f32.mrb[0].mxu0
        %v3632 = vadd.f32 0.0, %v3631
        %v3633 = vpop.f32.mrb[0].mxu0
        %v3634 = vpop.f32.mrb[0].mxu0
        %v3635 = vpop.f32.mrb[0].mxu0
        %3636 = vdwg.mxu0
        %v3637 = vsel %vm979, %v3632, -inf
        %3638 = vmax.xlane.f32.xlu0 %v3637
        %v3639 = vpop.xlane.xlu0 %3638
        %v3640 = vsub.f32 %v3632, %v3639
        %v3641 = vmul.f32 %v3640, 1.442695
        %v3642 = vpow.pop %v3641
        %v3643 = vsel %vm979, %v3642, 0.0
        %3644 = vadd.xlane.f32.xlu0 %v3643
        %v3645 = vpop.xlane.xlu0 %3644
        %v3646 = vrcp.pop %v3645
        %v3647 = vmul.f32 %v3642, %v3646
        %v3648 = vpack.c.bf16 %v3647, %v3647
        %v3649 = vpack.c.bf16 %v3584, %v3584
        %v3651 = vsel %vm979, %v3648, 0
        %v3654 = vsel %vm996, %v3649, 0
        %3656 = vmatprep.subr.bf16.mxu0 0
        %3657 = vmatpush1.bf16.msra.mxu0 %v3654
        %3658 = vmatprep.subr.bf16.mxu0 0
        %3659 = vmatpush1.bf16.msra.mxu0 0
        %3660 = vmatprep.subr.bf16.mxu0 0
        %3661 = vmatpush1.bf16.msra.mxu0 0
        %3662 = vmatprep.subr.bf16.mxu0 0
        %3663 = vmatpush1.bf16.msra.mxu0 0
        %3664 = vmatprep.subr.bf16.mxu0 0
        %3665 = vmatpush1.bf16.msra.mxu0 0
        %3666 = vmatprep.subr.bf16.mxu0 0
        %3667 = vmatpush1.bf16.msra.mxu0 0
        %3668 = vmatprep.subr.bf16.mxu0 0
        %3669 = vmatpush1.bf16.msra.mxu0 0
        %3670 = vmatprep.subr.bf16.mxu0 0
        %3671 = vmatpush1.bf16.msra.mxu0 0
        %3672 = vmatprep.subr.bf16.mxu0 0
        %3673 = vmatpush1.bf16.msra.mxu0 0
        %3674 = vmatprep.subr.bf16.mxu0 0
        %3675 = vmatpush1.bf16.msra.mxu0 0
        %3676 = vmatprep.subr.bf16.mxu0 0
        %3677 = vmatpush1.bf16.msra.mxu0 0
        %3678 = vmatprep.subr.bf16.mxu0 0
        %3679 = vmatpush1.bf16.msra.mxu0 0
        %3680 = vmatprep.subr.bf16.mxu0 0
        %3681 = vmatpush1.bf16.msra.mxu0 0
        %3682 = vmatprep.subr.bf16.mxu0 0
        %3683 = vmatpush1.bf16.msra.mxu0 0
        %3684 = vmatprep.subr.bf16.mxu0 0
        %3685 = vmatpush1.bf16.msra.mxu0 0
        %3686 = vmatprep.subr.bf16.mxu0 0
        %3687 = vmatpush1.bf16.msra.mxu0 0
        %3688 = vmatprep.mubr.bf16.mxu0 0
        %3689 = vmatmul.mubr.bf16.gmra.mrb[0].mxu0 %v3651
        %v3690 = vpop.f32.mrb[0].mxu0
        %v3691 = vadd.f32 0.0, %v3690
        %v3692 = vpop.f32.mrb[0].mxu0
        %v3693 = vpop.f32.mrb[0].mxu0
        %v3694 = vpop.f32.mrb[0].mxu0
        %3695 = vdwg.mxu0
        %v3696 = vpack.c.bf16 %v3691, %v3691
        %s3697 = scalar_lea.vmem %s9, 80
        %v3698 = vld [vmem:[%s3697] sm:$0xf]
        %v3699 = vld [vmem:[%s3697 + $0x4] sm:$0xf]
        %v3700 = vld [vmem:[%s3697 + $0x8] sm:$0xf]
        %v3701 = vld [vmem:[%s3697 + $0xc] sm:$0xf]
        %v3706 = vunpack.c.l.b16 %v3698
        %v3707 = vunpack.c.l.b16 %v3699
        %v3708 = vunpack.c.l.b16 %v3700
        %v3709 = vunpack.c.l.b16 %v3701
        %v3710 = vpack.c.b16 %v3707, %v3706
        %v3711 = vpack.c.b16 %v3709, %v3708
        %v3715 = vsel %vm924, %v3696, 0
        %3717 = vmatprep.subr.bf16.mxu0 0
        %3718 = vmatpush1.bf16.msra.mxu0 %v3710
        %3719 = vmatprep.subr.bf16.mxu0 0
        %3720 = vmatpush1.bf16.msra.mxu0 %v3711
        %3721 = vmatprep.subr.bf16.mxu0 0
        %3722 = vmatpush1.bf16.msra.mxu0 0
        %3723 = vmatprep.subr.bf16.mxu0 0
        %3724 = vmatpush1.bf16.msra.mxu0 0
        %3725 = vmatprep.subr.bf16.mxu0 0
        %3726 = vmatpush1.bf16.msra.mxu0 0
        %3727 = vmatprep.subr.bf16.mxu0 0
        %3728 = vmatpush1.bf16.msra.mxu0 0
        %3729 = vmatprep.subr.bf16.mxu0 0
        %3730 = vmatpush1.bf16.msra.mxu0 0
        %3731 = vmatprep.subr.bf16.mxu0 0
        %3732 = vmatpush1.bf16.msra.mxu0 0
        %3733 = vmatprep.subr.bf16.mxu0 0
        %3734 = vmatpush1.bf16.msra.mxu0 0
        %3735 = vmatprep.subr.bf16.mxu0 0
        %3736 = vmatpush1.bf16.msra.mxu0 0
        %3737 = vmatprep.subr.bf16.mxu0 0
        %3738 = vmatpush1.bf16.msra.mxu0 0
        %3739 = vmatprep.subr.bf16.mxu0 0
        %3740 = vmatpush1.bf16.msra.mxu0 0
        %3741 = vmatprep.subr.bf16.mxu0 0
        %3742 = vmatpush1.bf16.msra.mxu0 0
        %3743 = vmatprep.subr.bf16.mxu0 0
        %3744 = vmatpush1.bf16.msra.mxu0 0
        %3745 = vmatprep.subr.bf16.mxu0 0
        %3746 = vmatpush1.bf16.msra.mxu0 0
        %3747 = vmatprep.subr.bf16.mxu0 0
        %3748 = vmatpush1.bf16.msra.mxu0 0
        %3749 = vmatprep.mubr.bf16.mxu0 0
        %3750 = vmatmul.mubr.bf16.gmra.mrb[0].mxu0 %v3715
        %v3751 = vpop.f32.mrb[0].mxu0
        %v3752 = vadd.f32 0.0, %v3751
        %v3753 = vpop.f32.mrb[0].mxu0
        %v3754 = vpop.f32.mrb[0].mxu0
        %v3755 = vpop.f32.mrb[0].mxu0
        %3756 = vdwg.mxu0
        %v3761 = vunpack.c.l.b16 %v3270
        %v3762 = vunpack.c.l.b16 %v3271
        %v3763 = vunpack.c.l.b16 %v3272
        %v3764 = vunpack.c.l.b16 %v3273
        %v3765 = vpack.c.b16 %v3762, %v3761
        %v3766 = vpack.c.b16 %v3764, %v3763
        %v3770 = vsel %vm924, %v3268, 0
        %3772 = vmatprep.subr.bf16.mxu0 0
        %3773 = vmatpush1.bf16.msra.mxu0 %v3765
        %3774 = vmatprep.subr.bf16.mxu0 0
        %3775 = vmatpush1.bf16.msra.mxu0 %v3766
        %3776 = vmatprep.subr.bf16.mxu0 0
        %3777 = vmatpush1.bf16.msra.mxu0 0
        %3778 = vmatprep.subr.bf16.mxu0 0
        %3779 = vmatpush1.bf16.msra.mxu0 0
        %3780 = vmatprep.subr.bf16.mxu0 0
        %3781 = vmatpush1.bf16.msra.mxu0 0
        %3782 = vmatprep.subr.bf16.mxu0 0
        %3783 = vmatpush1.bf16.msra.mxu0 0
        %3784 = vmatprep.subr.bf16.mxu0 0
        %3785 = vmatpush1.bf16.msra.mxu0 0
        %3786 = vmatprep.subr.bf16.mxu0 0
        %3787 = vmatpush1.bf16.msra.mxu0 0
        %3788 = vmatprep.subr.bf16.mxu0 0
        %3789 = vmatpush1.bf16.msra.mxu0 0
        %3790 = vmatprep.subr.bf16.mxu0 0
        %3791 = vmatpush1.bf16.msra.mxu0 0
        %3792 = vmatprep.subr.bf16.mxu0 0
        %3793 = vmatpush1.bf16.msra.mxu0 0
        %3794 = vmatprep.subr.bf16.mxu0 0
        %3795 = vmatpush1.bf16.msra.mxu0 0
        %3796 = vmatprep.subr.bf16.mxu0 0
        %3797 = vmatpush1.bf16.msra.mxu0 0
        %3798 = vmatprep.subr.bf16.mxu0 0
        %3799 = vmatpush1.bf16.msra.mxu0 0
        %3800 = vmatprep.subr.bf16.mxu0 0
        %3801 = vmatpush1.bf16.msra.mxu0 0
        %3802 = vmatprep.subr.bf16.mxu0 0
        %3803 = vmatpush1.bf16.msra.mxu0 0
        %3804 = vmatprep.mubr.bf16.mxu0 0
        %3805 = vmatmul.mubr.bf16.gmra.mrb[0].mxu0 %v3770
        %v3806 = vpop.f32.mrb[0].mxu0
        %v3807 = vadd.f32 %v3752, %v3806
        %v3808 = vpop.f32.mrb[0].mxu0
        %v3809 = vpop.f32.mrb[0].mxu0
        %v3810 = vpop.f32.mrb[0].mxu0
        %3811 = vdwg.mxu0
        %s3812 = scalar_lea.vmem %s6, 384
        %v3813 = vld [vmem:[%s3812] sm:$0xf]
        %v3814 = vld [vmem:[%s3812 + $0x4] sm:$0xf]
        %v3815 = vld [vmem:[%s3812 + $0x8] sm:$0xf]
        %v3816 = vld [vmem:[%s3812 + $0xc] sm:$0xf]
        %v3817 = vld [vmem:[%s3812 + $0x10] sm:$0xf]
        %v3818 = vld [vmem:[%s3812 + $0x14] sm:$0xf]
        %v3819 = vld [vmem:[%s3812 + $0x18] sm:$0xf]
        %v3820 = vld [vmem:[%s3812 + $0x1c] sm:$0xf]
        %v3821 = vld [vmem:[%s3812 + $0x20] sm:$0xf]
        %v3822 = vld [vmem:[%s3812 + $0x24] sm:$0xf]
        %v3823 = vld [vmem:[%s3812 + $0x28] sm:$0xf]
        %v3824 = vld [vmem:[%s3812 + $0x2c] sm:$0xf]
        %v3825 = vld [vmem:[%s3812 + $0x30] sm:$0xf]
        %v3826 = vld [vmem:[%s3812 + $0x34] sm:$0xf]
        %v3827 = vld [vmem:[%s3812 + $0x38] sm:$0xf]
        %v3828 = vld [vmem:[%s3812 + $0x3c] sm:$0xf]
        %v3845 = vunpack.c.l.b16 %v3813
        %v3846 = vunpack.c.l.b16 %v3814
        %v3847 = vunpack.c.l.b16 %v3815
        %v3848 = vunpack.c.l.b16 %v3816
        %v3849 = vunpack.c.l.b16 %v3817
        %v3850 = vunpack.c.l.b16 %v3818
        %v3851 = vunpack.c.l.b16 %v3819
        %v3852 = vunpack.c.l.b16 %v3820
        %v3853 = vunpack.c.l.b16 %v3821
        %v3854 = vunpack.c.l.b16 %v3822
        %v3855 = vunpack.c.l.b16 %v3823
        %v3856 = vunpack.c.l.b16 %v3824
        %v3857 = vunpack.c.l.b16 %v3825
        %v3858 = vunpack.c.l.b16 %v3826
        %v3859 = vunpack.c.l.b16 %v3827
        %v3860 = vunpack.c.l.b16 %v3828
        %v3861 = vpack.c.b16 %v3846, %v3845
        %v3862 = vpack.c.b16 %v3848, %v3847
        %v3863 = vpack.c.b16 %v3850, %v3849
        %v3864 = vpack.c.b16 %v3852, %v3851
        %v3865 = vpack.c.b16 %v3854, %v3853
        %v3866 = vpack.c.b16 %v3856, %v3855
        %v3867 = vpack.c.b16 %v3858, %v3857
        %v3868 = vpack.c.b16 %v3860, %v3859
        %3877 = vmatprep.subr.bf16.mxu0 0
        %3878 = vmatpush1.bf16.msra.mxu0 %v3861
        %3879 = vmatprep.subr.bf16.mxu0 0
        %3880 = vmatpush1.bf16.msra.mxu0 %v3862
        %3881 = vmatprep.subr.bf16.mxu0 0
        %3882 = vmatpush1.bf16.msra.mxu0 %v3863
        %3883 = vmatprep.subr.bf16.mxu0 0
        %3884 = vmatpush1.bf16.msra.mxu0 %v3864
        %3885 = vmatprep.subr.bf16.mxu0 0
        %3886 = vmatpush1.bf16.msra.mxu0 %v3865
        %3887 = vmatprep.subr.bf16.mxu0 0
        %3888 = vmatpush1.bf16.msra.mxu0 %v3866
        %3889 = vmatprep.subr.bf16.mxu0 0
        %3890 = vmatpush1.bf16.msra.mxu0 %v3867
        %3891 = vmatprep.subr.bf16.mxu0 0
        %3892 = vmatpush1.bf16.msra.mxu0 %v3868
        %3893 = vmatprep.subr.bf16.mxu0 0
        %3894 = vmatpush1.bf16.msra.mxu0 0
        %3895 = vmatprep.subr.bf16.mxu0 0
        %3896 = vmatpush1.bf16.msra.mxu0 0
        %3897 = vmatprep.subr.bf16.mxu0 0
        %3898 = vmatpush1.bf16.msra.mxu0 0
        %3899 = vmatprep.subr.bf16.mxu0 0
        %3900 = vmatpush1.bf16.msra.mxu0 0
        %3901 = vmatprep.subr.bf16.mxu0 0
        %3902 = vmatpush1.bf16.msra.mxu0 0
        %3903 = vmatprep.subr.bf16.mxu0 0
        %3904 = vmatpush1.bf16.msra.mxu0 0
        %3905 = vmatprep.subr.bf16.mxu0 0
        %3906 = vmatpush1.bf16.msra.mxu0 0
        %3907 = vmatprep.subr.bf16.mxu0 0
        %3908 = vmatpush1.bf16.msra.mxu0 0
        %3909 = vmatprep.mubr.bf16.mxu0 0
        %3910 = vmatmul.mubr.bf16.gmra.mrb[0].mxu0 %v2845
        %v3911 = vpop.f32.mrb[0].mxu0
        %v3912 = vadd.f32 0.0, %v3911
        %v3913 = vpop.f32.mrb[0].mxu0
        %v3914 = vpop.f32.mrb[0].mxu0
        %v3915 = vpop.f32.mrb[0].mxu0
        %3916 = vdwg.mxu0
        %s3917 = scalar_lea.vmem %s7, 384
        %v3918 = vld [vmem:[%s3917] sm:$0xf]
        %v3919 = vld [vmem:[%s3917 + $0x4] sm:$0xf]
        %v3920 = vld [vmem:[%s3917 + $0x8] sm:$0xf]
        %v3921 = vld [vmem:[%s3917 + $0xc] sm:$0xf]
        %v3922 = vld [vmem:[%s3917 + $0x10] sm:$0xf]
        %v3923 = vld [vmem:[%s3917 + $0x14] sm:$0xf]
        %v3924 = vld [vmem:[%s3917 + $0x18] sm:$0xf]
        %v3925 = vld [vmem:[%s3917 + $0x1c] sm:$0xf]
        %v3926 = vld [vmem:[%s3917 + $0x20] sm:$0xf]
        %v3927 = vld [vmem:[%s3917 + $0x24] sm:$0xf]
        %v3928 = vld [vmem:[%s3917 + $0x28] sm:$0xf]
        %v3929 = vld [vmem:[%s3917 + $0x2c] sm:$0xf]
        %v3930 = vld [vmem:[%s3917 + $0x30] sm:$0xf]
        %v3931 = vld [vmem:[%s3917 + $0x34] sm:$0xf]
        %v3932 = vld [vmem:[%s3917 + $0x38] sm:$0xf]
        %v3933 = vld [vmem:[%s3917 + $0x3c] sm:$0xf]
        %v3950 = vunpack.c.l.b16 %v3918
        %v3951 = vunpack.c.l.b16 %v3919
        %v3952 = vunpack.c.l.b16 %v3920
        %v3953 = vunpack.c.l.b16 %v3921
        %v3954 = vunpack.c.l.b16 %v3922
        %v3955 = vunpack.c.l.b16 %v3923
        %v3956 = vunpack.c.l.b16 %v3924
        %v3957 = vunpack.c.l.b16 %v3925
        %v3958 = vunpack.c.l.b16 %v3926
        %v3959 = vunpack.c.l.b16 %v3927
        %v3960 = vunpack.c.l.b16 %v3928
        %v3961 = vunpack.c.l.b16 %v3929
        %v3962 = vunpack.c.l.b16 %v3930
        %v3963 = vunpack.c.l.b16 %v3931
        %v3964 = vunpack.c.l.b16 %v3932
        %v3965 = vunpack.c.l.b16 %v3933
        %v3966 = vpack.c.b16 %v3951, %v3950
        %v3967 = vpack.c.b16 %v3953, %v3952
        %v3968 = vpack.c.b16 %v3955, %v3954
        %v3969 = vpack.c.b16 %v3957, %v3956
        %v3970 = vpack.c.b16 %v3959, %v3958
        %v3971 = vpack.c.b16 %v3961, %v3960
        %v3972 = vpack.c.b16 %v3963, %v3962
        %v3973 = vpack.c.b16 %v3965, %v3964
        %3982 = vmatprep.subr.bf16.mxu0 0
        %3983 = vmatpush1.bf16.msra.mxu0 %v3966
        %3984 = vmatprep.subr.bf16.mxu0 0
        %3985 = vmatpush1.bf16.msra.mxu0 %v3967
        %3986 = vmatprep.subr.bf16.mxu0 0
        %3987 = vmatpush1.bf16.msra.mxu0 %v3968
        %3988 = vmatprep.subr.bf16.mxu0 0
        %3989 = vmatpush1.bf16.msra.mxu0 %v3969
        %3990 = vmatprep.subr.bf16.mxu0 0
        %3991 = vmatpush1.bf16.msra.mxu0 %v3970
        %3992 = vmatprep.subr.bf16.mxu0 0
        %3993 = vmatpush1.bf16.msra.mxu0 %v3971
        %3994 = vmatprep.subr.bf16.mxu0 0
        %3995 = vmatpush1.bf16.msra.mxu0 %v3972
        %3996 = vmatprep.subr.bf16.mxu0 0
        %3997 = vmatpush1.bf16.msra.mxu0 %v3973
        %3998 = vmatprep.subr.bf16.mxu0 0
        %3999 = vmatpush1.bf16.msra.mxu0 0
        %4000 = vmatprep.subr.bf16.mxu0 0
        %4001 = vmatpush1.bf16.msra.mxu0 0
        %4002 = vmatprep.subr.bf16.mxu0 0
        %4003 = vmatpush1.bf16.msra.mxu0 0
        %4004 = vmatprep.subr.bf16.mxu0 0
        %4005 = vmatpush1.bf16.msra.mxu0 0
        %4006 = vmatprep.subr.bf16.mxu0 0
        %4007 = vmatpush1.bf16.msra.mxu0 0
        %4008 = vmatprep.subr.bf16.mxu0 0
        %4009 = vmatpush1.bf16.msra.mxu0 0
        %4010 = vmatprep.subr.bf16.mxu0 0
        %4011 = vmatpush1.bf16.msra.mxu0 0
        %4012 = vmatprep.subr.bf16.mxu0 0
        %4013 = vmatpush1.bf16.msra.mxu0 0
        %4014 = vmatprep.mubr.bf16.mxu0 0
        %4015 = vmatmul.mubr.bf16.gmra.mrb[0].mxu0 %v2845
        %v4016 = vpop.f32.mrb[0].mxu0
        %v4017 = vadd.f32 0.0, %v4016
        %v4018 = vpop.f32.mrb[0].mxu0
        %v4019 = vpop.f32.mrb[0].mxu0
        %v4020 = vpop.f32.mrb[0].mxu0
        %4021 = vdwg.mxu0
        %s4022 = scalar_lea.vmem %s8, 384
        %v4023 = vld [vmem:[%s4022] sm:$0xf]
        %v4024 = vld [vmem:[%s4022 + $0x4] sm:$0xf]
        %v4025 = vld [vmem:[%s4022 + $0x8] sm:$0xf]
        %v4026 = vld [vmem:[%s4022 + $0xc] sm:$0xf]
        %v4027 = vld [vmem:[%s4022 + $0x10] sm:$0xf]
        %v4028 = vld [vmem:[%s4022 + $0x14] sm:$0xf]
        %v4029 = vld [vmem:[%s4022 + $0x18] sm:$0xf]
        %v4030 = vld [vmem:[%s4022 + $0x1c] sm:$0xf]
        %v4031 = vld [vmem:[%s4022 + $0x20] sm:$0xf]
        %v4032 = vld [vmem:[%s4022 + $0x24] sm:$0xf]
        %v4033 = vld [vmem:[%s4022 + $0x28] sm:$0xf]
        %v4034 = vld [vmem:[%s4022 + $0x2c] sm:$0xf]
        %v4035 = vld [vmem:[%s4022 + $0x30] sm:$0xf]
        %v4036 = vld [vmem:[%s4022 + $0x34] sm:$0xf]
        %v4037 = vld [vmem:[%s4022 + $0x38] sm:$0xf]
        %v4038 = vld [vmem:[%s4022 + $0x3c] sm:$0xf]
        %v4055 = vunpack.c.l.b16 %v4023
        %v4056 = vunpack.c.l.b16 %v4024
        %v4057 = vunpack.c.l.b16 %v4025
        %v4058 = vunpack.c.l.b16 %v4026
        %v4059 = vunpack.c.l.b16 %v4027
        %v4060 = vunpack.c.l.b16 %v4028
        %v4061 = vunpack.c.l.b16 %v4029
        %v4062 = vunpack.c.l.b16 %v4030
        %v4063 = vunpack.c.l.b16 %v4031
        %v4064 = vunpack.c.l.b16 %v4032
        %v4065 = vunpack.c.l.b16 %v4033
        %v4066 = vunpack.c.l.b16 %v4034
        %v4067 = vunpack.c.l.b16 %v4035
        %v4068 = vunpack.c.l.b16 %v4036
        %v4069 = vunpack.c.l.b16 %v4037
        %v4070 = vunpack.c.l.b16 %v4038
        %v4071 = vpack.c.b16 %v4056, %v4055
        %v4072 = vpack.c.b16 %v4058, %v4057
        %v4073 = vpack.c.b16 %v4060, %v4059
        %v4074 = vpack.c.b16 %v4062, %v4061
        %v4075 = vpack.c.b16 %v4064, %v4063
        %v4076 = vpack.c.b16 %v4066, %v4065
        %v4077 = vpack.c.b16 %v4068, %v4067
        %v4078 = vpack.c.b16 %v4070, %v4069
        %4087 = vmatprep.subr.bf16.mxu0 0
        %4088 = vmatpush1.bf16.msra.mxu0 %v4071
        %4089 = vmatprep.subr.bf16.mxu0 0
        %4090 = vmatpush1.bf16.msra.mxu0 %v4072
        %4091 = vmatprep.subr.bf16.mxu0 0
        %4092 = vmatpush1.bf16.msra.mxu0 %v4073
        %4093 = vmatprep.subr.bf16.mxu0 0
        %4094 = vmatpush1.bf16.msra.mxu0 %v4074
        %4095 = vmatprep.subr.bf16.mxu0 0
        %4096 = vmatpush1.bf16.msra.mxu0 %v4075
        %4097 = vmatprep.subr.bf16.mxu0 0
        %4098 = vmatpush1.bf16.msra.mxu0 %v4076
        %4099 = vmatprep.subr.bf16.mxu0 0
        %4100 = vmatpush1.bf16.msra.mxu0 %v4077
        %4101 = vmatprep.subr.bf16.mxu0 0
        %4102 = vmatpush1.bf16.msra.mxu0 %v4078
        %4103 = vmatprep.subr.bf16.mxu0 0
        %4104 = vmatpush1.bf16.msra.mxu0 0
        %4105 = vmatprep.subr.bf16.mxu0 0
        %4106 = vmatpush1.bf16.msra.mxu0 0
        %4107 = vmatprep.subr.bf16.mxu0 0
        %4108 = vmatpush1.bf16.msra.mxu0 0
        %4109 = vmatprep.subr.bf16.mxu0 0
        %4110 = vmatpush1.bf16.msra.mxu0 0
        %4111 = vmatprep.subr.bf16.mxu0 0
        %4112 = vmatpush1.bf16.msra.mxu0 0
        %4113 = vmatprep.subr.bf16.mxu0 0
        %4114 = vmatpush1.bf16.msra.mxu0 0
        %4115 = vmatprep.subr.bf16.mxu0 0
        %4116 = vmatpush1.bf16.msra.mxu0 0
        %4117 = vmatprep.subr.bf16.mxu0 0
        %4118 = vmatpush1.bf16.msra.mxu0 0
        %4119 = vmatprep.mubr.bf16.mxu0 0
        %4120 = vmatmul.mubr.bf16.gmra.mrb[0].mxu0 %v2845
        %v4121 = vpop.f32.mrb[0].mxu0
        %v4122 = vadd.f32 0.0, %v4121
        %v4123 = vpop.f32.mrb[0].mxu0
        %v4124 = vpop.f32.mrb[0].mxu0
        %v4125 = vpop.f32.mrb[0].mxu0
        %4126 = vdwg.mxu0
        %v4127 = vpack.c.bf16 %v3912, %v3912
        %v4128 = vpack.c.bf16 %v4017, %v4017
        %v4130 = vsel %vm924, %v4127, 0
        %v4133 = vsel %vm924, %v4128, 0
        %4135 = vmatprep.subr.bf16.mxu0 0
        %4136 = vmatpush1.bf16.xpose.msra.mxu0 %v4133
        %4137 = vmatprep.subr.bf16.mxu0 0
        %4138 = vmatpush1.bf16.xpose.msra.mxu0 0
        %4139 = vmatprep.subr.bf16.mxu0 0
        %4140 = vmatpush1.bf16.xpose.msra.mxu0 0
        %4141 = vmatprep.subr.bf16.mxu0 0
        %4142 = vmatpush1.bf16.xpose.msra.mxu0 0
        %4143 = vmatprep.subr.bf16.mxu0 0
        %4144 = vmatpush1.bf16.xpose.msra.mxu0 0
        %4145 = vmatprep.subr.bf16.mxu0 0
        %4146 = vmatpush1.bf16.xpose.msra.mxu0 0
        %4147 = vmatprep.subr.bf16.mxu0 0
        %4148 = vmatpush1.bf16.xpose.msra.mxu0 0
        %4149 = vmatprep.subr.bf16.mxu0 0
        %4150 = vmatpush1.bf16.xpose.msra.mxu0 0
        %4151 = vmatprep.subr.bf16.mxu0 0
        %4152 = vmatpush1.bf16.xpose.msra.mxu0 0
        %4153 = vmatprep.subr.bf16.mxu0 0
        %4154 = vmatpush1.bf16.xpose.msra.mxu0 0
        %4155 = vmatprep.subr.bf16.mxu0 0
        %4156 = vmatpush1.bf16.xpose.msra.mxu0 0
        %4157 = vmatprep.subr.bf16.mxu0 0
        %4158 = vmatpush1.bf16.xpose.msra.mxu0 0
        %4159 = vmatprep.subr.bf16.mxu0 0
        %4160 = vmatpush1.bf16.xpose.msra.mxu0 0
        %4161 = vmatprep.subr.bf16.mxu0 0
        %4162 = vmatpush1.bf16.xpose.msra.mxu0 0
        %4163 = vmatprep.subr.bf16.mxu0 0
        %4164 = vmatpush1.bf16.xpose.msra.mxu0 0
        %4165 = vmatprep.subr.bf16.mxu0 0
        %4166 = vmatpush1.bf16.xpose.msra.mxu0 0
        %4167 = vmatprep.mubr.bf16.mxu0 0
        %4168 = vmatmul.mubr.bf16.gmra.mrb[0].mxu0 %v4130
        %v4169 = vpop.f32.mrb[0].mxu0
        %v4170 = vadd.f32 0.0, %v4169
        %v4171 = vpop.f32.mrb[0].mxu0
        %v4172 = vpop.f32.mrb[0].mxu0
        %v4173 = vpop.f32.mrb[0].mxu0
        %4174 = vdwg.mxu0
        %v4175 = vsel %vm979, %v4170, -inf
        %4176 = vmax.xlane.f32.xlu0 %v4175
        %v4177 = vpop.xlane.xlu0 %4176
        %v4178 = vsub.f32 %v4170, %v4177
        %v4179 = vmul.f32 %v4178, 1.442695
        %v4180 = vpow.pop %v4179
        %v4181 = vsel %vm979, %v4180, 0.0
        %4182 = vadd.xlane.f32.xlu0 %v4181
        %v4183 = vpop.xlane.xlu0 %4182
        %v4184 = vrcp.pop %v4183
        %v4185 = vmul.f32 %v4180, %v4184
        %v4186 = vpack.c.bf16 %v4185, %v4185
        %v4187 = vpack.c.bf16 %v4122, %v4122
        %v4189 = vsel %vm979, %v4186, 0
        %v4192 = vsel %vm996, %v4187, 0
        %4194 = vmatprep.subr.bf16.mxu0 0
        %4195 = vmatpush1.bf16.msra.mxu0 %v4192
        %4196 = vmatprep.subr.bf16.mxu0 0
        %4197 = vmatpush1.bf16.msra.mxu0 0
        %4198 = vmatprep.subr.bf16.mxu0 0
        %4199 = vmatpush1.bf16.msra.mxu0 0
        %4200 = vmatprep.subr.bf16.mxu0 0
        %4201 = vmatpush1.bf16.msra.mxu0 0
        %4202 = vmatprep.subr.bf16.mxu0 0
        %4203 = vmatpush1.bf16.msra.mxu0 0
        %4204 = vmatprep.subr.bf16.mxu0 0
        %4205 = vmatpush1.bf16.msra.mxu0 0
        %4206 = vmatprep.subr.bf16.mxu0 0
        %4207 = vmatpush1.bf16.msra.mxu0 0
        %4208 = vmatprep.subr.bf16.mxu0 0
        %4209 = vmatpush1.bf16.msra.mxu0 0
        %4210 = vmatprep.subr.bf16.mxu0 0
        %4211 = vmatpush1.bf16.msra.mxu0 0
        %4212 = vmatprep.subr.bf16.mxu0 0
        %4213 = vmatpush1.bf16.msra.mxu0 0
        %4214 = vmatprep.subr.bf16.mxu0 0
        %4215 = vmatpush1.bf16.msra.mxu0 0
        %4216 = vmatprep.subr.bf16.mxu0 0
        %4217 = vmatpush1.bf16.msra.mxu0 0
        %4218 = vmatprep.subr.bf16.mxu0 0
        %4219 = vmatpush1.bf16.msra.mxu0 0
        %4220 = vmatprep.subr.bf16.mxu0 0
        %4221 = vmatpush1.bf16.msra.mxu0 0
        %4222 = vmatprep.subr.bf16.mxu0 0
        %4223 = vmatpush1.bf16.msra.mxu0 0
        %4224 = vmatprep.subr.bf16.mxu0 0
        %4225 = vmatpush1.bf16.msra.mxu0 0
        %4226 = vmatprep.mubr.bf16.mxu0 0
        %4227 = vmatmul.mubr.bf16.gmra.mrb[0].mxu0 %v4189
        %v4228 = vpop.f32.mrb[0].mxu0
        %v4229 = vadd.f32 0.0, %v4228
        %v4230 = vpop.f32.mrb[0].mxu0
        %v4231 = vpop.f32.mrb[0].mxu0
        %v4232 = vpop.f32.mrb[0].mxu0
        %4233 = vdwg.mxu0
        %v4234 = vpack.c.bf16 %v4229, %v4229
        %s4235 = scalar_lea.vmem %s9, 96
        %v4236 = vld [vmem:[%s4235] sm:$0xf]
        %v4237 = vld [vmem:[%s4235 + $0x4] sm:$0xf]
        %v4238 = vld [vmem:[%s4235 + $0x8] sm:$0xf]
        %v4239 = vld [vmem:[%s4235 + $0xc] sm:$0xf]
        %v4244 = vunpack.c.l.b16 %v4236
        %v4245 = vunpack.c.l.b16 %v4237
        %v4246 = vunpack.c.l.b16 %v4238
        %v4247 = vunpack.c.l.b16 %v4239
        %v4248 = vpack.c.b16 %v4245, %v4244
        %v4249 = vpack.c.b16 %v4247, %v4246
        %v4253 = vsel %vm924, %v4234, 0
        %4255 = vmatprep.subr.bf16.mxu0 0
        %4256 = vmatpush1.bf16.msra.mxu0 %v4248
        %4257 = vmatprep.subr.bf16.mxu0 0
        %4258 = vmatpush1.bf16.msra.mxu0 %v4249
        %4259 = vmatprep.subr.bf16.mxu0 0
        %4260 = vmatpush1.bf16.msra.mxu0 0
        %4261 = vmatprep.subr.bf16.mxu0 0
        %4262 = vmatpush1.bf16.msra.mxu0 0
        %4263 = vmatprep.subr.bf16.mxu0 0
        %4264 = vmatpush1.bf16.msra.mxu0 0
        %4265 = vmatprep.subr.bf16.mxu0 0
        %4266 = vmatpush1.bf16.msra.mxu0 0
        %4267 = vmatprep.subr.bf16.mxu0 0
        %4268 = vmatpush1.bf16.msra.mxu0 0
        %4269 = vmatprep.subr.bf16.mxu0 0
        %4270 = vmatpush1.bf16.msra.mxu0 0
        %4271 = vmatprep.subr.bf16.mxu0 0
        %4272 = vmatpush1.bf16.msra.mxu0 0
        %4273 = vmatprep.subr.bf16.mxu0 0
        %4274 = vmatpush1.bf16.msra.mxu0 0
        %4275 = vmatprep.subr.bf16.mxu0 0
        %4276 = vmatpush1.bf16.msra.mxu0 0
        %4277 = vmatprep.subr.bf16.mxu0 0
        %4278 = vmatpush1.bf16.msra.mxu0 0
        %4279 = vmatprep.subr.bf16.mxu0 0
        %4280 = vmatpush1.bf16.msra.mxu0 0
        %4281 = vmatprep.subr.bf16.mxu0 0
        %4282 = vmatpush1.bf16.msra.mxu0 0
        %4283 = vmatprep.subr.bf16.mxu0 0
        %4284 = vmatpush1.bf16.msra.mxu0 0
        %4285 = vmatprep.subr.bf16.mxu0 0
        %4286 = vmatpush1.bf16.msra.mxu0 0
        %4287 = vmatprep.mubr.bf16.mxu0 0
        %4288 = vmatmul.mubr.bf16.gmra.mrb[0].mxu0 %v4253
        %v4289 = vpop.f32.mrb[0].mxu0
        %v4290 = vadd.f32 0.0, %v4289
        %v4291 = vpop.f32.mrb[0].mxu0
        %v4292 = vpop.f32.mrb[0].mxu0
        %v4293 = vpop.f32.mrb[0].mxu0
        %4294 = vdwg.mxu0
        %v4295 = vadd.f32 %v3807, %v4290
        %s4296 = scalar_lea.vmem %s6, 448
        %v4297 = vld [vmem:[%s4296] sm:$0xf]
        %v4298 = vld [vmem:[%s4296 + $0x4] sm:$0xf]
        %v4299 = vld [vmem:[%s4296 + $0x8] sm:$0xf]
        %v4300 = vld [vmem:[%s4296 + $0xc] sm:$0xf]
        %v4301 = vld [vmem:[%s4296 + $0x10] sm:$0xf]
        %v4302 = vld [vmem:[%s4296 + $0x14] sm:$0xf]
        %v4303 = vld [vmem:[%s4296 + $0x18] sm:$0xf]
        %v4304 = vld [vmem:[%s4296 + $0x1c] sm:$0xf]
        %v4305 = vld [vmem:[%s4296 + $0x20] sm:$0xf]
        %v4306 = vld [vmem:[%s4296 + $0x24] sm:$0xf]
        %v4307 = vld [vmem:[%s4296 + $0x28] sm:$0xf]
        %v4308 = vld [vmem:[%s4296 + $0x2c] sm:$0xf]
        %v4309 = vld [vmem:[%s4296 + $0x30] sm:$0xf]
        %v4310 = vld [vmem:[%s4296 + $0x34] sm:$0xf]
        %v4311 = vld [vmem:[%s4296 + $0x38] sm:$0xf]
        %v4312 = vld [vmem:[%s4296 + $0x3c] sm:$0xf]
        %v4329 = vunpack.c.l.b16 %v4297
        %v4330 = vunpack.c.l.b16 %v4298
        %v4331 = vunpack.c.l.b16 %v4299
        %v4332 = vunpack.c.l.b16 %v4300
        %v4333 = vunpack.c.l.b16 %v4301
        %v4334 = vunpack.c.l.b16 %v4302
        %v4335 = vunpack.c.l.b16 %v4303
        %v4336 = vunpack.c.l.b16 %v4304
        %v4337 = vunpack.c.l.b16 %v4305
        %v4338 = vunpack.c.l.b16 %v4306
        %v4339 = vunpack.c.l.b16 %v4307
        %v4340 = vunpack.c.l.b16 %v4308
        %v4341 = vunpack.c.l.b16 %v4309
        %v4342 = vunpack.c.l.b16 %v4310
        %v4343 = vunpack.c.l.b16 %v4311
        %v4344 = vunpack.c.l.b16 %v4312
        %v4345 = vpack.c.b16 %v4330, %v4329
        %v4346 = vpack.c.b16 %v4332, %v4331
        %v4347 = vpack.c.b16 %v4334, %v4333
        %v4348 = vpack.c.b16 %v4336, %v4335
        %v4349 = vpack.c.b16 %v4338, %v4337
        %v4350 = vpack.c.b16 %v4340, %v4339
        %v4351 = vpack.c.b16 %v4342, %v4341
        %v4352 = vpack.c.b16 %v4344, %v4343
        %4361 = vmatprep.subr.bf16.mxu0 0
        %4362 = vmatpush1.bf16.msra.mxu0 %v4345
        %4363 = vmatprep.subr.bf16.mxu0 0
        %4364 = vmatpush1.bf16.msra.mxu0 %v4346
        %4365 = vmatprep.subr.bf16.mxu0 0
        %4366 = vmatpush1.bf16.msra.mxu0 %v4347
        %4367 = vmatprep.subr.bf16.mxu0 0
        %4368 = vmatpush1.bf16.msra.mxu0 %v4348
        %4369 = vmatprep.subr.bf16.mxu0 0
        %4370 = vmatpush1.bf16.msra.mxu0 %v4349
        %4371 = vmatprep.subr.bf16.mxu0 0
        %4372 = vmatpush1.bf16.msra.mxu0 %v4350
        %4373 = vmatprep.subr.bf16.mxu0 0
        %4374 = vmatpush1.bf16.msra.mxu0 %v4351
        %4375 = vmatprep.subr.bf16.mxu0 0
        %4376 = vmatpush1.bf16.msra.mxu0 %v4352
        %4377 = vmatprep.subr.bf16.mxu0 0
        %4378 = vmatpush1.bf16.msra.mxu0 0
        %4379 = vmatprep.subr.bf16.mxu0 0
        %4380 = vmatpush1.bf16.msra.mxu0 0
        %4381 = vmatprep.subr.bf16.mxu0 0
        %4382 = vmatpush1.bf16.msra.mxu0 0
        %4383 = vmatprep.subr.bf16.mxu0 0
        %4384 = vmatpush1.bf16.msra.mxu0 0
        %4385 = vmatprep.subr.bf16.mxu0 0
        %4386 = vmatpush1.bf16.msra.mxu0 0
        %4387 = vmatprep.subr.bf16.mxu0 0
        %4388 = vmatpush1.bf16.msra.mxu0 0
        %4389 = vmatprep.subr.bf16.mxu0 0
        %4390 = vmatpush1.bf16.msra.mxu0 0
        %4391 = vmatprep.subr.bf16.mxu0 0
        %4392 = vmatpush1.bf16.msra.mxu0 0
        %4393 = vmatprep.mubr.bf16.mxu0 0
        %4394 = vmatmul.mubr.bf16.gmra.mrb[0].mxu0 %v2845
        %v4395 = vpop.f32.mrb[0].mxu0
        %v4396 = vadd.f32 0.0, %v4395
        %v4397 = vpop.f32.mrb[0].mxu0
        %v4398 = vpop.f32.mrb[0].mxu0
        %v4399 = vpop.f32.mrb[0].mxu0
        %4400 = vdwg.mxu0
        %s4401 = scalar_lea.vmem %s7, 448
        %v4402 = vld [vmem:[%s4401] sm:$0xf]
        %v4403 = vld [vmem:[%s4401 + $0x4] sm:$0xf]
        %v4404 = vld [vmem:[%s4401 + $0x8] sm:$0xf]
        %v4405 = vld [vmem:[%s4401 + $0xc] sm:$0xf]
        %v4406 = vld [vmem:[%s4401 + $0x10] sm:$0xf]
        %v4407 = vld [vmem:[%s4401 + $0x14] sm:$0xf]
        %v4408 = vld [vmem:[%s4401 + $0x18] sm:$0xf]
        %v4409 = vld [vmem:[%s4401 + $0x1c] sm:$0xf]
        %v4410 = vld [vmem:[%s4401 + $0x20] sm:$0xf]
        %v4411 = vld [vmem:[%s4401 + $0x24] sm:$0xf]
        %v4412 = vld [vmem:[%s4401 + $0x28] sm:$0xf]
        %v4413 = vld [vmem:[%s4401 + $0x2c] sm:$0xf]
        %v4414 = vld [vmem:[%s4401 + $0x30] sm:$0xf]
        %v4415 = vld [vmem:[%s4401 + $0x34] sm:$0xf]
        %v4416 = vld [vmem:[%s4401 + $0x38] sm:$0xf]
        %v4417 = vld [vmem:[%s4401 + $0x3c] sm:$0xf]
        %v4434 = vunpack.c.l.b16 %v4402
        %v4435 = vunpack.c.l.b16 %v4403
        %v4436 = vunpack.c.l.b16 %v4404
        %v4437 = vunpack.c.l.b16 %v4405
        %v4438 = vunpack.c.l.b16 %v4406
        %v4439 = vunpack.c.l.b16 %v4407
        %v4440 = vunpack.c.l.b16 %v4408
        %v4441 = vunpack.c.l.b16 %v4409
        %v4442 = vunpack.c.l.b16 %v4410
        %v4443 = vunpack.c.l.b16 %v4411
        %v4444 = vunpack.c.l.b16 %v4412
        %v4445 = vunpack.c.l.b16 %v4413
        %v4446 = vunpack.c.l.b16 %v4414
        %v4447 = vunpack.c.l.b16 %v4415
        %v4448 = vunpack.c.l.b16 %v4416
        %v4449 = vunpack.c.l.b16 %v4417
        %v4450 = vpack.c.b16 %v4435, %v4434
        %v4451 = vpack.c.b16 %v4437, %v4436
        %v4452 = vpack.c.b16 %v4439, %v4438
        %v4453 = vpack.c.b16 %v4441, %v4440
        %v4454 = vpack.c.b16 %v4443, %v4442
        %v4455 = vpack.c.b16 %v4445, %v4444
        %v4456 = vpack.c.b16 %v4447, %v4446
        %v4457 = vpack.c.b16 %v4449, %v4448
        %4466 = vmatprep.subr.bf16.mxu0 0
        %4467 = vmatpush1.bf16.msra.mxu0 %v4450
        %4468 = vmatprep.subr.bf16.mxu0 0
        %4469 = vmatpush1.bf16.msra.mxu0 %v4451
        %4470 = vmatprep.subr.bf16.mxu0 0
        %4471 = vmatpush1.bf16.msra.mxu0 %v4452
        %4472 = vmatprep.subr.bf16.mxu0 0
        %4473 = vmatpush1.bf16.msra.mxu0 %v4453
        %4474 = vmatprep.subr.bf16.mxu0 0
        %4475 = vmatpush1.bf16.msra.mxu0 %v4454
        %4476 = vmatprep.subr.bf16.mxu0 0
        %4477 = vmatpush1.bf16.msra.mxu0 %v4455
        %4478 = vmatprep.subr.bf16.mxu0 0
        %4479 = vmatpush1.bf16.msra.mxu0 %v4456
        %4480 = vmatprep.subr.bf16.mxu0 0
        %4481 = vmatpush1.bf16.msra.mxu0 %v4457
        %4482 = vmatprep.subr.bf16.mxu0 0
        %4483 = vmatpush1.bf16.msra.mxu0 0
        %4484 = vmatprep.subr.bf16.mxu0 0
        %4485 = vmatpush1.bf16.msra.mxu0 0
        %4486 = vmatprep.subr.bf16.mxu0 0
        %4487 = vmatpush1.bf16.msra.mxu0 0
        %4488 = vmatprep.subr.bf16.mxu0 0
        %4489 = vmatpush1.bf16.msra.mxu0 0
        %4490 = vmatprep.subr.bf16.mxu0 0
        %4491 = vmatpush1.bf16.msra.mxu0 0
        %4492 = vmatprep.subr.bf16.mxu0 0
        %4493 = vmatpush1.bf16.msra.mxu0 0
        %4494 = vmatprep.subr.bf16.mxu0 0
        %4495 = vmatpush1.bf16.msra.mxu0 0
        %4496 = vmatprep.subr.bf16.mxu0 0
        %4497 = vmatpush1.bf16.msra.mxu0 0
        %4498 = vmatprep.mubr.bf16.mxu0 0
        %4499 = vmatmul.mubr.bf16.gmra.mrb[0].mxu0 %v2845
        %v4500 = vpop.f32.mrb[0].mxu0
        %v4501 = vadd.f32 0.0, %v4500
        %v4502 = vpop.f32.mrb[0].mxu0
        %v4503 = vpop.f32.mrb[0].mxu0
        %v4504 = vpop.f32.mrb[0].mxu0
        %4505 = vdwg.mxu0
        %s4506 = scalar_lea.vmem %s8, 448
        %v4507 = vld [vmem:[%s4506] sm:$0xf]
        %v4508 = vld [vmem:[%s4506 + $0x4] sm:$0xf]
        %v4509 = vld [vmem:[%s4506 + $0x8] sm:$0xf]
        %v4510 = vld [vmem:[%s4506 + $0xc] sm:$0xf]
        %v4511 = vld [vmem:[%s4506 + $0x10] sm:$0xf]
        %v4512 = vld [vmem:[%s4506 + $0x14] sm:$0xf]
        %v4513 = vld [vmem:[%s4506 + $0x18] sm:$0xf]
        %v4514 = vld [vmem:[%s4506 + $0x1c] sm:$0xf]
        %v4515 = vld [vmem:[%s4506 + $0x20] sm:$0xf]
        %v4516 = vld [vmem:[%s4506 + $0x24] sm:$0xf]
        %v4517 = vld [vmem:[%s4506 + $0x28] sm:$0xf]
        %v4518 = vld [vmem:[%s4506 + $0x2c] sm:$0xf]
        %v4519 = vld [vmem:[%s4506 + $0x30] sm:$0xf]
        %v4520 = vld [vmem:[%s4506 + $0x34] sm:$0xf]
        %v4521 = vld [vmem:[%s4506 + $0x38] sm:$0xf]
        %v4522 = vld [vmem:[%s4506 + $0x3c] sm:$0xf]
        %v4539 = vunpack.c.l.b16 %v4507
        %v4540 = vunpack.c.l.b16 %v4508
        %v4541 = vunpack.c.l.b16 %v4509
        %v4542 = vunpack.c.l.b16 %v4510
        %v4543 = vunpack.c.l.b16 %v4511
        %v4544 = vunpack.c.l.b16 %v4512
        %v4545 = vunpack.c.l.b16 %v4513
        %v4546 = vunpack.c.l.b16 %v4514
        %v4547 = vunpack.c.l.b16 %v4515
        %v4548 = vunpack.c.l.b16 %v4516
        %v4549 = vunpack.c.l.b16 %v4517
        %v4550 = vunpack.c.l.b16 %v4518
        %v4551 = vunpack.c.l.b16 %v4519
        %v4552 = vunpack.c.l.b16 %v4520
        %v4553 = vunpack.c.l.b16 %v4521
        %v4554 = vunpack.c.l.b16 %v4522
        %v4555 = vpack.c.b16 %v4540, %v4539
        %v4556 = vpack.c.b16 %v4542, %v4541
        %v4557 = vpack.c.b16 %v4544, %v4543
        %v4558 = vpack.c.b16 %v4546, %v4545
        %v4559 = vpack.c.b16 %v4548, %v4547
        %v4560 = vpack.c.b16 %v4550, %v4549
        %v4561 = vpack.c.b16 %v4552, %v4551
        %v4562 = vpack.c.b16 %v4554, %v4553
        %4571 = vmatprep.subr.bf16.mxu0 0
        %4572 = vmatpush1.bf16.msra.mxu0 %v4555
        %4573 = vmatprep.subr.bf16.mxu0 0
        %4574 = vmatpush1.bf16.msra.mxu0 %v4556
        %4575 = vmatprep.subr.bf16.mxu0 0
        %4576 = vmatpush1.bf16.msra.mxu0 %v4557
        %4577 = vmatprep.subr.bf16.mxu0 0
        %4578 = vmatpush1.bf16.msra.mxu0 %v4558
        %4579 = vmatprep.subr.bf16.mxu0 0
        %4580 = vmatpush1.bf16.msra.mxu0 %v4559
        %4581 = vmatprep.subr.bf16.mxu0 0
        %4582 = vmatpush1.bf16.msra.mxu0 %v4560
        %4583 = vmatprep.subr.bf16.mxu0 0
        %4584 = vmatpush1.bf16.msra.mxu0 %v4561
        %4585 = vmatprep.subr.bf16.mxu0 0
        %4586 = vmatpush1.bf16.msra.mxu0 %v4562
        %4587 = vmatprep.subr.bf16.mxu0 0
        %4588 = vmatpush1.bf16.msra.mxu0 0
        %4589 = vmatprep.subr.bf16.mxu0 0
        %4590 = vmatpush1.bf16.msra.mxu0 0
        %4591 = vmatprep.subr.bf16.mxu0 0
        %4592 = vmatpush1.bf16.msra.mxu0 0
        %4593 = vmatprep.subr.bf16.mxu0 0
        %4594 = vmatpush1.bf16.msra.mxu0 0
        %4595 = vmatprep.subr.bf16.mxu0 0
        %4596 = vmatpush1.bf16.msra.mxu0 0
        %4597 = vmatprep.subr.bf16.mxu0 0
        %4598 = vmatpush1.bf16.msra.mxu0 0
        %4599 = vmatprep.subr.bf16.mxu0 0
        %4600 = vmatpush1.bf16.msra.mxu0 0
        %4601 = vmatprep.subr.bf16.mxu0 0
        %4602 = vmatpush1.bf16.msra.mxu0 0
        %4603 = vmatprep.mubr.bf16.mxu0 0
        %4604 = vmatmul.mubr.bf16.gmra.mrb[0].mxu0 %v2845
        %v4605 = vpop.f32.mrb[0].mxu0
        %v4606 = vadd.f32 0.0, %v4605
        %v4607 = vpop.f32.mrb[0].mxu0
        %v4608 = vpop.f32.mrb[0].mxu0
        %v4609 = vpop.f32.mrb[0].mxu0
        %4610 = vdwg.mxu0
        %v4611 = vpack.c.bf16 %v4396, %v4396
        %v4612 = vpack.c.bf16 %v4501, %v4501
        %v4614 = vsel %vm924, %v4611, 0
        %v4617 = vsel %vm924, %v4612, 0
        %4619 = vmatprep.subr.bf16.mxu0 0
        %4620 = vmatpush1.bf16.xpose.msra.mxu0 %v4617
        %4621 = vmatprep.subr.bf16.mxu0 0
        %4622 = vmatpush1.bf16.xpose.msra.mxu0 0
        %4623 = vmatprep.subr.bf16.mxu0 0
        %4624 = vmatpush1.bf16.xpose.msra.mxu0 0
        %4625 = vmatprep.subr.bf16.mxu0 0
        %4626 = vmatpush1.bf16.xpose.msra.mxu0 0
        %4627 = vmatprep.subr.bf16.mxu0 0
        %4628 = vmatpush1.bf16.xpose.msra.mxu0 0
        %4629 = vmatprep.subr.bf16.mxu0 0
        %4630 = vmatpush1.bf16.xpose.msra.mxu0 0
        %4631 = vmatprep.subr.bf16.mxu0 0
        %4632 = vmatpush1.bf16.xpose.msra.mxu0 0
        %4633 = vmatprep.subr.bf16.mxu0 0
        %4634 = vmatpush1.bf16.xpose.msra.mxu0 0
        %4635 = vmatprep.subr.bf16.mxu0 0
        %4636 = vmatpush1.bf16.xpose.msra.mxu0 0
        %4637 = vmatprep.subr.bf16.mxu0 0
        %4638 = vmatpush1.bf16.xpose.msra.mxu0 0
        %4639 = vmatprep.subr.bf16.mxu0 0
        %4640 = vmatpush1.bf16.xpose.msra.mxu0 0
        %4641 = vmatprep.subr.bf16.mxu0 0
        %4642 = vmatpush1.bf16.xpose.msra.mxu0 0
        %4643 = vmatprep.subr.bf16.mxu0 0
        %4644 = vmatpush1.bf16.xpose.msra.mxu0 0
        %4645 = vmatprep.subr.bf16.mxu0 0
        %4646 = vmatpush1.bf16.xpose.msra.mxu0 0
        %4647 = vmatprep.subr.bf16.mxu0 0
        %4648 = vmatpush1.bf16.xpose.msra.mxu0 0
        %4649 = vmatprep.subr.bf16.mxu0 0
        %4650 = vmatpush1.bf16.xpose.msra.mxu0 0
        %4651 = vmatprep.mubr.bf16.mxu0 0
        %4652 = vmatmul.mubr.bf16.gmra.mrb[0].mxu0 %v4614
        %v4653 = vpop.f32.mrb[0].mxu0
        %v4654 = vadd.f32 0.0, %v4653
        %v4655 = vpop.f32.mrb[0].mxu0
        %v4656 = vpop.f32.mrb[0].mxu0
        %v4657 = vpop.f32.mrb[0].mxu0
        %4658 = vdwg.mxu0
        %v4659 = vsel %vm979, %v4654, -inf
        %4660 = vmax.xlane.f32.xlu0 %v4659
        %v4661 = vpop.xlane.xlu0 %4660
        %v4662 = vsub.f32 %v4654, %v4661
        %v4663 = vmul.f32 %v4662, 1.442695
        %v4664 = vpow.pop %v4663
        %v4665 = vsel %vm979, %v4664, 0.0
        %4666 = vadd.xlane.f32.xlu0 %v4665
        %v4667 = vpop.xlane.xlu0 %4666
        %v4668 = vrcp.pop %v4667
        %v4669 = vmul.f32 %v4664, %v4668
        %v4670 = vpack.c.bf16 %v4669, %v4669
        %v4671 = vpack.c.bf16 %v4606, %v4606
        %v4673 = vsel %vm979, %v4670, 0
        %v4676 = vsel %vm996, %v4671, 0
        %4678 = vmatprep.subr.bf16.mxu0 0
        %4679 = vmatpush1.bf16.msra.mxu0 %v4676
        %4680 = vmatprep.subr.bf16.mxu0 0
        %4681 = vmatpush1.bf16.msra.mxu0 0
        %4682 = vmatprep.subr.bf16.mxu0 0
        %4683 = vmatpush1.bf16.msra.mxu0 0
        %4684 = vmatprep.subr.bf16.mxu0 0
        %4685 = vmatpush1.bf16.msra.mxu0 0
        %4686 = vmatprep.subr.bf16.mxu0 0
        %4687 = vmatpush1.bf16.msra.mxu0 0
        %4688 = vmatprep.subr.bf16.mxu0 0
        %4689 = vmatpush1.bf16.msra.mxu0 0
        %4690 = vmatprep.subr.bf16.mxu0 0
        %4691 = vmatpush1.bf16.msra.mxu0 0
        %4692 = vmatprep.subr.bf16.mxu0 0
        %4693 = vmatpush1.bf16.msra.mxu0 0
        %4694 = vmatprep.subr.bf16.mxu0 0
        %4695 = vmatpush1.bf16.msra.mxu0 0
        %4696 = vmatprep.subr.bf16.mxu0 0
        %4697 = vmatpush1.bf16.msra.mxu0 0
        %4698 = vmatprep.subr.bf16.mxu0 0
        %4699 = vmatpush1.bf16.msra.mxu0 0
        %4700 = vmatprep.subr.bf16.mxu0 0
        %4701 = vmatpush1.bf16.msra.mxu0 0
        %4702 = vmatprep.subr.bf16.mxu0 0
        %4703 = vmatpush1.bf16.msra.mxu0 0
        %4704 = vmatprep.subr.bf16.mxu0 0
        %4705 = vmatpush1.bf16.msra.mxu0 0
        %4706 = vmatprep.subr.bf16.mxu0 0
        %4707 = vmatpush1.bf16.msra.mxu0 0
        %4708 = vmatprep.subr.bf16.mxu0 0
        %4709 = vmatpush1.bf16.msra.mxu0 0
        %4710 = vmatprep.mubr.bf16.mxu0 0
        %4711 = vmatmul.mubr.bf16.gmra.mrb[0].mxu0 %v4673
        %v4712 = vpop.f32.mrb[0].mxu0
        %v4713 = vadd.f32 0.0, %v4712
        %v4714 = vpop.f32.mrb[0].mxu0
        %v4715 = vpop.f32.mrb[0].mxu0
        %v4716 = vpop.f32.mrb[0].mxu0
        %4717 = vdwg.mxu0
        %v4718 = vpack.c.bf16 %v4713, %v4713
        %s4719 = scalar_lea.vmem %s9, 112
        %v4720 = vld [vmem:[%s4719] sm:$0xf]
        %v4721 = vld [vmem:[%s4719 + $0x4] sm:$0xf]
        %v4722 = vld [vmem:[%s4719 + $0x8] sm:$0xf]
        %v4723 = vld [vmem:[%s4719 + $0xc] sm:$0xf]
        %v4728 = vunpack.c.l.b16 %v4720
        %v4729 = vunpack.c.l.b16 %v4721
        %v4730 = vunpack.c.l.b16 %v4722
        %v4731 = vunpack.c.l.b16 %v4723
        %v4732 = vpack.c.b16 %v4729, %v4728
        %v4733 = vpack.c.b16 %v4731, %v4730
        %v4737 = vsel %vm924, %v4718, 0
        %4739 = vmatprep.subr.bf16.mxu0 0
        %4740 = vmatpush1.bf16.msra.mxu0 %v4732
        %4741 = vmatprep.subr.bf16.mxu0 0
        %4742 = vmatpush1.bf16.msra.mxu0 %v4733
        %4743 = vmatprep.subr.bf16.mxu0 0
        %4744 = vmatpush1.bf16.msra.mxu0 0
        %4745 = vmatprep.subr.bf16.mxu0 0
        %4746 = vmatpush1.bf16.msra.mxu0 0
        %4747 = vmatprep.subr.bf16.mxu0 0
        %4748 = vmatpush1.bf16.msra.mxu0 0
        %4749 = vmatprep.subr.bf16.mxu0 0
        %4750 = vmatpush1.bf16.msra.mxu0 0
        %4751 = vmatprep.subr.bf16.mxu0 0
        %4752 = vmatpush1.bf16.msra.mxu0 0
        %4753 = vmatprep.subr.bf16.mxu0 0
        %4754 = vmatpush1.bf16.msra.mxu0 0
        %4755 = vmatprep.subr.bf16.mxu0 0
        %4756 = vmatpush1.bf16.msra.mxu0 0
        %4757 = vmatprep.subr.bf16.mxu0 0
        %4758 = vmatpush1.bf16.msra.mxu0 0
        %4759 = vmatprep.subr.bf16.mxu0 0
        %4760 = vmatpush1.bf16.msra.mxu0 0
        %4761 = vmatprep.subr.bf16.mxu0 0
        %4762 = vmatpush1.bf16.msra.mxu0 0
        %4763 = vmatprep.subr.bf16.mxu0 0
        %4764 = vmatpush1.bf16.msra.mxu0 0
        %4765 = vmatprep.subr.bf16.mxu0 0
        %4766 = vmatpush1.bf16.msra.mxu0 0
        %4767 = vmatprep.subr.bf16.mxu0 0
        %4768 = vmatpush1.bf16.msra.mxu0 0
        %4769 = vmatprep.subr.bf16.mxu0 0
        %4770 = vmatpush1.bf16.msra.mxu0 0
        %4771 = vmatprep.mubr.bf16.mxu0 0
        %4772 = vmatmul.mubr.bf16.gmra.mrb[0].mxu0 %v4737
        %v4773 = vpop.f32.mrb[0].mxu0
        %v4774 = vadd.f32 0.0, %v4773
        %v4775 = vpop.f32.mrb[0].mxu0
        %v4776 = vpop.f32.mrb[0].mxu0
        %v4777 = vpop.f32.mrb[0].mxu0
        %4778 = vdwg.mxu0
        %v4779 = vadd.f32 %v4295, %v4774
        %v4780 = vadd.f32 %v2815, %v4779
        %s4781 = scalar_lea.vmem %s10, 1
        %v4782 = vld [vmem:[%s4781] sm:$0x1]
        %v4784 = vlaneseq
        %v4785 = vshrl.u32 %v4784, 7
        %v4786 = vsub.s32 0, %v4785
        %v4787 = vrot.slane %v4782, %v4786
        %v4789 = vadd.f32 %v4780, %v4787
        %s4790 = scalar_lea.vmem %s11, 1
        %v4791 = vld [vmem:[%s4790] sm:$0x1]
        %s4792 = scalar_lea.vmem %s12, 1
        %v4793 = vld [vmem:[%s4792] sm:$0x1]
        %4794 = vadd.xlane.f32.xlu0 %v4789
        %v4795 = vpop.xlane.xlu0 %4794
        %v4796 = vmul.f32 %v4795, %v584
        %v4797 = vsub.f32 %v4789, %v4796
        %v4798 = vmul.f32 %v4797, %v4797
        %4799 = vadd.xlane.f32.xlu0 %v4798
        %v4800 = vpop.xlane.xlu0 %4799
        %v4801 = vmul.f32 %v4800, %v584
        %v4802 = vadd.f32 %v4801, 1e-05
        %v4803 = vrsqrt.pop %v4802
        %v4804 = vmul.f32 %v4797, %v4803
        %v4806 = vlaneseq
        %v4807 = vshrl.u32 %v4806, 7
        %v4808 = vsub.s32 0, %v4807
        %v4809 = vrot.slane %v4791, %v4808
        %v4811 = vmul.f32 %v4804, %v4809
        %v4813 = vlaneseq
        %v4814 = vshrl.u32 %v4813, 7
        %v4815 = vsub.s32 0, %v4814
        %v4816 = vrot.slane %v4793, %v4815
        %v4818 = vadd.f32 %v4811, %v4816
        %v4819 = vpack.c.bf16 %v4818, %v4818
        %s4820 = scalar_lea.vmem %s13, 64
        %v4821 = vld [vmem:[%s4820] sm:$0xf]
        %v4822 = vld [vmem:[%s4820 + $0x4] sm:$0xf]
        %v4823 = vld [vmem:[%s4820 + $0x8] sm:$0xf]
        %v4824 = vld [vmem:[%s4820 + $0xc] sm:$0xf]
        %v4825 = vld [vmem:[%s4820 + $0x10] sm:$0xf]
        %v4826 = vld [vmem:[%s4820 + $0x14] sm:$0xf]
        %v4827 = vld [vmem:[%s4820 + $0x18] sm:$0xf]
        %v4828 = vld [vmem:[%s4820 + $0x1c] sm:$0xf]
        %v4829 = vld [vmem:[%s4820 + $0x20] sm:$0xf]
        %v4830 = vld [vmem:[%s4820 + $0x24] sm:$0xf]
        %v4831 = vld [vmem:[%s4820 + $0x28] sm:$0xf]
        %v4832 = vld [vmem:[%s4820 + $0x2c] sm:$0xf]
        %v4833 = vld [vmem:[%s4820 + $0x30] sm:$0xf]
        %v4834 = vld [vmem:[%s4820 + $0x34] sm:$0xf]
        %v4835 = vld [vmem:[%s4820 + $0x38] sm:$0xf]
        %v4836 = vld [vmem:[%s4820 + $0x3c] sm:$0xf]
        %s4837 = scalar_lea.vmem %s14, 1
        %v4838 = vld [vmem:[%s4837] sm:$0x1]
        %v4840 = vlaneseq
        %v4841 = vshrl.u32 %v4840, 7
        %v4842 = vsub.s32 0, %v4841
        %v4843 = vrot.slane %v4838, %v4842
        %v4861 = vunpack.c.l.b16 %v4821
        %v4862 = vunpack.c.l.b16 %v4822
        %v4863 = vunpack.c.l.b16 %v4823
        %v4864 = vunpack.c.l.b16 %v4824
        %v4865 = vunpack.c.l.b16 %v4825
        %v4866 = vunpack.c.l.b16 %v4826
        %v4867 = vunpack.c.l.b16 %v4827
        %v4868 = vunpack.c.l.b16 %v4828
        %v4869 = vunpack.c.l.b16 %v4829
        %v4870 = vunpack.c.l.b16 %v4830
        %v4871 = vunpack.c.l.b16 %v4831
        %v4872 = vunpack.c.l.b16 %v4832
        %v4873 = vunpack.c.l.b16 %v4833
        %v4874 = vunpack.c.l.b16 %v4834
        %v4875 = vunpack.c.l.b16 %v4835
        %v4876 = vunpack.c.l.b16 %v4836
        %v4877 = vpack.c.b16 %v4862, %v4861
        %v4878 = vpack.c.b16 %v4864, %v4863
        %v4879 = vpack.c.b16 %v4866, %v4865
        %v4880 = vpack.c.b16 %v4868, %v4867
        %v4881 = vpack.c.b16 %v4870, %v4869
        %v4882 = vpack.c.b16 %v4872, %v4871
        %v4883 = vpack.c.b16 %v4874, %v4873
        %v4884 = vpack.c.b16 %v4876, %v4875
        %4893 = vmatprep.subr.bf16.mxu0 0
        %4894 = vmatpush1.bf16.msra.mxu0 %v4877
        %4895 = vmatprep.subr.bf16.mxu0 0
        %4896 = vmatpush1.bf16.msra.mxu0 %v4878
        %4897 = vmatprep.subr.bf16.mxu0 0
        %4898 = vmatpush1.bf16.msra.mxu0 %v4879
        %4899 = vmatprep.subr.bf16.mxu0 0
        %4900 = vmatpush1.bf16.msra.mxu0 %v4880
        %4901 = vmatprep.subr.bf16.mxu0 0
        %4902 = vmatpush1.bf16.msra.mxu0 %v4881
        %4903 = vmatprep.subr.bf16.mxu0 0
        %4904 = vmatpush1.bf16.msra.mxu0 %v4882
        %4905 = vmatprep.subr.bf16.mxu0 0
        %4906 = vmatpush1.bf16.msra.mxu0 %v4883
        %4907 = vmatprep.subr.bf16.mxu0 0
        %4908 = vmatpush1.bf16.msra.mxu0 %v4884
        %4909 = vmatprep.subr.bf16.mxu0 0
        %4910 = vmatpush1.bf16.msra.mxu0 0
        %4911 = vmatprep.subr.bf16.mxu0 0
        %4912 = vmatpush1.bf16.msra.mxu0 0
        %4913 = vmatprep.subr.bf16.mxu0 0
        %4914 = vmatpush1.bf16.msra.mxu0 0
        %4915 = vmatprep.subr.bf16.mxu0 0
        %4916 = vmatpush1.bf16.msra.mxu0 0
        %4917 = vmatprep.subr.bf16.mxu0 0
        %4918 = vmatpush1.bf16.msra.mxu0 0
        %4919 = vmatprep.subr.bf16.mxu0 0
        %4920 = vmatpush1.bf16.msra.mxu0 0
        %4921 = vmatprep.subr.bf16.mxu0 0
        %4922 = vmatpush1.bf16.msra.mxu0 0
        %4923 = vmatprep.subr.bf16.mxu0 0
        %4924 = vmatpush1.bf16.msra.mxu0 0
        %4925 = vmatprep.mubr.bf16.mxu0 0
        %4926 = vmatmul.mubr.bf16.gmra.mrb[0].mxu0 %v4819
        %v4927 = vpop.f32.mrb[0].mxu0
        %v4928 = vadd.f32 %v4843, %v4927
        %v4929 = vpop.f32.mrb[0].mxu0
        %v4930 = vpop.f32.mrb[0].mxu0
        %v4931 = vpop.f32.mrb[0].mxu0
        %4932 = vdwg.mxu0
        %v4933 = vmax.f32 %v4928, 0.0
        %v4934 = vpack.c.bf16 %v4933, %v4933
        %s4935 = scalar_lea.vmem %s15, 64
        %v4936 = vld [vmem:[%s4935] sm:$0xf]
        %v4937 = vld [vmem:[%s4935 + $0x4] sm:$0xf]
        %v4938 = vld [vmem:[%s4935 + $0x8] sm:$0xf]
        %v4939 = vld [vmem:[%s4935 + $0xc] sm:$0xf]
        %v4940 = vld [vmem:[%s4935 + $0x10] sm:$0xf]
        %v4941 = vld [vmem:[%s4935 + $0x14] sm:$0xf]
        %v4942 = vld [vmem:[%s4935 + $0x18] sm:$0xf]
        %v4943 = vld [vmem:[%s4935 + $0x1c] sm:$0xf]
        %v4944 = vld [vmem:[%s4935 + $0x20] sm:$0xf]
        %v4945 = vld [vmem:[%s4935 + $0x24] sm:$0xf]
        %v4946 = vld [vmem:[%s4935 + $0x28] sm:$0xf]
        %v4947 = vld [vmem:[%s4935 + $0x2c] sm:$0xf]
        %v4948 = vld [vmem:[%s4935 + $0x30] sm:$0xf]
        %v4949 = vld [vmem:[%s4935 + $0x34] sm:$0xf]
        %v4950 = vld [vmem:[%s4935 + $0x38] sm:$0xf]
        %v4951 = vld [vmem:[%s4935 + $0x3c] sm:$0xf]
        %s4952 = scalar_lea.vmem %s16, 1
        %v4953 = vld [vmem:[%s4952] sm:$0x1]
        %v4955 = vlaneseq
        %v4956 = vshrl.u32 %v4955, 7
        %v4957 = vsub.s32 0, %v4956
        %v4958 = vrot.slane %v4953, %v4957
        %v4976 = vunpack.c.l.b16 %v4936
        %v4977 = vunpack.c.l.b16 %v4937
        %v4978 = vunpack.c.l.b16 %v4938
        %v4979 = vunpack.c.l.b16 %v4939
        %v4980 = vunpack.c.l.b16 %v4940
        %v4981 = vunpack.c.l.b16 %v4941
        %v4982 = vunpack.c.l.b16 %v4942
        %v4983 = vunpack.c.l.b16 %v4943
        %v4984 = vunpack.c.l.b16 %v4944
        %v4985 = vunpack.c.l.b16 %v4945
        %v4986 = vunpack.c.l.b16 %v4946
        %v4987 = vunpack.c.l.b16 %v4947
        %v4988 = vunpack.c.l.b16 %v4948
        %v4989 = vunpack.c.l.b16 %v4949
        %v4990 = vunpack.c.l.b16 %v4950
        %v4991 = vunpack.c.l.b16 %v4951
        %v4992 = vpack.c.b16 %v4977, %v4976
        %v4993 = vpack.c.b16 %v4979, %v4978
        %v4994 = vpack.c.b16 %v4981, %v4980
        %v4995 = vpack.c.b16 %v4983, %v4982
        %v4996 = vpack.c.b16 %v4985, %v4984
        %v4997 = vpack.c.b16 %v4987, %v4986
        %v4998 = vpack.c.b16 %v4989, %v4988
        %v4999 = vpack.c.b16 %v4991, %v4990
        %5008 = vmatprep.subr.bf16.mxu0 0
        %5009 = vmatpush1.bf16.msra.mxu0 %v4992
        %5010 = vmatprep.subr.bf16.mxu0 0
        %5011 = vmatpush1.bf16.msra.mxu0 %v4993
        %5012 = vmatprep.subr.bf16.mxu0 0
        %5013 = vmatpush1.bf16.msra.mxu0 %v4994
        %5014 = vmatprep.subr.bf16.mxu0 0
        %5015 = vmatpush1.bf16.msra.mxu0 %v4995
        %5016 = vmatprep.subr.bf16.mxu0 0
        %5017 = vmatpush1.bf16.msra.mxu0 %v4996
        %5018 = vmatprep.subr.bf16.mxu0 0
        %5019 = vmatpush1.bf16.msra.mxu0 %v4997
        %5020 = vmatprep.subr.bf16.mxu0 0
        %5021 = vmatpush1.bf16.msra.mxu0 %v4998
        %5022 = vmatprep.subr.bf16.mxu0 0
        %5023 = vmatpush1.bf16.msra.mxu0 %v4999
        %5024 = vmatprep.subr.bf16.mxu0 0
        %5025 = vmatpush1.bf16.msra.mxu0 0
        %5026 = vmatprep.subr.bf16.mxu0 0
        %5027 = vmatpush1.bf16.msra.mxu0 0
        %5028 = vmatprep.subr.bf16.mxu0 0
        %5029 = vmatpush1.bf16.msra.mxu0 0
        %5030 = vmatprep.subr.bf16.mxu0 0
        %5031 = vmatpush1.bf16.msra.mxu0 0
        %5032 = vmatprep.subr.bf16.mxu0 0
        %5033 = vmatpush1.bf16.msra.mxu0 0
        %5034 = vmatprep.subr.bf16.mxu0 0
        %5035 = vmatpush1.bf16.msra.mxu0 0
        %5036 = vmatprep.subr.bf16.mxu0 0
        %5037 = vmatpush1.bf16.msra.mxu0 0
        %5038 = vmatprep.subr.bf16.mxu0 0
        %5039 = vmatpush1.bf16.msra.mxu0 0
        %5040 = vmatprep.mubr.bf16.mxu0 0
        %5041 = vmatmul.mubr.bf16.gmra.mrb[0].mxu0 %v4934
        %v5042 = vpop.f32.mrb[0].mxu0
        %v5043 = vadd.f32 %v4958, %v5042
        %v5044 = vpop.f32.mrb[0].mxu0
        %v5045 = vpop.f32.mrb[0].mxu0
        %v5046 = vpop.f32.mrb[0].mxu0
        %5047 = vdwg.mxu0
        %v5048 = vadd.f32 %v4789, %v5043
        %s5049 = scalar_lea.vmem %s4, 2
        %v5050 = vld [vmem:[%s5049] sm:$0x1]
        %s5051 = scalar_lea.vmem %s5, 2
        %v5052 = vld [vmem:[%s5051] sm:$0x1]
        %5053 = vadd.xlane.f32.xlu0 %v577
        %v5054 = vpop.xlane.xlu0 %5053
        %v5055 = vmul.f32 %v5054, %v584
        %v5056 = vsub.f32 %v577, %v5055
        %v5057 = vmul.f32 %v5056, %v5056
        %5058 = vadd.xlane.f32.xlu0 %v5057
        %v5059 = vpop.xlane.xlu0 %5058
        %v5060 = vmul.f32 %v5059, %v584
        %v5061 = vadd.f32 %v5060, 1e-05
        %v5062 = vrsqrt.pop %v5061
        %v5063 = vmul.f32 %v5056, %v5062
        %v5065 = vlaneseq
        %v5066 = vshrl.u32 %v5065, 7
        %v5067 = vsub.s32 0, %v5066
        %v5068 = vrot.slane %v5050, %v5067
        %v5070 = vmul.f32 %v5063, %v5068
        %v5072 = vlaneseq
        %v5073 = vshrl.u32 %v5072, 7
        %v5074 = vsub.s32 0, %v5073
        %v5075 = vrot.slane %v5052, %v5074
        %v5077 = vadd.f32 %v5070, %v5075
        %v5078 = vpack.c.bf16 %v5077, %v5077
        %v5079 = vpack.c.bf16 %v5048, %v5048
        %s5080 = scalar_lea.vmem %s6, 512
        %v5081 = vld [vmem:[%s5080] sm:$0xf]
        %v5082 = vld [vmem:[%s5080 + $0x4] sm:$0xf]
        %v5083 = vld [vmem:[%s5080 + $0x8] sm:$0xf]
        %v5084 = vld [vmem:[%s5080 + $0xc] sm:$0xf]
        %v5085 = vld [vmem:[%s5080 + $0x10] sm:$0xf]
        %v5086 = vld [vmem:[%s5080 + $0x14] sm:$0xf]
        %v5087 = vld [vmem:[%s5080 + $0x18] sm:$0xf]
        %v5088 = vld [vmem:[%s5080 + $0x1c] sm:$0xf]
        %v5089 = vld [vmem:[%s5080 + $0x20] sm:$0xf]
        %v5090 = vld [vmem:[%s5080 + $0x24] sm:$0xf]
        %v5091 = vld [vmem:[%s5080 + $0x28] sm:$0xf]
        %v5092 = vld [vmem:[%s5080 + $0x2c] sm:$0xf]
        %v5093 = vld [vmem:[%s5080 + $0x30] sm:$0xf]
        %v5094 = vld [vmem:[%s5080 + $0x34] sm:$0xf]
        %v5095 = vld [vmem:[%s5080 + $0x38] sm:$0xf]
        %v5096 = vld [vmem:[%s5080 + $0x3c] sm:$0xf]
        %v5113 = vunpack.c.l.b16 %v5081
        %v5114 = vunpack.c.l.b16 %v5082
        %v5115 = vunpack.c.l.b16 %v5083
        %v5116 = vunpack.c.l.b16 %v5084
        %v5117 = vunpack.c.l.b16 %v5085
        %v5118 = vunpack.c.l.b16 %v5086
        %v5119 = vunpack.c.l.b16 %v5087
        %v5120 = vunpack.c.l.b16 %v5088
        %v5121 = vunpack.c.l.b16 %v5089
        %v5122 = vunpack.c.l.b16 %v5090
        %v5123 = vunpack.c.l.b16 %v5091
        %v5124 = vunpack.c.l.b16 %v5092
        %v5125 = vunpack.c.l.b16 %v5093
        %v5126 = vunpack.c.l.b16 %v5094
        %v5127 = vunpack.c.l.b16 %v5095
        %v5128 = vunpack.c.l.b16 %v5096
        %v5129 = vpack.c.b16 %v5114, %v5113
        %v5130 = vpack.c.b16 %v5116, %v5115
        %v5131 = vpack.c.b16 %v5118, %v5117
        %v5132 = vpack.c.b16 %v5120, %v5119
        %v5133 = vpack.c.b16 %v5122, %v5121
        %v5134 = vpack.c.b16 %v5124, %v5123
        %v5135 = vpack.c.b16 %v5126, %v5125
        %v5136 = vpack.c.b16 %v5128, %v5127
        %5145 = vmatprep.subr.bf16.mxu0 0
        %5146 = vmatpush1.bf16.msra.mxu0 %v5129
        %5147 = vmatprep.subr.bf16.mxu0 0
        %5148 = vmatpush1.bf16.msra.mxu0 %v5130
        %5149 = vmatprep.subr.bf16.mxu0 0
        %5150 = vmatpush1.bf16.msra.mxu0 %v5131
        %5151 = vmatprep.subr.bf16.mxu0 0
        %5152 = vmatpush1.bf16.msra.mxu0 %v5132
        %5153 = vmatprep.subr.bf16.mxu0 0
        %5154 = vmatpush1.bf16.msra.mxu0 %v5133
        %5155 = vmatprep.subr.bf16.mxu0 0
        %5156 = vmatpush1.bf16.msra.mxu0 %v5134
        %5157 = vmatprep.subr.bf16.mxu0 0
        %5158 = vmatpush1.bf16.msra.mxu0 %v5135
        %5159 = vmatprep.subr.bf16.mxu0 0
        %5160 = vmatpush1.bf16.msra.mxu0 %v5136
        %5161 = vmatprep.subr.bf16.mxu0 0
        %5162 = vmatpush1.bf16.msra.mxu0 0
        %5163 = vmatprep.subr.bf16.mxu0 0
        %5164 = vmatpush1.bf16.msra.mxu0 0
        %5165 = vmatprep.subr.bf16.mxu0 0
        %5166 = vmatpush1.bf16.msra.mxu0 0
        %5167 = vmatprep.subr.bf16.mxu0 0
        %5168 = vmatpush1.bf16.msra.mxu0 0
        %5169 = vmatprep.subr.bf16.mxu0 0
        %5170 = vmatpush1.bf16.msra.mxu0 0
        %5171 = vmatprep.subr.bf16.mxu0 0
        %5172 = vmatpush1.bf16.msra.mxu0 0
        %5173 = vmatprep.subr.bf16.mxu0 0
        %5174 = vmatpush1.bf16.msra.mxu0 0
        %5175 = vmatprep.subr.bf16.mxu0 0
        %5176 = vmatpush1.bf16.msra.mxu0 0
        %5177 = vmatprep.mubr.bf16.mxu0 0
        %5178 = vmatmul.mubr.bf16.gmra.mrb[0].mxu0 %v5078
        %v5179 = vpop.f32.mrb[0].mxu0
        %v5180 = vadd.f32 0.0, %v5179
        %v5181 = vpop.f32.mrb[0].mxu0
        %v5182 = vpop.f32.mrb[0].mxu0
        %v5183 = vpop.f32.mrb[0].mxu0
        %5184 = vdwg.mxu0
        %s5185 = scalar_lea.vmem %s7, 512
        %v5186 = vld [vmem:[%s5185] sm:$0xf]
        %v5187 = vld [vmem:[%s5185 + $0x4] sm:$0xf]
        %v5188 = vld [vmem:[%s5185 + $0x8] sm:$0xf]
        %v5189 = vld [vmem:[%s5185 + $0xc] sm:$0xf]
        %v5190 = vld [vmem:[%s5185 + $0x10] sm:$0xf]
        %v5191 = vld [vmem:[%s5185 + $0x14] sm:$0xf]
        %v5192 = vld [vmem:[%s5185 + $0x18] sm:$0xf]
        %v5193 = vld [vmem:[%s5185 + $0x1c] sm:$0xf]
        %v5194 = vld [vmem:[%s5185 + $0x20] sm:$0xf]
        %v5195 = vld [vmem:[%s5185 + $0x24] sm:$0xf]
        %v5196 = vld [vmem:[%s5185 + $0x28] sm:$0xf]
        %v5197 = vld [vmem:[%s5185 + $0x2c] sm:$0xf]
        %v5198 = vld [vmem:[%s5185 + $0x30] sm:$0xf]
        %v5199 = vld [vmem:[%s5185 + $0x34] sm:$0xf]
        %v5200 = vld [vmem:[%s5185 + $0x38] sm:$0xf]
        %v5201 = vld [vmem:[%s5185 + $0x3c] sm:$0xf]
        %v5218 = vunpack.c.l.b16 %v5186
        %v5219 = vunpack.c.l.b16 %v5187
        %v5220 = vunpack.c.l.b16 %v5188
        %v5221 = vunpack.c.l.b16 %v5189
        %v5222 = vunpack.c.l.b16 %v5190
        %v5223 = vunpack.c.l.b16 %v5191
        %v5224 = vunpack.c.l.b16 %v5192
        %v5225 = vunpack.c.l.b16 %v5193
        %v5226 = vunpack.c.l.b16 %v5194
        %v5227 = vunpack.c.l.b16 %v5195
        %v5228 = vunpack.c.l.b16 %v5196
        %v5229 = vunpack.c.l.b16 %v5197
        %v5230 = vunpack.c.l.b16 %v5198
        %v5231 = vunpack.c.l.b16 %v5199
        %v5232 = vunpack.c.l.b16 %v5200
        %v5233 = vunpack.c.l.b16 %v5201
        %v5234 = vpack.c.b16 %v5219, %v5218
        %v5235 = vpack.c.b16 %v5221, %v5220
        %v5236 = vpack.c.b16 %v5223, %v5222
        %v5237 = vpack.c.b16 %v5225, %v5224
        %v5238 = vpack.c.b16 %v5227, %v5226
        %v5239 = vpack.c.b16 %v5229, %v5228
        %v5240 = vpack.c.b16 %v5231, %v5230
        %v5241 = vpack.c.b16 %v5233, %v5232
        %5250 = vmatprep.subr.bf16.mxu0 0
        %5251 = vmatpush1.bf16.msra.mxu0 %v5234
        %5252 = vmatprep.subr.bf16.mxu0 0
        %5253 = vmatpush1.bf16.msra.mxu0 %v5235
        %5254 = vmatprep.subr.bf16.mxu0 0
        %5255 = vmatpush1.bf16.msra.mxu0 %v5236
        %5256 = vmatprep.subr.bf16.mxu0 0
        %5257 = vmatpush1.bf16.msra.mxu0 %v5237
        %5258 = vmatprep.subr.bf16.mxu0 0
        %5259 = vmatpush1.bf16.msra.mxu0 %v5238
        %5260 = vmatprep.subr.bf16.mxu0 0
        %5261 = vmatpush1.bf16.msra.mxu0 %v5239
        %5262 = vmatprep.subr.bf16.mxu0 0
        %5263 = vmatpush1.bf16.msra.mxu0 %v5240
        %5264 = vmatprep.subr.bf16.mxu0 0
        %5265 = vmatpush1.bf16.msra.mxu0 %v5241
        %5266 = vmatprep.subr.bf16.mxu0 0
        %5267 = vmatpush1.bf16.msra.mxu0 0
        %5268 = vmatprep.subr.bf16.mxu0 0
        %5269 = vmatpush1.bf16.msra.mxu0 0
        %5270 = vmatprep.subr.bf16.mxu0 0
        %5271 = vmatpush1.bf16.msra.mxu0 0
        %5272 = vmatprep.subr.bf16.mxu0 0
        %5273 = vmatpush1.bf16.msra.mxu0 0
        %5274 = vmatprep.subr.bf16.mxu0 0
        %5275 = vmatpush1.bf16.msra.mxu0 0
        %5276 = vmatprep.subr.bf16.mxu0 0
        %5277 = vmatpush1.bf16.msra.mxu0 0
        %5278 = vmatprep.subr.bf16.mxu0 0
        %5279 = vmatpush1.bf16.msra.mxu0 0
        %5280 = vmatprep.subr.bf16.mxu0 0
        %5281 = vmatpush1.bf16.msra.mxu0 0
        %5282 = vmatprep.mubr.bf16.mxu0 0
        %5283 = vmatmul.mubr.bf16.gmra.mrb[0].mxu0 %v5079
        %v5284 = vpop.f32.mrb[0].mxu0
        %v5285 = vadd.f32 0.0, %v5284
        %v5286 = vpop.f32.mrb[0].mxu0
        %v5287 = vpop.f32.mrb[0].mxu0
        %v5288 = vpop.f32.mrb[0].mxu0
        %5289 = vdwg.mxu0
        %s5290 = scalar_lea.vmem %s8, 512
        %v5291 = vld [vmem:[%s5290] sm:$0xf]
        %v5292 = vld [vmem:[%s5290 + $0x4] sm:$0xf]
        %v5293 = vld [vmem:[%s5290 + $0x8] sm:$0xf]
        %v5294 = vld [vmem:[%s5290 + $0xc] sm:$0xf]
        %v5295 = vld [vmem:[%s5290 + $0x10] sm:$0xf]
        %v5296 = vld [vmem:[%s5290 + $0x14] sm:$0xf]
        %v5297 = vld [vmem:[%s5290 + $0x18] sm:$0xf]
        %v5298 = vld [vmem:[%s5290 + $0x1c] sm:$0xf]
        %v5299 = vld [vmem:[%s5290 + $0x20] sm:$0xf]
        %v5300 = vld [vmem:[%s5290 + $0x24] sm:$0xf]
        %v5301 = vld [vmem:[%s5290 + $0x28] sm:$0xf]
        %v5302 = vld [vmem:[%s5290 + $0x2c] sm:$0xf]
        %v5303 = vld [vmem:[%s5290 + $0x30] sm:$0xf]
        %v5304 = vld [vmem:[%s5290 + $0x34] sm:$0xf]
        %v5305 = vld [vmem:[%s5290 + $0x38] sm:$0xf]
        %v5306 = vld [vmem:[%s5290 + $0x3c] sm:$0xf]
        %v5323 = vunpack.c.l.b16 %v5291
        %v5324 = vunpack.c.l.b16 %v5292
        %v5325 = vunpack.c.l.b16 %v5293
        %v5326 = vunpack.c.l.b16 %v5294
        %v5327 = vunpack.c.l.b16 %v5295
        %v5328 = vunpack.c.l.b16 %v5296
        %v5329 = vunpack.c.l.b16 %v5297
        %v5330 = vunpack.c.l.b16 %v5298
        %v5331 = vunpack.c.l.b16 %v5299
        %v5332 = vunpack.c.l.b16 %v5300
        %v5333 = vunpack.c.l.b16 %v5301
        %v5334 = vunpack.c.l.b16 %v5302
        %v5335 = vunpack.c.l.b16 %v5303
        %v5336 = vunpack.c.l.b16 %v5304
        %v5337 = vunpack.c.l.b16 %v5305
        %v5338 = vunpack.c.l.b16 %v5306
        %v5339 = vpack.c.b16 %v5324, %v5323
        %v5340 = vpack.c.b16 %v5326, %v5325
        %v5341 = vpack.c.b16 %v5328, %v5327
        %v5342 = vpack.c.b16 %v5330, %v5329
        %v5343 = vpack.c.b16 %v5332, %v5331
        %v5344 = vpack.c.b16 %v5334, %v5333
        %v5345 = vpack.c.b16 %v5336, %v5335
        %v5346 = vpack.c.b16 %v5338, %v5337
        %5355 = vmatprep.subr.bf16.mxu0 0
        %5356 = vmatpush1.bf16.msra.mxu0 %v5339
        %5357 = vmatprep.subr.bf16.mxu0 0
        %5358 = vmatpush1.bf16.msra.mxu0 %v5340
        %5359 = vmatprep.subr.bf16.mxu0 0
        %5360 = vmatpush1.bf16.msra.mxu0 %v5341
        %5361 = vmatprep.subr.bf16.mxu0 0
        %5362 = vmatpush1.bf16.msra.mxu0 %v5342
        %5363 = vmatprep.subr.bf16.mxu0 0
        %5364 = vmatpush1.bf16.msra.mxu0 %v5343
        %5365 = vmatprep.subr.bf16.mxu0 0
        %5366 = vmatpush1.bf16.msra.mxu0 %v5344
        %5367 = vmatprep.subr.bf16.mxu0 0
        %5368 = vmatpush1.bf16.msra.mxu0 %v5345
        %5369 = vmatprep.subr.bf16.mxu0 0
        %5370 = vmatpush1.bf16.msra.mxu0 %v5346
        %5371 = vmatprep.subr.bf16.mxu0 0
        %5372 = vmatpush1.bf16.msra.mxu0 0
        %5373 = vmatprep.subr.bf16.mxu0 0
        %5374 = vmatpush1.bf16.msra.mxu0 0
        %5375 = vmatprep.subr.bf16.mxu0 0
        %5376 = vmatpush1.bf16.msra.mxu0 0
        %5377 = vmatprep.subr.bf16.mxu0 0
        %5378 = vmatpush1.bf16.msra.mxu0 0
        %5379 = vmatprep.subr.bf16.mxu0 0
        %5380 = vmatpush1.bf16.msra.mxu0 0
        %5381 = vmatprep.subr.bf16.mxu0 0
        %5382 = vmatpush1.bf16.msra.mxu0 0
        %5383 = vmatprep.subr.bf16.mxu0 0
        %5384 = vmatpush1.bf16.msra.mxu0 0
        %5385 = vmatprep.subr.bf16.mxu0 0
        %5386 = vmatpush1.bf16.msra.mxu0 0
        %5387 = vmatprep.mubr.bf16.mxu0 0
        %5388 = vmatmul.mubr.bf16.gmra.mrb[0].mxu0 %v5079
        %v5389 = vpop.f32.mrb[0].mxu0
        %v5390 = vadd.f32 0.0, %v5389
        %v5391 = vpop.f32.mrb[0].mxu0
        %v5392 = vpop.f32.mrb[0].mxu0
        %v5393 = vpop.f32.mrb[0].mxu0
        %5394 = vdwg.mxu0
        %v5395 = vpack.c.bf16 %v5180, %v5180
        %v5396 = vpack.c.bf16 %v5285, %v5285
        %v5398 = vsel %vm924, %v5395, 0
        %v5401 = vsel %vm924, %v5396, 0
        %5403 = vmatprep.subr.bf16.mxu0 0
        %5404 = vmatpush1.bf16.xpose.msra.mxu0 %v5401
        %5405 = vmatprep.subr.bf16.mxu0 0
        %5406 = vmatpush1.bf16.xpose.msra.mxu0 0
        %5407 = vmatprep.subr.bf16.mxu0 0
        %5408 = vmatpush1.bf16.xpose.msra.mxu0 0
        %5409 = vmatprep.subr.bf16.mxu0 0
        %5410 = vmatpush1.bf16.xpose.msra.mxu0 0
        %5411 = vmatprep.subr.bf16.mxu0 0
        %5412 = vmatpush1.bf16.xpose.msra.mxu0 0
        %5413 = vmatprep.subr.bf16.mxu0 0
        %5414 = vmatpush1.bf16.xpose.msra.mxu0 0
        %5415 = vmatprep.subr.bf16.mxu0 0
        %5416 = vmatpush1.bf16.xpose.msra.mxu0 0
        %5417 = vmatprep.subr.bf16.mxu0 0
        %5418 = vmatpush1.bf16.xpose.msra.mxu0 0
        %5419 = vmatprep.subr.bf16.mxu0 0
        %5420 = vmatpush1.bf16.xpose.msra.mxu0 0
        %5421 = vmatprep.subr.bf16.mxu0 0
        %5422 = vmatpush1.bf16.xpose.msra.mxu0 0
        %5423 = vmatprep.subr.bf16.mxu0 0
        %5424 = vmatpush1.bf16.xpose.msra.mxu0 0
        %5425 = vmatprep.subr.bf16.mxu0 0
        %5426 = vmatpush1.bf16.xpose.msra.mxu0 0
        %5427 = vmatprep.subr.bf16.mxu0 0
        %5428 = vmatpush1.bf16.xpose.msra.mxu0 0
        %5429 = vmatprep.subr.bf16.mxu0 0
        %5430 = vmatpush1.bf16.xpose.msra.mxu0 0
        %5431 = vmatprep.subr.bf16.mxu0 0
        %5432 = vmatpush1.bf16.xpose.msra.mxu0 0
        %5433 = vmatprep.subr.bf16.mxu0 0
        %5434 = vmatpush1.bf16.xpose.msra.mxu0 0
        %5435 = vmatprep.mubr.bf16.mxu0 0
        %5436 = vmatmul.mubr.bf16.gmra.mrb[0].mxu0 %v5398
        %v5437 = vpop.f32.mrb[0].mxu0
        %v5438 = vadd.f32 0.0, %v5437
        %v5439 = vpop.f32.mrb[0].mxu0
        %v5440 = vpop.f32.mrb[0].mxu0
        %v5441 = vpop.f32.mrb[0].mxu0
        %5442 = vdwg.mxu0
        %v5443 = vsel %vm979, %v5438, -inf
        %5444 = vmax.xlane.f32.xlu0 %v5443
        %v5445 = vpop.xlane.xlu0 %5444
        %v5446 = vsub.f32 %v5438, %v5445
        %v5447 = vmul.f32 %v5446, 1.442695
        %v5448 = vpow.pop %v5447
        %v5449 = vsel %vm979, %v5448, 0.0
        %5450 = vadd.xlane.f32.xlu0 %v5449
        %v5451 = vpop.xlane.xlu0 %5450
        %v5452 = vrcp.pop %v5451
        %v5453 = vmul.f32 %v5448, %v5452
        %v5454 = vpack.c.bf16 %v5453, %v5453
        %v5455 = vpack.c.bf16 %v5390, %v5390
        %v5457 = vsel %vm979, %v5454, 0
        %v5460 = vsel %vm996, %v5455, 0
        %5462 = vmatprep.subr.bf16.mxu0 0
        %5463 = vmatpush1.bf16.msra.mxu0 %v5460
        %5464 = vmatprep.subr.bf16.mxu0 0
        %5465 = vmatpush1.bf16.msra.mxu0 0
        %5466 = vmatprep.subr.bf16.mxu0 0
        %5467 = vmatpush1.bf16.msra.mxu0 0
        %5468 = vmatprep.subr.bf16.mxu0 0
        %5469 = vmatpush1.bf16.msra.mxu0 0
        %5470 = vmatprep.subr.bf16.mxu0 0
        %5471 = vmatpush1.bf16.msra.mxu0 0
        %5472 = vmatprep.subr.bf16.mxu0 0
        %5473 = vmatpush1.bf16.msra.mxu0 0
        %5474 = vmatprep.subr.bf16.mxu0 0
        %5475 = vmatpush1.bf16.msra.mxu0 0
        %5476 = vmatprep.subr.bf16.mxu0 0
        %5477 = vmatpush1.bf16.msra.mxu0 0
        %5478 = vmatprep.subr.bf16.mxu0 0
        %5479 = vmatpush1.bf16.msra.mxu0 0
        %5480 = vmatprep.subr.bf16.mxu0 0
        %5481 = vmatpush1.bf16.msra.mxu0 0
        %5482 = vmatprep.subr.bf16.mxu0 0
        %5483 = vmatpush1.bf16.msra.mxu0 0
        %5484 = vmatprep.subr.bf16.mxu0 0
        %5485 = vmatpush1.bf16.msra.mxu0 0
        %5486 = vmatprep.subr.bf16.mxu0 0
        %5487 = vmatpush1.bf16.msra.mxu0 0
        %5488 = vmatprep.subr.bf16.mxu0 0
        %5489 = vmatpush1.bf16.msra.mxu0 0
        %5490 = vmatprep.subr.bf16.mxu0 0
        %5491 = vmatpush1.bf16.msra.mxu0 0
        %5492 = vmatprep.subr.bf16.mxu0 0
        %5493 = vmatpush1.bf16.msra.mxu0 0
        %5494 = vmatprep.mubr.bf16.mxu0 0
        %5495 = vmatmul.mubr.bf16.gmra.mrb[0].mxu0 %v5457
        %v5496 = vpop.f32.mrb[0].mxu0
        %v5497 = vadd.f32 0.0, %v5496
        %v5498 = vpop.f32.mrb[0].mxu0
        %v5499 = vpop.f32.mrb[0].mxu0
        %v5500 = vpop.f32.mrb[0].mxu0
        %5501 = vdwg.mxu0
        %v5502 = vpack.c.bf16 %v5497, %v5497
        %s5503 = scalar_lea.vmem %s9, 128
        %v5504 = vld [vmem:[%s5503] sm:$0xf]
        %v5505 = vld [vmem:[%s5503 + $0x4] sm:$0xf]
        %v5506 = vld [vmem:[%s5503 + $0x8] sm:$0xf]
        %v5507 = vld [vmem:[%s5503 + $0xc] sm:$0xf]
        %s5508 = scalar_lea.vmem %s6, 576
        %v5509 = vld [vmem:[%s5508] sm:$0xf]
        %v5510 = vld [vmem:[%s5508 + $0x4] sm:$0xf]
        %v5511 = vld [vmem:[%s5508 + $0x8] sm:$0xf]
        %v5512 = vld [vmem:[%s5508 + $0xc] sm:$0xf]
        %v5513 = vld [vmem:[%s5508 + $0x10] sm:$0xf]
        %v5514 = vld [vmem:[%s5508 + $0x14] sm:$0xf]
        %v5515 = vld [vmem:[%s5508 + $0x18] sm:$0xf]
        %v5516 = vld [vmem:[%s5508 + $0x1c] sm:$0xf]
        %v5517 = vld [vmem:[%s5508 + $0x20] sm:$0xf]
        %v5518 = vld [vmem:[%s5508 + $0x24] sm:$0xf]
        %v5519 = vld [vmem:[%s5508 + $0x28] sm:$0xf]
        %v5520 = vld [vmem:[%s5508 + $0x2c] sm:$0xf]
        %v5521 = vld [vmem:[%s5508 + $0x30] sm:$0xf]
        %v5522 = vld [vmem:[%s5508 + $0x34] sm:$0xf]
        %v5523 = vld [vmem:[%s5508 + $0x38] sm:$0xf]
        %v5524 = vld [vmem:[%s5508 + $0x3c] sm:$0xf]
        %v5541 = vunpack.c.l.b16 %v5509
        %v5542 = vunpack.c.l.b16 %v5510
        %v5543 = vunpack.c.l.b16 %v5511
        %v5544 = vunpack.c.l.b16 %v5512
        %v5545 = vunpack.c.l.b16 %v5513
        %v5546 = vunpack.c.l.b16 %v5514
        %v5547 = vunpack.c.l.b16 %v5515
        %v5548 = vunpack.c.l.b16 %v5516
        %v5549 = vunpack.c.l.b16 %v5517
        %v5550 = vunpack.c.l.b16 %v5518
        %v5551 = vunpack.c.l.b16 %v5519
        %v5552 = vunpack.c.l.b16 %v5520
        %v5553 = vunpack.c.l.b16 %v5521
        %v5554 = vunpack.c.l.b16 %v5522
        %v5555 = vunpack.c.l.b16 %v5523
        %v5556 = vunpack.c.l.b16 %v5524
        %v5557 = vpack.c.b16 %v5542, %v5541
        %v5558 = vpack.c.b16 %v5544, %v5543
        %v5559 = vpack.c.b16 %v5546, %v5545
        %v5560 = vpack.c.b16 %v5548, %v5547
        %v5561 = vpack.c.b16 %v5550, %v5549
        %v5562 = vpack.c.b16 %v5552, %v5551
        %v5563 = vpack.c.b16 %v5554, %v5553
        %v5564 = vpack.c.b16 %v5556, %v5555
        %5573 = vmatprep.subr.bf16.mxu0 0
        %5574 = vmatpush1.bf16.msra.mxu0 %v5557
        %5575 = vmatprep.subr.bf16.mxu0 0
        %5576 = vmatpush1.bf16.msra.mxu0 %v5558
        %5577 = vmatprep.subr.bf16.mxu0 0
        %5578 = vmatpush1.bf16.msra.mxu0 %v5559
        %5579 = vmatprep.subr.bf16.mxu0 0
        %5580 = vmatpush1.bf16.msra.mxu0 %v5560
        %5581 = vmatprep.subr.bf16.mxu0 0
        %5582 = vmatpush1.bf16.msra.mxu0 %v5561
        %5583 = vmatprep.subr.bf16.mxu0 0
        %5584 = vmatpush1.bf16.msra.mxu0 %v5562
        %5585 = vmatprep.subr.bf16.mxu0 0
        %5586 = vmatpush1.bf16.msra.mxu0 %v5563
        %5587 = vmatprep.subr.bf16.mxu0 0
        %5588 = vmatpush1.bf16.msra.mxu0 %v5564
        %5589 = vmatprep.subr.bf16.mxu0 0
        %5590 = vmatpush1.bf16.msra.mxu0 0
        %5591 = vmatprep.subr.bf16.mxu0 0
        %5592 = vmatpush1.bf16.msra.mxu0 0
        %5593 = vmatprep.subr.bf16.mxu0 0
        %5594 = vmatpush1.bf16.msra.mxu0 0
        %5595 = vmatprep.subr.bf16.mxu0 0
        %5596 = vmatpush1.bf16.msra.mxu0 0
        %5597 = vmatprep.subr.bf16.mxu0 0
        %5598 = vmatpush1.bf16.msra.mxu0 0
        %5599 = vmatprep.subr.bf16.mxu0 0
        %5600 = vmatpush1.bf16.msra.mxu0 0
        %5601 = vmatprep.subr.bf16.mxu0 0
        %5602 = vmatpush1.bf16.msra.mxu0 0
        %5603 = vmatprep.subr.bf16.mxu0 0
        %5604 = vmatpush1.bf16.msra.mxu0 0
        %5605 = vmatprep.mubr.bf16.mxu0 0
        %5606 = vmatmul.mubr.bf16.gmra.mrb[0].mxu0 %v5078
        %v5607 = vpop.f32.mrb[0].mxu0
        %v5608 = vadd.f32 0.0, %v5607
        %v5609 = vpop.f32.mrb[0].mxu0
        %v5610 = vpop.f32.mrb[0].mxu0
        %v5611 = vpop.f32.mrb[0].mxu0
        %5612 = vdwg.mxu0
        %s5613 = scalar_lea.vmem %s7, 576
        %v5614 = vld [vmem:[%s5613] sm:$0xf]
        %v5615 = vld [vmem:[%s5613 + $0x4] sm:$0xf]
        %v5616 = vld [vmem:[%s5613 + $0x8] sm:$0xf]
        %v5617 = vld [vmem:[%s5613 + $0xc] sm:$0xf]
        %v5618 = vld [vmem:[%s5613 + $0x10] sm:$0xf]
        %v5619 = vld [vmem:[%s5613 + $0x14] sm:$0xf]
        %v5620 = vld [vmem:[%s5613 + $0x18] sm:$0xf]
        %v5621 = vld [vmem:[%s5613 + $0x1c] sm:$0xf]
        %v5622 = vld [vmem:[%s5613 + $0x20] sm:$0xf]
        %v5623 = vld [vmem:[%s5613 + $0x24] sm:$0xf]
        %v5624 = vld [vmem:[%s5613 + $0x28] sm:$0xf]
        %v5625 = vld [vmem:[%s5613 + $0x2c] sm:$0xf]
        %v5626 = vld [vmem:[%s5613 + $0x30] sm:$0xf]
        %v5627 = vld [vmem:[%s5613 + $0x34] sm:$0xf]
        %v5628 = vld [vmem:[%s5613 + $0x38] sm:$0xf]
        %v5629 = vld [vmem:[%s5613 + $0x3c] sm:$0xf]
        %v5646 = vunpack.c.l.b16 %v5614
        %v5647 = vunpack.c.l.b16 %v5615
        %v5648 = vunpack.c.l.b16 %v5616
        %v5649 = vunpack.c.l.b16 %v5617
        %v5650 = vunpack.c.l.b16 %v5618
        %v5651 = vunpack.c.l.b16 %v5619
        %v5652 = vunpack.c.l.b16 %v5620
        %v5653 = vunpack.c.l.b16 %v5621
        %v5654 = vunpack.c.l.b16 %v5622
        %v5655 = vunpack.c.l.b16 %v5623
        %v5656 = vunpack.c.l.b16 %v5624
        %v5657 = vunpack.c.l.b16 %v5625
        %v5658 = vunpack.c.l.b16 %v5626
        %v5659 = vunpack.c.l.b16 %v5627
        %v5660 = vunpack.c.l.b16 %v5628
        %v5661 = vunpack.c.l.b16 %v5629
        %v5662 = vpack.c.b16 %v5647, %v5646
        %v5663 = vpack.c.b16 %v5649, %v5648
        %v5664 = vpack.c.b16 %v5651, %v5650
        %v5665 = vpack.c.b16 %v5653, %v5652
        %v5666 = vpack.c.b16 %v5655, %v5654
        %v5667 = vpack.c.b16 %v5657, %v5656
        %v5668 = vpack.c.b16 %v5659, %v5658
        %v5669 = vpack.c.b16 %v5661, %v5660
        %5678 = vmatprep.subr.bf16.mxu0 0
        %5679 = vmatpush1.bf16.msra.mxu0 %v5662
        %5680 = vmatprep.subr.bf16.mxu0 0
        %5681 = vmatpush1.bf16.msra.mxu0 %v5663
        %5682 = vmatprep.subr.bf16.mxu0 0
        %5683 = vmatpush1.bf16.msra.mxu0 %v5664
        %5684 = vmatprep.subr.bf16.mxu0 0
        %5685 = vmatpush1.bf16.msra.mxu0 %v5665
        %5686 = vmatprep.subr.bf16.mxu0 0
        %5687 = vmatpush1.bf16.msra.mxu0 %v5666
        %5688 = vmatprep.subr.bf16.mxu0 0
        %5689 = vmatpush1.bf16.msra.mxu0 %v5667
        %5690 = vmatprep.subr.bf16.mxu0 0
        %5691 = vmatpush1.bf16.msra.mxu0 %v5668
        %5692 = vmatprep.subr.bf16.mxu0 0
        %5693 = vmatpush1.bf16.msra.mxu0 %v5669
        %5694 = vmatprep.subr.bf16.mxu0 0
        %5695 = vmatpush1.bf16.msra.mxu0 0
        %5696 = vmatprep.subr.bf16.mxu0 0
        %5697 = vmatpush1.bf16.msra.mxu0 0
        %5698 = vmatprep.subr.bf16.mxu0 0
        %5699 = vmatpush1.bf16.msra.mxu0 0
        %5700 = vmatprep.subr.bf16.mxu0 0
        %5701 = vmatpush1.bf16.msra.mxu0 0
        %5702 = vmatprep.subr.bf16.mxu0 0
        %5703 = vmatpush1.bf16.msra.mxu0 0
        %5704 = vmatprep.subr.bf16.mxu0 0
        %5705 = vmatpush1.bf16.msra.mxu0 0
        %5706 = vmatprep.subr.bf16.mxu0 0
        %5707 = vmatpush1.bf16.msra.mxu0 0
        %5708 = vmatprep.subr.bf16.mxu0 0
        %5709 = vmatpush1.bf16.msra.mxu0 0
        %5710 = vmatprep.mubr.bf16.mxu0 0
        %5711 = vmatmul.mubr.bf16.gmra.mrb[0].mxu0 %v5079
        %v5712 = vpop.f32.mrb[0].mxu0
        %v5713 = vadd.f32 0.0, %v5712
        %v5714 = vpop.f32.mrb[0].mxu0
        %v5715 = vpop.f32.mrb[0].mxu0
        %v5716 = vpop.f32.mrb[0].mxu0
        %5717 = vdwg.mxu0
        %s5718 = scalar_lea.vmem %s8, 576
        %v5719 = vld [vmem:[%s5718] sm:$0xf]
        %v5720 = vld [vmem:[%s5718 + $0x4] sm:$0xf]
        %v5721 = vld [vmem:[%s5718 + $0x8] sm:$0xf]
        %v5722 = vld [vmem:[%s5718 + $0xc] sm:$0xf]
        %v5723 = vld [vmem:[%s5718 + $0x10] sm:$0xf]
        %v5724 = vld [vmem:[%s5718 + $0x14] sm:$0xf]
        %v5725 = vld [vmem:[%s5718 + $0x18] sm:$0xf]
        %v5726 = vld [vmem:[%s5718 + $0x1c] sm:$0xf]
        %v5727 = vld [vmem:[%s5718 + $0x20] sm:$0xf]
        %v5728 = vld [vmem:[%s5718 + $0x24] sm:$0xf]
        %v5729 = vld [vmem:[%s5718 + $0x28] sm:$0xf]
        %v5730 = vld [vmem:[%s5718 + $0x2c] sm:$0xf]
        %v5731 = vld [vmem:[%s5718 + $0x30] sm:$0xf]
        %v5732 = vld [vmem:[%s5718 + $0x34] sm:$0xf]
        %v5733 = vld [vmem:[%s5718 + $0x38] sm:$0xf]
        %v5734 = vld [vmem:[%s5718 + $0x3c] sm:$0xf]
        %v5751 = vunpack.c.l.b16 %v5719
        %v5752 = vunpack.c.l.b16 %v5720
        %v5753 = vunpack.c.l.b16 %v5721
        %v5754 = vunpack.c.l.b16 %v5722
        %v5755 = vunpack.c.l.b16 %v5723
        %v5756 = vunpack.c.l.b16 %v5724
        %v5757 = vunpack.c.l.b16 %v5725
        %v5758 = vunpack.c.l.b16 %v5726
        %v5759 = vunpack.c.l.b16 %v5727
        %v5760 = vunpack.c.l.b16 %v5728
        %v5761 = vunpack.c.l.b16 %v5729
        %v5762 = vunpack.c.l.b16 %v5730
        %v5763 = vunpack.c.l.b16 %v5731
        %v5764 = vunpack.c.l.b16 %v5732
        %v5765 = vunpack.c.l.b16 %v5733
        %v5766 = vunpack.c.l.b16 %v5734
        %v5767 = vpack.c.b16 %v5752, %v5751
        %v5768 = vpack.c.b16 %v5754, %v5753
        %v5769 = vpack.c.b16 %v5756, %v5755
        %v5770 = vpack.c.b16 %v5758, %v5757
        %v5771 = vpack.c.b16 %v5760, %v5759
        %v5772 = vpack.c.b16 %v5762, %v5761
        %v5773 = vpack.c.b16 %v5764, %v5763
        %v5774 = vpack.c.b16 %v5766, %v5765
        %5783 = vmatprep.subr.bf16.mxu0 0
        %5784 = vmatpush1.bf16.msra.mxu0 %v5767
        %5785 = vmatprep.subr.bf16.mxu0 0
        %5786 = vmatpush1.bf16.msra.mxu0 %v5768
        %5787 = vmatprep.subr.bf16.mxu0 0
        %5788 = vmatpush1.bf16.msra.mxu0 %v5769
        %5789 = vmatprep.subr.bf16.mxu0 0
        %5790 = vmatpush1.bf16.msra.mxu0 %v5770
        %5791 = vmatprep.subr.bf16.mxu0 0
        %5792 = vmatpush1.bf16.msra.mxu0 %v5771
        %5793 = vmatprep.subr.bf16.mxu0 0
        %5794 = vmatpush1.bf16.msra.mxu0 %v5772
        %5795 = vmatprep.subr.bf16.mxu0 0
        %5796 = vmatpush1.bf16.msra.mxu0 %v5773
        %5797 = vmatprep.subr.bf16.mxu0 0
        %5798 = vmatpush1.bf16.msra.mxu0 %v5774
        %5799 = vmatprep.subr.bf16.mxu0 0
        %5800 = vmatpush1.bf16.msra.mxu0 0
        %5801 = vmatprep.subr.bf16.mxu0 0
        %5802 = vmatpush1.bf16.msra.mxu0 0
        %5803 = vmatprep.subr.bf16.mxu0 0
        %5804 = vmatpush1.bf16.msra.mxu0 0
        %5805 = vmatprep.subr.bf16.mxu0 0
        %5806 = vmatpush1.bf16.msra.mxu0 0
        %5807 = vmatprep.subr.bf16.mxu0 0
        %5808 = vmatpush1.bf16.msra.mxu0 0
        %5809 = vmatprep.subr.bf16.mxu0 0
        %5810 = vmatpush1.bf16.msra.mxu0 0
        %5811 = vmatprep.subr.bf16.mxu0 0
        %5812 = vmatpush1.bf16.msra.mxu0 0
        %5813 = vmatprep.subr.bf16.mxu0 0
        %5814 = vmatpush1.bf16.msra.mxu0 0
        %5815 = vmatprep.mubr.bf16.mxu0 0
        %5816 = vmatmul.mubr.bf16.gmra.mrb[0].mxu0 %v5079
        %v5817 = vpop.f32.mrb[0].mxu0
        %v5818 = vadd.f32 0.0, %v5817
        %v5819 = vpop.f32.mrb[0].mxu0
        %v5820 = vpop.f32.mrb[0].mxu0
        %v5821 = vpop.f32.mrb[0].mxu0
        %5822 = vdwg.mxu0
        %v5823 = vpack.c.bf16 %v5608, %v5608
        %v5824 = vpack.c.bf16 %v5713, %v5713
        %v5826 = vsel %vm924, %v5823, 0
        %v5829 = vsel %vm924, %v5824, 0
        %5831 = vmatprep.subr.bf16.mxu0 0
        %5832 = vmatpush1.bf16.xpose.msra.mxu0 %v5829
        %5833 = vmatprep.subr.bf16.mxu0 0
        %5834 = vmatpush1.bf16.xpose.msra.mxu0 0
        %5835 = vmatprep.subr.bf16.mxu0 0
        %5836 = vmatpush1.bf16.xpose.msra.mxu0 0
        %5837 = vmatprep.subr.bf16.mxu0 0
        %5838 = vmatpush1.bf16.xpose.msra.mxu0 0
        %5839 = vmatprep.subr.bf16.mxu0 0
        %5840 = vmatpush1.bf16.xpose.msra.mxu0 0
        %5841 = vmatprep.subr.bf16.mxu0 0
        %5842 = vmatpush1.bf16.xpose.msra.mxu0 0
        %5843 = vmatprep.subr.bf16.mxu0 0
        %5844 = vmatpush1.bf16.xpose.msra.mxu0 0
        %5845 = vmatprep.subr.bf16.mxu0 0
        %5846 = vmatpush1.bf16.xpose.msra.mxu0 0
        %5847 = vmatprep.subr.bf16.mxu0 0
        %5848 = vmatpush1.bf16.xpose.msra.mxu0 0
        %5849 = vmatprep.subr.bf16.mxu0 0
        %5850 = vmatpush1.bf16.xpose.msra.mxu0 0
        %5851 = vmatprep.subr.bf16.mxu0 0
        %5852 = vmatpush1.bf16.xpose.msra.mxu0 0
        %5853 = vmatprep.subr.bf16.mxu0 0
        %5854 = vmatpush1.bf16.xpose.msra.mxu0 0
        %5855 = vmatprep.subr.bf16.mxu0 0
        %5856 = vmatpush1.bf16.xpose.msra.mxu0 0
        %5857 = vmatprep.subr.bf16.mxu0 0
        %5858 = vmatpush1.bf16.xpose.msra.mxu0 0
        %5859 = vmatprep.subr.bf16.mxu0 0
        %5860 = vmatpush1.bf16.xpose.msra.mxu0 0
        %5861 = vmatprep.subr.bf16.mxu0 0
        %5862 = vmatpush1.bf16.xpose.msra.mxu0 0
        %5863 = vmatprep.mubr.bf16.mxu0 0
        %5864 = vmatmul.mubr.bf16.gmra.mrb[0].mxu0 %v5826
        %v5865 = vpop.f32.mrb[0].mxu0
        %v5866 = vadd.f32 0.0, %v5865
        %v5867 = vpop.f32.mrb[0].mxu0
        %v5868 = vpop.f32.mrb[0].mxu0
        %v5869 = vpop.f32.mrb[0].mxu0
        %5870 = vdwg.mxu0
        %v5871 = vsel %vm979, %v5866, -inf
        %5872 = vmax.xlane.f32.xlu0 %v5871
        %v5873 = vpop.xlane.xlu0 %5872
        %v5874 = vsub.f32 %v5866, %v5873
        %v5875 = vmul.f32 %v5874, 1.442695
        %v5876 = vpow.pop %v5875
        %v5877 = vsel %vm979, %v5876, 0.0
        %5878 = vadd.xlane.f32.xlu0 %v5877
        %v5879 = vpop.xlane.xlu0 %5878
        %v5880 = vrcp.pop %v5879
        %v5881 = vmul.f32 %v5876, %v5880
        %v5882 = vpack.c.bf16 %v5881, %v5881
        %v5883 = vpack.c.bf16 %v5818, %v5818
        %v5885 = vsel %vm979, %v5882, 0
        %v5888 = vsel %vm996, %v5883, 0
        %5890 = vmatprep.subr.bf16.mxu0 0
        %5891 = vmatpush1.bf16.msra.mxu0 %v5888
        %5892 = vmatprep.subr.bf16.mxu0 0
        %5893 = vmatpush1.bf16.msra.mxu0 0
        %5894 = vmatprep.subr.bf16.mxu0 0
        %5895 = vmatpush1.bf16.msra.mxu0 0
        %5896 = vmatprep.subr.bf16.mxu0 0
        %5897 = vmatpush1.bf16.msra.mxu0 0
        %5898 = vmatprep.subr.bf16.mxu0 0
        %5899 = vmatpush1.bf16.msra.mxu0 0
        %5900 = vmatprep.subr.bf16.mxu0 0
        %5901 = vmatpush1.bf16.msra.mxu0 0
        %5902 = vmatprep.subr.bf16.mxu0 0
        %5903 = vmatpush1.bf16.msra.mxu0 0
        %5904 = vmatprep.subr.bf16.mxu0 0
        %5905 = vmatpush1.bf16.msra.mxu0 0
        %5906 = vmatprep.subr.bf16.mxu0 0
        %5907 = vmatpush1.bf16.msra.mxu0 0
        %5908 = vmatprep.subr.bf16.mxu0 0
        %5909 = vmatpush1.bf16.msra.mxu0 0
        %5910 = vmatprep.subr.bf16.mxu0 0
        %5911 = vmatpush1.bf16.msra.mxu0 0
        %5912 = vmatprep.subr.bf16.mxu0 0
        %5913 = vmatpush1.bf16.msra.mxu0 0
        %5914 = vmatprep.subr.bf16.mxu0 0
        %5915 = vmatpush1.bf16.msra.mxu0 0
        %5916 = vmatprep.subr.bf16.mxu0 0
        %5917 = vmatpush1.bf16.msra.mxu0 0
        %5918 = vmatprep.subr.bf16.mxu0 0
        %5919 = vmatpush1.bf16.msra.mxu0 0
        %5920 = vmatprep.subr.bf16.mxu0 0
        %5921 = vmatpush1.bf16.msra.mxu0 0
        %5922 = vmatprep.mubr.bf16.mxu0 0
        %5923 = vmatmul.mubr.bf16.gmra.mrb[0].mxu0 %v5885
        %v5924 = vpop.f32.mrb[0].mxu0
        %v5925 = vadd.f32 0.0, %v5924
        %v5926 = vpop.f32.mrb[0].mxu0
        %v5927 = vpop.f32.mrb[0].mxu0
        %v5928 = vpop.f32.mrb[0].mxu0
        %5929 = vdwg.mxu0
        %v5930 = vpack.c.bf16 %v5925, %v5925
        %s5931 = scalar_lea.vmem %s9, 144
        %v5932 = vld [vmem:[%s5931] sm:$0xf]
        %v5933 = vld [vmem:[%s5931 + $0x4] sm:$0xf]
        %v5934 = vld [vmem:[%s5931 + $0x8] sm:$0xf]
        %v5935 = vld [vmem:[%s5931 + $0xc] sm:$0xf]
        %v5940 = vunpack.c.l.b16 %v5932
        %v5941 = vunpack.c.l.b16 %v5933
        %v5942 = vunpack.c.l.b16 %v5934
        %v5943 = vunpack.c.l.b16 %v5935
        %v5944 = vpack.c.b16 %v5941, %v5940
        %v5945 = vpack.c.b16 %v5943, %v5942
        %v5949 = vsel %vm924, %v5930, 0
        %5951 = vmatprep.subr.bf16.mxu0 0
        %5952 = vmatpush1.bf16.msra.mxu0 %v5944
        %5953 = vmatprep.subr.bf16.mxu0 0
        %5954 = vmatpush1.bf16.msra.mxu0 %v5945
        %5955 = vmatprep.subr.bf16.mxu0 0
        %5956 = vmatpush1.bf16.msra.mxu0 0
        %5957 = vmatprep.subr.bf16.mxu0 0
        %5958 = vmatpush1.bf16.msra.mxu0 0
        %5959 = vmatprep.subr.bf16.mxu0 0
        %5960 = vmatpush1.bf16.msra.mxu0 0
        %5961 = vmatprep.subr.bf16.mxu0 0
        %5962 = vmatpush1.bf16.msra.mxu0 0
        %5963 = vmatprep.subr.bf16.mxu0 0
        %5964 = vmatpush1.bf16.msra.mxu0 0
        %5965 = vmatprep.subr.bf16.mxu0 0
        %5966 = vmatpush1.bf16.msra.mxu0 0
        %5967 = vmatprep.subr.bf16.mxu0 0
        %5968 = vmatpush1.bf16.msra.mxu0 0
        %5969 = vmatprep.subr.bf16.mxu0 0
        %5970 = vmatpush1.bf16.msra.mxu0 0
        %5971 = vmatprep.subr.bf16.mxu0 0
        %5972 = vmatpush1.bf16.msra.mxu0 0
        %5973 = vmatprep.subr.bf16.mxu0 0
        %5974 = vmatpush1.bf16.msra.mxu0 0
        %5975 = vmatprep.subr.bf16.mxu0 0
        %5976 = vmatpush1.bf16.msra.mxu0 0
        %5977 = vmatprep.subr.bf16.mxu0 0
        %5978 = vmatpush1.bf16.msra.mxu0 0
        %5979 = vmatprep.subr.bf16.mxu0 0
        %5980 = vmatpush1.bf16.msra.mxu0 0
        %5981 = vmatprep.subr.bf16.mxu0 0
        %5982 = vmatpush1.bf16.msra.mxu0 0
        %5983 = vmatprep.mubr.bf16.mxu0 0
        %5984 = vmatmul.mubr.bf16.gmra.mrb[0].mxu0 %v5949
        %v5985 = vpop.f32.mrb[0].mxu0
        %v5986 = vadd.f32 0.0, %v5985
        %v5987 = vpop.f32.mrb[0].mxu0
        %v5988 = vpop.f32.mrb[0].mxu0
        %v5989 = vpop.f32.mrb[0].mxu0
        %5990 = vdwg.mxu0
        %v5995 = vunpack.c.l.b16 %v5504
        %v5996 = vunpack.c.l.b16 %v5505
        %v5997 = vunpack.c.l.b16 %v5506
        %v5998 = vunpack.c.l.b16 %v5507
        %v5999 = vpack.c.b16 %v5996, %v5995
        %v6000 = vpack.c.b16 %v5998, %v5997
        %v6004 = vsel %vm924, %v5502, 0
        %6006 = vmatprep.subr.bf16.mxu0 0
        %6007 = vmatpush1.bf16.msra.mxu0 %v5999
        %6008 = vmatprep.subr.bf16.mxu0 0
        %6009 = vmatpush1.bf16.msra.mxu0 %v6000
        %6010 = vmatprep.subr.bf16.mxu0 0
        %6011 = vmatpush1.bf16.msra.mxu0 0
        %6012 = vmatprep.subr.bf16.mxu0 0
        %6013 = vmatpush1.bf16.msra.mxu0 0
        %6014 = vmatprep.subr.bf16.mxu0 0
        %6015 = vmatpush1.bf16.msra.mxu0 0
        %6016 = vmatprep.subr.bf16.mxu0 0
        %6017 = vmatpush1.bf16.msra.mxu0 0
        %6018 = vmatprep.subr.bf16.mxu0 0
        %6019 = vmatpush1.bf16.msra.mxu0 0
        %6020 = vmatprep.subr.bf16.mxu0 0
        %6021 = vmatpush1.bf16.msra.mxu0 0
        %6022 = vmatprep.subr.bf16.mxu0 0
        %6023 = vmatpush1.bf16.msra.mxu0 0
        %6024 = vmatprep.subr.bf16.mxu0 0
        %6025 = vmatpush1.bf16.msra.mxu0 0
        %6026 = vmatprep.subr.bf16.mxu0 0
        %6027 = vmatpush1.bf16.msra.mxu0 0
        %6028 = vmatprep.subr.bf16.mxu0 0
        %6029 = vmatpush1.bf16.msra.mxu0 0
        %6030 = vmatprep.subr.bf16.mxu0 0
        %6031 = vmatpush1.bf16.msra.mxu0 0
        %6032 = vmatprep.subr.bf16.mxu0 0
        %6033 = vmatpush1.bf16.msra.mxu0 0
        %6034 = vmatprep.subr.bf16.mxu0 0
        %6035 = vmatpush1.bf16.msra.mxu0 0
        %6036 = vmatprep.subr.bf16.mxu0 0
        %6037 = vmatpush1.bf16.msra.mxu0 0
        %6038 = vmatprep.mubr.bf16.mxu0 0
        %6039 = vmatmul.mubr.bf16.gmra.mrb[0].mxu0 %v6004
        %v6040 = vpop.f32.mrb[0].mxu0
        %v6041 = vadd.f32 %v5986, %v6040
        %v6042 = vpop.f32.mrb[0].mxu0
        %v6043 = vpop.f32.mrb[0].mxu0
        %v6044 = vpop.f32.mrb[0].mxu0
        %6045 = vdwg.mxu0
        %s6046 = scalar_lea.vmem %s6, 640
        %v6047 = vld [vmem:[%s6046] sm:$0xf]
        %v6048 = vld [vmem:[%s6046 + $0x4] sm:$0xf]
        %v6049 = vld [vmem:[%s6046 + $0x8] sm:$0xf]
        %v6050 = vld [vmem:[%s6046 + $0xc] sm:$0xf]
        %v6051 = vld [vmem:[%s6046 + $0x10] sm:$0xf]
        %v6052 = vld [vmem:[%s6046 + $0x14] sm:$0xf]
        %v6053 = vld [vmem:[%s6046 + $0x18] sm:$0xf]
        %v6054 = vld [vmem:[%s6046 + $0x1c] sm:$0xf]
        %v6055 = vld [vmem:[%s6046 + $0x20] sm:$0xf]
        %v6056 = vld [vmem:[%s6046 + $0x24] sm:$0xf]
        %v6057 = vld [vmem:[%s6046 + $0x28] sm:$0xf]
        %v6058 = vld [vmem:[%s6046 + $0x2c] sm:$0xf]
        %v6059 = vld [vmem:[%s6046 + $0x30] sm:$0xf]
        %v6060 = vld [vmem:[%s6046 + $0x34] sm:$0xf]
        %v6061 = vld [vmem:[%s6046 + $0x38] sm:$0xf]
        %v6062 = vld [vmem:[%s6046 + $0x3c] sm:$0xf]
        %v6079 = vunpack.c.l.b16 %v6047
        %v6080 = vunpack.c.l.b16 %v6048
        %v6081 = vunpack.c.l.b16 %v6049
        %v6082 = vunpack.c.l.b16 %v6050
        %v6083 = vunpack.c.l.b16 %v6051
        %v6084 = vunpack.c.l.b16 %v6052
        %v6085 = vunpack.c.l.b16 %v6053
        %v6086 = vunpack.c.l.b16 %v6054
        %v6087 = vunpack.c.l.b16 %v6055
        %v6088 = vunpack.c.l.b16 %v6056
        %v6089 = vunpack.c.l.b16 %v6057
        %v6090 = vunpack.c.l.b16 %v6058
        %v6091 = vunpack.c.l.b16 %v6059
        %v6092 = vunpack.c.l.b16 %v6060
        %v6093 = vunpack.c.l.b16 %v6061
        %v6094 = vunpack.c.l.b16 %v6062
        %v6095 = vpack.c.b16 %v6080, %v6079
        %v6096 = vpack.c.b16 %v6082, %v6081
        %v6097 = vpack.c.b16 %v6084, %v6083
        %v6098 = vpack.c.b16 %v6086, %v6085
        %v6099 = vpack.c.b16 %v6088, %v6087
        %v6100 = vpack.c.b16 %v6090, %v6089
        %v6101 = vpack.c.b16 %v6092, %v6091
        %v6102 = vpack.c.b16 %v6094, %v6093
        %6111 = vmatprep.subr.bf16.mxu0 0
        %6112 = vmatpush1.bf16.msra.mxu0 %v6095
        %6113 = vmatprep.subr.bf16.mxu0 0
        %6114 = vmatpush1.bf16.msra.mxu0 %v6096
        %6115 = vmatprep.subr.bf16.mxu0 0
        %6116 = vmatpush1.bf16.msra.mxu0 %v6097
        %6117 = vmatprep.subr.bf16.mxu0 0
        %6118 = vmatpush1.bf16.msra.mxu0 %v6098
        %6119 = vmatprep.subr.bf16.mxu0 0
        %6120 = vmatpush1.bf16.msra.mxu0 %v6099
        %6121 = vmatprep.subr.bf16.mxu0 0
        %6122 = vmatpush1.bf16.msra.mxu0 %v6100
        %6123 = vmatprep.subr.bf16.mxu0 0
        %6124 = vmatpush1.bf16.msra.mxu0 %v6101
        %6125 = vmatprep.subr.bf16.mxu0 0
        %6126 = vmatpush1.bf16.msra.mxu0 %v6102
        %6127 = vmatprep.subr.bf16.mxu0 0
        %6128 = vmatpush1.bf16.msra.mxu0 0
        %6129 = vmatprep.subr.bf16.mxu0 0
        %6130 = vmatpush1.bf16.msra.mxu0 0
        %6131 = vmatprep.subr.bf16.mxu0 0
        %6132 = vmatpush1.bf16.msra.mxu0 0
        %6133 = vmatprep.subr.bf16.mxu0 0
        %6134 = vmatpush1.bf16.msra.mxu0 0
        %6135 = vmatprep.subr.bf16.mxu0 0
        %6136 = vmatpush1.bf16.msra.mxu0 0
        %6137 = vmatprep.subr.bf16.mxu0 0
        %6138 = vmatpush1.bf16.msra.mxu0 0
        %6139 = vmatprep.subr.bf16.mxu0 0
        %6140 = vmatpush1.bf16.msra.mxu0 0
        %6141 = vmatprep.subr.bf16.mxu0 0
        %6142 = vmatpush1.bf16.msra.mxu0 0
        %6143 = vmatprep.mubr.bf16.mxu0 0
        %6144 = vmatmul.mubr.bf16.gmra.mrb[0].mxu0 %v5078
        %v6145 = vpop.f32.mrb[0].mxu0
        %v6146 = vadd.f32 0.0, %v6145
        %v6147 = vpop.f32.mrb[0].mxu0
        %v6148 = vpop.f32.mrb[0].mxu0
        %v6149 = vpop.f32.mrb[0].mxu0
        %6150 = vdwg.mxu0
        %s6151 = scalar_lea.vmem %s7, 640
        %v6152 = vld [vmem:[%s6151] sm:$0xf]
        %v6153 = vld [vmem:[%s6151 + $0x4] sm:$0xf]
        %v6154 = vld [vmem:[%s6151 + $0x8] sm:$0xf]
        %v6155 = vld [vmem:[%s6151 + $0xc] sm:$0xf]
        %v6156 = vld [vmem:[%s6151 + $0x10] sm:$0xf]
        %v6157 = vld [vmem:[%s6151 + $0x14] sm:$0xf]
        %v6158 = vld [vmem:[%s6151 + $0x18] sm:$0xf]
        %v6159 = vld [vmem:[%s6151 + $0x1c] sm:$0xf]
        %v6160 = vld [vmem:[%s6151 + $0x20] sm:$0xf]
        %v6161 = vld [vmem:[%s6151 + $0x24] sm:$0xf]
        %v6162 = vld [vmem:[%s6151 + $0x28] sm:$0xf]
        %v6163 = vld [vmem:[%s6151 + $0x2c] sm:$0xf]
        %v6164 = vld [vmem:[%s6151 + $0x30] sm:$0xf]
        %v6165 = vld [vmem:[%s6151 + $0x34] sm:$0xf]
        %v6166 = vld [vmem:[%s6151 + $0x38] sm:$0xf]
        %v6167 = vld [vmem:[%s6151 + $0x3c] sm:$0xf]
        %v6184 = vunpack.c.l.b16 %v6152
        %v6185 = vunpack.c.l.b16 %v6153
        %v6186 = vunpack.c.l.b16 %v6154
        %v6187 = vunpack.c.l.b16 %v6155
        %v6188 = vunpack.c.l.b16 %v6156
        %v6189 = vunpack.c.l.b16 %v6157
        %v6190 = vunpack.c.l.b16 %v6158
        %v6191 = vunpack.c.l.b16 %v6159
        %v6192 = vunpack.c.l.b16 %v6160
        %v6193 = vunpack.c.l.b16 %v6161
        %v6194 = vunpack.c.l.b16 %v6162
        %v6195 = vunpack.c.l.b16 %v6163
        %v6196 = vunpack.c.l.b16 %v6164
        %v6197 = vunpack.c.l.b16 %v6165
        %v6198 = vunpack.c.l.b16 %v6166
        %v6199 = vunpack.c.l.b16 %v6167
        %v6200 = vpack.c.b16 %v6185, %v6184
        %v6201 = vpack.c.b16 %v6187, %v6186
        %v6202 = vpack.c.b16 %v6189, %v6188
        %v6203 = vpack.c.b16 %v6191, %v6190
        %v6204 = vpack.c.b16 %v6193, %v6192
        %v6205 = vpack.c.b16 %v6195, %v6194
        %v6206 = vpack.c.b16 %v6197, %v6196
        %v6207 = vpack.c.b16 %v6199, %v6198
        %6216 = vmatprep.subr.bf16.mxu0 0
        %6217 = vmatpush1.bf16.msra.mxu0 %v6200
        %6218 = vmatprep.subr.bf16.mxu0 0
        %6219 = vmatpush1.bf16.msra.mxu0 %v6201
        %6220 = vmatprep.subr.bf16.mxu0 0
        %6221 = vmatpush1.bf16.msra.mxu0 %v6202
        %6222 = vmatprep.subr.bf16.mxu0 0
        %6223 = vmatpush1.bf16.msra.mxu0 %v6203
        %6224 = vmatprep.subr.bf16.mxu0 0
        %6225 = vmatpush1.bf16.msra.mxu0 %v6204
        %6226 = vmatprep.subr.bf16.mxu0 0
        %6227 = vmatpush1.bf16.msra.mxu0 %v6205
        %6228 = vmatprep.subr.bf16.mxu0 0
        %6229 = vmatpush1.bf16.msra.mxu0 %v6206
        %6230 = vmatprep.subr.bf16.mxu0 0
        %6231 = vmatpush1.bf16.msra.mxu0 %v6207
        %6232 = vmatprep.subr.bf16.mxu0 0
        %6233 = vmatpush1.bf16.msra.mxu0 0
        %6234 = vmatprep.subr.bf16.mxu0 0
        %6235 = vmatpush1.bf16.msra.mxu0 0
        %6236 = vmatprep.subr.bf16.mxu0 0
        %6237 = vmatpush1.bf16.msra.mxu0 0
        %6238 = vmatprep.subr.bf16.mxu0 0
        %6239 = vmatpush1.bf16.msra.mxu0 0
        %6240 = vmatprep.subr.bf16.mxu0 0
        %6241 = vmatpush1.bf16.msra.mxu0 0
        %6242 = vmatprep.subr.bf16.mxu0 0
        %6243 = vmatpush1.bf16.msra.mxu0 0
        %6244 = vmatprep.subr.bf16.mxu0 0
        %6245 = vmatpush1.bf16.msra.mxu0 0
        %6246 = vmatprep.subr.bf16.mxu0 0
        %6247 = vmatpush1.bf16.msra.mxu0 0
        %6248 = vmatprep.mubr.bf16.mxu0 0
        %6249 = vmatmul.mubr.bf16.gmra.mrb[0].mxu0 %v5079
        %v6250 = vpop.f32.mrb[0].mxu0
        %v6251 = vadd.f32 0.0, %v6250
        %v6252 = vpop.f32.mrb[0].mxu0
        %v6253 = vpop.f32.mrb[0].mxu0
        %v6254 = vpop.f32.mrb[0].mxu0
        %6255 = vdwg.mxu0
        %s6256 = scalar_lea.vmem %s8, 640
        %v6257 = vld [vmem:[%s6256] sm:$0xf]
        %v6258 = vld [vmem:[%s6256 + $0x4] sm:$0xf]
        %v6259 = vld [vmem:[%s6256 + $0x8] sm:$0xf]
        %v6260 = vld [vmem:[%s6256 + $0xc] sm:$0xf]
        %v6261 = vld [vmem:[%s6256 + $0x10] sm:$0xf]
        %v6262 = vld [vmem:[%s6256 + $0x14] sm:$0xf]
        %v6263 = vld [vmem:[%s6256 + $0x18] sm:$0xf]
        %v6264 = vld [vmem:[%s6256 + $0x1c] sm:$0xf]
        %v6265 = vld [vmem:[%s6256 + $0x20] sm:$0xf]
        %v6266 = vld [vmem:[%s6256 + $0x24] sm:$0xf]
        %v6267 = vld [vmem:[%s6256 + $0x28] sm:$0xf]
        %v6268 = vld [vmem:[%s6256 + $0x2c] sm:$0xf]
        %v6269 = vld [vmem:[%s6256 + $0x30] sm:$0xf]
        %v6270 = vld [vmem:[%s6256 + $0x34] sm:$0xf]
        %v6271 = vld [vmem:[%s6256 + $0x38] sm:$0xf]
        %v6272 = vld [vmem:[%s6256 + $0x3c] sm:$0xf]
        %v6289 = vunpack.c.l.b16 %v6257
        %v6290 = vunpack.c.l.b16 %v6258
        %v6291 = vunpack.c.l.b16 %v6259
        %v6292 = vunpack.c.l.b16 %v6260
        %v6293 = vunpack.c.l.b16 %v6261
        %v6294 = vunpack.c.l.b16 %v6262
        %v6295 = vunpack.c.l.b16 %v6263
        %v6296 = vunpack.c.l.b16 %v6264
        %v6297 = vunpack.c.l.b16 %v6265
        %v6298 = vunpack.c.l.b16 %v6266
        %v6299 = vunpack.c.l.b16 %v6267
        %v6300 = vunpack.c.l.b16 %v6268
        %v6301 = vunpack.c.l.b16 %v6269
        %v6302 = vunpack.c.l.b16 %v6270
        %v6303 = vunpack.c.l.b16 %v6271
        %v6304 = vunpack.c.l.b16 %v6272
        %v6305 = vpack.c.b16 %v6290, %v6289
        %v6306 = vpack.c.b16 %v6292, %v6291
        %v6307 = vpack.c.b16 %v6294, %v6293
        %v6308 = vpack.c.b16 %v6296, %v6295
        %v6309 = vpack.c.b16 %v6298, %v6297
        %v6310 = vpack.c.b16 %v6300, %v6299
        %v6311 = vpack.c.b16 %v6302, %v6301
        %v6312 = vpack.c.b16 %v6304, %v6303
        %6321 = vmatprep.subr.bf16.mxu0 0
        %6322 = vmatpush1.bf16.msra.mxu0 %v6305
        %6323 = vmatprep.subr.bf16.mxu0 0
        %6324 = vmatpush1.bf16.msra.mxu0 %v6306
        %6325 = vmatprep.subr.bf16.mxu0 0
        %6326 = vmatpush1.bf16.msra.mxu0 %v6307
        %6327 = vmatprep.subr.bf16.mxu0 0
        %6328 = vmatpush1.bf16.msra.mxu0 %v6308
        %6329 = vmatprep.subr.bf16.mxu0 0
        %6330 = vmatpush1.bf16.msra.mxu0 %v6309
        %6331 = vmatprep.subr.bf16.mxu0 0
        %6332 = vmatpush1.bf16.msra.mxu0 %v6310
        %6333 = vmatprep.subr.bf16.mxu0 0
        %6334 = vmatpush1.bf16.msra.mxu0 %v6311
        %6335 = vmatprep.subr.bf16.mxu0 0
        %6336 = vmatpush1.bf16.msra.mxu0 %v6312
        %6337 = vmatprep.subr.bf16.mxu0 0
        %6338 = vmatpush1.bf16.msra.mxu0 0
        %6339 = vmatprep.subr.bf16.mxu0 0
        %6340 = vmatpush1.bf16.msra.mxu0 0
        %6341 = vmatprep.subr.bf16.mxu0 0
        %6342 = vmatpush1.bf16.msra.mxu0 0
        %6343 = vmatprep.subr.bf16.mxu0 0
        %6344 = vmatpush1.bf16.msra.mxu0 0
        %6345 = vmatprep.subr.bf16.mxu0 0
        %6346 = vmatpush1.bf16.msra.mxu0 0
        %6347 = vmatprep.subr.bf16.mxu0 0
        %6348 = vmatpush1.bf16.msra.mxu0 0
        %6349 = vmatprep.subr.bf16.mxu0 0
        %6350 = vmatpush1.bf16.msra.mxu0 0
        %6351 = vmatprep.subr.bf16.mxu0 0
        %6352 = vmatpush1.bf16.msra.mxu0 0
        %6353 = vmatprep.mubr.bf16.mxu0 0
        %6354 = vmatmul.mubr.bf16.gmra.mrb[0].mxu0 %v5079
        %v6355 = vpop.f32.mrb[0].mxu0
        %v6356 = vadd.f32 0.0, %v6355
        %v6357 = vpop.f32.mrb[0].mxu0
        %v6358 = vpop.f32.mrb[0].mxu0
        %v6359 = vpop.f32.mrb[0].mxu0
        %6360 = vdwg.mxu0
        %v6361 = vpack.c.bf16 %v6146, %v6146
        %v6362 = vpack.c.bf16 %v6251, %v6251
        %v6364 = vsel %vm924, %v6361, 0
        %v6367 = vsel %vm924, %v6362, 0
        %6369 = vmatprep.subr.bf16.mxu0 0
        %6370 = vmatpush1.bf16.xpose.msra.mxu0 %v6367
        %6371 = vmatprep.subr.bf16.mxu0 0
        %6372 = vmatpush1.bf16.xpose.msra.mxu0 0
        %6373 = vmatprep.subr.bf16.mxu0 0
        %6374 = vmatpush1.bf16.xpose.msra.mxu0 0
        %6375 = vmatprep.subr.bf16.mxu0 0
        %6376 = vmatpush1.bf16.xpose.msra.mxu0 0
        %6377 = vmatprep.subr.bf16.mxu0 0
        %6378 = vmatpush1.bf16.xpose.msra.mxu0 0
        %6379 = vmatprep.subr.bf16.mxu0 0
        %6380 = vmatpush1.bf16.xpose.msra.mxu0 0
        %6381 = vmatprep.subr.bf16.mxu0 0
        %6382 = vmatpush1.bf16.xpose.msra.mxu0 0
        %6383 = vmatprep.subr.bf16.mxu0 0
        %6384 = vmatpush1.bf16.xpose.msra.mxu0 0
        %6385 = vmatprep.subr.bf16.mxu0 0
        %6386 = vmatpush1.bf16.xpose.msra.mxu0 0
        %6387 = vmatprep.subr.bf16.mxu0 0
        %6388 = vmatpush1.bf16.xpose.msra.mxu0 0
        %6389 = vmatprep.subr.bf16.mxu0 0
        %6390 = vmatpush1.bf16.xpose.msra.mxu0 0
        %6391 = vmatprep.subr.bf16.mxu0 0
        %6392 = vmatpush1.bf16.xpose.msra.mxu0 0
        %6393 = vmatprep.subr.bf16.mxu0 0
        %6394 = vmatpush1.bf16.xpose.msra.mxu0 0
        %6395 = vmatprep.subr.bf16.mxu0 0
        %6396 = vmatpush1.bf16.xpose.msra.mxu0 0
        %6397 = vmatprep.subr.bf16.mxu0 0
        %6398 = vmatpush1.bf16.xpose.msra.mxu0 0
        %6399 = vmatprep.subr.bf16.mxu0 0
        %6400 = vmatpush1.bf16.xpose.msra.mxu0 0
        %6401 = vmatprep.mubr.bf16.mxu0 0
        %6402 = vmatmul.mubr.bf16.gmra.mrb[0].mxu0 %v6364
        %v6403 = vpop.f32.mrb[0].mxu0
        %v6404 = vadd.f32 0.0, %v6403
        %v6405 = vpop.f32.mrb[0].mxu0
        %v6406 = vpop.f32.mrb[0].mxu0
        %v6407 = vpop.f32.mrb[0].mxu0
        %6408 = vdwg.mxu0
        %v6409 = vsel %vm979, %v6404, -inf
        %6410 = vmax.xlane.f32.xlu0 %v6409
        %v6411 = vpop.xlane.xlu0 %6410
        %v6412 = vsub.f32 %v6404, %v6411
        %v6413 = vmul.f32 %v6412, 1.442695
        %v6414 = vpow.pop %v6413
        %v6415 = vsel %vm979, %v6414, 0.0
        %6416 = vadd.xlane.f32.xlu0 %v6415
        %v6417 = vpop.xlane.xlu0 %6416
        %v6418 = vrcp.pop %v6417
        %v6419 = vmul.f32 %v6414, %v6418
        %v6420 = vpack.c.bf16 %v6419, %v6419
        %v6421 = vpack.c.bf16 %v6356, %v6356
        %v6423 = vsel %vm979, %v6420, 0
        %v6426 = vsel %vm996, %v6421, 0
        %6428 = vmatprep.subr.bf16.mxu0 0
        %6429 = vmatpush1.bf16.msra.mxu0 %v6426
        %6430 = vmatprep.subr.bf16.mxu0 0
        %6431 = vmatpush1.bf16.msra.mxu0 0
        %6432 = vmatprep.subr.bf16.mxu0 0
        %6433 = vmatpush1.bf16.msra.mxu0 0
        %6434 = vmatprep.subr.bf16.mxu0 0
        %6435 = vmatpush1.bf16.msra.mxu0 0
        %6436 = vmatprep.subr.bf16.mxu0 0
        %6437 = vmatpush1.bf16.msra.mxu0 0
        %6438 = vmatprep.subr.bf16.mxu0 0
        %6439 = vmatpush1.bf16.msra.mxu0 0
        %6440 = vmatprep.subr.bf16.mxu0 0
        %6441 = vmatpush1.bf16.msra.mxu0 0
        %6442 = vmatprep.subr.bf16.mxu0 0
        %6443 = vmatpush1.bf16.msra.mxu0 0
        %6444 = vmatprep.subr.bf16.mxu0 0
        %6445 = vmatpush1.bf16.msra.mxu0 0
        %6446 = vmatprep.subr.bf16.mxu0 0
        %6447 = vmatpush1.bf16.msra.mxu0 0
        %6448 = vmatprep.subr.bf16.mxu0 0
        %6449 = vmatpush1.bf16.msra.mxu0 0
        %6450 = vmatprep.subr.bf16.mxu0 0
        %6451 = vmatpush1.bf16.msra.mxu0 0
        %6452 = vmatprep.subr.bf16.mxu0 0
        %6453 = vmatpush1.bf16.msra.mxu0 0
        %6454 = vmatprep.subr.bf16.mxu0 0
        %6455 = vmatpush1.bf16.msra.mxu0 0
        %6456 = vmatprep.subr.bf16.mxu0 0
        %6457 = vmatpush1.bf16.msra.mxu0 0
        %6458 = vmatprep.subr.bf16.mxu0 0
        %6459 = vmatpush1.bf16.msra.mxu0 0
        %6460 = vmatprep.mubr.bf16.mxu0 0
        %6461 = vmatmul.mubr.bf16.gmra.mrb[0].mxu0 %v6423
        %v6462 = vpop.f32.mrb[0].mxu0
        %v6463 = vadd.f32 0.0, %v6462
        %v6464 = vpop.f32.mrb[0].mxu0
        %v6465 = vpop.f32.mrb[0].mxu0
        %v6466 = vpop.f32.mrb[0].mxu0
        %6467 = vdwg.mxu0
        %v6468 = vpack.c.bf16 %v6463, %v6463
        %s6469 = scalar_lea.vmem %s9, 160
        %v6470 = vld [vmem:[%s6469] sm:$0xf]
        %v6471 = vld [vmem:[%s6469 + $0x4] sm:$0xf]
        %v6472 = vld [vmem:[%s6469 + $0x8] sm:$0xf]
        %v6473 = vld [vmem:[%s6469 + $0xc] sm:$0xf]
        %v6478 = vunpack.c.l.b16 %v6470
        %v6479 = vunpack.c.l.b16 %v6471
        %v6480 = vunpack.c.l.b16 %v6472
        %v6481 = vunpack.c.l.b16 %v6473
        %v6482 = vpack.c.b16 %v6479, %v6478
        %v6483 = vpack.c.b16 %v6481, %v6480
        %v6487 = vsel %vm924, %v6468, 0
        %6489 = vmatprep.subr.bf16.mxu0 0
        %6490 = vmatpush1.bf16.msra.mxu0 %v6482
        %6491 = vmatprep.subr.bf16.mxu0 0
        %6492 = vmatpush1.bf16.msra.mxu0 %v6483
        %6493 = vmatprep.subr.bf16.mxu0 0
        %6494 = vmatpush1.bf16.msra.mxu0 0
        %6495 = vmatprep.subr.bf16.mxu0 0
        %6496 = vmatpush1.bf16.msra.mxu0 0
        %6497 = vmatprep.subr.bf16.mxu0 0
        %6498 = vmatpush1.bf16.msra.mxu0 0
        %6499 = vmatprep.subr.bf16.mxu0 0
        %6500 = vmatpush1.bf16.msra.mxu0 0
        %6501 = vmatprep.subr.bf16.mxu0 0
        %6502 = vmatpush1.bf16.msra.mxu0 0
        %6503 = vmatprep.subr.bf16.mxu0 0
        %6504 = vmatpush1.bf16.msra.mxu0 0
        %6505 = vmatprep.subr.bf16.mxu0 0
        %6506 = vmatpush1.bf16.msra.mxu0 0
        %6507 = vmatprep.subr.bf16.mxu0 0
        %6508 = vmatpush1.bf16.msra.mxu0 0
        %6509 = vmatprep.subr.bf16.mxu0 0
        %6510 = vmatpush1.bf16.msra.mxu0 0
        %6511 = vmatprep.subr.bf16.mxu0 0
        %6512 = vmatpush1.bf16.msra.mxu0 0
        %6513 = vmatprep.subr.bf16.mxu0 0
        %6514 = vmatpush1.bf16.msra.mxu0 0
        %6515 = vmatprep.subr.bf16.mxu0 0
        %6516 = vmatpush1.bf16.msra.mxu0 0
        %6517 = vmatprep.subr.bf16.mxu0 0
        %6518 = vmatpush1.bf16.msra.mxu0 0
        %6519 = vmatprep.subr.bf16.mxu0 0
        %6520 = vmatpush1.bf16.msra.mxu0 0
        %6521 = vmatprep.mubr.bf16.mxu0 0
        %6522 = vmatmul.mubr.bf16.gmra.mrb[0].mxu0 %v6487
        %v6523 = vpop.f32.mrb[0].mxu0
        %v6524 = vadd.f32 0.0, %v6523
        %v6525 = vpop.f32.mrb[0].mxu0
        %v6526 = vpop.f32.mrb[0].mxu0
        %v6527 = vpop.f32.mrb[0].mxu0
        %6528 = vdwg.mxu0
        %v6529 = vadd.f32 %v6041, %v6524
        %s6530 = scalar_lea.vmem %s6, 704
        %v6531 = vld [vmem:[%s6530] sm:$0xf]
        %v6532 = vld [vmem:[%s6530 + $0x4] sm:$0xf]
        %v6533 = vld [vmem:[%s6530 + $0x8] sm:$0xf]
        %v6534 = vld [vmem:[%s6530 + $0xc] sm:$0xf]
        %v6535 = vld [vmem:[%s6530 + $0x10] sm:$0xf]
        %v6536 = vld [vmem:[%s6530 + $0x14] sm:$0xf]
        %v6537 = vld [vmem:[%s6530 + $0x18] sm:$0xf]
        %v6538 = vld [vmem:[%s6530 + $0x1c] sm:$0xf]
        %v6539 = vld [vmem:[%s6530 + $0x20] sm:$0xf]
        %v6540 = vld [vmem:[%s6530 + $0x24] sm:$0xf]
        %v6541 = vld [vmem:[%s6530 + $0x28] sm:$0xf]
        %v6542 = vld [vmem:[%s6530 + $0x2c] sm:$0xf]
        %v6543 = vld [vmem:[%s6530 + $0x30] sm:$0xf]
        %v6544 = vld [vmem:[%s6530 + $0x34] sm:$0xf]
        %v6545 = vld [vmem:[%s6530 + $0x38] sm:$0xf]
        %v6546 = vld [vmem:[%s6530 + $0x3c] sm:$0xf]
        %v6563 = vunpack.c.l.b16 %v6531
        %v6564 = vunpack.c.l.b16 %v6532
        %v6565 = vunpack.c.l.b16 %v6533
        %v6566 = vunpack.c.l.b16 %v6534
        %v6567 = vunpack.c.l.b16 %v6535
        %v6568 = vunpack.c.l.b16 %v6536
        %v6569 = vunpack.c.l.b16 %v6537
        %v6570 = vunpack.c.l.b16 %v6538
        %v6571 = vunpack.c.l.b16 %v6539
        %v6572 = vunpack.c.l.b16 %v6540
        %v6573 = vunpack.c.l.b16 %v6541
        %v6574 = vunpack.c.l.b16 %v6542
        %v6575 = vunpack.c.l.b16 %v6543
        %v6576 = vunpack.c.l.b16 %v6544
        %v6577 = vunpack.c.l.b16 %v6545
        %v6578 = vunpack.c.l.b16 %v6546
        %v6579 = vpack.c.b16 %v6564, %v6563
        %v6580 = vpack.c.b16 %v6566, %v6565
        %v6581 = vpack.c.b16 %v6568, %v6567
        %v6582 = vpack.c.b16 %v6570, %v6569
        %v6583 = vpack.c.b16 %v6572, %v6571
        %v6584 = vpack.c.b16 %v6574, %v6573
        %v6585 = vpack.c.b16 %v6576, %v6575
        %v6586 = vpack.c.b16 %v6578, %v6577
        %6595 = vmatprep.subr.bf16.mxu0 0
        %6596 = vmatpush1.bf16.msra.mxu0 %v6579
        %6597 = vmatprep.subr.bf16.mxu0 0
        %6598 = vmatpush1.bf16.msra.mxu0 %v6580
        %6599 = vmatprep.subr.bf16.mxu0 0
        %6600 = vmatpush1.bf16.msra.mxu0 %v6581
        %6601 = vmatprep.subr.bf16.mxu0 0
        %6602 = vmatpush1.bf16.msra.mxu0 %v6582
        %6603 = vmatprep.subr.bf16.mxu0 0
        %6604 = vmatpush1.bf16.msra.mxu0 %v6583
        %6605 = vmatprep.subr.bf16.mxu0 0
        %6606 = vmatpush1.bf16.msra.mxu0 %v6584
        %6607 = vmatprep.subr.bf16.mxu0 0
        %6608 = vmatpush1.bf16.msra.mxu0 %v6585
        %6609 = vmatprep.subr.bf16.mxu0 0
        %6610 = vmatpush1.bf16.msra.mxu0 %v6586
        %6611 = vmatprep.subr.bf16.mxu0 0
        %6612 = vmatpush1.bf16.msra.mxu0 0
        %6613 = vmatprep.subr.bf16.mxu0 0
        %6614 = vmatpush1.bf16.msra.mxu0 0
        %6615 = vmatprep.subr.bf16.mxu0 0
        %6616 = vmatpush1.bf16.msra.mxu0 0
        %6617 = vmatprep.subr.bf16.mxu0 0
        %6618 = vmatpush1.bf16.msra.mxu0 0
        %6619 = vmatprep.subr.bf16.mxu0 0
        %6620 = vmatpush1.bf16.msra.mxu0 0
        %6621 = vmatprep.subr.bf16.mxu0 0
        %6622 = vmatpush1.bf16.msra.mxu0 0
        %6623 = vmatprep.subr.bf16.mxu0 0
        %6624 = vmatpush1.bf16.msra.mxu0 0
        %6625 = vmatprep.subr.bf16.mxu0 0
        %6626 = vmatpush1.bf16.msra.mxu0 0
        %6627 = vmatprep.mubr.bf16.mxu0 0
        %6628 = vmatmul.mubr.bf16.gmra.mrb[0].mxu0 %v5078
        %v6629 = vpop.f32.mrb[0].mxu0
        %v6630 = vadd.f32 0.0, %v6629
        %v6631 = vpop.f32.mrb[0].mxu0
        %v6632 = vpop.f32.mrb[0].mxu0
        %v6633 = vpop.f32.mrb[0].mxu0
        %6634 = vdwg.mxu0
        %s6635 = scalar_lea.vmem %s7, 704
        %v6636 = vld [vmem:[%s6635] sm:$0xf]
        %v6637 = vld [vmem:[%s6635 + $0x4] sm:$0xf]
        %v6638 = vld [vmem:[%s6635 + $0x8] sm:$0xf]
        %v6639 = vld [vmem:[%s6635 + $0xc] sm:$0xf]
        %v6640 = vld [vmem:[%s6635 + $0x10] sm:$0xf]
        %v6641 = vld [vmem:[%s6635 + $0x14] sm:$0xf]
        %v6642 = vld [vmem:[%s6635 + $0x18] sm:$0xf]
        %v6643 = vld [vmem:[%s6635 + $0x1c] sm:$0xf]
        %v6644 = vld [vmem:[%s6635 + $0x20] sm:$0xf]
        %v6645 = vld [vmem:[%s6635 + $0x24] sm:$0xf]
        %v6646 = vld [vmem:[%s6635 + $0x28] sm:$0xf]
        %v6647 = vld [vmem:[%s6635 + $0x2c] sm:$0xf]
        %v6648 = vld [vmem:[%s6635 + $0x30] sm:$0xf]
        %v6649 = vld [vmem:[%s6635 + $0x34] sm:$0xf]
        %v6650 = vld [vmem:[%s6635 + $0x38] sm:$0xf]
        %v6651 = vld [vmem:[%s6635 + $0x3c] sm:$0xf]
        %v6668 = vunpack.c.l.b16 %v6636
        %v6669 = vunpack.c.l.b16 %v6637
        %v6670 = vunpack.c.l.b16 %v6638
        %v6671 = vunpack.c.l.b16 %v6639
        %v6672 = vunpack.c.l.b16 %v6640
        %v6673 = vunpack.c.l.b16 %v6641
        %v6674 = vunpack.c.l.b16 %v6642
        %v6675 = vunpack.c.l.b16 %v6643
        %v6676 = vunpack.c.l.b16 %v6644
        %v6677 = vunpack.c.l.b16 %v6645
        %v6678 = vunpack.c.l.b16 %v6646
        %v6679 = vunpack.c.l.b16 %v6647
        %v6680 = vunpack.c.l.b16 %v6648
        %v6681 = vunpack.c.l.b16 %v6649
        %v6682 = vunpack.c.l.b16 %v6650
        %v6683 = vunpack.c.l.b16 %v6651
        %v6684 = vpack.c.b16 %v6669, %v6668
        %v6685 = vpack.c.b16 %v6671, %v6670
        %v6686 = vpack.c.b16 %v6673, %v6672
        %v6687 = vpack.c.b16 %v6675, %v6674
        %v6688 = vpack.c.b16 %v6677, %v6676
        %v6689 = vpack.c.b16 %v6679, %v6678
        %v6690 = vpack.c.b16 %v6681, %v6680
        %v6691 = vpack.c.b16 %v6683, %v6682
        %6700 = vmatprep.subr.bf16.mxu0 0
        %6701 = vmatpush1.bf16.msra.mxu0 %v6684
        %6702 = vmatprep.subr.bf16.mxu0 0
        %6703 = vmatpush1.bf16.msra.mxu0 %v6685
        %6704 = vmatprep.subr.bf16.mxu0 0
        %6705 = vmatpush1.bf16.msra.mxu0 %v6686
        %6706 = vmatprep.subr.bf16.mxu0 0
        %6707 = vmatpush1.bf16.msra.mxu0 %v6687
        %6708 = vmatprep.subr.bf16.mxu0 0
        %6709 = vmatpush1.bf16.msra.mxu0 %v6688
        %6710 = vmatprep.subr.bf16.mxu0 0
        %6711 = vmatpush1.bf16.msra.mxu0 %v6689
        %6712 = vmatprep.subr.bf16.mxu0 0
        %6713 = vmatpush1.bf16.msra.mxu0 %v6690
        %6714 = vmatprep.subr.bf16.mxu0 0
        %6715 = vmatpush1.bf16.msra.mxu0 %v6691
        %6716 = vmatprep.subr.bf16.mxu0 0
        %6717 = vmatpush1.bf16.msra.mxu0 0
        %6718 = vmatprep.subr.bf16.mxu0 0
        %6719 = vmatpush1.bf16.msra.mxu0 0
        %6720 = vmatprep.subr.bf16.mxu0 0
        %6721 = vmatpush1.bf16.msra.mxu0 0
        %6722 = vmatprep.subr.bf16.mxu0 0
        %6723 = vmatpush1.bf16.msra.mxu0 0
        %6724 = vmatprep.subr.bf16.mxu0 0
        %6725 = vmatpush1.bf16.msra.mxu0 0
        %6726 = vmatprep.subr.bf16.mxu0 0
        %6727 = vmatpush1.bf16.msra.mxu0 0
        %6728 = vmatprep.subr.bf16.mxu0 0
        %6729 = vmatpush1.bf16.msra.mxu0 0
        %6730 = vmatprep.subr.bf16.mxu0 0
        %6731 = vmatpush1.bf16.msra.mxu0 0
        %6732 = vmatprep.mubr.bf16.mxu0 0
        %6733 = vmatmul.mubr.bf16.gmra.mrb[0].mxu0 %v5079
        %v6734 = vpop.f32.mrb[0].mxu0
        %v6735 = vadd.f32 0.0, %v6734
        %v6736 = vpop.f32.mrb[0].mxu0
        %v6737 = vpop.f32.mrb[0].mxu0
        %v6738 = vpop.f32.mrb[0].mxu0
        %6739 = vdwg.mxu0
        %s6740 = scalar_lea.vmem %s8, 704
        %v6741 = vld [vmem:[%s6740] sm:$0xf]
        %v6742 = vld [vmem:[%s6740 + $0x4] sm:$0xf]
        %v6743 = vld [vmem:[%s6740 + $0x8] sm:$0xf]
        %v6744 = vld [vmem:[%s6740 + $0xc] sm:$0xf]
        %v6745 = vld [vmem:[%s6740 + $0x10] sm:$0xf]
        %v6746 = vld [vmem:[%s6740 + $0x14] sm:$0xf]
        %v6747 = vld [vmem:[%s6740 + $0x18] sm:$0xf]
        %v6748 = vld [vmem:[%s6740 + $0x1c] sm:$0xf]
        %v6749 = vld [vmem:[%s6740 + $0x20] sm:$0xf]
        %v6750 = vld [vmem:[%s6740 + $0x24] sm:$0xf]
        %v6751 = vld [vmem:[%s6740 + $0x28] sm:$0xf]
        %v6752 = vld [vmem:[%s6740 + $0x2c] sm:$0xf]
        %v6753 = vld [vmem:[%s6740 + $0x30] sm:$0xf]
        %v6754 = vld [vmem:[%s6740 + $0x34] sm:$0xf]
        %v6755 = vld [vmem:[%s6740 + $0x38] sm:$0xf]
        %v6756 = vld [vmem:[%s6740 + $0x3c] sm:$0xf]
        %v6773 = vunpack.c.l.b16 %v6741
        %v6774 = vunpack.c.l.b16 %v6742
        %v6775 = vunpack.c.l.b16 %v6743
        %v6776 = vunpack.c.l.b16 %v6744
        %v6777 = vunpack.c.l.b16 %v6745
        %v6778 = vunpack.c.l.b16 %v6746
        %v6779 = vunpack.c.l.b16 %v6747
        %v6780 = vunpack.c.l.b16 %v6748
        %v6781 = vunpack.c.l.b16 %v6749
        %v6782 = vunpack.c.l.b16 %v6750
        %v6783 = vunpack.c.l.b16 %v6751
        %v6784 = vunpack.c.l.b16 %v6752
        %v6785 = vunpack.c.l.b16 %v6753
        %v6786 = vunpack.c.l.b16 %v6754
        %v6787 = vunpack.c.l.b16 %v6755
        %v6788 = vunpack.c.l.b16 %v6756
        %v6789 = vpack.c.b16 %v6774, %v6773
        %v6790 = vpack.c.b16 %v6776, %v6775
        %v6791 = vpack.c.b16 %v6778, %v6777
        %v6792 = vpack.c.b16 %v6780, %v6779
        %v6793 = vpack.c.b16 %v6782, %v6781
        %v6794 = vpack.c.b16 %v6784, %v6783
        %v6795 = vpack.c.b16 %v6786, %v6785
        %v6796 = vpack.c.b16 %v6788, %v6787
        %6805 = vmatprep.subr.bf16.mxu0 0
        %6806 = vmatpush1.bf16.msra.mxu0 %v6789
        %6807 = vmatprep.subr.bf16.mxu0 0
        %6808 = vmatpush1.bf16.msra.mxu0 %v6790
        %6809 = vmatprep.subr.bf16.mxu0 0
        %6810 = vmatpush1.bf16.msra.mxu0 %v6791
        %6811 = vmatprep.subr.bf16.mxu0 0
        %6812 = vmatpush1.bf16.msra.mxu0 %v6792
        %6813 = vmatprep.subr.bf16.mxu0 0
        %6814 = vmatpush1.bf16.msra.mxu0 %v6793
        %6815 = vmatprep.subr.bf16.mxu0 0
        %6816 = vmatpush1.bf16.msra.mxu0 %v6794
        %6817 = vmatprep.subr.bf16.mxu0 0
        %6818 = vmatpush1.bf16.msra.mxu0 %v6795
        %6819 = vmatprep.subr.bf16.mxu0 0
        %6820 = vmatpush1.bf16.msra.mxu0 %v6796
        %6821 = vmatprep.subr.bf16.mxu0 0
        %6822 = vmatpush1.bf16.msra.mxu0 0
        %6823 = vmatprep.subr.bf16.mxu0 0
        %6824 = vmatpush1.bf16.msra.mxu0 0
        %6825 = vmatprep.subr.bf16.mxu0 0
        %6826 = vmatpush1.bf16.msra.mxu0 0
        %6827 = vmatprep.subr.bf16.mxu0 0
        %6828 = vmatpush1.bf16.msra.mxu0 0
        %6829 = vmatprep.subr.bf16.mxu0 0
        %6830 = vmatpush1.bf16.msra.mxu0 0
        %6831 = vmatprep.subr.bf16.mxu0 0
        %6832 = vmatpush1.bf16.msra.mxu0 0
        %6833 = vmatprep.subr.bf16.mxu0 0
        %6834 = vmatpush1.bf16.msra.mxu0 0
        %6835 = vmatprep.subr.bf16.mxu0 0
        %6836 = vmatpush1.bf16.msra.mxu0 0
        %6837 = vmatprep.mubr.bf16.mxu0 0
        %6838 = vmatmul.mubr.bf16.gmra.mrb[0].mxu0 %v5079
        %v6839 = vpop.f32.mrb[0].mxu0
        %v6840 = vadd.f32 0.0, %v6839
        %v6841 = vpop.f32.mrb[0].mxu0
        %v6842 = vpop.f32.mrb[0].mxu0
        %v6843 = vpop.f32.mrb[0].mxu0
        %6844 = vdwg.mxu0
        %v6845 = vpack.c.bf16 %v6630, %v6630
        %v6846 = vpack.c.bf16 %v6735, %v6735
        %v6848 = vsel %vm924, %v6845, 0
        %v6851 = vsel %vm924, %v6846, 0
        %6853 = vmatprep.subr.bf16.mxu0 0
        %6854 = vmatpush1.bf16.xpose.msra.mxu0 %v6851
        %6855 = vmatprep.subr.bf16.mxu0 0
        %6856 = vmatpush1.bf16.xpose.msra.mxu0 0
        %6857 = vmatprep.subr.bf16.mxu0 0
        %6858 = vmatpush1.bf16.xpose.msra.mxu0 0
        %6859 = vmatprep.subr.bf16.mxu0 0
        %6860 = vmatpush1.bf16.xpose.msra.mxu0 0
        %6861 = vmatprep.subr.bf16.mxu0 0
        %6862 = vmatpush1.bf16.xpose.msra.mxu0 0
        %6863 = vmatprep.subr.bf16.mxu0 0
        %6864 = vmatpush1.bf16.xpose.msra.mxu0 0
        %6865 = vmatprep.subr.bf16.mxu0 0
        %6866 = vmatpush1.bf16.xpose.msra.mxu0 0
        %6867 = vmatprep.subr.bf16.mxu0 0
        %6868 = vmatpush1.bf16.xpose.msra.mxu0 0
        %6869 = vmatprep.subr.bf16.mxu0 0
        %6870 = vmatpush1.bf16.xpose.msra.mxu0 0
        %6871 = vmatprep.subr.bf16.mxu0 0
        %6872 = vmatpush1.bf16.xpose.msra.mxu0 0
        %6873 = vmatprep.subr.bf16.mxu0 0
        %6874 = vmatpush1.bf16.xpose.msra.mxu0 0
        %6875 = vmatprep.subr.bf16.mxu0 0
        %6876 = vmatpush1.bf16.xpose.msra.mxu0 0
        %6877 = vmatprep.subr.bf16.mxu0 0
        %6878 = vmatpush1.bf16.xpose.msra.mxu0 0
        %6879 = vmatprep.subr.bf16.mxu0 0
        %6880 = vmatpush1.bf16.xpose.msra.mxu0 0
        %6881 = vmatprep.subr.bf16.mxu0 0
        %6882 = vmatpush1.bf16.xpose.msra.mxu0 0
        %6883 = vmatprep.subr.bf16.mxu0 0
        %6884 = vmatpush1.bf16.xpose.msra.mxu0 0
        %6885 = vmatprep.mubr.bf16.mxu0 0
        %6886 = vmatmul.mubr.bf16.gmra.mrb[0].mxu0 %v6848
        %v6887 = vpop.f32.mrb[0].mxu0
        %v6888 = vadd.f32 0.0, %v6887
        %v6889 = vpop.f32.mrb[0].mxu0
        %v6890 = vpop.f32.mrb[0].mxu0
        %v6891 = vpop.f32.mrb[0].mxu0
        %6892 = vdwg.mxu0
        %v6893 = vsel %vm979, %v6888, -inf
        %6894 = vmax.xlane.f32.xlu0 %v6893
        %v6895 = vpop.xlane.xlu0 %6894
        %v6896 = vsub.f32 %v6888, %v6895
        %v6897 = vmul.f32 %v6896, 1.442695
        %v6898 = vpow.pop %v6897
        %v6899 = vsel %vm979, %v6898, 0.0
        %6900 = vadd.xlane.f32.xlu0 %v6899
        %v6901 = vpop.xlane.xlu0 %6900
        %v6902 = vrcp.pop %v6901
        %v6903 = vmul.f32 %v6898, %v6902
        %v6904 = vpack.c.bf16 %v6903, %v6903
        %v6905 = vpack.c.bf16 %v6840, %v6840
        %v6907 = vsel %vm979, %v6904, 0
        %v6910 = vsel %vm996, %v6905, 0
        %6912 = vmatprep.subr.bf16.mxu0 0
        %6913 = vmatpush1.bf16.msra.mxu0 %v6910
        %6914 = vmatprep.subr.bf16.mxu0 0
        %6915 = vmatpush1.bf16.msra.mxu0 0
        %6916 = vmatprep.subr.bf16.mxu0 0
        %6917 = vmatpush1.bf16.msra.mxu0 0
        %6918 = vmatprep.subr.bf16.mxu0 0
        %6919 = vmatpush1.bf16.msra.mxu0 0
        %6920 = vmatprep.subr.bf16.mxu0 0
        %6921 = vmatpush1.bf16.msra.mxu0 0
        %6922 = vmatprep.subr.bf16.mxu0 0
        %6923 = vmatpush1.bf16.msra.mxu0 0
        %6924 = vmatprep.subr.bf16.mxu0 0
        %6925 = vmatpush1.bf16.msra.mxu0 0
        %6926 = vmatprep.subr.bf16.mxu0 0
        %6927 = vmatpush1.bf16.msra.mxu0 0
        %6928 = vmatprep.subr.bf16.mxu0 0
        %6929 = vmatpush1.bf16.msra.mxu0 0
        %6930 = vmatprep.subr.bf16.mxu0 0
        %6931 = vmatpush1.bf16.msra.mxu0 0
        %6932 = vmatprep.subr.bf16.mxu0 0
        %6933 = vmatpush1.bf16.msra.mxu0 0
        %6934 = vmatprep.subr.bf16.mxu0 0
        %6935 = vmatpush1.bf16.msra.mxu0 0
        %6936 = vmatprep.subr.bf16.mxu0 0
        %6937 = vmatpush1.bf16.msra.mxu0 0
        %6938 = vmatprep.subr.bf16.mxu0 0
        %6939 = vmatpush1.bf16.msra.mxu0 0
        %6940 = vmatprep.subr.bf16.mxu0 0
        %6941 = vmatpush1.bf16.msra.mxu0 0
        %6942 = vmatprep.subr.bf16.mxu0 0
        %6943 = vmatpush1.bf16.msra.mxu0 0
        %6944 = vmatprep.mubr.bf16.mxu0 0
        %6945 = vmatmul.mubr.bf16.gmra.mrb[0].mxu0 %v6907
        %v6946 = vpop.f32.mrb[0].mxu0
        %v6947 = vadd.f32 0.0, %v6946
        %v6948 = vpop.f32.mrb[0].mxu0
        %v6949 = vpop.f32.mrb[0].mxu0
        %v6950 = vpop.f32.mrb[0].mxu0
        %6951 = vdwg.mxu0
        %v6952 = vpack.c.bf16 %v6947, %v6947
        %s6953 = scalar_lea.vmem %s9, 176
        %v6954 = vld [vmem:[%s6953] sm:$0xf]
        %v6955 = vld [vmem:[%s6953 + $0x4] sm:$0xf]
        %v6956 = vld [vmem:[%s6953 + $0x8] sm:$0xf]
        %v6957 = vld [vmem:[%s6953 + $0xc] sm:$0xf]
        %v6962 = vunpack.c.l.b16 %v6954
        %v6963 = vunpack.c.l.b16 %v6955
        %v6964 = vunpack.c.l.b16 %v6956
        %v6965 = vunpack.c.l.b16 %v6957
        %v6966 = vpack.c.b16 %v6963, %v6962
        %v6967 = vpack.c.b16 %v6965, %v6964
        %v6971 = vsel %vm924, %v6952, 0
        %6973 = vmatprep.subr.bf16.mxu0 0
        %6974 = vmatpush1.bf16.msra.mxu0 %v6966
        %6975 = vmatprep.subr.bf16.mxu0 0
        %6976 = vmatpush1.bf16.msra.mxu0 %v6967
        %6977 = vmatprep.subr.bf16.mxu0 0
        %6978 = vmatpush1.bf16.msra.mxu0 0
        %6979 = vmatprep.subr.bf16.mxu0 0
        %6980 = vmatpush1.bf16.msra.mxu0 0
        %6981 = vmatprep.subr.bf16.mxu0 0
        %6982 = vmatpush1.bf16.msra.mxu0 0
        %6983 = vmatprep.subr.bf16.mxu0 0
        %6984 = vmatpush1.bf16.msra.mxu0 0
        %6985 = vmatprep.subr.bf16.mxu0 0
        %6986 = vmatpush1.bf16.msra.mxu0 0
        %6987 = vmatprep.subr.bf16.mxu0 0
        %6988 = vmatpush1.bf16.msra.mxu0 0
        %6989 = vmatprep.subr.bf16.mxu0 0
        %6990 = vmatpush1.bf16.msra.mxu0 0
        %6991 = vmatprep.subr.bf16.mxu0 0
        %6992 = vmatpush1.bf16.msra.mxu0 0
        %6993 = vmatprep.subr.bf16.mxu0 0
        %6994 = vmatpush1.bf16.msra.mxu0 0
        %6995 = vmatprep.subr.bf16.mxu0 0
        %6996 = vmatpush1.bf16.msra.mxu0 0
        %6997 = vmatprep.subr.bf16.mxu0 0
        %6998 = vmatpush1.bf16.msra.mxu0 0
        %6999 = vmatprep.subr.bf16.mxu0 0
        %7000 = vmatpush1.bf16.msra.mxu0 0
        %7001 = vmatprep.subr.bf16.mxu0 0
        %7002 = vmatpush1.bf16.msra.mxu0 0
        %7003 = vmatprep.subr.bf16.mxu0 0
        %7004 = vmatpush1.bf16.msra.mxu0 0
        %7005 = vmatprep.mubr.bf16.mxu0 0
        %7006 = vmatmul.mubr.bf16.gmra.mrb[0].mxu0 %v6971
        %v7007 = vpop.f32.mrb[0].mxu0
        %v7008 = vadd.f32 0.0, %v7007
        %v7009 = vpop.f32.mrb[0].mxu0
        %v7010 = vpop.f32.mrb[0].mxu0
        %v7011 = vpop.f32.mrb[0].mxu0
        %7012 = vdwg.mxu0
        %v7013 = vadd.f32 %v6529, %v7008
        %v7014 = vadd.f32 %v577, %v7013
        %s7015 = scalar_lea.vmem %s10, 2
        %v7016 = vld [vmem:[%s7015] sm:$0x1]
        %v7018 = vlaneseq
        %v7019 = vshrl.u32 %v7018, 7
        %v7020 = vsub.s32 0, %v7019
        %v7021 = vrot.slane %v7016, %v7020
        %v7023 = vadd.f32 %v7014, %v7021
        %s7024 = scalar_lea.vmem %s11, 2
        %v7025 = vld [vmem:[%s7024] sm:$0x1]
        %s7026 = scalar_lea.vmem %s12, 2
        %v7027 = vld [vmem:[%s7026] sm:$0x1]
        %7028 = vadd.xlane.f32.xlu0 %v7023
        %v7029 = vpop.xlane.xlu0 %7028
        %v7030 = vmul.f32 %v7029, %v584
        %v7031 = vsub.f32 %v7023, %v7030
        %v7032 = vmul.f32 %v7031, %v7031
        %7033 = vadd.xlane.f32.xlu0 %v7032
        %v7034 = vpop.xlane.xlu0 %7033
        %v7035 = vmul.f32 %v7034, %v584
        %v7036 = vadd.f32 %v7035, 1e-05
        %v7037 = vrsqrt.pop %v7036
        %v7038 = vmul.f32 %v7031, %v7037
        %v7040 = vlaneseq
        %v7041 = vshrl.u32 %v7040, 7
        %v7042 = vsub.s32 0, %v7041
        %v7043 = vrot.slane %v7025, %v7042
        %v7045 = vmul.f32 %v7038, %v7043
        %v7047 = vlaneseq
        %v7048 = vshrl.u32 %v7047, 7
        %v7049 = vsub.s32 0, %v7048
        %v7050 = vrot.slane %v7027, %v7049
        %v7052 = vadd.f32 %v7045, %v7050
        %v7053 = vpack.c.bf16 %v7052, %v7052
        %s7054 = scalar_lea.vmem %s13, 128
        %v7055 = vld [vmem:[%s7054] sm:$0xf]
        %v7056 = vld [vmem:[%s7054 + $0x4] sm:$0xf]
        %v7057 = vld [vmem:[%s7054 + $0x8] sm:$0xf]
        %v7058 = vld [vmem:[%s7054 + $0xc] sm:$0xf]
        %v7059 = vld [vmem:[%s7054 + $0x10] sm:$0xf]
        %v7060 = vld [vmem:[%s7054 + $0x14] sm:$0xf]
        %v7061 = vld [vmem:[%s7054 + $0x18] sm:$0xf]
        %v7062 = vld [vmem:[%s7054 + $0x1c] sm:$0xf]
        %v7063 = vld [vmem:[%s7054 + $0x20] sm:$0xf]
        %v7064 = vld [vmem:[%s7054 + $0x24] sm:$0xf]
        %v7065 = vld [vmem:[%s7054 + $0x28] sm:$0xf]
        %v7066 = vld [vmem:[%s7054 + $0x2c] sm:$0xf]
        %v7067 = vld [vmem:[%s7054 + $0x30] sm:$0xf]
        %v7068 = vld [vmem:[%s7054 + $0x34] sm:$0xf]
        %v7069 = vld [vmem:[%s7054 + $0x38] sm:$0xf]
        %v7070 = vld [vmem:[%s7054 + $0x3c] sm:$0xf]
        %s7071 = scalar_lea.vmem %s14, 2
        %v7072 = vld [vmem:[%s7071] sm:$0x1]
        %v7074 = vlaneseq
        %v7075 = vshrl.u32 %v7074, 7
        %v7076 = vsub.s32 0, %v7075
        %v7077 = vrot.slane %v7072, %v7076
        %v7095 = vunpack.c.l.b16 %v7055
        %v7096 = vunpack.c.l.b16 %v7056
        %v7097 = vunpack.c.l.b16 %v7057
        %v7098 = vunpack.c.l.b16 %v7058
        %v7099 = vunpack.c.l.b16 %v7059
        %v7100 = vunpack.c.l.b16 %v7060
        %v7101 = vunpack.c.l.b16 %v7061
        %v7102 = vunpack.c.l.b16 %v7062
        %v7103 = vunpack.c.l.b16 %v7063
        %v7104 = vunpack.c.l.b16 %v7064
        %v7105 = vunpack.c.l.b16 %v7065
        %v7106 = vunpack.c.l.b16 %v7066
        %v7107 = vunpack.c.l.b16 %v7067
        %v7108 = vunpack.c.l.b16 %v7068
        %v7109 = vunpack.c.l.b16 %v7069
        %v7110 = vunpack.c.l.b16 %v7070
        %v7111 = vpack.c.b16 %v7096, %v7095
        %v7112 = vpack.c.b16 %v7098, %v7097
        %v7113 = vpack.c.b16 %v7100, %v7099
        %v7114 = vpack.c.b16 %v7102, %v7101
        %v7115 = vpack.c.b16 %v7104, %v7103
        %v7116 = vpack.c.b16 %v7106, %v7105
        %v7117 = vpack.c.b16 %v7108, %v7107
        %v7118 = vpack.c.b16 %v7110, %v7109
        %7127 = vmatprep.subr.bf16.mxu0 0
        %7128 = vmatpush1.bf16.msra.mxu0 %v7111
        %7129 = vmatprep.subr.bf16.mxu0 0
        %7130 = vmatpush1.bf16.msra.mxu0 %v7112
        %7131 = vmatprep.subr.bf16.mxu0 0
        %7132 = vmatpush1.bf16.msra.mxu0 %v7113
        %7133 = vmatprep.subr.bf16.mxu0 0
        %7134 = vmatpush1.bf16.msra.mxu0 %v7114
        %7135 = vmatprep.subr.bf16.mxu0 0
        %7136 = vmatpush1.bf16.msra.mxu0 %v7115
        %7137 = vmatprep.subr.bf16.mxu0 0
        %7138 = vmatpush1.bf16.msra.mxu0 %v7116
        %7139 = vmatprep.subr.bf16.mxu0 0
        %7140 = vmatpush1.bf16.msra.mxu0 %v7117
        %7141 = vmatprep.subr.bf16.mxu0 0
        %7142 = vmatpush1.bf16.msra.mxu0 %v7118
        %7143 = vmatprep.subr.bf16.mxu0 0
        %7144 = vmatpush1.bf16.msra.mxu0 0
        %7145 = vmatprep.subr.bf16.mxu0 0
        %7146 = vmatpush1.bf16.msra.mxu0 0
        %7147 = vmatprep.subr.bf16.mxu0 0
        %7148 = vmatpush1.bf16.msra.mxu0 0
        %7149 = vmatprep.subr.bf16.mxu0 0
        %7150 = vmatpush1.bf16.msra.mxu0 0
        %7151 = vmatprep.subr.bf16.mxu0 0
        %7152 = vmatpush1.bf16.msra.mxu0 0
        %7153 = vmatprep.subr.bf16.mxu0 0
        %7154 = vmatpush1.bf16.msra.mxu0 0
        %7155 = vmatprep.subr.bf16.mxu0 0
        %7156 = vmatpush1.bf16.msra.mxu0 0
        %7157 = vmatprep.subr.bf16.mxu0 0
        %7158 = vmatpush1.bf16.msra.mxu0 0
        %7159 = vmatprep.mubr.bf16.mxu0 0
        %7160 = vmatmul.mubr.bf16.gmra.mrb[0].mxu0 %v7053
        %v7161 = vpop.f32.mrb[0].mxu0
        %v7162 = vadd.f32 %v7077, %v7161
        %v7163 = vpop.f32.mrb[0].mxu0
        %v7164 = vpop.f32.mrb[0].mxu0
        %v7165 = vpop.f32.mrb[0].mxu0
        %7166 = vdwg.mxu0
        %v7167 = vmax.f32 %v7162, 0.0
        %v7168 = vpack.c.bf16 %v7167, %v7167
        %s7169 = scalar_lea.vmem %s15, 128
        %v7170 = vld [vmem:[%s7169] sm:$0xf]
        %v7171 = vld [vmem:[%s7169 + $0x4] sm:$0xf]
        %v7172 = vld [vmem:[%s7169 + $0x8] sm:$0xf]
        %v7173 = vld [vmem:[%s7169 + $0xc] sm:$0xf]
        %v7174 = vld [vmem:[%s7169 + $0x10] sm:$0xf]
        %v7175 = vld [vmem:[%s7169 + $0x14] sm:$0xf]
        %v7176 = vld [vmem:[%s7169 + $0x18] sm:$0xf]
        %v7177 = vld [vmem:[%s7169 + $0x1c] sm:$0xf]
        %v7178 = vld [vmem:[%s7169 + $0x20] sm:$0xf]
        %v7179 = vld [vmem:[%s7169 + $0x24] sm:$0xf]
        %v7180 = vld [vmem:[%s7169 + $0x28] sm:$0xf]
        %v7181 = vld [vmem:[%s7169 + $0x2c] sm:$0xf]
        %v7182 = vld [vmem:[%s7169 + $0x30] sm:$0xf]
        %v7183 = vld [vmem:[%s7169 + $0x34] sm:$0xf]
        %v7184 = vld [vmem:[%s7169 + $0x38] sm:$0xf]
        %v7185 = vld [vmem:[%s7169 + $0x3c] sm:$0xf]
        %s7186 = scalar_lea.vmem %s16, 2
        %v7187 = vld [vmem:[%s7186] sm:$0x1]
        %v7189 = vlaneseq
        %v7190 = vshrl.u32 %v7189, 7
        %v7191 = vsub.s32 0, %v7190
        %v7192 = vrot.slane %v7187, %v7191
        %v7210 = vunpack.c.l.b16 %v7170
        %v7211 = vunpack.c.l.b16 %v7171
        %v7212 = vunpack.c.l.b16 %v7172
        %v7213 = vunpack.c.l.b16 %v7173
        %v7214 = vunpack.c.l.b16 %v7174
        %v7215 = vunpack.c.l.b16 %v7175
        %v7216 = vunpack.c.l.b16 %v7176
        %v7217 = vunpack.c.l.b16 %v7177
        %v7218 = vunpack.c.l.b16 %v7178
        %v7219 = vunpack.c.l.b16 %v7179
        %v7220 = vunpack.c.l.b16 %v7180
        %v7221 = vunpack.c.l.b16 %v7181
        %v7222 = vunpack.c.l.b16 %v7182
        %v7223 = vunpack.c.l.b16 %v7183
        %v7224 = vunpack.c.l.b16 %v7184
        %v7225 = vunpack.c.l.b16 %v7185
        %v7226 = vpack.c.b16 %v7211, %v7210
        %v7227 = vpack.c.b16 %v7213, %v7212
        %v7228 = vpack.c.b16 %v7215, %v7214
        %v7229 = vpack.c.b16 %v7217, %v7216
        %v7230 = vpack.c.b16 %v7219, %v7218
        %v7231 = vpack.c.b16 %v7221, %v7220
        %v7232 = vpack.c.b16 %v7223, %v7222
        %v7233 = vpack.c.b16 %v7225, %v7224
        %7242 = vmatprep.subr.bf16.mxu0 0
        %7243 = vmatpush1.bf16.msra.mxu0 %v7226
        %7244 = vmatprep.subr.bf16.mxu0 0
        %7245 = vmatpush1.bf16.msra.mxu0 %v7227
        %7246 = vmatprep.subr.bf16.mxu0 0
        %7247 = vmatpush1.bf16.msra.mxu0 %v7228
        %7248 = vmatprep.subr.bf16.mxu0 0
        %7249 = vmatpush1.bf16.msra.mxu0 %v7229
        %7250 = vmatprep.subr.bf16.mxu0 0
        %7251 = vmatpush1.bf16.msra.mxu0 %v7230
        %7252 = vmatprep.subr.bf16.mxu0 0
        %7253 = vmatpush1.bf16.msra.mxu0 %v7231
        %7254 = vmatprep.subr.bf16.mxu0 0
        %7255 = vmatpush1.bf16.msra.mxu0 %v7232
        %7256 = vmatprep.subr.bf16.mxu0 0
        %7257 = vmatpush1.bf16.msra.mxu0 %v7233
        %7258 = vmatprep.subr.bf16.mxu0 0
        %7259 = vmatpush1.bf16.msra.mxu0 0
        %7260 = vmatprep.subr.bf16.mxu0 0
        %7261 = vmatpush1.bf16.msra.mxu0 0
        %7262 = vmatprep.subr.bf16.mxu0 0
        %7263 = vmatpush1.bf16.msra.mxu0 0
        %7264 = vmatprep.subr.bf16.mxu0 0
        %7265 = vmatpush1.bf16.msra.mxu0 0
        %7266 = vmatprep.subr.bf16.mxu0 0
        %7267 = vmatpush1.bf16.msra.mxu0 0
        %7268 = vmatprep.subr.bf16.mxu0 0
        %7269 = vmatpush1.bf16.msra.mxu0 0
        %7270 = vmatprep.subr.bf16.mxu0 0
        %7271 = vmatpush1.bf16.msra.mxu0 0
        %7272 = vmatprep.subr.bf16.mxu0 0
        %7273 = vmatpush1.bf16.msra.mxu0 0
        %7274 = vmatprep.mubr.bf16.mxu0 0
        %7275 = vmatmul.mubr.bf16.gmra.mrb[0].mxu0 %v7168
        %v7276 = vpop.f32.mrb[0].mxu0
        %v7277 = vadd.f32 %v7192, %v7276
        %v7278 = vpop.f32.mrb[0].mxu0
        %v7279 = vpop.f32.mrb[0].mxu0
        %v7280 = vpop.f32.mrb[0].mxu0
        %7281 = vdwg.mxu0
        %v7282 = vadd.f32 %v7023, %v7277
        %7283 = vst [vmem:[%s563] sm:$0xff] %v7282
        %s7284 = sand.u32 %s411, 1
        %s7285 = scalar_lea.sflag [#allocation3], %s7284
        %s7286 = sand.u32 %s411, 1
        %s7287 = smul.addr %s7286, 8
        %s7288 = scalar_lea.vmem [#allocation2], %s7287
        // Predicated region
        $region89: #{conv_layer_forward.1} parent=87 // pred_check
          %p7289 = pneg %p421
        $region90: #{conv_layer_forward.1} parent=87 // pred_check_branch
          %7291 = sbr.rel (%p7289) target = $region92
        $region91: #{conv_layer_forward.1} parent=87 // pred_region
          %s7293 = ssub.s32 128, 128
          %7294 = vsyncadd %s7285, %s7293
          %s7295 = smul.addr %s31, 128
          %s7296 = scalar_lea.hbm %s17, %s7295
          %s7298 = sshll.u32 %s7288, 4
          %s7299 = int_to_ptr.vmem [resolvable:$true] %s7298
          %7301 = dma.vmem_to_hbm [thread:$0]  %s7299, 128, %s7296, %s7285
        $region92: #{conv_layer_forward.1} parent=87 // pred_fallthru
          _
      $region88: #{conv_layer_forward.1} parent=5 // pred_fallthru
        _
      %p7302 = scmp.le.s32.totalorder 2, %s26
      // Predicated region
      $region93: #{conv_layer_forward.1} parent=5 // pred_check
        %p7303 = pneg %p7302
      $region94: #{conv_layer_forward.1} parent=5 // pred_check_branch
        %7305 = sbr.rel (%p7303) target = $region96
      $region95: #{conv_layer_forward.1} parent=5 // pred_region
        %s7306 = ssub.s32 %s26, 2
        // Predicated region
        $region97: #{conv_layer_forward.1} parent=95 // pred_check
          %p7307 = pneg %p427
        $region98: #{conv_layer_forward.1} parent=95 // pred_check_branch
          %7309 = sbr.rel (%p7307) target = $region100
        $region99: #{conv_layer_forward.1} parent=95 // pred_region
          %s7310 = sand.u32 %s412, 1
          %s7311 = scalar_lea.sflag [#allocation3], %s7310
          %s7312 = sand.u32 %s412, 1
          %s7313 = smul.addr %s7312, 8
          %s7314 = scalar_lea.vmem [#allocation2], %s7313
          %7315 = dma.done %s7311, 128
        $region100: #{conv_layer_forward.1} parent=95 // pred_fallthru
          _
      $region96: #{conv_layer_forward.1} parent=5 // pred_fallthru
        _
    $region6: #{conv_layer_forward.1} parent=1 // loop_footer
      %s30 = sadd.s32 1, %s26
    $region7: #{conv_layer_forward.1} parent=1 // loop_footer_branch
      %25 = sbr.rel target = $region3
    $region8: #{conv_layer_forward.1} parent=1 // loop_exit
      _
    %7316 = vsyncpa [#allocation3], 1
    %s7317 = scalar_lea.sflag [#allocation3], 1
    %7318 = vsyncpa %s7317, 1

</llo_original>
